<compile_context>
chip_gen: v7x
topology: tpu7x:2x2x1
jax: 0.10.0
libtpu: 0.0.40
codegen_flags: <defaults>
</compile_context>

<pallas_src>
import numpy as np
import jax
import jax.numpy as jnp
from jax.experimental import pallas as pl
from jax.experimental.pallas import tpu as pltpu


BATCH = 2
IN_HW = 16

# (Cin, Cout, stride) for layer1..layer18 of the PyTorch VGG module.
LAYER_CFG = [
    (4, 16, 1), (16, 16, 1), (16, 32, 2), (32, 32, 1), (32, 32, 1),
    (32, 64, 2), (64, 64, 1), (64, 64, 1), (64, 128, 2), (128, 128, 1),
    (128, 128, 1), (128, 256, 2), (256, 256, 1), (256, 256, 1),
    (256, 512, 2), (512, 512, 1), (512, 512, 1), (512, 512, 1),
]

FEATURE_IDX = (7, 10, 13, 17)     # layers 8, 11, 14, 18 (0-based)
TAIL_START = 15                   # layers 16-18 streamed via manual DMA
N_TAIL = 3
MAX_M = BATCH * IN_HW             # 32 rows max
N_CONV = 12                       # layers 1-12 have spatial extent > 1
MAX_COUT_LANES = 512              # max W_out*Cout over all layers


def _layer_specs():
    specs = []
    h = w = IN_HW
    for cin, cout, stride in LAYER_CFG:
        ho = (h - 1) // stride + 1
        wo = (w - 1) // stride + 1
        specs.append((cin, cout, stride, h, w, ho, wo))
        h, w = ho, wo
    return tuple(specs)


LAYER_SPECS = _layer_specs()


def _active_dys(spec):
    """dy taps that read at least one real (non-padding) input row."""
    _cin, _cout, stride, hi, _wi, ho, _wo = spec
    return tuple(dy for dy in range(3)
                 if any(0 <= stride * y + dy - 1 < hi for y in range(ho)))


# ------------------------------ fused kernel ------------------------------ #

def _vgg_fused_kernel(x_ref, t_ref, b_ref, *rest):
    # Operand layout (see pallas_call below):
    w_refs = rest[:TAIL_START]                    # 15 per-layer weights (VMEM)
    w_tail_hbm = rest[TAIL_START]                 # (3, 512, 512) bf16 in HBM
    out_refs = rest[TAIL_START + 1:TAIL_START + 5]  # features A, B, C, D (f32)
    w_tail_vmem = rest[TAIL_START + 5]            # VMEM scratch for tail weights
    tail_sem = rest[TAIL_START + 6]               # DMA semaphore

    # Prefetch the 512x512 tail weights (layers 16-18) so their HBM read
    # overlaps the compute of layers 1-15 instead of delaying kernel start.
    tail_copy = pltpu.make_async_copy(w_tail_hbm, w_tail_vmem, tail_sem)
    tail_copy.start()

    x = x_ref[...]                                # (N*16, 16*4) bf16
    feat = 0
    for idx, spec in enumerate(LAYER_SPECS):
        cin, cout, stride, hi, wi, ho, wo = spec
        m_in, m_out, k_out = BATCH * hi, BATCH * ho, wo * cout

        if hi == 1 and wi == 1:
            # 3x3 conv with pad=1 on a 1x1 map touches only the centre tap
            # (stride 1 and 2 alike): a single (N, Cin) @ (Cin, Cout) matmul.
            if idx >= TAIL_START:
                if idx == TAIL_START:
                    tail_copy.wait()
                a = w_tail_vmem[idx - TAIL_START]
            else:
                a = w_refs[idx][...]
            acc = jnp.dot(x, a, preferred_element_type=jnp.float32)
        else:
            acc = None
            for j, dy in enumerate(_active_dys(spec)):
                if stride == 1 and dy == 1:
                    tap = x                       # dy=1 row shift is identity
                else:
                    # Exact 0/1 row-gather (handles dy shift, y-stride and
                    # zero padding at the image borders) done on the MXU.
                    t = t_ref[idx, dy, :m_out, :m_in]
                    tap = jnp.dot(t, x, preferred_element_type=jnp.float32)
                    tap = tap.astype(jnp.bfloat16)    # lossless (gathered bf16)
                # Banded weight folds the dx taps, x-stride and x-padding, so
                # this is a plain (m_out, W_in*Cin) @ (W_in*Cin, W_out*Cout).
                part = jnp.dot(tap, w_refs[idx][j],
                               preferred_element_type=jnp.float32)
                acc = part if acc is None else acc + part

        # Folded-BN bias + ReLU epilogue (scale already folded into weights).
        y = jnp.maximum(acc + b_ref[idx:idx + 1, :k_out], 0.0)     # f32
        if idx in FEATURE_IDX:
            out_refs[feat][...] = y
            feat += 1
        x = y.astype(jnp.bfloat16)               # bf16 intermediate storage


# ----------------------------- model / params ----------------------------- #

def init_params(key):
    """Builds kernel-ready parameters and matching reference parameters.

    kernel params (dict):
      t      : (12, 3, 32, 32) bf16  -- 0/1 row-gather matrices (padded)
      b      : (18, 512)       f32   -- folded BN bias, tiled over W_out
      ws     : 15 arrays             -- layers 1-12: (n_taps, W_in*Cin, W_out*Cout)
                                        layers 13-15: centre-tap (Cin, Cout)
      w_tail : (3, 512, 512)   bf16  -- centre-tap weights for layers 16-18
    reference params: list of (w_scaled_bf16 (Cout,Cin,3,3), bias (Cout,))
    """
    eps = 1e-5
    kernel_ws, tail_ws, rparams = [], [], []
    t_stack = np.zeros((N_CONV, 3, MAX_M, MAX_M), np.float32)
    b_stack = np.zeros((len(LAYER_CFG), MAX_COUT_LANES), np.float32)

    for idx, spec in enumerate(LAYER_SPECS):
        cin, cout, stride, hi, wi, ho, wo = spec
        key, kw, kb, kg, kbt, km = jax.random.split(key, 6)
        w = jax.random.normal(kw, (cout, cin, 3, 3), jnp.float32) / jnp.sqrt(9.0 * cin)
        conv_b = 0.01 * jax.random.normal(kb, (cout,), jnp.float32)
        gamma = 1.0 + 0.1 * jax.random.normal(kg, (cout,), jnp.float32)
        beta = 0.1 * jax.random.normal(kbt, (cout,), jnp.float32)
        running_mean = 0.1 * jax.random.normal(km, (cout,), jnp.float32)
        running_var = jnp.ones((cout,), jnp.float32)

        scale = gamma / jnp.sqrt(running_var + eps)
        bias = scale * (conv_b - running_mean) + beta
        # Fold the BN scale into the conv weight in f32 BEFORE the bf16 cast.
        w_scaled_bf16 = (w * scale[:, None, None, None]).astype(jnp.bfloat16)
        rparams.append((w_scaled_bf16, bias))

        w_np = np.asarray(w_scaled_bf16.astype(jnp.float32))     # exact bf16 values
        bias_np = np.asarray(bias)
        b_stack[idx, :wo * cout] = np.tile(bias_np, wo)

        if hi == 1 and wi == 1:
            # Pre-sliced centre tap (Cin, Cout).
            a = np.ascontiguousarray(w_np[:, :, 1, 1].T)
            arr = jnp.asarray(a, dtype=jnp.bfloat16)
            (tail_ws if idx >= TAIL_START else kernel_ws).append(arr)
        else:
            active = _active_dys(spec)
            a = np.zeros((len(active), wi * cin, wo * cout), np.float32)
            for j, dy in enumerate(active):
                for x_out in range(wo):
                    for dx in range(3):
                        x_in = stride * x_out + dx - 1
                        if 0 <= x_in < wi:
                            a[j, x_in * cin:(x_in + 1) * cin,
                                 x_out * cout:(x_out + 1) * cout] = w_np[:, :, dy, dx].T
                for n in range(BATCH):
                    for y_out in range(ho):
                        y_in = stride * y_out + dy - 1
                        if 0 <= y_in < hi:
                            t_stack[idx, dy, n * ho + y_out, n * hi + y_in] = 1.0
            kernel_ws.append(jnp.asarray(a, dtype=jnp.bfloat16))

    kparams = dict(
        t=jnp.asarray(t_stack, dtype=jnp.bfloat16),
        b=jnp.asarray(b_stack, dtype=jnp.float32),
        ws=tuple(kernel_ws),
        w_tail=jnp.stack(tail_ws, axis=0),
    )
    return kparams, rparams


def vgg_forward(x_nchw, kp):
    """Matches VGG.forward: returns [A, B, C, D] in NCHW (float32)."""
    n = x_nchw.shape[0]
    assert n == BATCH
    x = jnp.transpose(x_nchw, (0, 2, 3, 1)).astype(jnp.bfloat16)
    x = x.reshape(n * IN_HW, IN_HW * LAYER_CFG[0][0])          # (32, 64)

    feat_specs = []
    for idx in FEATURE_IDX:
        _, cout, _, _, _, ho, wo = LAYER_SPECS[idx]
        feat_specs.append((ho, wo, cout))
    out_shape = tuple(jax.ShapeDtypeStruct((n * ho, wo * cout), jnp.float32)
                      for ho, wo, cout in feat_specs)

    n_vmem_in = 3 + len(kp["ws"])
    in_specs = ([pl.BlockSpec(memory_space=pltpu.MemorySpace.VMEM)
                 for _ in range(n_vmem_in)]
                + [pl.BlockSpec(memory_space=pl.ANY)])          # tail weights
    out_specs = tuple(pl.BlockSpec(memory_space=pltpu.MemorySpace.VMEM)
                      for _ in range(4))

    outs = pl.pallas_call(
        _vgg_fused_kernel,
        out_shape=out_shape,
        in_specs=in_specs,
        out_specs=out_specs,
        scratch_shapes=[
            pltpu.VMEM((N_TAIL, 512, 512), jnp.bfloat16),
            pltpu.SemaphoreType.DMA,
        ],
        compiler_params=pltpu.CompilerParams(vmem_limit_bytes=32 << 20),
    )(x, kp["t"], kp["b"], *kp["ws"], kp["w_tail"])

    feats = []
    for rows, (ho, wo, cout) in zip(outs, feat_specs):
        feats.append(jnp.transpose(rows.reshape(n, ho, wo, cout), (0, 3, 1, 2)))
    return feats


def vgg_forward_reference(x_nchw, rparams):
    """Pure-JAX (lax.conv) reference at matching precision (bf16 in, f32 acc)."""
    x = x_nchw
    feats = []
    for idx, ((w_bf, bias), spec) in enumerate(zip(rparams, LAYER_SPECS)):
        stride = spec[2]
        y = jax.lax.conv_general_dilated(
            x.astype(jnp.bfloat16), w_bf,
            window_strides=(stride, stride), padding=((1, 1), (1, 1)),
            dimension_numbers=("NCHW", "OIHW", "NCHW"),
            preferred_element_type=jnp.float32)
        y = jnp.maximum(y + bias[None, :, None, None], 0.0)
        if idx in FEATURE_IDX:
            feats.append(y)
        x = y
    return feats


# --------------------------------- main ----------------------------------- #

if __name__ == "__main__":
    key = jax.random.PRNGKey(0)
    kx, kp_key = jax.random.split(key)
    x = jax.random.normal(kx, (BATCH, 4, IN_HW, IN_HW), jnp.float32)   # NCHW
    kparams, rparams = init_params(kp_key)

    forward = jax.jit(vgg_forward)
    outs = jax.block_until_ready(forward(x, kparams))

    refs = vgg_forward_reference(x, rparams)
    expected_shapes = [(2, 64, 4, 4), (2, 128, 2, 2), (2, 256, 1, 1), (2, 512, 1, 1)]
    for o, r, es in zip(outs, refs, expected_shapes):
        assert o.shape == es, (o.shape, es)
        err = float(jnp.max(jnp.abs(o - r)))
        ref_scale = float(jnp.max(jnp.abs(r))) + 1e-6
        assert err <= 1e-2 * ref_scale + 1e-2, (err, ref_scale)

    print("KERNEL_OK")
</pallas_src>

<mosaic_0001>
module attributes {stable_mosaic.version = 11 : i64} {
  func.func @_vgg_fused_kernel(%arg0: memref<32x64xbf16, #tpu.memory_space<vmem>>, %arg1: memref<12x3x32x32xbf16, #tpu.memory_space<vmem>>, %arg2: memref<18x512xf32, #tpu.memory_space<vmem>>, %arg3: memref<3x64x256xbf16, #tpu.memory_space<vmem>>, %arg4: memref<3x256x256xbf16, #tpu.memory_space<vmem>>, %arg5: memref<3x256x256xbf16, #tpu.memory_space<vmem>>, %arg6: memref<3x256x256xbf16, #tpu.memory_space<vmem>>, %arg7: memref<3x256x256xbf16, #tpu.memory_space<vmem>>, %arg8: memref<3x256x256xbf16, #tpu.memory_space<vmem>>, %arg9: memref<3x256x256xbf16, #tpu.memory_space<vmem>>, %arg10: memref<3x256x256xbf16, #tpu.memory_space<vmem>>, %arg11: memref<3x256x256xbf16, #tpu.memory_space<vmem>>, %arg12: memref<3x256x256xbf16, #tpu.memory_space<vmem>>, %arg13: memref<3x256x256xbf16, #tpu.memory_space<vmem>>, %arg14: memref<2x256x256xbf16, #tpu.memory_space<vmem>>, %arg15: memref<256x256xbf16, #tpu.memory_space<vmem>>, %arg16: memref<256x256xbf16, #tpu.memory_space<vmem>>, %arg17: memref<256x512xbf16, #tpu.memory_space<vmem>>, %arg18: memref<3x512x512xbf16, #tpu.memory_space<any>>, %arg19: memref<8x256xf32, #tpu.memory_space<vmem>>, %arg20: memref<4x256xf32, #tpu.memory_space<vmem>>, %arg21: memref<2x256xf32, #tpu.memory_space<vmem>>, %arg22: memref<2x512xf32, #tpu.memory_space<vmem>>, %arg23: memref<3x512x512xbf16, #tpu.memory_space<vmem>>, %arg24: memref<!tpu.dma_semaphore, #tpu.memory_space<semaphore_mem>>) attributes {dimension_semantics = [], scalar_prefetch = 0 : i64, scratch_operands = 2 : i64, tpu.core_type = #tpu.core_type<tc>} {
    tpu.enqueue_dma source(%arg18 : memref<3x512x512xbf16, #tpu.memory_space<any>>) target(%arg23 : memref<3x512x512xbf16, #tpu.memory_space<vmem>>) target_semaphore(%arg24 : memref<!tpu.dma_semaphore, #tpu.memory_space<semaphore_mem>>)
    %c0 = arith.constant 0 : index
    %c0_0 = arith.constant 0 : index
    %0 = vector.load %arg0[%c0, %c0_0] : memref<32x64xbf16, #tpu.memory_space<vmem>>, vector<32x64xbf16>
    %c0_1 = arith.constant 0 : index
    %c0_2 = arith.constant 0 : index
    %c0_3 = arith.constant 0 : index
    %c0_4 = arith.constant 0 : index
    %1 = vector.load %arg1[%c0_1, %c0_2, %c0_3, %c0_4] : memref<12x3x32x32xbf16, #tpu.memory_space<vmem>>, vector<1x1x32x32xbf16>
    %2 = vector.shape_cast %1 : vector<1x1x32x32xbf16> to vector<32x32xbf16>
    %cst = arith.constant dense<0.000000e+00> : vector<32x64xf32>
    %3 = tpu.matmul %2, %0, %cst {dimension_numbers = #tpu.dot_dimension_numbers<[1], [0], [0], [1], [0, 0, 1, 1], [], []>} : vector<32x32xbf16>, vector<32x64xbf16>, vector<32x64xf32> -> vector<32x64xf32>
    %4 = arith.truncf %3 : vector<32x64xf32> to vector<32x64xbf16>
    %c0_5 = arith.constant 0 : index
    %c0_6 = arith.constant 0 : index
    %c0_7 = arith.constant 0 : index
    %5 = vector.load %arg3[%c0_5, %c0_6, %c0_7] : memref<3x64x256xbf16, #tpu.memory_space<vmem>>, vector<1x64x256xbf16>
    %6 = vector.shape_cast %5 : vector<1x64x256xbf16> to vector<64x256xbf16>
    %cst_8 = arith.constant dense<0.000000e+00> : vector<32x256xf32>
    %7 = tpu.matmul %4, %6, %cst_8 {dimension_numbers = #tpu.dot_dimension_numbers<[1], [0], [0], [1], [0, 0, 1, 1], [], []>} : vector<32x64xbf16>, vector<64x256xbf16>, vector<32x256xf32> -> vector<32x256xf32>
    %c1 = arith.constant 1 : index
    %c0_9 = arith.constant 0 : index
    %c0_10 = arith.constant 0 : index
    %8 = vector.load %arg3[%c1, %c0_9, %c0_10] : memref<3x64x256xbf16, #tpu.memory_space<vmem>>, vector<1x64x256xbf16>
    %9 = vector.shape_cast %8 : vector<1x64x256xbf16> to vector<64x256xbf16>
    %cst_11 = arith.constant dense<0.000000e+00> : vector<32x256xf32>
    %10 = tpu.matmul %0, %9, %cst_11 {dimension_numbers = #tpu.dot_dimension_numbers<[1], [0], [0], [1], [0, 0, 1, 1], [], []>} : vector<32x64xbf16>, vector<64x256xbf16>, vector<32x256xf32> -> vector<32x256xf32>
    %11 = arith.addf %7, %10 : vector<32x256xf32>
    %c0_12 = arith.constant 0 : index
    %c2 = arith.constant 2 : index
    %c0_13 = arith.constant 0 : index
    %c0_14 = arith.constant 0 : index
    %12 = vector.load %arg1[%c0_12, %c2, %c0_13, %c0_14] : memref<12x3x32x32xbf16, #tpu.memory_space<vmem>>, vector<1x1x32x32xbf16>
    %13 = vector.shape_cast %12 : vector<1x1x32x32xbf16> to vector<32x32xbf16>
    %cst_15 = arith.constant dense<0.000000e+00> : vector<32x64xf32>
    %14 = tpu.matmul %13, %0, %cst_15 {dimension_numbers = #tpu.dot_dimension_numbers<[1], [0], [0], [1], [0, 0, 1, 1], [], []>} : vector<32x32xbf16>, vector<32x64xbf16>, vector<32x64xf32> -> vector<32x64xf32>
    %15 = arith.truncf %14 : vector<32x64xf32> to vector<32x64xbf16>
    %c2_16 = arith.constant 2 : index
    %c0_17 = arith.constant 0 : index
    %c0_18 = arith.constant 0 : index
    %16 = vector.load %arg3[%c2_16, %c0_17, %c0_18] : memref<3x64x256xbf16, #tpu.memory_space<vmem>>, vector<1x64x256xbf16>
    %17 = vector.shape_cast %16 : vector<1x64x256xbf16> to vector<64x256xbf16>
    %cst_19 = arith.constant dense<0.000000e+00> : vector<32x256xf32>
    %18 = tpu.matmul %15, %17, %cst_19 {dimension_numbers = #tpu.dot_dimension_numbers<[1], [0], [0], [1], [0, 0, 1, 1], [], []>} : vector<32x64xbf16>, vector<64x256xbf16>, vector<32x256xf32> -> vector<32x256xf32>
    %19 = arith.addf %11, %18 : vector<32x256xf32>
    %c0_20 = arith.constant 0 : index
    %c0_21 = arith.constant 0 : index
    %20 = vector.load %arg2[%c0_20, %c0_21] : memref<18x512xf32, #tpu.memory_space<vmem>>, vector<1x256xf32>
    %21 = vector.broadcast %20 : vector<1x256xf32> to vector<32x256xf32>
    %22 = arith.addf %19, %21 : vector<32x256xf32>
    %cst_22 = arith.constant 0.000000e+00 : f32
    %23 = vector.broadcast %cst_22 : f32 to vector<32x256xf32>
    %24 = arith.maximumf %22, %23 : vector<32x256xf32>
    %25 = arith.truncf %24 : vector<32x256xf32> to vector<32x256xbf16>
    %c1_23 = arith.constant 1 : index
    %c0_24 = arith.constant 0 : index
    %c0_25 = arith.constant 0 : index
    %c0_26 = arith.constant 0 : index
    %26 = vector.load %arg1[%c1_23, %c0_24, %c0_25, %c0_26] : memref<12x3x32x32xbf16, #tpu.memory_space<vmem>>, vector<1x1x32x32xbf16>
    %27 = vector.shape_cast %26 : vector<1x1x32x32xbf16> to vector<32x32xbf16>
    %cst_27 = arith.constant dense<0.000000e+00> : vector<32x256xf32>
    %28 = tpu.matmul %27, %25, %cst_27 {dimension_numbers = #tpu.dot_dimension_numbers<[1], [0], [0], [1], [0, 0, 1, 1], [], []>} : vector<32x32xbf16>, vector<32x256xbf16>, vector<32x256xf32> -> vector<32x256xf32>
    %29 = arith.truncf %28 : vector<32x256xf32> to vector<32x256xbf16>
    %c0_28 = arith.constant 0 : index
    %c0_29 = arith.constant 0 : index
    %c0_30 = arith.constant 0 : index
    %30 = vector.load %arg4[%c0_28, %c0_29, %c0_30] : memref<3x256x256xbf16, #tpu.memory_space<vmem>>, vector<1x256x256xbf16>
    %31 = vector.shape_cast %30 : vector<1x256x256xbf16> to vector<256x256xbf16>
    %cst_31 = arith.constant dense<0.000000e+00> : vector<32x256xf32>
    %32 = tpu.matmul %29, %31, %cst_31 {dimension_numbers = #tpu.dot_dimension_numbers<[1], [0], [0], [1], [0, 0, 1, 1], [], []>} : vector<32x256xbf16>, vector<256x256xbf16>, vector<32x256xf32> -> vector<32x256xf32>
    %c1_32 = arith.constant 1 : index
    %c0_33 = arith.constant 0 : index
    %c0_34 = arith.constant 0 : index
    %33 = vector.load %arg4[%c1_32, %c0_33, %c0_34] : memref<3x256x256xbf16, #tpu.memory_space<vmem>>, vector<1x256x256xbf16>
    %34 = vector.shape_cast %33 : vector<1x256x256xbf16> to vector<256x256xbf16>
    %cst_35 = arith.constant dense<0.000000e+00> : vector<32x256xf32>
    %35 = tpu.matmul %25, %34, %cst_35 {dimension_numbers = #tpu.dot_dimension_numbers<[1], [0], [0], [1], [0, 0, 1, 1], [], []>} : vector<32x256xbf16>, vector<256x256xbf16>, vector<32x256xf32> -> vector<32x256xf32>
    %36 = arith.addf %32, %35 : vector<32x256xf32>
    %c1_36 = arith.constant 1 : index
    %c2_37 = arith.constant 2 : index
    %c0_38 = arith.constant 0 : index
    %c0_39 = arith.constant 0 : index
    %37 = vector.load %arg1[%c1_36, %c2_37, %c0_38, %c0_39] : memref<12x3x32x32xbf16, #tpu.memory_space<vmem>>, vector<1x1x32x32xbf16>
    %38 = vector.shape_cast %37 : vector<1x1x32x32xbf16> to vector<32x32xbf16>
    %cst_40 = arith.constant dense<0.000000e+00> : vector<32x256xf32>
    %39 = tpu.matmul %38, %25, %cst_40 {dimension_numbers = #tpu.dot_dimension_numbers<[1], [0], [0], [1], [0, 0, 1, 1], [], []>} : vector<32x32xbf16>, vector<32x256xbf16>, vector<32x256xf32> -> vector<32x256xf32>
    %40 = arith.truncf %39 : vector<32x256xf32> to vector<32x256xbf16>
    %c2_41 = arith.constant 2 : index
    %c0_42 = arith.constant 0 : index
    %c0_43 = arith.constant 0 : index
    %41 = vector.load %arg4[%c2_41, %c0_42, %c0_43] : memref<3x256x256xbf16, #tpu.memory_space<vmem>>, vector<1x256x256xbf16>
    %42 = vector.shape_cast %41 : vector<1x256x256xbf16> to vector<256x256xbf16>
    %cst_44 = arith.constant dense<0.000000e+00> : vector<32x256xf32>
    %43 = tpu.matmul %40, %42, %cst_44 {dimension_numbers = #tpu.dot_dimension_numbers<[1], [0], [0], [1], [0, 0, 1, 1], [], []>} : vector<32x256xbf16>, vector<256x256xbf16>, vector<32x256xf32> -> vector<32x256xf32>
    %44 = arith.addf %36, %43 : vector<32x256xf32>
    %c1_45 = arith.constant 1 : index
    %c0_46 = arith.constant 0 : index
    %45 = vector.load %arg2[%c1_45, %c0_46] : memref<18x512xf32, #tpu.memory_space<vmem>>, vector<1x256xf32>
    %46 = vector.broadcast %45 : vector<1x256xf32> to vector<32x256xf32>
    %47 = arith.addf %44, %46 : vector<32x256xf32>
    %cst_47 = arith.constant 0.000000e+00 : f32
    %48 = vector.broadcast %cst_47 : f32 to vector<32x256xf32>
    %49 = arith.maximumf %47, %48 : vector<32x256xf32>
    %50 = arith.truncf %49 : vector<32x256xf32> to vector<32x256xbf16>
    %c2_48 = arith.constant 2 : index
    %c0_49 = arith.constant 0 : index
    %c0_50 = arith.constant 0 : index
    %c0_51 = arith.constant 0 : index
    %51 = vector.load %arg1[%c2_48, %c0_49, %c0_50, %c0_51] : memref<12x3x32x32xbf16, #tpu.memory_space<vmem>>, vector<1x1x16x32xbf16>
    %52 = vector.shape_cast %51 : vector<1x1x16x32xbf16> to vector<16x32xbf16>
    %cst_52 = arith.constant dense<0.000000e+00> : vector<16x256xf32>
    %53 = tpu.matmul %52, %50, %cst_52 {dimension_numbers = #tpu.dot_dimension_numbers<[1], [0], [0], [1], [0, 0, 1, 1], [], []>} : vector<16x32xbf16>, vector<32x256xbf16>, vector<16x256xf32> -> vector<16x256xf32>
    %54 = arith.truncf %53 : vector<16x256xf32> to vector<16x256xbf16>
    %c0_53 = arith.constant 0 : index
    %c0_54 = arith.constant 0 : index
    %c0_55 = arith.constant 0 : index
    %55 = vector.load %arg5[%c0_53, %c0_54, %c0_55] : memref<3x256x256xbf16, #tpu.memory_space<vmem>>, vector<1x256x256xbf16>
    %56 = vector.shape_cast %55 : vector<1x256x256xbf16> to vector<256x256xbf16>
    %cst_56 = arith.constant dense<0.000000e+00> : vector<16x256xf32>
    %57 = tpu.matmul %54, %56, %cst_56 {dimension_numbers = #tpu.dot_dimension_numbers<[1], [0], [0], [1], [0, 0, 1, 1], [], []>} : vector<16x256xbf16>, vector<256x256xbf16>, vector<16x256xf32> -> vector<16x256xf32>
    %c2_57 = arith.constant 2 : index
    %c1_58 = arith.constant 1 : index
    %c0_59 = arith.constant 0 : index
    %c0_60 = arith.constant 0 : index
    %58 = vector.load %arg1[%c2_57, %c1_58, %c0_59, %c0_60] : memref<12x3x32x32xbf16, #tpu.memory_space<vmem>>, vector<1x1x16x32xbf16>
    %59 = vector.shape_cast %58 : vector<1x1x16x32xbf16> to vector<16x32xbf16>
    %cst_61 = arith.constant dense<0.000000e+00> : vector<16x256xf32>
    %60 = tpu.matmul %59, %50, %cst_61 {dimension_numbers = #tpu.dot_dimension_numbers<[1], [0], [0], [1], [0, 0, 1, 1], [], []>} : vector<16x32xbf16>, vector<32x256xbf16>, vector<16x256xf32> -> vector<16x256xf32>
    %61 = arith.truncf %60 : vector<16x256xf32> to vector<16x256xbf16>
    %c1_62 = arith.constant 1 : index
    %c0_63 = arith.constant 0 : index
    %c0_64 = arith.constant 0 : index
    %62 = vector.load %arg5[%c1_62, %c0_63, %c0_64] : memref<3x256x256xbf16, #tpu.memory_space<vmem>>, vector<1x256x256xbf16>
    %63 = vector.shape_cast %62 : vector<1x256x256xbf16> to vector<256x256xbf16>
    %cst_65 = arith.constant dense<0.000000e+00> : vector<16x256xf32>
    %64 = tpu.matmul %61, %63, %cst_65 {dimension_numbers = #tpu.dot_dimension_numbers<[1], [0], [0], [1], [0, 0, 1, 1], [], []>} : vector<16x256xbf16>, vector<256x256xbf16>, vector<16x256xf32> -> vector<16x256xf32>
    %65 = arith.addf %57, %64 : vector<16x256xf32>
    %c2_66 = arith.constant 2 : index
    %c2_67 = arith.constant 2 : index
    %c0_68 = arith.constant 0 : index
    %c0_69 = arith.constant 0 : index
    %66 = vector.load %arg1[%c2_66, %c2_67, %c0_68, %c0_69] : memref<12x3x32x32xbf16, #tpu.memory_space<vmem>>, vector<1x1x16x32xbf16>
    %67 = vector.shape_cast %66 : vector<1x1x16x32xbf16> to vector<16x32xbf16>
    %cst_70 = arith.constant dense<0.000000e+00> : vector<16x256xf32>
    %68 = tpu.matmul %67, %50, %cst_70 {dimension_numbers = #tpu.dot_dimension_numbers<[1], [0], [0], [1], [0, 0, 1, 1], [], []>} : vector<16x32xbf16>, vector<32x256xbf16>, vector<16x256xf32> -> vector<16x256xf32>
    %69 = arith.truncf %68 : vector<16x256xf32> to vector<16x256xbf16>
    %c2_71 = arith.constant 2 : index
    %c0_72 = arith.constant 0 : index
    %c0_73 = arith.constant 0 : index
    %70 = vector.load %arg5[%c2_71, %c0_72, %c0_73] : memref<3x256x256xbf16, #tpu.memory_space<vmem>>, vector<1x256x256xbf16>
    %71 = vector.shape_cast %70 : vector<1x256x256xbf16> to vector<256x256xbf16>
    %cst_74 = arith.constant dense<0.000000e+00> : vector<16x256xf32>
    %72 = tpu.matmul %69, %71, %cst_74 {dimension_numbers = #tpu.dot_dimension_numbers<[1], [0], [0], [1], [0, 0, 1, 1], [], []>} : vector<16x256xbf16>, vector<256x256xbf16>, vector<16x256xf32> -> vector<16x256xf32>
    %73 = arith.addf %65, %72 : vector<16x256xf32>
    %c2_75 = arith.constant 2 : index
    %c0_76 = arith.constant 0 : index
    %74 = vector.load %arg2[%c2_75, %c0_76] : memref<18x512xf32, #tpu.memory_space<vmem>>, vector<1x256xf32>
    %75 = vector.broadcast %74 : vector<1x256xf32> to vector<16x256xf32>
    %76 = arith.addf %73, %75 : vector<16x256xf32>
    %cst_77 = arith.constant 0.000000e+00 : f32
    %77 = vector.broadcast %cst_77 : f32 to vector<16x256xf32>
    %78 = arith.maximumf %76, %77 : vector<16x256xf32>
    %79 = arith.truncf %78 : vector<16x256xf32> to vector<16x256xbf16>
    %c3 = arith.constant 3 : index
    %c0_78 = arith.constant 0 : index
    %c0_79 = arith.constant 0 : index
    %c0_80 = arith.constant 0 : index
    %80 = vector.load %arg1[%c3, %c0_78, %c0_79, %c0_80] : memref<12x3x32x32xbf16, #tpu.memory_space<vmem>>, vector<1x1x16x16xbf16>
    %81 = vector.shape_cast %80 : vector<1x1x16x16xbf16> to vector<16x16xbf16>
    %cst_81 = arith.constant dense<0.000000e+00> : vector<16x256xf32>
    %82 = tpu.matmul %81, %79, %cst_81 {dimension_numbers = #tpu.dot_dimension_numbers<[1], [0], [0], [1], [0, 0, 1, 1], [], []>} : vector<16x16xbf16>, vector<16x256xbf16>, vector<16x256xf32> -> vector<16x256xf32>
    %83 = arith.truncf %82 : vector<16x256xf32> to vector<16x256xbf16>
    %c0_82 = arith.constant 0 : index
    %c0_83 = arith.constant 0 : index
    %c0_84 = arith.constant 0 : index
    %84 = vector.load %arg6[%c0_82, %c0_83, %c0_84] : memref<3x256x256xbf16, #tpu.memory_space<vmem>>, vector<1x256x256xbf16>
    %85 = vector.shape_cast %84 : vector<1x256x256xbf16> to vector<256x256xbf16>
    %cst_85 = arith.constant dense<0.000000e+00> : vector<16x256xf32>
    %86 = tpu.matmul %83, %85, %cst_85 {dimension_numbers = #tpu.dot_dimension_numbers<[1], [0], [0], [1], [0, 0, 1, 1], [], []>} : vector<16x256xbf16>, vector<256x256xbf16>, vector<16x256xf32> -> vector<16x256xf32>
    %c1_86 = arith.constant 1 : index
    %c0_87 = arith.constant 0 : index
    %c0_88 = arith.constant 0 : index
    %87 = vector.load %arg6[%c1_86, %c0_87, %c0_88] : memref<3x256x256xbf16, #tpu.memory_space<vmem>>, vector<1x256x256xbf16>
    %88 = vector.shape_cast %87 : vector<1x256x256xbf16> to vector<256x256xbf16>
    %cst_89 = arith.constant dense<0.000000e+00> : vector<16x256xf32>
    %89 = tpu.matmul %79, %88, %cst_89 {dimension_numbers = #tpu.dot_dimension_numbers<[1], [0], [0], [1], [0, 0, 1, 1], [], []>} : vector<16x256xbf16>, vector<256x256xbf16>, vector<16x256xf32> -> vector<16x256xf32>
    %90 = arith.addf %86, %89 : vector<16x256xf32>
    %c3_90 = arith.constant 3 : index
    %c2_91 = arith.constant 2 : index
    %c0_92 = arith.constant 0 : index
    %c0_93 = arith.constant 0 : index
    %91 = vector.load %arg1[%c3_90, %c2_91, %c0_92, %c0_93] : memref<12x3x32x32xbf16, #tpu.memory_space<vmem>>, vector<1x1x16x16xbf16>
    %92 = vector.shape_cast %91 : vector<1x1x16x16xbf16> to vector<16x16xbf16>
    %cst_94 = arith.constant dense<0.000000e+00> : vector<16x256xf32>
    %93 = tpu.matmul %92, %79, %cst_94 {dimension_numbers = #tpu.dot_dimension_numbers<[1], [0], [0], [1], [0, 0, 1, 1], [], []>} : vector<16x16xbf16>, vector<16x256xbf16>, vector<16x256xf32> -> vector<16x256xf32>
    %94 = arith.truncf %93 : vector<16x256xf32> to vector<16x256xbf16>
    %c2_95 = arith.constant 2 : index
    %c0_96 = arith.constant 0 : index
    %c0_97 = arith.constant 0 : index
    %95 = vector.load %arg6[%c2_95, %c0_96, %c0_97] : memref<3x256x256xbf16, #tpu.memory_space<vmem>>, vector<1x256x256xbf16>
    %96 = vector.shape_cast %95 : vector<1x256x256xbf16> to vector<256x256xbf16>
    %cst_98 = arith.constant dense<0.000000e+00> : vector<16x256xf32>
    %97 = tpu.matmul %94, %96, %cst_98 {dimension_numbers = #tpu.dot_dimension_numbers<[1], [0], [0], [1], [0, 0, 1, 1], [], []>} : vector<16x256xbf16>, vector<256x256xbf16>, vector<16x256xf32> -> vector<16x256xf32>
    %98 = arith.addf %90, %97 : vector<16x256xf32>
    %c3_99 = arith.constant 3 : index
    %c0_100 = arith.constant 0 : index
    %99 = vector.load %arg2[%c3_99, %c0_100] : memref<18x512xf32, #tpu.memory_space<vmem>>, vector<1x256xf32>
    %100 = vector.broadcast %99 : vector<1x256xf32> to vector<16x256xf32>
    %101 = arith.addf %98, %100 : vector<16x256xf32>
    %cst_101 = arith.constant 0.000000e+00 : f32
    %102 = vector.broadcast %cst_101 : f32 to vector<16x256xf32>
    %103 = arith.maximumf %101, %102 : vector<16x256xf32>
    %104 = arith.truncf %103 : vector<16x256xf32> to vector<16x256xbf16>
    %c4 = arith.constant 4 : index
    %c0_102 = arith.constant 0 : index
    %c0_103 = arith.constant 0 : index
    %c0_104 = arith.constant 0 : index
    %105 = vector.load %arg1[%c4, %c0_102, %c0_103, %c0_104] : memref<12x3x32x32xbf16, #tpu.memory_space<vmem>>, vector<1x1x16x16xbf16>
    %106 = vector.shape_cast %105 : vector<1x1x16x16xbf16> to vector<16x16xbf16>
    %cst_105 = arith.constant dense<0.000000e+00> : vector<16x256xf32>
    %107 = tpu.matmul %106, %104, %cst_105 {dimension_numbers = #tpu.dot_dimension_numbers<[1], [0], [0], [1], [0, 0, 1, 1], [], []>} : vector<16x16xbf16>, vector<16x256xbf16>, vector<16x256xf32> -> vector<16x256xf32>
    %108 = arith.truncf %107 : vector<16x256xf32> to vector<16x256xbf16>
    %c0_106 = arith.constant 0 : index
    %c0_107 = arith.constant 0 : index
    %c0_108 = arith.constant 0 : index
    %109 = vector.load %arg7[%c0_106, %c0_107, %c0_108] : memref<3x256x256xbf16, #tpu.memory_space<vmem>>, vector<1x256x256xbf16>
    %110 = vector.shape_cast %109 : vector<1x256x256xbf16> to vector<256x256xbf16>
    %cst_109 = arith.constant dense<0.000000e+00> : vector<16x256xf32>
    %111 = tpu.matmul %108, %110, %cst_109 {dimension_numbers = #tpu.dot_dimension_numbers<[1], [0], [0], [1], [0, 0, 1, 1], [], []>} : vector<16x256xbf16>, vector<256x256xbf16>, vector<16x256xf32> -> vector<16x256xf32>
    %c1_110 = arith.constant 1 : index
    %c0_111 = arith.constant 0 : index
    %c0_112 = arith.constant 0 : index
    %112 = vector.load %arg7[%c1_110, %c0_111, %c0_112] : memref<3x256x256xbf16, #tpu.memory_space<vmem>>, vector<1x256x256xbf16>
    %113 = vector.shape_cast %112 : vector<1x256x256xbf16> to vector<256x256xbf16>
    %cst_113 = arith.constant dense<0.000000e+00> : vector<16x256xf32>
    %114 = tpu.matmul %104, %113, %cst_113 {dimension_numbers = #tpu.dot_dimension_numbers<[1], [0], [0], [1], [0, 0, 1, 1], [], []>} : vector<16x256xbf16>, vector<256x256xbf16>, vector<16x256xf32> -> vector<16x256xf32>
    %115 = arith.addf %111, %114 : vector<16x256xf32>
    %c4_114 = arith.constant 4 : index
    %c2_115 = arith.constant 2 : index
    %c0_116 = arith.constant 0 : index
    %c0_117 = arith.constant 0 : index
    %116 = vector.load %arg1[%c4_114, %c2_115, %c0_116, %c0_117] : memref<12x3x32x32xbf16, #tpu.memory_space<vmem>>, vector<1x1x16x16xbf16>
    %117 = vector.shape_cast %116 : vector<1x1x16x16xbf16> to vector<16x16xbf16>
    %cst_118 = arith.constant dense<0.000000e+00> : vector<16x256xf32>
    %118 = tpu.matmul %117, %104, %cst_118 {dimension_numbers = #tpu.dot_dimension_numbers<[1], [0], [0], [1], [0, 0, 1, 1], [], []>} : vector<16x16xbf16>, vector<16x256xbf16>, vector<16x256xf32> -> vector<16x256xf32>
    %119 = arith.truncf %118 : vector<16x256xf32> to vector<16x256xbf16>
    %c2_119 = arith.constant 2 : index
    %c0_120 = arith.constant 0 : index
    %c0_121 = arith.constant 0 : index
    %120 = vector.load %arg7[%c2_119, %c0_120, %c0_121] : memref<3x256x256xbf16, #tpu.memory_space<vmem>>, vector<1x256x256xbf16>
    %121 = vector.shape_cast %120 : vector<1x256x256xbf16> to vector<256x256xbf16>
    %cst_122 = arith.constant dense<0.000000e+00> : vector<16x256xf32>
    %122 = tpu.matmul %119, %121, %cst_122 {dimension_numbers = #tpu.dot_dimension_numbers<[1], [0], [0], [1], [0, 0, 1, 1], [], []>} : vector<16x256xbf16>, vector<256x256xbf16>, vector<16x256xf32> -> vector<16x256xf32>
    %123 = arith.addf %115, %122 : vector<16x256xf32>
    %c4_123 = arith.constant 4 : index
    %c0_124 = arith.constant 0 : index
    %124 = vector.load %arg2[%c4_123, %c0_124] : memref<18x512xf32, #tpu.memory_space<vmem>>, vector<1x256xf32>
    %125 = vector.broadcast %124 : vector<1x256xf32> to vector<16x256xf32>
    %126 = arith.addf %123, %125 : vector<16x256xf32>
    %cst_125 = arith.constant 0.000000e+00 : f32
    %127 = vector.broadcast %cst_125 : f32 to vector<16x256xf32>
    %128 = arith.maximumf %126, %127 : vector<16x256xf32>
    %129 = arith.truncf %128 : vector<16x256xf32> to vector<16x256xbf16>
    %c5 = arith.constant 5 : index
    %c0_126 = arith.constant 0 : index
    %c0_127 = arith.constant 0 : index
    %c0_128 = arith.constant 0 : index
    %130 = vector.load %arg1[%c5, %c0_126, %c0_127, %c0_128] : memref<12x3x32x32xbf16, #tpu.memory_space<vmem>>, vector<1x1x8x16xbf16>
    %131 = vector.shape_cast %130 : vector<1x1x8x16xbf16> to vector<8x16xbf16>
    %cst_129 = arith.constant dense<0.000000e+00> : vector<8x256xf32>
    %132 = tpu.matmul %131, %129, %cst_129 {dimension_numbers = #tpu.dot_dimension_numbers<[1], [0], [0], [1], [0, 0, 1, 1], [], []>} : vector<8x16xbf16>, vector<16x256xbf16>, vector<8x256xf32> -> vector<8x256xf32>
    %133 = arith.truncf %132 : vector<8x256xf32> to vector<8x256xbf16>
    %c0_130 = arith.constant 0 : index
    %c0_131 = arith.constant 0 : index
    %c0_132 = arith.constant 0 : index
    %134 = vector.load %arg8[%c0_130, %c0_131, %c0_132] : memref<3x256x256xbf16, #tpu.memory_space<vmem>>, vector<1x256x256xbf16>
    %135 = vector.shape_cast %134 : vector<1x256x256xbf16> to vector<256x256xbf16>
    %cst_133 = arith.constant dense<0.000000e+00> : vector<8x256xf32>
    %136 = tpu.matmul %133, %135, %cst_133 {dimension_numbers = #tpu.dot_dimension_numbers<[1], [0], [0], [1], [0, 0, 1, 1], [], []>} : vector<8x256xbf16>, vector<256x256xbf16>, vector<8x256xf32> -> vector<8x256xf32>
    %c5_134 = arith.constant 5 : index
    %c1_135 = arith.constant 1 : index
    %c0_136 = arith.constant 0 : index
    %c0_137 = arith.constant 0 : index
    %137 = vector.load %arg1[%c5_134, %c1_135, %c0_136, %c0_137] : memref<12x3x32x32xbf16, #tpu.memory_space<vmem>>, vector<1x1x8x16xbf16>
    %138 = vector.shape_cast %137 : vector<1x1x8x16xbf16> to vector<8x16xbf16>
    %cst_138 = arith.constant dense<0.000000e+00> : vector<8x256xf32>
    %139 = tpu.matmul %138, %129, %cst_138 {dimension_numbers = #tpu.dot_dimension_numbers<[1], [0], [0], [1], [0, 0, 1, 1], [], []>} : vector<8x16xbf16>, vector<16x256xbf16>, vector<8x256xf32> -> vector<8x256xf32>
    %140 = arith.truncf %139 : vector<8x256xf32> to vector<8x256xbf16>
    %c1_139 = arith.constant 1 : index
    %c0_140 = arith.constant 0 : index
    %c0_141 = arith.constant 0 : index
    %141 = vector.load %arg8[%c1_139, %c0_140, %c0_141] : memref<3x256x256xbf16, #tpu.memory_space<vmem>>, vector<1x256x256xbf16>
    %142 = vector.shape_cast %141 : vector<1x256x256xbf16> to vector<256x256xbf16>
    %cst_142 = arith.constant dense<0.000000e+00> : vector<8x256xf32>
    %143 = tpu.matmul %140, %142, %cst_142 {dimension_numbers = #tpu.dot_dimension_numbers<[1], [0], [0], [1], [0, 0, 1, 1], [], []>} : vector<8x256xbf16>, vector<256x256xbf16>, vector<8x256xf32> -> vector<8x256xf32>
    %144 = arith.addf %136, %143 : vector<8x256xf32>
    %c5_143 = arith.constant 5 : index
    %c2_144 = arith.constant 2 : index
    %c0_145 = arith.constant 0 : index
    %c0_146 = arith.constant 0 : index
    %145 = vector.load %arg1[%c5_143, %c2_144, %c0_145, %c0_146] : memref<12x3x32x32xbf16, #tpu.memory_space<vmem>>, vector<1x1x8x16xbf16>
    %146 = vector.shape_cast %145 : vector<1x1x8x16xbf16> to vector<8x16xbf16>
    %cst_147 = arith.constant dense<0.000000e+00> : vector<8x256xf32>
    %147 = tpu.matmul %146, %129, %cst_147 {dimension_numbers = #tpu.dot_dimension_numbers<[1], [0], [0], [1], [0, 0, 1, 1], [], []>} : vector<8x16xbf16>, vector<16x256xbf16>, vector<8x256xf32> -> vector<8x256xf32>
    %148 = arith.truncf %147 : vector<8x256xf32> to vector<8x256xbf16>
    %c2_148 = arith.constant 2 : index
    %c0_149 = arith.constant 0 : index
    %c0_150 = arith.constant 0 : index
    %149 = vector.load %arg8[%c2_148, %c0_149, %c0_150] : memref<3x256x256xbf16, #tpu.memory_space<vmem>>, vector<1x256x256xbf16>
    %150 = vector.shape_cast %149 : vector<1x256x256xbf16> to vector<256x256xbf16>
    %cst_151 = arith.constant dense<0.000000e+00> : vector<8x256xf32>
    %151 = tpu.matmul %148, %150, %cst_151 {dimension_numbers = #tpu.dot_dimension_numbers<[1], [0], [0], [1], [0, 0, 1, 1], [], []>} : vector<8x256xbf16>, vector<256x256xbf16>, vector<8x256xf32> -> vector<8x256xf32>
    %152 = arith.addf %144, %151 : vector<8x256xf32>
    %c5_152 = arith.constant 5 : index
    %c0_153 = arith.constant 0 : index
    %153 = vector.load %arg2[%c5_152, %c0_153] : memref<18x512xf32, #tpu.memory_space<vmem>>, vector<1x256xf32>
    %154 = vector.broadcast %153 : vector<1x256xf32> to vector<8x256xf32>
    %155 = arith.addf %152, %154 : vector<8x256xf32>
    %cst_154 = arith.constant 0.000000e+00 : f32
    %156 = vector.broadcast %cst_154 : f32 to vector<8x256xf32>
    %157 = arith.maximumf %155, %156 : vector<8x256xf32>
    %158 = arith.truncf %157 : vector<8x256xf32> to vector<8x256xbf16>
    %c6 = arith.constant 6 : index
    %c0_155 = arith.constant 0 : index
    %c0_156 = arith.constant 0 : index
    %c0_157 = arith.constant 0 : index
    %159 = vector.load %arg1[%c6, %c0_155, %c0_156, %c0_157] : memref<12x3x32x32xbf16, #tpu.memory_space<vmem>>, vector<1x1x8x8xbf16>
    %160 = vector.shape_cast %159 : vector<1x1x8x8xbf16> to vector<8x8xbf16>
    %cst_158 = arith.constant dense<0.000000e+00> : vector<8x256xf32>
    %161 = tpu.matmul %160, %158, %cst_158 {dimension_numbers = #tpu.dot_dimension_numbers<[1], [0], [0], [1], [0, 0, 1, 1], [], []>} : vector<8x8xbf16>, vector<8x256xbf16>, vector<8x256xf32> -> vector<8x256xf32>
    %162 = arith.truncf %161 : vector<8x256xf32> to vector<8x256xbf16>
    %c0_159 = arith.constant 0 : index
    %c0_160 = arith.constant 0 : index
    %c0_161 = arith.constant 0 : index
    %163 = vector.load %arg9[%c0_159, %c0_160, %c0_161] : memref<3x256x256xbf16, #tpu.memory_space<vmem>>, vector<1x256x256xbf16>
    %164 = vector.shape_cast %163 : vector<1x256x256xbf16> to vector<256x256xbf16>
    %cst_162 = arith.constant dense<0.000000e+00> : vector<8x256xf32>
    %165 = tpu.matmul %162, %164, %cst_162 {dimension_numbers = #tpu.dot_dimension_numbers<[1], [0], [0], [1], [0, 0, 1, 1], [], []>} : vector<8x256xbf16>, vector<256x256xbf16>, vector<8x256xf32> -> vector<8x256xf32>
    %c1_163 = arith.constant 1 : index
    %c0_164 = arith.constant 0 : index
    %c0_165 = arith.constant 0 : index
    %166 = vector.load %arg9[%c1_163, %c0_164, %c0_165] : memref<3x256x256xbf16, #tpu.memory_space<vmem>>, vector<1x256x256xbf16>
    %167 = vector.shape_cast %166 : vector<1x256x256xbf16> to vector<256x256xbf16>
    %cst_166 = arith.constant dense<0.000000e+00> : vector<8x256xf32>
    %168 = tpu.matmul %158, %167, %cst_166 {dimension_numbers = #tpu.dot_dimension_numbers<[1], [0], [0], [1], [0, 0, 1, 1], [], []>} : vector<8x256xbf16>, vector<256x256xbf16>, vector<8x256xf32> -> vector<8x256xf32>
    %169 = arith.addf %165, %168 : vector<8x256xf32>
    %c6_167 = arith.constant 6 : index
    %c2_168 = arith.constant 2 : index
    %c0_169 = arith.constant 0 : index
    %c0_170 = arith.constant 0 : index
    %170 = vector.load %arg1[%c6_167, %c2_168, %c0_169, %c0_170] : memref<12x3x32x32xbf16, #tpu.memory_space<vmem>>, vector<1x1x8x8xbf16>
    %171 = vector.shape_cast %170 : vector<1x1x8x8xbf16> to vector<8x8xbf16>
    %cst_171 = arith.constant dense<0.000000e+00> : vector<8x256xf32>
    %172 = tpu.matmul %171, %158, %cst_171 {dimension_numbers = #tpu.dot_dimension_numbers<[1], [0], [0], [1], [0, 0, 1, 1], [], []>} : vector<8x8xbf16>, vector<8x256xbf16>, vector<8x256xf32> -> vector<8x256xf32>
    %173 = arith.truncf %172 : vector<8x256xf32> to vector<8x256xbf16>
    %c2_172 = arith.constant 2 : index
    %c0_173 = arith.constant 0 : index
    %c0_174 = arith.constant 0 : index
    %174 = vector.load %arg9[%c2_172, %c0_173, %c0_174] : memref<3x256x256xbf16, #tpu.memory_space<vmem>>, vector<1x256x256xbf16>
    %175 = vector.shape_cast %174 : vector<1x256x256xbf16> to vector<256x256xbf16>
    %cst_175 = arith.constant dense<0.000000e+00> : vector<8x256xf32>
    %176 = tpu.matmul %173, %175, %cst_175 {dimension_numbers = #tpu.dot_dimension_numbers<[1], [0], [0], [1], [0, 0, 1, 1], [], []>} : vector<8x256xbf16>, vector<256x256xbf16>, vector<8x256xf32> -> vector<8x256xf32>
    %177 = arith.addf %169, %176 : vector<8x256xf32>
    %c6_176 = arith.constant 6 : index
    %c0_177 = arith.constant 0 : index
    %178 = vector.load %arg2[%c6_176, %c0_177] : memref<18x512xf32, #tpu.memory_space<vmem>>, vector<1x256xf32>
    %179 = vector.broadcast %178 : vector<1x256xf32> to vector<8x256xf32>
    %180 = arith.addf %177, %179 : vector<8x256xf32>
    %cst_178 = arith.constant 0.000000e+00 : f32
    %181 = vector.broadcast %cst_178 : f32 to vector<8x256xf32>
    %182 = arith.maximumf %180, %181 : vector<8x256xf32>
    %183 = arith.truncf %182 : vector<8x256xf32> to vector<8x256xbf16>
    %c7 = arith.constant 7 : index
    %c0_179 = arith.constant 0 : index
    %c0_180 = arith.constant 0 : index
    %c0_181 = arith.constant 0 : index
    %184 = vector.load %arg1[%c7, %c0_179, %c0_180, %c0_181] : memref<12x3x32x32xbf16, #tpu.memory_space<vmem>>, vector<1x1x8x8xbf16>
    %185 = vector.shape_cast %184 : vector<1x1x8x8xbf16> to vector<8x8xbf16>
    %cst_182 = arith.constant dense<0.000000e+00> : vector<8x256xf32>
    %186 = tpu.matmul %185, %183, %cst_182 {dimension_numbers = #tpu.dot_dimension_numbers<[1], [0], [0], [1], [0, 0, 1, 1], [], []>} : vector<8x8xbf16>, vector<8x256xbf16>, vector<8x256xf32> -> vector<8x256xf32>
    %187 = arith.truncf %186 : vector<8x256xf32> to vector<8x256xbf16>
    %c0_183 = arith.constant 0 : index
    %c0_184 = arith.constant 0 : index
    %c0_185 = arith.constant 0 : index
    %188 = vector.load %arg10[%c0_183, %c0_184, %c0_185] : memref<3x256x256xbf16, #tpu.memory_space<vmem>>, vector<1x256x256xbf16>
    %189 = vector.shape_cast %188 : vector<1x256x256xbf16> to vector<256x256xbf16>
    %cst_186 = arith.constant dense<0.000000e+00> : vector<8x256xf32>
    %190 = tpu.matmul %187, %189, %cst_186 {dimension_numbers = #tpu.dot_dimension_numbers<[1], [0], [0], [1], [0, 0, 1, 1], [], []>} : vector<8x256xbf16>, vector<256x256xbf16>, vector<8x256xf32> -> vector<8x256xf32>
    %c1_187 = arith.constant 1 : index
    %c0_188 = arith.constant 0 : index
    %c0_189 = arith.constant 0 : index
    %191 = vector.load %arg10[%c1_187, %c0_188, %c0_189] : memref<3x256x256xbf16, #tpu.memory_space<vmem>>, vector<1x256x256xbf16>
    %192 = vector.shape_cast %191 : vector<1x256x256xbf16> to vector<256x256xbf16>
    %cst_190 = arith.constant dense<0.000000e+00> : vector<8x256xf32>
    %193 = tpu.matmul %183, %192, %cst_190 {dimension_numbers = #tpu.dot_dimension_numbers<[1], [0], [0], [1], [0, 0, 1, 1], [], []>} : vector<8x256xbf16>, vector<256x256xbf16>, vector<8x256xf32> -> vector<8x256xf32>
    %194 = arith.addf %190, %193 : vector<8x256xf32>
    %c7_191 = arith.constant 7 : index
    %c2_192 = arith.constant 2 : index
    %c0_193 = arith.constant 0 : index
    %c0_194 = arith.constant 0 : index
    %195 = vector.load %arg1[%c7_191, %c2_192, %c0_193, %c0_194] : memref<12x3x32x32xbf16, #tpu.memory_space<vmem>>, vector<1x1x8x8xbf16>
    %196 = vector.shape_cast %195 : vector<1x1x8x8xbf16> to vector<8x8xbf16>
    %cst_195 = arith.constant dense<0.000000e+00> : vector<8x256xf32>
    %197 = tpu.matmul %196, %183, %cst_195 {dimension_numbers = #tpu.dot_dimension_numbers<[1], [0], [0], [1], [0, 0, 1, 1], [], []>} : vector<8x8xbf16>, vector<8x256xbf16>, vector<8x256xf32> -> vector<8x256xf32>
    %198 = arith.truncf %197 : vector<8x256xf32> to vector<8x256xbf16>
    %c2_196 = arith.constant 2 : index
    %c0_197 = arith.constant 0 : index
    %c0_198 = arith.constant 0 : index
    %199 = vector.load %arg10[%c2_196, %c0_197, %c0_198] : memref<3x256x256xbf16, #tpu.memory_space<vmem>>, vector<1x256x256xbf16>
    %200 = vector.shape_cast %199 : vector<1x256x256xbf16> to vector<256x256xbf16>
    %cst_199 = arith.constant dense<0.000000e+00> : vector<8x256xf32>
    %201 = tpu.matmul %198, %200, %cst_199 {dimension_numbers = #tpu.dot_dimension_numbers<[1], [0], [0], [1], [0, 0, 1, 1], [], []>} : vector<8x256xbf16>, vector<256x256xbf16>, vector<8x256xf32> -> vector<8x256xf32>
    %202 = arith.addf %194, %201 : vector<8x256xf32>
    %c7_200 = arith.constant 7 : index
    %c0_201 = arith.constant 0 : index
    %203 = vector.load %arg2[%c7_200, %c0_201] : memref<18x512xf32, #tpu.memory_space<vmem>>, vector<1x256xf32>
    %204 = vector.broadcast %203 : vector<1x256xf32> to vector<8x256xf32>
    %205 = arith.addf %202, %204 : vector<8x256xf32>
    %cst_202 = arith.constant 0.000000e+00 : f32
    %206 = vector.broadcast %cst_202 : f32 to vector<8x256xf32>
    %207 = arith.maximumf %205, %206 : vector<8x256xf32>
    %c0_203 = arith.constant 0 : index
    %c0_204 = arith.constant 0 : index
    %208 = vector.load %arg19[%c0_203, %c0_204] : memref<8x256xf32, #tpu.memory_space<vmem>>, vector<8x256xf32>
    tpu.vector_store %arg19[%c0_203, %c0_204], %207 {strides = array<i32>} : memref<8x256xf32, #tpu.memory_space<vmem>>, vector<8x256xf32>,
    %209 = arith.truncf %207 : vector<8x256xf32> to vector<8x256xbf16>
    %c8 = arith.constant 8 : index
    %c0_205 = arith.constant 0 : index
    %c0_206 = arith.constant 0 : index
    %c0_207 = arith.constant 0 : index
    %210 = vector.load %arg1[%c8, %c0_205, %c0_206, %c0_207] : memref<12x3x32x32xbf16, #tpu.memory_space<vmem>>, vector<1x1x4x8xbf16>
    %211 = vector.shape_cast %210 : vector<1x1x4x8xbf16> to vector<4x8xbf16>
    %cst_208 = arith.constant dense<0.000000e+00> : vector<4x256xf32>
    %212 = tpu.matmul %211, %209, %cst_208 {dimension_numbers = #tpu.dot_dimension_numbers<[1], [0], [0], [1], [0, 0, 1, 1], [], []>} : vector<4x8xbf16>, vector<8x256xbf16>, vector<4x256xf32> -> vector<4x256xf32>
    %213 = arith.truncf %212 : vector<4x256xf32> to vector<4x256xbf16>
    %c0_209 = arith.constant 0 : index
    %c0_210 = arith.constant 0 : index
    %c0_211 = arith.constant 0 : index
    %214 = vector.load %arg11[%c0_209, %c0_210, %c0_211] : memref<3x256x256xbf16, #tpu.memory_space<vmem>>, vector<1x256x256xbf16>
    %215 = vector.shape_cast %214 : vector<1x256x256xbf16> to vector<256x256xbf16>
    %cst_212 = arith.constant dense<0.000000e+00> : vector<4x256xf32>
    %216 = tpu.matmul %213, %215, %cst_212 {dimension_numbers = #tpu.dot_dimension_numbers<[1], [0], [0], [1], [0, 0, 1, 1], [], []>} : vector<4x256xbf16>, vector<256x256xbf16>, vector<4x256xf32> -> vector<4x256xf32>
    %c8_213 = arith.constant 8 : index
    %c1_214 = arith.constant 1 : index
    %c0_215 = arith.constant 0 : index
    %c0_216 = arith.constant 0 : index
    %217 = vector.load %arg1[%c8_213, %c1_214, %c0_215, %c0_216] : memref<12x3x32x32xbf16, #tpu.memory_space<vmem>>, vector<1x1x4x8xbf16>
    %218 = vector.shape_cast %217 : vector<1x1x4x8xbf16> to vector<4x8xbf16>
    %cst_217 = arith.constant dense<0.000000e+00> : vector<4x256xf32>
    %219 = tpu.matmul %218, %209, %cst_217 {dimension_numbers = #tpu.dot_dimension_numbers<[1], [0], [0], [1], [0, 0, 1, 1], [], []>} : vector<4x8xbf16>, vector<8x256xbf16>, vector<4x256xf32> -> vector<4x256xf32>
    %220 = arith.truncf %219 : vector<4x256xf32> to vector<4x256xbf16>
    %c1_218 = arith.constant 1 : index
    %c0_219 = arith.constant 0 : index
    %c0_220 = arith.constant 0 : index
    %221 = vector.load %arg11[%c1_218, %c0_219, %c0_220] : memref<3x256x256xbf16, #tpu.memory_space<vmem>>, vector<1x256x256xbf16>
    %222 = vector.shape_cast %221 : vector<1x256x256xbf16> to vector<256x256xbf16>
    %cst_221 = arith.constant dense<0.000000e+00> : vector<4x256xf32>
    %223 = tpu.matmul %220, %222, %cst_221 {dimension_numbers = #tpu.dot_dimension_numbers<[1], [0], [0], [1], [0, 0, 1, 1], [], []>} : vector<4x256xbf16>, vector<256x256xbf16>, vector<4x256xf32> -> vector<4x256xf32>
    %224 = arith.addf %216, %223 : vector<4x256xf32>
    %c8_222 = arith.constant 8 : index
    %c2_223 = arith.constant 2 : index
    %c0_224 = arith.constant 0 : index
    %c0_225 = arith.constant 0 : index
    %225 = vector.load %arg1[%c8_222, %c2_223, %c0_224, %c0_225] : memref<12x3x32x32xbf16, #tpu.memory_space<vmem>>, vector<1x1x4x8xbf16>
    %226 = vector.shape_cast %225 : vector<1x1x4x8xbf16> to vector<4x8xbf16>
    %cst_226 = arith.constant dense<0.000000e+00> : vector<4x256xf32>
    %227 = tpu.matmul %226, %209, %cst_226 {dimension_numbers = #tpu.dot_dimension_numbers<[1], [0], [0], [1], [0, 0, 1, 1], [], []>} : vector<4x8xbf16>, vector<8x256xbf16>, vector<4x256xf32> -> vector<4x256xf32>
    %228 = arith.truncf %227 : vector<4x256xf32> to vector<4x256xbf16>
    %c2_227 = arith.constant 2 : index
    %c0_228 = arith.constant 0 : index
    %c0_229 = arith.constant 0 : index
    %229 = vector.load %arg11[%c2_227, %c0_228, %c0_229] : memref<3x256x256xbf16, #tpu.memory_space<vmem>>, vector<1x256x256xbf16>
    %230 = vector.shape_cast %229 : vector<1x256x256xbf16> to vector<256x256xbf16>
    %cst_230 = arith.constant dense<0.000000e+00> : vector<4x256xf32>
    %231 = tpu.matmul %228, %230, %cst_230 {dimension_numbers = #tpu.dot_dimension_numbers<[1], [0], [0], [1], [0, 0, 1, 1], [], []>} : vector<4x256xbf16>, vector<256x256xbf16>, vector<4x256xf32> -> vector<4x256xf32>
    %232 = arith.addf %224, %231 : vector<4x256xf32>
    %c8_231 = arith.constant 8 : index
    %c0_232 = arith.constant 0 : index
    %233 = vector.load %arg2[%c8_231, %c0_232] : memref<18x512xf32, #tpu.memory_space<vmem>>, vector<1x256xf32>
    %234 = vector.broadcast %233 : vector<1x256xf32> to vector<4x256xf32>
    %235 = arith.addf %232, %234 : vector<4x256xf32>
    %cst_233 = arith.constant 0.000000e+00 : f32
    %236 = vector.broadcast %cst_233 : f32 to vector<4x256xf32>
    %237 = arith.maximumf %235, %236 : vector<4x256xf32>
    %238 = arith.truncf %237 : vector<4x256xf32> to vector<4x256xbf16>
    %c9 = arith.constant 9 : index
    %c0_234 = arith.constant 0 : index
    %c0_235 = arith.constant 0 : index
    %c0_236 = arith.constant 0 : index
    %239 = vector.load %arg1[%c9, %c0_234, %c0_235, %c0_236] : memref<12x3x32x32xbf16, #tpu.memory_space<vmem>>, vector<1x1x4x4xbf16>
    %240 = vector.shape_cast %239 : vector<1x1x4x4xbf16> to vector<4x4xbf16>
    %cst_237 = arith.constant dense<0.000000e+00> : vector<4x256xf32>
    %241 = tpu.matmul %240, %238, %cst_237 {dimension_numbers = #tpu.dot_dimension_numbers<[1], [0], [0], [1], [0, 0, 1, 1], [], []>} : vector<4x4xbf16>, vector<4x256xbf16>, vector<4x256xf32> -> vector<4x256xf32>
    %242 = arith.truncf %241 : vector<4x256xf32> to vector<4x256xbf16>
    %c0_238 = arith.constant 0 : index
    %c0_239 = arith.constant 0 : index
    %c0_240 = arith.constant 0 : index
    %243 = vector.load %arg12[%c0_238, %c0_239, %c0_240] : memref<3x256x256xbf16, #tpu.memory_space<vmem>>, vector<1x256x256xbf16>
    %244 = vector.shape_cast %243 : vector<1x256x256xbf16> to vector<256x256xbf16>
    %cst_241 = arith.constant dense<0.000000e+00> : vector<4x256xf32>
    %245 = tpu.matmul %242, %244, %cst_241 {dimension_numbers = #tpu.dot_dimension_numbers<[1], [0], [0], [1], [0, 0, 1, 1], [], []>} : vector<4x256xbf16>, vector<256x256xbf16>, vector<4x256xf32> -> vector<4x256xf32>
    %c1_242 = arith.constant 1 : index
    %c0_243 = arith.constant 0 : index
    %c0_244 = arith.constant 0 : index
    %246 = vector.load %arg12[%c1_242, %c0_243, %c0_244] : memref<3x256x256xbf16, #tpu.memory_space<vmem>>, vector<1x256x256xbf16>
    %247 = vector.shape_cast %246 : vector<1x256x256xbf16> to vector<256x256xbf16>
    %cst_245 = arith.constant dense<0.000000e+00> : vector<4x256xf32>
    %248 = tpu.matmul %238, %247, %cst_245 {dimension_numbers = #tpu.dot_dimension_numbers<[1], [0], [0], [1], [0, 0, 1, 1], [], []>} : vector<4x256xbf16>, vector<256x256xbf16>, vector<4x256xf32> -> vector<4x256xf32>
    %249 = arith.addf %245, %248 : vector<4x256xf32>
    %c9_246 = arith.constant 9 : index
    %c2_247 = arith.constant 2 : index
    %c0_248 = arith.constant 0 : index
    %c0_249 = arith.constant 0 : index
    %250 = vector.load %arg1[%c9_246, %c2_247, %c0_248, %c0_249] : memref<12x3x32x32xbf16, #tpu.memory_space<vmem>>, vector<1x1x4x4xbf16>
    %251 = vector.shape_cast %250 : vector<1x1x4x4xbf16> to vector<4x4xbf16>
    %cst_250 = arith.constant dense<0.000000e+00> : vector<4x256xf32>
    %252 = tpu.matmul %251, %238, %cst_250 {dimension_numbers = #tpu.dot_dimension_numbers<[1], [0], [0], [1], [0, 0, 1, 1], [], []>} : vector<4x4xbf16>, vector<4x256xbf16>, vector<4x256xf32> -> vector<4x256xf32>
    %253 = arith.truncf %252 : vector<4x256xf32> to vector<4x256xbf16>
    %c2_251 = arith.constant 2 : index
    %c0_252 = arith.constant 0 : index
    %c0_253 = arith.constant 0 : index
    %254 = vector.load %arg12[%c2_251, %c0_252, %c0_253] : memref<3x256x256xbf16, #tpu.memory_space<vmem>>, vector<1x256x256xbf16>
    %255 = vector.shape_cast %254 : vector<1x256x256xbf16> to vector<256x256xbf16>
    %cst_254 = arith.constant dense<0.000000e+00> : vector<4x256xf32>
    %256 = tpu.matmul %253, %255, %cst_254 {dimension_numbers = #tpu.dot_dimension_numbers<[1], [0], [0], [1], [0, 0, 1, 1], [], []>} : vector<4x256xbf16>, vector<256x256xbf16>, vector<4x256xf32> -> vector<4x256xf32>
    %257 = arith.addf %249, %256 : vector<4x256xf32>
    %c9_255 = arith.constant 9 : index
    %c0_256 = arith.constant 0 : index
    %258 = vector.load %arg2[%c9_255, %c0_256] : memref<18x512xf32, #tpu.memory_space<vmem>>, vector<1x256xf32>
    %259 = vector.broadcast %258 : vector<1x256xf32> to vector<4x256xf32>
    %260 = arith.addf %257, %259 : vector<4x256xf32>
    %cst_257 = arith.constant 0.000000e+00 : f32
    %261 = vector.broadcast %cst_257 : f32 to vector<4x256xf32>
    %262 = arith.maximumf %260, %261 : vector<4x256xf32>
    %263 = arith.truncf %262 : vector<4x256xf32> to vector<4x256xbf16>
    %c10 = arith.constant 10 : index
    %c0_258 = arith.constant 0 : index
    %c0_259 = arith.constant 0 : index
    %c0_260 = arith.constant 0 : index
    %264 = vector.load %arg1[%c10, %c0_258, %c0_259, %c0_260] : memref<12x3x32x32xbf16, #tpu.memory_space<vmem>>, vector<1x1x4x4xbf16>
    %265 = vector.shape_cast %264 : vector<1x1x4x4xbf16> to vector<4x4xbf16>
    %cst_261 = arith.constant dense<0.000000e+00> : vector<4x256xf32>
    %266 = tpu.matmul %265, %263, %cst_261 {dimension_numbers = #tpu.dot_dimension_numbers<[1], [0], [0], [1], [0, 0, 1, 1], [], []>} : vector<4x4xbf16>, vector<4x256xbf16>, vector<4x256xf32> -> vector<4x256xf32>
    %267 = arith.truncf %266 : vector<4x256xf32> to vector<4x256xbf16>
    %c0_262 = arith.constant 0 : index
    %c0_263 = arith.constant 0 : index
    %c0_264 = arith.constant 0 : index
    %268 = vector.load %arg13[%c0_262, %c0_263, %c0_264] : memref<3x256x256xbf16, #tpu.memory_space<vmem>>, vector<1x256x256xbf16>
    %269 = vector.shape_cast %268 : vector<1x256x256xbf16> to vector<256x256xbf16>
    %cst_265 = arith.constant dense<0.000000e+00> : vector<4x256xf32>
    %270 = tpu.matmul %267, %269, %cst_265 {dimension_numbers = #tpu.dot_dimension_numbers<[1], [0], [0], [1], [0, 0, 1, 1], [], []>} : vector<4x256xbf16>, vector<256x256xbf16>, vector<4x256xf32> -> vector<4x256xf32>
    %c1_266 = arith.constant 1 : index
    %c0_267 = arith.constant 0 : index
    %c0_268 = arith.constant 0 : index
    %271 = vector.load %arg13[%c1_266, %c0_267, %c0_268] : memref<3x256x256xbf16, #tpu.memory_space<vmem>>, vector<1x256x256xbf16>
    %272 = vector.shape_cast %271 : vector<1x256x256xbf16> to vector<256x256xbf16>
    %cst_269 = arith.constant dense<0.000000e+00> : vector<4x256xf32>
    %273 = tpu.matmul %263, %272, %cst_269 {dimension_numbers = #tpu.dot_dimension_numbers<[1], [0], [0], [1], [0, 0, 1, 1], [], []>} : vector<4x256xbf16>, vector<256x256xbf16>, vector<4x256xf32> -> vector<4x256xf32>
    %274 = arith.addf %270, %273 : vector<4x256xf32>
    %c10_270 = arith.constant 10 : index
    %c2_271 = arith.constant 2 : index
    %c0_272 = arith.constant 0 : index
    %c0_273 = arith.constant 0 : index
    %275 = vector.load %arg1[%c10_270, %c2_271, %c0_272, %c0_273] : memref<12x3x32x32xbf16, #tpu.memory_space<vmem>>, vector<1x1x4x4xbf16>
    %276 = vector.shape_cast %275 : vector<1x1x4x4xbf16> to vector<4x4xbf16>
    %cst_274 = arith.constant dense<0.000000e+00> : vector<4x256xf32>
    %277 = tpu.matmul %276, %263, %cst_274 {dimension_numbers = #tpu.dot_dimension_numbers<[1], [0], [0], [1], [0, 0, 1, 1], [], []>} : vector<4x4xbf16>, vector<4x256xbf16>, vector<4x256xf32> -> vector<4x256xf32>
    %278 = arith.truncf %277 : vector<4x256xf32> to vector<4x256xbf16>
    %c2_275 = arith.constant 2 : index
    %c0_276 = arith.constant 0 : index
    %c0_277 = arith.constant 0 : index
    %279 = vector.load %arg13[%c2_275, %c0_276, %c0_277] : memref<3x256x256xbf16, #tpu.memory_space<vmem>>, vector<1x256x256xbf16>
    %280 = vector.shape_cast %279 : vector<1x256x256xbf16> to vector<256x256xbf16>
    %cst_278 = arith.constant dense<0.000000e+00> : vector<4x256xf32>
    %281 = tpu.matmul %278, %280, %cst_278 {dimension_numbers = #tpu.dot_dimension_numbers<[1], [0], [0], [1], [0, 0, 1, 1], [], []>} : vector<4x256xbf16>, vector<256x256xbf16>, vector<4x256xf32> -> vector<4x256xf32>
    %282 = arith.addf %274, %281 : vector<4x256xf32>
    %c10_279 = arith.constant 10 : index
    %c0_280 = arith.constant 0 : index
    %283 = vector.load %arg2[%c10_279, %c0_280] : memref<18x512xf32, #tpu.memory_space<vmem>>, vector<1x256xf32>
    %284 = vector.broadcast %283 : vector<1x256xf32> to vector<4x256xf32>
    %285 = arith.addf %282, %284 : vector<4x256xf32>
    %cst_281 = arith.constant 0.000000e+00 : f32
    %286 = vector.broadcast %cst_281 : f32 to vector<4x256xf32>
    %287 = arith.maximumf %285, %286 : vector<4x256xf32>
    %c0_282 = arith.constant 0 : index
    %c0_283 = arith.constant 0 : index
    %288 = vector.load %arg20[%c0_282, %c0_283] : memref<4x256xf32, #tpu.memory_space<vmem>>, vector<4x256xf32>
    tpu.vector_store %arg20[%c0_282, %c0_283], %287 {strides = array<i32>} : memref<4x256xf32, #tpu.memory_space<vmem>>, vector<4x256xf32>,
    %289 = arith.truncf %287 : vector<4x256xf32> to vector<4x256xbf16>
    %c11 = arith.constant 11 : index
    %c1_284 = arith.constant 1 : index
    %c0_285 = arith.constant 0 : index
    %c0_286 = arith.constant 0 : index
    %290 = vector.load %arg1[%c11, %c1_284, %c0_285, %c0_286] : memref<12x3x32x32xbf16, #tpu.memory_space<vmem>>, vector<1x1x2x4xbf16>
    %291 = vector.shape_cast %290 : vector<1x1x2x4xbf16> to vector<2x4xbf16>
    %cst_287 = arith.constant dense<0.000000e+00> : vector<2x256xf32>
    %292 = tpu.matmul %291, %289, %cst_287 {dimension_numbers = #tpu.dot_dimension_numbers<[1], [0], [0], [1], [0, 0, 1, 1], [], []>} : vector<2x4xbf16>, vector<4x256xbf16>, vector<2x256xf32> -> vector<2x256xf32>
    %293 = arith.truncf %292 : vector<2x256xf32> to vector<2x256xbf16>
    %c0_288 = arith.constant 0 : index
    %c0_289 = arith.constant 0 : index
    %c0_290 = arith.constant 0 : index
    %294 = vector.load %arg14[%c0_288, %c0_289, %c0_290] : memref<2x256x256xbf16, #tpu.memory_space<vmem>>, vector<1x256x256xbf16>
    %295 = vector.shape_cast %294 : vector<1x256x256xbf16> to vector<256x256xbf16>
    %cst_291 = arith.constant dense<0.000000e+00> : vector<2x256xf32>
    %296 = tpu.matmul %293, %295, %cst_291 {dimension_numbers = #tpu.dot_dimension_numbers<[1], [0], [0], [1], [0, 0, 1, 1], [], []>} : vector<2x256xbf16>, vector<256x256xbf16>, vector<2x256xf32> -> vector<2x256xf32>
    %c11_292 = arith.constant 11 : index
    %c2_293 = arith.constant 2 : index
    %c0_294 = arith.constant 0 : index
    %c0_295 = arith.constant 0 : index
    %297 = vector.load %arg1[%c11_292, %c2_293, %c0_294, %c0_295] : memref<12x3x32x32xbf16, #tpu.memory_space<vmem>>, vector<1x1x2x4xbf16>
    %298 = vector.shape_cast %297 : vector<1x1x2x4xbf16> to vector<2x4xbf16>
    %cst_296 = arith.constant dense<0.000000e+00> : vector<2x256xf32>
    %299 = tpu.matmul %298, %289, %cst_296 {dimension_numbers = #tpu.dot_dimension_numbers<[1], [0], [0], [1], [0, 0, 1, 1], [], []>} : vector<2x4xbf16>, vector<4x256xbf16>, vector<2x256xf32> -> vector<2x256xf32>
    %300 = arith.truncf %299 : vector<2x256xf32> to vector<2x256xbf16>
    %c1_297 = arith.constant 1 : index
    %c0_298 = arith.constant 0 : index
    %c0_299 = arith.constant 0 : index
    %301 = vector.load %arg14[%c1_297, %c0_298, %c0_299] : memref<2x256x256xbf16, #tpu.memory_space<vmem>>, vector<1x256x256xbf16>
    %302 = vector.shape_cast %301 : vector<1x256x256xbf16> to vector<256x256xbf16>
    %cst_300 = arith.constant dense<0.000000e+00> : vector<2x256xf32>
    %303 = tpu.matmul %300, %302, %cst_300 {dimension_numbers = #tpu.dot_dimension_numbers<[1], [0], [0], [1], [0, 0, 1, 1], [], []>} : vector<2x256xbf16>, vector<256x256xbf16>, vector<2x256xf32> -> vector<2x256xf32>
    %304 = arith.addf %296, %303 : vector<2x256xf32>
    %c11_301 = arith.constant 11 : index
    %c0_302 = arith.constant 0 : index
    %305 = vector.load %arg2[%c11_301, %c0_302] : memref<18x512xf32, #tpu.memory_space<vmem>>, vector<1x256xf32>
    %306 = vector.broadcast %305 : vector<1x256xf32> to vector<2x256xf32>
    %307 = arith.addf %304, %306 : vector<2x256xf32>
    %cst_303 = arith.constant 0.000000e+00 : f32
    %308 = vector.broadcast %cst_303 : f32 to vector<2x256xf32>
    %309 = arith.maximumf %307, %308 : vector<2x256xf32>
    %310 = arith.truncf %309 : vector<2x256xf32> to vector<2x256xbf16>
    %c0_304 = arith.constant 0 : index
    %c0_305 = arith.constant 0 : index
    %311 = vector.load %arg15[%c0_304, %c0_305] : memref<256x256xbf16, #tpu.memory_space<vmem>>, vector<256x256xbf16>
    %cst_306 = arith.constant dense<0.000000e+00> : vector<2x256xf32>
    %312 = tpu.matmul %310, %311, %cst_306 {dimension_numbers = #tpu.dot_dimension_numbers<[1], [0], [0], [1], [0, 0, 1, 1], [], []>} : vector<2x256xbf16>, vector<256x256xbf16>, vector<2x256xf32> -> vector<2x256xf32>
    %c12 = arith.constant 12 : index
    %c0_307 = arith.constant 0 : index
    %313 = vector.load %arg2[%c12, %c0_307] : memref<18x512xf32, #tpu.memory_space<vmem>>, vector<1x256xf32>
    %314 = vector.broadcast %313 : vector<1x256xf32> to vector<2x256xf32>
    %315 = arith.addf %312, %314 : vector<2x256xf32>
    %cst_308 = arith.constant 0.000000e+00 : f32
    %316 = vector.broadcast %cst_308 : f32 to vector<2x256xf32>
    %317 = arith.maximumf %315, %316 : vector<2x256xf32>
    %318 = arith.truncf %317 : vector<2x256xf32> to vector<2x256xbf16>
    %c0_309 = arith.constant 0 : index
    %c0_310 = arith.constant 0 : index
    %319 = vector.load %arg16[%c0_309, %c0_310] : memref<256x256xbf16, #tpu.memory_space<vmem>>, vector<256x256xbf16>
    %cst_311 = arith.constant dense<0.000000e+00> : vector<2x256xf32>
    %320 = tpu.matmul %318, %319, %cst_311 {dimension_numbers = #tpu.dot_dimension_numbers<[1], [0], [0], [1], [0, 0, 1, 1], [], []>} : vector<2x256xbf16>, vector<256x256xbf16>, vector<2x256xf32> -> vector<2x256xf32>
    %c13 = arith.constant 13 : index
    %c0_312 = arith.constant 0 : index
    %321 = vector.load %arg2[%c13, %c0_312] : memref<18x512xf32, #tpu.memory_space<vmem>>, vector<1x256xf32>
    %322 = vector.broadcast %321 : vector<1x256xf32> to vector<2x256xf32>
    %323 = arith.addf %320, %322 : vector<2x256xf32>
    %cst_313 = arith.constant 0.000000e+00 : f32
    %324 = vector.broadcast %cst_313 : f32 to vector<2x256xf32>
    %325 = arith.maximumf %323, %324 : vector<2x256xf32>
    %c0_314 = arith.constant 0 : index
    %c0_315 = arith.constant 0 : index
    %326 = vector.load %arg21[%c0_314, %c0_315] : memref<2x256xf32, #tpu.memory_space<vmem>>, vector<2x256xf32>
    tpu.vector_store %arg21[%c0_314, %c0_315], %325 {strides = array<i32>} : memref<2x256xf32, #tpu.memory_space<vmem>>, vector<2x256xf32>,
    %327 = arith.truncf %325 : vector<2x256xf32> to vector<2x256xbf16>
    %c0_316 = arith.constant 0 : index
    %c0_317 = arith.constant 0 : index
    %328 = vector.load %arg17[%c0_316, %c0_317] : memref<256x512xbf16, #tpu.memory_space<vmem>>, vector<256x512xbf16>
    %cst_318 = arith.constant dense<0.000000e+00> : vector<2x512xf32>
    %329 = tpu.matmul %327, %328, %cst_318 {dimension_numbers = #tpu.dot_dimension_numbers<[1], [0], [0], [1], [0, 0, 1, 1], [], []>} : vector<2x256xbf16>, vector<256x512xbf16>, vector<2x512xf32> -> vector<2x512xf32>
    %c14 = arith.constant 14 : index
    %c0_319 = arith.constant 0 : index
    %330 = vector.load %arg2[%c14, %c0_319] : memref<18x512xf32, #tpu.memory_space<vmem>>, vector<1x512xf32>
    %331 = vector.broadcast %330 : vector<1x512xf32> to vector<2x512xf32>
    %332 = arith.addf %329, %331 : vector<2x512xf32>
    %cst_320 = arith.constant 0.000000e+00 : f32
    %333 = vector.broadcast %cst_320 : f32 to vector<2x512xf32>
    %334 = arith.maximumf %332, %333 : vector<2x512xf32>
    %335 = arith.truncf %334 : vector<2x512xf32> to vector<2x512xbf16>
    tpu.wait_dma2 semaphore(%arg24 : memref<!tpu.dma_semaphore, #tpu.memory_space<semaphore_mem>>) src(%arg18 : memref<3x512x512xbf16, #tpu.memory_space<any>>) dst(%arg23 : memref<3x512x512xbf16, #tpu.memory_space<vmem>>)
    %c0_321 = arith.constant 0 : index
    %c0_322 = arith.constant 0 : index
    %c0_323 = arith.constant 0 : index
    %336 = vector.load %arg23[%c0_321, %c0_322, %c0_323] : memref<3x512x512xbf16, #tpu.memory_space<vmem>>, vector<1x512x512xbf16>
    %337 = vector.shape_cast %336 : vector<1x512x512xbf16> to vector<512x512xbf16>
    %cst_324 = arith.constant dense<0.000000e+00> : vector<2x512xf32>
    %338 = tpu.matmul %335, %337, %cst_324 {dimension_numbers = #tpu.dot_dimension_numbers<[1], [0], [0], [1], [0, 0, 1, 1], [], []>} : vector<2x512xbf16>, vector<512x512xbf16>, vector<2x512xf32> -> vector<2x512xf32>
    %c15 = arith.constant 15 : index
    %c0_325 = arith.constant 0 : index
    %339 = vector.load %arg2[%c15, %c0_325] : memref<18x512xf32, #tpu.memory_space<vmem>>, vector<1x512xf32>
    %340 = vector.broadcast %339 : vector<1x512xf32> to vector<2x512xf32>
    %341 = arith.addf %338, %340 : vector<2x512xf32>
    %cst_326 = arith.constant 0.000000e+00 : f32
    %342 = vector.broadcast %cst_326 : f32 to vector<2x512xf32>
    %343 = arith.maximumf %341, %342 : vector<2x512xf32>
    %344 = arith.truncf %343 : vector<2x512xf32> to vector<2x512xbf16>
    %c1_327 = arith.constant 1 : index
    %c0_328 = arith.constant 0 : index
    %c0_329 = arith.constant 0 : index
    %345 = vector.load %arg23[%c1_327, %c0_328, %c0_329] : memref<3x512x512xbf16, #tpu.memory_space<vmem>>, vector<1x512x512xbf16>
    %346 = vector.shape_cast %345 : vector<1x512x512xbf16> to vector<512x512xbf16>
    %cst_330 = arith.constant dense<0.000000e+00> : vector<2x512xf32>
    %347 = tpu.matmul %344, %346, %cst_330 {dimension_numbers = #tpu.dot_dimension_numbers<[1], [0], [0], [1], [0, 0, 1, 1], [], []>} : vector<2x512xbf16>, vector<512x512xbf16>, vector<2x512xf32> -> vector<2x512xf32>
    %c16 = arith.constant 16 : index
    %c0_331 = arith.constant 0 : index
    %348 = vector.load %arg2[%c16, %c0_331] : memref<18x512xf32, #tpu.memory_space<vmem>>, vector<1x512xf32>
    %349 = vector.broadcast %348 : vector<1x512xf32> to vector<2x512xf32>
    %350 = arith.addf %347, %349 : vector<2x512xf32>
    %cst_332 = arith.constant 0.000000e+00 : f32
    %351 = vector.broadcast %cst_332 : f32 to vector<2x512xf32>
    %352 = arith.maximumf %350, %351 : vector<2x512xf32>
    %353 = arith.truncf %352 : vector<2x512xf32> to vector<2x512xbf16>
    %c2_333 = arith.constant 2 : index
    %c0_334 = arith.constant 0 : index
    %c0_335 = arith.constant 0 : index
    %354 = vector.load %arg23[%c2_333, %c0_334, %c0_335] : memref<3x512x512xbf16, #tpu.memory_space<vmem>>, vector<1x512x512xbf16>
    %355 = vector.shape_cast %354 : vector<1x512x512xbf16> to vector<512x512xbf16>
    %cst_336 = arith.constant dense<0.000000e+00> : vector<2x512xf32>
    %356 = tpu.matmul %353, %355, %cst_336 {dimension_numbers = #tpu.dot_dimension_numbers<[1], [0], [0], [1], [0, 0, 1, 1], [], []>} : vector<2x512xbf16>, vector<512x512xbf16>, vector<2x512xf32> -> vector<2x512xf32>
    %c17 = arith.constant 17 : index
    %c0_337 = arith.constant 0 : index
    %357 = vector.load %arg2[%c17, %c0_337] : memref<18x512xf32, #tpu.memory_space<vmem>>, vector<1x512xf32>
    %358 = vector.broadcast %357 : vector<1x512xf32> to vector<2x512xf32>
    %359 = arith.addf %356, %358 : vector<2x512xf32>
    %cst_338 = arith.constant 0.000000e+00 : f32
    %360 = vector.broadcast %cst_338 : f32 to vector<2x512xf32>
    %361 = arith.maximumf %359, %360 : vector<2x512xf32>
    %c0_339 = arith.constant 0 : index
    %c0_340 = arith.constant 0 : index
    %362 = vector.load %arg22[%c0_339, %c0_340] : memref<2x512xf32, #tpu.memory_space<vmem>>, vector<2x512xf32>
    tpu.vector_store %arg22[%c0_339, %c0_340], %361 {strides = array<i32>} : memref<2x512xf32, #tpu.memory_space<vmem>>, vector<2x512xf32>,
    return
  }
}

</mosaic_0001>

<llo_original>
// kernel: vgg_forward.1
$region0: #{vgg_forward.1}
  #allocation0 [shape = 'u32[]', space=smem, size = 0x4, offset = 0x4, fixed_abs, tag = 'smem constant byte address 0x4 - core index']
  #allocation1 [shape = 'u32[144,128]{1,0:T(1,128)}', space=vmem, size = 0x12000, scoped, tag = 'internal scratch']
  #allocation2 [shape = 'bf16[3,512,512]{2,1,0:T(16,128)(2,1)}', space=vmem, size = 0x180000, scoped, tag = 'scratch operand']
  #allocation3 [shape = 's32[1]{0}', space=sflag, size = 0x4, scoped, tag = 'scratch operand']
  #allocation30 [shape = 's32[]', space=sflag, size = 0x4, offset = 0, fixed_abs, tag = 'sflag constant byte address 0x0 - dummy sync flag']
  %s0 = inlined_call_operand.vmem [shape: bf16[32,64], index: 0, kind: input, shape index: {}]
  %s1 = inlined_call_operand.hbm [shape: bf16[12,3,32,32], index: 1, kind: input, shape index: {}]
  %s2 = inlined_call_operand.hbm [shape: f32[18,512], index: 2, kind: input, shape index: {}]
  %s3 = inlined_call_operand.hbm [shape: bf16[3,64,256], index: 3, kind: input, shape index: {}]
  %s4 = inlined_call_operand.hbm [shape: bf16[3,256,256], index: 4, kind: input, shape index: {}]
  %s5 = inlined_call_operand.hbm [shape: bf16[3,256,256], index: 5, kind: input, shape index: {}]
  %s6 = inlined_call_operand.hbm [shape: bf16[3,256,256], index: 6, kind: input, shape index: {}]
  %s7 = inlined_call_operand.hbm [shape: bf16[3,256,256], index: 7, kind: input, shape index: {}]
  %s8 = inlined_call_operand.hbm [shape: bf16[3,256,256], index: 8, kind: input, shape index: {}]
  %s9 = inlined_call_operand.hbm [shape: bf16[3,256,256], index: 9, kind: input, shape index: {}]
  %s10 = inlined_call_operand.hbm [shape: bf16[3,256,256], index: 10, kind: input, shape index: {}]
  %s11 = inlined_call_operand.hbm [shape: bf16[3,256,256], index: 11, kind: input, shape index: {}]
  %s12 = inlined_call_operand.hbm [shape: bf16[3,256,256], index: 12, kind: input, shape index: {}]
  %s13 = inlined_call_operand.hbm [shape: bf16[3,256,256], index: 13, kind: input, shape index: {}]
  %s14 = inlined_call_operand.hbm [shape: bf16[2,256,256], index: 14, kind: input, shape index: {}]
  %s15 = inlined_call_operand.hbm [shape: bf16[256,256], index: 15, kind: input, shape index: {}]
  %s16 = inlined_call_operand.hbm [shape: bf16[256,256], index: 16, kind: input, shape index: {}]
  %s17 = inlined_call_operand.hbm [shape: bf16[256,512], index: 17, kind: input, shape index: {}]
  %s18 = inlined_call_operand.hbm [shape: bf16[3,512,512], index: 18, kind: input, shape index: {}]
  %s19 = inlined_call_operand.vmem [shape: f32[8,256], index: 19, kind: output, shape index: {0}]
  %s20 = inlined_call_operand.vmem [shape: f32[4,256], index: 20, kind: output, shape index: {1}]
  %s21 = inlined_call_operand.vmem [shape: f32[2,256], index: 21, kind: output, shape index: {2}]
  %s22 = inlined_call_operand.vmem [shape: f32[2,512], index: 22, kind: output, shape index: {3}]
  %23 = xla_tuple %s19, %s20, %s21, %s22
  %s24 = sld [smem:[#allocation0]]
  $region174: #{vgg_forward.1} parent=0
    _
  %s26 = ssub.s32 1, %s24
  %s27 = scalar_select 0, %s26, %s24
  $region1: #{vgg_forward.1} parent=0
    #allocation4 [shape = 'u8[294912]{0}', space=vmem, size = 0x48000, scoped, tag = 'input window, operand 1, single buffered']
    #allocation5 [shape = 's32[1]{0}', space=sflag, size = 0x4, scoped, tag = 'scoped memory for vgg_forward.1']
    #allocation6 [shape = 'u8[49152]{0}', space=vmem, size = 0xc000, scoped, tag = 'input window, operand 2, single buffered']
    #allocation7 [shape = 's32[1]{0}', space=sflag, size = 0x4, scoped, tag = 'scoped memory for vgg_forward.1']
    #allocation8 [shape = 'u8[98304]{0}', space=vmem, size = 0x18000, scoped, tag = 'input window, operand 3, single buffered']
    #allocation9 [shape = 'u8[393216]{0}', space=vmem, size = 0x60000, scoped, tag = 'input window, operand 4, single buffered']
    #allocation10 [shape = 's32[1]{0}', space=sflag, size = 0x4, scoped, tag = 'scoped memory for vgg_forward.1']
    #allocation11 [shape = 'u8[393216]{0}', space=vmem, size = 0x60000, scoped, tag = 'input window, operand 5, single buffered']
    #allocation12 [shape = 'u8[393216]{0}', space=vmem, size = 0x60000, scoped, tag = 'input window, operand 6, single buffered']
    #allocation13 [shape = 's32[1]{0}', space=sflag, size = 0x4, scoped, tag = 'scoped memory for vgg_forward.1']
    #allocation14 [shape = 'u8[393216]{0}', space=vmem, size = 0x60000, scoped, tag = 'input window, operand 7, single buffered']
    #allocation15 [shape = 'u8[393216]{0}', space=vmem, size = 0x60000, scoped, tag = 'input window, operand 8, single buffered']
    #allocation16 [shape = 's32[1]{0}', space=sflag, size = 0x4, scoped, tag = 'scoped memory for vgg_forward.1']
    #allocation17 [shape = 'u8[393216]{0}', space=vmem, size = 0x60000, scoped, tag = 'input window, operand 9, single buffered']
    #allocation18 [shape = 'u8[393216]{0}', space=vmem, size = 0x60000, scoped, tag = 'input window, operand 10, single buffered']
    #allocation19 [shape = 's32[1]{0}', space=sflag, size = 0x4, scoped, tag = 'scoped memory for vgg_forward.1']
    #allocation20 [shape = 'u8[393216]{0}', space=vmem, size = 0x60000, scoped, tag = 'input window, operand 11, single buffered']
    #allocation21 [shape = 'u8[393216]{0}', space=vmem, size = 0x60000, scoped, tag = 'input window, operand 12, single buffered']
    #allocation22 [shape = 's32[1]{0}', space=sflag, size = 0x4, scoped, tag = 'scoped memory for vgg_forward.1']
    #allocation23 [shape = 'u8[393216]{0}', space=vmem, size = 0x60000, scoped, tag = 'input window, operand 13, single buffered']
    #allocation24 [shape = 'u8[262144]{0}', space=vmem, size = 0x40000, scoped, tag = 'input window, operand 14, single buffered']
    #allocation25 [shape = 's32[1]{0}', space=sflag, size = 0x4, scoped, tag = 'scoped memory for vgg_forward.1']
    #allocation26 [shape = 'u8[131072]{0}', space=vmem, size = 0x20000, scoped, tag = 'input window, operand 15, single buffered']
    #allocation27 [shape = 'u8[131072]{0}', space=vmem, size = 0x20000, scoped, tag = 'input window, operand 16, single buffered']
    #allocation28 [shape = 's32[1]{0}', space=sflag, size = 0x4, scoped, tag = 'scoped memory for vgg_forward.1']
    #allocation29 [shape = 'u8[262144]{0}', space=vmem, size = 0x40000, scoped, tag = 'input window, operand 17, single buffered']
    #allocation31 [shape = 'u32[9]{0}', space=smem, size = 0x24, scoped, tag = 'DMA stride descriptor']
    %28 = vsyncpa [#allocation5], 0
    %29 = vsyncpa [#allocation7], 0
    %30 = vsyncpa [#allocation10], 0
    %31 = vsyncpa [#allocation13], 0
    %32 = vsyncpa [#allocation16], 0
    %33 = vsyncpa [#allocation19], 0
    %34 = vsyncpa [#allocation22], 0
    %35 = vsyncpa [#allocation25], 0
    %36 = vsyncpa [#allocation28], 0
    // Predicated region
    $region2: #{vgg_forward.1} parent=1 // pred_check
      _
    $region3: #{vgg_forward.1} parent=1 // pred_check_branch
      %38 = sbr.rel (0) target = $region5
    $region4: #{vgg_forward.1} parent=1 // pred_region
      _
    $region5: #{vgg_forward.1} parent=1 // pred_fallthru
      _
    // Predicated region
    $region6: #{vgg_forward.1} parent=1 // pred_check
      _
    $region7: #{vgg_forward.1} parent=1 // pred_check_branch
      %40 = sbr.rel (0) target = $region9
    $region8: #{vgg_forward.1} parent=1 // pred_region
      %s42 = ssub.s32 9216, 9216
      %43 = vsyncadd [#allocation5], %s42
      %s44 = sshll.u32 [#allocation4], 4
      %s45 = int_to_ptr.vmem [resolvable:$true] %s44
      %50 = dma.hbm_to_vmem [thread:$0]  %s1, 9216, %s45, [#allocation5], 64, 64, 4
    $region9: #{vgg_forward.1} parent=1 // pred_fallthru
      _
    // Predicated region
    $region10: #{vgg_forward.1} parent=1 // pred_check
      _
    $region11: #{vgg_forward.1} parent=1 // pred_check_branch
      %52 = sbr.rel (0) target = $region13
    $region12: #{vgg_forward.1} parent=1 // pred_region
      %s54 = ssub.s32 1536, 1536
      %55 = vsyncadd [#allocation7], %s54
      %s56 = sshll.u32 [#allocation6], 4
      %s57 = int_to_ptr.vmem [resolvable:$true] %s56
      %62 = dma.hbm_to_vmem [thread:$0]  %s2, 1536, %s57, [#allocation7], 512, 512, 32
    $region13: #{vgg_forward.1} parent=1 // pred_fallthru
      _
    // Predicated region
    $region14: #{vgg_forward.1} parent=1 // pred_check
      _
    $region15: #{vgg_forward.1} parent=1 // pred_check_branch
      %64 = sbr.rel (0) target = $region17
    $region16: #{vgg_forward.1} parent=1 // pred_region
      %s66 = ssub.s32 3072, 3072
      %67 = vsyncadd [#allocation7], %s66
      %s68 = sshll.u32 [#allocation8], 4
      %s69 = int_to_ptr.vmem [resolvable:$true] %s68
      %74 = dma.hbm_to_vmem [thread:$0]  %s3, 3072, %s69, [#allocation7], 128, 128, 8
    $region17: #{vgg_forward.1} parent=1 // pred_fallthru
      _
    // Predicated region
    $region18: #{vgg_forward.1} parent=1 // pred_check
      _
    $region19: #{vgg_forward.1} parent=1 // pred_check_branch
      %76 = sbr.rel (0) target = $region21
    $region20: #{vgg_forward.1} parent=1 // pred_region
      %s78 = ssub.s32 12288, 12288
      %79 = vsyncadd [#allocation10], %s78
      %s80 = sshll.u32 [#allocation9], 4
      %s81 = int_to_ptr.vmem [resolvable:$true] %s80
      %86 = dma.hbm_to_vmem [thread:$0]  %s4, 12288, %s81, [#allocation10], 128, 128, 8
    $region21: #{vgg_forward.1} parent=1 // pred_fallthru
      _
    // Predicated region
    $region22: #{vgg_forward.1} parent=1 // pred_check
      _
    $region23: #{vgg_forward.1} parent=1 // pred_check_branch
      %88 = sbr.rel (0) target = $region25
    $region24: #{vgg_forward.1} parent=1 // pred_region
      %s90 = ssub.s32 12288, 12288
      %91 = vsyncadd [#allocation10], %s90
      %s92 = sshll.u32 [#allocation11], 4
      %s93 = int_to_ptr.vmem [resolvable:$true] %s92
      %98 = dma.hbm_to_vmem [thread:$0]  %s5, 12288, %s93, [#allocation10], 128, 128, 8
    $region25: #{vgg_forward.1} parent=1 // pred_fallthru
      _
    // Predicated region
    $region26: #{vgg_forward.1} parent=1 // pred_check
      _
    $region27: #{vgg_forward.1} parent=1 // pred_check_branch
      %100 = sbr.rel (0) target = $region29
    $region28: #{vgg_forward.1} parent=1 // pred_region
      %s102 = ssub.s32 12288, 12288
      %103 = vsyncadd [#allocation13], %s102
      %s104 = sshll.u32 [#allocation12], 4
      %s105 = int_to_ptr.vmem [resolvable:$true] %s104
      %110 = dma.hbm_to_vmem [thread:$0]  %s6, 12288, %s105, [#allocation13], 128, 128, 8
    $region29: #{vgg_forward.1} parent=1 // pred_fallthru
      _
    // Predicated region
    $region30: #{vgg_forward.1} parent=1 // pred_check
      _
    $region31: #{vgg_forward.1} parent=1 // pred_check_branch
      %112 = sbr.rel (0) target = $region33
    $region32: #{vgg_forward.1} parent=1 // pred_region
      %s114 = ssub.s32 12288, 12288
      %115 = vsyncadd [#allocation13], %s114
      %s116 = sshll.u32 [#allocation14], 4
      %s117 = int_to_ptr.vmem [resolvable:$true] %s116
      %122 = dma.hbm_to_vmem [thread:$0]  %s7, 12288, %s117, [#allocation13], 128, 128, 8
    $region33: #{vgg_forward.1} parent=1 // pred_fallthru
      _
    // Predicated region
    $region34: #{vgg_forward.1} parent=1 // pred_check
      _
    $region35: #{vgg_forward.1} parent=1 // pred_check_branch
      %124 = sbr.rel (0) target = $region37
    $region36: #{vgg_forward.1} parent=1 // pred_region
      %s126 = ssub.s32 12288, 12288
      %127 = vsyncadd [#allocation16], %s126
      %s128 = sshll.u32 [#allocation15], 4
      %s129 = int_to_ptr.vmem [resolvable:$true] %s128
      %134 = dma.hbm_to_vmem [thread:$0]  %s8, 12288, %s129, [#allocation16], 128, 128, 8
    $region37: #{vgg_forward.1} parent=1 // pred_fallthru
      _
    // Predicated region
    $region38: #{vgg_forward.1} parent=1 // pred_check
      _
    $region39: #{vgg_forward.1} parent=1 // pred_check_branch
      %136 = sbr.rel (0) target = $region41
    $region40: #{vgg_forward.1} parent=1 // pred_region
      %s138 = ssub.s32 12288, 12288
      %139 = vsyncadd [#allocation16], %s138
      %s140 = sshll.u32 [#allocation17], 4
      %s141 = int_to_ptr.vmem [resolvable:$true] %s140
      %146 = dma.hbm_to_vmem [thread:$0]  %s9, 12288, %s141, [#allocation16], 128, 128, 8
    $region41: #{vgg_forward.1} parent=1 // pred_fallthru
      _
    // Predicated region
    $region42: #{vgg_forward.1} parent=1 // pred_check
      _
    $region43: #{vgg_forward.1} parent=1 // pred_check_branch
      %148 = sbr.rel (0) target = $region45
    $region44: #{vgg_forward.1} parent=1 // pred_region
      %s150 = ssub.s32 12288, 12288
      %151 = vsyncadd [#allocation19], %s150
      %s152 = sshll.u32 [#allocation18], 4
      %s153 = int_to_ptr.vmem [resolvable:$true] %s152
      %158 = dma.hbm_to_vmem [thread:$0]  %s10, 12288, %s153, [#allocation19], 128, 128, 8
    $region45: #{vgg_forward.1} parent=1 // pred_fallthru
      _
    // Predicated region
    $region46: #{vgg_forward.1} parent=1 // pred_check
      _
    $region47: #{vgg_forward.1} parent=1 // pred_check_branch
      %160 = sbr.rel (0) target = $region49
    $region48: #{vgg_forward.1} parent=1 // pred_region
      %s162 = ssub.s32 12288, 12288
      %163 = vsyncadd [#allocation19], %s162
      %s164 = sshll.u32 [#allocation20], 4
      %s165 = int_to_ptr.vmem [resolvable:$true] %s164
      %170 = dma.hbm_to_vmem [thread:$0]  %s11, 12288, %s165, [#allocation19], 128, 128, 8
    $region49: #{vgg_forward.1} parent=1 // pred_fallthru
      _
    // Predicated region
    $region50: #{vgg_forward.1} parent=1 // pred_check
      _
    $region51: #{vgg_forward.1} parent=1 // pred_check_branch
      %172 = sbr.rel (0) target = $region53
    $region52: #{vgg_forward.1} parent=1 // pred_region
      %s174 = ssub.s32 12288, 12288
      %175 = vsyncadd [#allocation22], %s174
      %s176 = sshll.u32 [#allocation21], 4
      %s177 = int_to_ptr.vmem [resolvable:$true] %s176
      %182 = dma.hbm_to_vmem [thread:$0]  %s12, 12288, %s177, [#allocation22], 128, 128, 8
    $region53: #{vgg_forward.1} parent=1 // pred_fallthru
      _
    // Predicated region
    $region54: #{vgg_forward.1} parent=1 // pred_check
      _
    $region55: #{vgg_forward.1} parent=1 // pred_check_branch
      %184 = sbr.rel (0) target = $region57
    $region56: #{vgg_forward.1} parent=1 // pred_region
      %s186 = ssub.s32 12288, 12288
      %187 = vsyncadd [#allocation22], %s186
      %s188 = sshll.u32 [#allocation23], 4
      %s189 = int_to_ptr.vmem [resolvable:$true] %s188
      %194 = dma.hbm_to_vmem [thread:$0]  %s13, 12288, %s189, [#allocation22], 128, 128, 8
    $region57: #{vgg_forward.1} parent=1 // pred_fallthru
      _
    // Predicated region
    $region58: #{vgg_forward.1} parent=1 // pred_check
      _
    $region59: #{vgg_forward.1} parent=1 // pred_check_branch
      %196 = sbr.rel (0) target = $region61
    $region60: #{vgg_forward.1} parent=1 // pred_region
      %s198 = ssub.s32 8192, 8192
      %199 = vsyncadd [#allocation25], %s198
      %s200 = sshll.u32 [#allocation24], 4
      %s201 = int_to_ptr.vmem [resolvable:$true] %s200
      %206 = dma.hbm_to_vmem [thread:$0]  %s14, 8192, %s201, [#allocation25], 128, 128, 8
    $region61: #{vgg_forward.1} parent=1 // pred_fallthru
      _
    // Predicated region
    $region62: #{vgg_forward.1} parent=1 // pred_check
      _
    $region63: #{vgg_forward.1} parent=1 // pred_check_branch
      %208 = sbr.rel (0) target = $region65
    $region64: #{vgg_forward.1} parent=1 // pred_region
      %s210 = ssub.s32 4096, 4096
      %211 = vsyncadd [#allocation25], %s210
      %s212 = sshll.u32 [#allocation26], 4
      %s213 = int_to_ptr.vmem [resolvable:$true] %s212
      %218 = dma.hbm_to_vmem [thread:$0]  %s15, 4096, %s213, [#allocation25], 128, 128, 8
    $region65: #{vgg_forward.1} parent=1 // pred_fallthru
      _
    // Predicated region
    $region66: #{vgg_forward.1} parent=1 // pred_check
      _
    $region67: #{vgg_forward.1} parent=1 // pred_check_branch
      %220 = sbr.rel (0) target = $region69
    $region68: #{vgg_forward.1} parent=1 // pred_region
      %s222 = ssub.s32 4096, 4096
      %223 = vsyncadd [#allocation28], %s222
      %s224 = sshll.u32 [#allocation27], 4
      %s225 = int_to_ptr.vmem [resolvable:$true] %s224
      %230 = dma.hbm_to_vmem [thread:$0]  %s16, 4096, %s225, [#allocation28], 128, 128, 8
    $region69: #{vgg_forward.1} parent=1 // pred_fallthru
      _
    // Predicated region
    $region70: #{vgg_forward.1} parent=1 // pred_check
      _
    $region71: #{vgg_forward.1} parent=1 // pred_check_branch
      %232 = sbr.rel (0) target = $region73
    $region72: #{vgg_forward.1} parent=1 // pred_region
      %s234 = ssub.s32 8192, 8192
      %235 = vsyncadd [#allocation28], %s234
      %s236 = sshll.u32 [#allocation29], 4
      %s237 = int_to_ptr.vmem [resolvable:$true] %s236
      %242 = dma.hbm_to_vmem [thread:$0]  %s17, 8192, %s237, [#allocation28], 256, 256, 16
    $region73: #{vgg_forward.1} parent=1 // pred_fallthru
      _
    // Predicated region
    $region74: #{vgg_forward.1} parent=1 // pred_check
      _
    $region75: #{vgg_forward.1} parent=1 // pred_check_branch
      %244 = sbr.rel (0) target = $region77
    $region76: #{vgg_forward.1} parent=1 // pred_region
      %245 = dma.done [#allocation5], 9216
    $region77: #{vgg_forward.1} parent=1 // pred_fallthru
      _
    // Predicated region
    $region78: #{vgg_forward.1} parent=1 // pred_check
      _
    $region79: #{vgg_forward.1} parent=1 // pred_check_branch
      %247 = sbr.rel (0) target = $region81
    $region80: #{vgg_forward.1} parent=1 // pred_region
      %248 = dma.done [#allocation7], 1536
    $region81: #{vgg_forward.1} parent=1 // pred_fallthru
      _
    // Predicated region
    $region82: #{vgg_forward.1} parent=1 // pred_check
      _
    $region83: #{vgg_forward.1} parent=1 // pred_check_branch
      %250 = sbr.rel (0) target = $region85
    $region84: #{vgg_forward.1} parent=1 // pred_region
      %251 = dma.done [#allocation7], 3072
    $region85: #{vgg_forward.1} parent=1 // pred_fallthru
      _
    // Predicated region
    $region86: #{vgg_forward.1} parent=1 // pred_check
      _
    $region87: #{vgg_forward.1} parent=1 // pred_check_branch
      %253 = sbr.rel (0) target = $region89
    $region88: #{vgg_forward.1} parent=1 // pred_region
      %254 = dma.done [#allocation10], 12288
    $region89: #{vgg_forward.1} parent=1 // pred_fallthru
      _
    // Predicated region
    $region90: #{vgg_forward.1} parent=1 // pred_check
      _
    $region91: #{vgg_forward.1} parent=1 // pred_check_branch
      %256 = sbr.rel (0) target = $region93
    $region92: #{vgg_forward.1} parent=1 // pred_region
      %257 = dma.done [#allocation10], 12288
    $region93: #{vgg_forward.1} parent=1 // pred_fallthru
      _
    // Predicated region
    $region94: #{vgg_forward.1} parent=1 // pred_check
      _
    $region95: #{vgg_forward.1} parent=1 // pred_check_branch
      %259 = sbr.rel (0) target = $region97
    $region96: #{vgg_forward.1} parent=1 // pred_region
      %260 = dma.done [#allocation13], 12288
    $region97: #{vgg_forward.1} parent=1 // pred_fallthru
      _
    // Predicated region
    $region98: #{vgg_forward.1} parent=1 // pred_check
      _
    $region99: #{vgg_forward.1} parent=1 // pred_check_branch
      %262 = sbr.rel (0) target = $region101
    $region100: #{vgg_forward.1} parent=1 // pred_region
      %263 = dma.done [#allocation13], 12288
    $region101: #{vgg_forward.1} parent=1 // pred_fallthru
      _
    // Predicated region
    $region102: #{vgg_forward.1} parent=1 // pred_check
      _
    $region103: #{vgg_forward.1} parent=1 // pred_check_branch
      %265 = sbr.rel (0) target = $region105
    $region104: #{vgg_forward.1} parent=1 // pred_region
      %266 = dma.done [#allocation16], 12288
    $region105: #{vgg_forward.1} parent=1 // pred_fallthru
      _
    // Predicated region
    $region106: #{vgg_forward.1} parent=1 // pred_check
      _
    $region107: #{vgg_forward.1} parent=1 // pred_check_branch
      %268 = sbr.rel (0) target = $region109
    $region108: #{vgg_forward.1} parent=1 // pred_region
      %269 = dma.done [#allocation16], 12288
    $region109: #{vgg_forward.1} parent=1 // pred_fallthru
      _
    // Predicated region
    $region110: #{vgg_forward.1} parent=1 // pred_check
      _
    $region111: #{vgg_forward.1} parent=1 // pred_check_branch
      %271 = sbr.rel (0) target = $region113
    $region112: #{vgg_forward.1} parent=1 // pred_region
      %272 = dma.done [#allocation19], 12288
    $region113: #{vgg_forward.1} parent=1 // pred_fallthru
      _
    // Predicated region
    $region114: #{vgg_forward.1} parent=1 // pred_check
      _
    $region115: #{vgg_forward.1} parent=1 // pred_check_branch
      %274 = sbr.rel (0) target = $region117
    $region116: #{vgg_forward.1} parent=1 // pred_region
      %275 = dma.done [#allocation19], 12288
    $region117: #{vgg_forward.1} parent=1 // pred_fallthru
      _
    // Predicated region
    $region118: #{vgg_forward.1} parent=1 // pred_check
      _
    $region119: #{vgg_forward.1} parent=1 // pred_check_branch
      %277 = sbr.rel (0) target = $region121
    $region120: #{vgg_forward.1} parent=1 // pred_region
      %278 = dma.done [#allocation22], 12288
    $region121: #{vgg_forward.1} parent=1 // pred_fallthru
      _
    // Predicated region
    $region122: #{vgg_forward.1} parent=1 // pred_check
      _
    $region123: #{vgg_forward.1} parent=1 // pred_check_branch
      %280 = sbr.rel (0) target = $region125
    $region124: #{vgg_forward.1} parent=1 // pred_region
      %281 = dma.done [#allocation22], 12288
    $region125: #{vgg_forward.1} parent=1 // pred_fallthru
      _
    // Predicated region
    $region126: #{vgg_forward.1} parent=1 // pred_check
      _
    $region127: #{vgg_forward.1} parent=1 // pred_check_branch
      %283 = sbr.rel (0) target = $region129
    $region128: #{vgg_forward.1} parent=1 // pred_region
      %284 = dma.done [#allocation25], 8192
    $region129: #{vgg_forward.1} parent=1 // pred_fallthru
      _
    // Predicated region
    $region130: #{vgg_forward.1} parent=1 // pred_check
      _
    $region131: #{vgg_forward.1} parent=1 // pred_check_branch
      %286 = sbr.rel (0) target = $region133
    $region132: #{vgg_forward.1} parent=1 // pred_region
      %287 = dma.done [#allocation25], 4096
    $region133: #{vgg_forward.1} parent=1 // pred_fallthru
      _
    // Predicated region
    $region134: #{vgg_forward.1} parent=1 // pred_check
      _
    $region135: #{vgg_forward.1} parent=1 // pred_check_branch
      %289 = sbr.rel (0) target = $region137
    $region136: #{vgg_forward.1} parent=1 // pred_region
      %290 = dma.done [#allocation28], 4096
    $region137: #{vgg_forward.1} parent=1 // pred_fallthru
      _
    // Predicated region
    $region138: #{vgg_forward.1} parent=1 // pred_check
      _
    $region139: #{vgg_forward.1} parent=1 // pred_check_branch
      %292 = sbr.rel (0) target = $region141
    $region140: #{vgg_forward.1} parent=1 // pred_region
      %293 = dma.done [#allocation28], 8192
    $region141: #{vgg_forward.1} parent=1 // pred_fallthru
      _
    %s296 = sshll.u32 1, 14
    %s297 = sxor.u32 4294967295, %s296
    %s299 = sld [smem:[#allocation0]]
    %s300 = sadd.s32 2, %s299
    %s302 = sshll.u32 7, 26
    %s303 = sxor.u32 4294967295, %s302
    %s304 = sand.u32 0, %s303
    %s305 = sshll.u32 %s300, 26
    %s306 = sor.u32 %s304, %s305
    %s307 = sshll.u32 [#allocation2], 4
    %s308 = int_to_ptr.vmem [resolvable:$true] %s307
    %311 = sst [smem:[#allocation31]] 512
    %s312 = scalar_lea.smem [#allocation31], 1
    %313 = sst [smem:[%s312]] 512
    %s314 = scalar_lea.smem [#allocation31], 2
    %315 = sst [smem:[%s314]] 4
    %s316 = scalar_lea.smem [#allocation31], 3
    %317 = sst [smem:[%s316]] 64
    %s318 = scalar_lea.smem [#allocation31], 4
    %319 = sst [smem:[%s318]] 128
    %s320 = scalar_lea.smem [#allocation31], 5
    %321 = sst [smem:[%s320]] 2
    %s322 = scalar_lea.smem [#allocation31], 6
    %323 = sst [smem:[%s322]] 256
    %s324 = scalar_lea.smem [#allocation31], 7
    %325 = sst [smem:[%s324]] 64
    %s326 = scalar_lea.smem [#allocation31], 8
    %327 = sst [smem:[%s326]] 4
    %329 = dma.general %s18, 49152, %s308, [#allocation3], [#allocation30], [#allocation31], %s306, 0
    %v330 = vld [vmem:[%s0] sm:$0xf]
    %v331 = vld [vmem:[%s0 + $0x4] sm:$0xf]
    %v332 = vld [vmem:[%s0 + $0x8] sm:$0xf]
    %v333 = vld [vmem:[%s0 + $0xc] sm:$0xf]
    %v334 = vld [vmem:[#allocation4] sm:$0xf]
    %v335 = vld [vmem:[#allocation4 + $0x4] sm:$0xf]
    %v336 = vld [vmem:[#allocation4 + $0x8] sm:$0xf]
    %v337 = vld [vmem:[#allocation4 + $0xc] sm:$0xf]
    %v342 = vunpack.c.l.b16 %v334
    %v343 = vunpack.c.l.b16 %v335
    %v344 = vunpack.c.l.b16 %v336
    %v345 = vunpack.c.l.b16 %v337
    %v346 = vpack.c.b16 %v343, %v342
    %v347 = vpack.c.b16 %v345, %v344
    %v352 = vunpack.c.l.b16 %v330
    %v353 = vunpack.c.l.b16 %v331
    %v354 = vunpack.c.l.b16 %v332
    %v355 = vunpack.c.l.b16 %v333
    %v356 = vpack.c.b16 %v353, %v352
    %v357 = vpack.c.b16 %v355, %v354
    %vm360 = vcmask 261120
    %v362 = vsel %vm360, %v346, 0
    %v365 = vsel %vm360, %v347, 0
    %367 = vmatprep.subr.bf16.mxu0 0
    %368 = vmatpush1.bf16.msra.mxu0 %v356
    %369 = vmatprep.subr.bf16.mxu0 0
    %370 = vmatpush1.bf16.msra.mxu0 %v357
    %371 = vmatprep.subr.bf16.mxu0 0
    %372 = vmatpush1.bf16.msra.mxu0 0
    %373 = vmatprep.subr.bf16.mxu0 0
    %374 = vmatpush1.bf16.msra.mxu0 0
    %375 = vmatprep.subr.bf16.mxu0 0
    %376 = vmatpush1.bf16.msra.mxu0 0
    %377 = vmatprep.subr.bf16.mxu0 0
    %378 = vmatpush1.bf16.msra.mxu0 0
    %379 = vmatprep.subr.bf16.mxu0 0
    %380 = vmatpush1.bf16.msra.mxu0 0
    %381 = vmatprep.subr.bf16.mxu0 0
    %382 = vmatpush1.bf16.msra.mxu0 0
    %383 = vmatprep.subr.bf16.mxu0 0
    %384 = vmatpush1.bf16.msra.mxu0 0
    %385 = vmatprep.subr.bf16.mxu0 0
    %386 = vmatpush1.bf16.msra.mxu0 0
    %387 = vmatprep.subr.bf16.mxu0 0
    %388 = vmatpush1.bf16.msra.mxu0 0
    %389 = vmatprep.subr.bf16.mxu0 0
    %390 = vmatpush1.bf16.msra.mxu0 0
    %391 = vmatprep.subr.bf16.mxu0 0
    %392 = vmatpush1.bf16.msra.mxu0 0
    %393 = vmatprep.subr.bf16.mxu0 0
    %394 = vmatpush1.bf16.msra.mxu0 0
    %395 = vmatprep.subr.bf16.mxu0 0
    %396 = vmatpush1.bf16.msra.mxu0 0
    %397 = vmatprep.subr.bf16.mxu0 0
    %398 = vmatpush1.bf16.msra.mxu0 0
    %399 = vmatprep.mubr.bf16.mxu0 0
    %400 = vmatmul.mubr.bf16.gmra.mrb[0].mxu0 %v362
    %v401 = vpop.f32.mrb[0].mxu0
    %v402 = vadd.f32 0.0, %v401
    %v403 = vpop.f32.mrb[0].mxu0
    %v404 = vpop.f32.mrb[0].mxu0
    %v405 = vadd.f32 0.0, %v404
    %v406 = vpop.f32.mrb[0].mxu0
    %407 = vmatprep.mubr.bf16.mxu0 0
    %408 = vmatmul.mubr.bf16.gmra.mrb[0].mxu0 %v365
    %v409 = vpop.f32.mrb[0].mxu0
    %v410 = vadd.f32 0.0, %v409
    %v411 = vpop.f32.mrb[0].mxu0
    %v412 = vpop.f32.mrb[0].mxu0
    %v413 = vadd.f32 0.0, %v412
    %v414 = vpop.f32.mrb[0].mxu0
    %415 = vdwg.mxu0
    %v416 = vpack.c.bf16 %v405, %v402
    %v417 = vpack.c.bf16 %v413, %v410
    %v418 = vld [vmem:[#allocation8] sm:$0xff]
    %v419 = vld [vmem:[#allocation8 + $0x8] sm:$0xff]
    %v420 = vld [vmem:[#allocation8 + $0x10] sm:$0xff]
    %v421 = vld [vmem:[#allocation8 + $0x18] sm:$0xff]
    %v422 = vld [vmem:[#allocation8 + $0x20] sm:$0xff]
    %v423 = vld [vmem:[#allocation8 + $0x28] sm:$0xff]
    %v424 = vld [vmem:[#allocation8 + $0x30] sm:$0xff]
    %v425 = vld [vmem:[#allocation8 + $0x38] sm:$0xff]
    %s426 = scalar_lea.vmem [#allocation8], 64
    %v427 = vld [vmem:[%s426] sm:$0xff]
    %v428 = vld [vmem:[%s426 + $0x8] sm:$0xff]
    %v429 = vld [vmem:[%s426 + $0x10] sm:$0xff]
    %v430 = vld [vmem:[%s426 + $0x18] sm:$0xff]
    %v431 = vld [vmem:[%s426 + $0x20] sm:$0xff]
    %v432 = vld [vmem:[%s426 + $0x28] sm:$0xff]
    %v433 = vld [vmem:[%s426 + $0x30] sm:$0xff]
    %v434 = vld [vmem:[%s426 + $0x38] sm:$0xff]
    %v443 = vunpack.c.l.b16 %v427
    %v444 = vunpack.c.h.b16 %v427
    %v445 = vunpack.c.l.b16 %v428
    %v446 = vunpack.c.h.b16 %v428
    %v447 = vunpack.c.l.b16 %v429
    %v448 = vunpack.c.h.b16 %v429
    %v449 = vunpack.c.l.b16 %v430
    %v450 = vunpack.c.h.b16 %v430
    %v451 = vunpack.c.l.b16 %v431
    %v452 = vunpack.c.h.b16 %v431
    %v453 = vunpack.c.l.b16 %v432
    %v454 = vunpack.c.h.b16 %v432
    %v455 = vunpack.c.l.b16 %v433
    %v456 = vunpack.c.h.b16 %v433
    %v457 = vunpack.c.l.b16 %v434
    %v458 = vunpack.c.h.b16 %v434
    %v459 = vpack.c.b16 %v445, %v443
    %v460 = vpack.c.b16 %v446, %v444
    %v461 = vpack.c.b16 %v449, %v447
    %v462 = vpack.c.b16 %v450, %v448
    %v463 = vpack.c.b16 %v453, %v451
    %v464 = vpack.c.b16 %v454, %v452
    %v465 = vpack.c.b16 %v457, %v455
    %v466 = vpack.c.b16 %v458, %v456
    %vm475 = vcmask 523264
    %v477 = vsel %vm475, %v356, 0
    %v480 = vsel %vm475, %v357, 0
    %482 = vmatprep.subr.bf16.mxu0 %v460
    %483 = vmatpush1.bf16.msra.mxu0 %v459
    %484 = vmatprep.subr.bf16.mxu0 %v462
    %485 = vmatpush1.bf16.msra.mxu0 %v461
    %486 = vmatprep.subr.bf16.mxu0 %v464
    %487 = vmatpush1.bf16.msra.mxu0 %v463
    %488 = vmatprep.subr.bf16.mxu0 %v466
    %489 = vmatpush1.bf16.msra.mxu0 %v465
    %490 = vmatprep.subr.bf16.mxu0 0
    %491 = vmatpush1.bf16.msra.mxu0 0
    %492 = vmatprep.subr.bf16.mxu0 0
    %493 = vmatpush1.bf16.msra.mxu0 0
    %494 = vmatprep.subr.bf16.mxu0 0
    %495 = vmatpush1.bf16.msra.mxu0 0
    %496 = vmatprep.subr.bf16.mxu0 0
    %497 = vmatpush1.bf16.msra.mxu0 0
    %498 = vmatprep.subr.bf16.mxu0 0
    %499 = vmatpush1.bf16.msra.mxu0 0
    %500 = vmatprep.subr.bf16.mxu0 0
    %501 = vmatpush1.bf16.msra.mxu0 0
    %502 = vmatprep.subr.bf16.mxu0 0
    %503 = vmatpush1.bf16.msra.mxu0 0
    %504 = vmatprep.subr.bf16.mxu0 0
    %505 = vmatpush1.bf16.msra.mxu0 0
    %506 = vmatprep.subr.bf16.mxu0 0
    %507 = vmatpush1.bf16.msra.mxu0 0
    %508 = vmatprep.subr.bf16.mxu0 0
    %509 = vmatpush1.bf16.msra.mxu0 0
    %510 = vmatprep.subr.bf16.mxu0 0
    %511 = vmatpush1.bf16.msra.mxu0 0
    %512 = vmatprep.subr.bf16.mxu0 0
    %513 = vmatpush1.bf16.msra.mxu0 0
    %514 = vmatprep.mubr.bf16.mxu0 0
    %515 = vmatmul.mubr.bf16.gmra.mrb[0].mxu0 %v477
    %v516 = vpop.f32.mrb[0].mxu0
    %v517 = vadd.f32 0.0, %v516
    %v518 = vpop.f32.mrb[0].mxu0
    %v519 = vadd.f32 0.0, %v518
    %v520 = vpop.f32.mrb[0].mxu0
    %v521 = vadd.f32 0.0, %v520
    %v522 = vpop.f32.mrb[0].mxu0
    %v523 = vadd.f32 0.0, %v522
    %524 = vmatprep.mubr.bf16.mxu0 0
    %525 = vmatmul.mubr.bf16.gmra.mrb[0].mxu0 %v480
    %v526 = vpop.f32.mrb[0].mxu0
    %v527 = vadd.f32 0.0, %v526
    %v528 = vpop.f32.mrb[0].mxu0
    %v529 = vadd.f32 0.0, %v528
    %v530 = vpop.f32.mrb[0].mxu0
    %v531 = vadd.f32 0.0, %v530
    %v532 = vpop.f32.mrb[0].mxu0
    %v533 = vadd.f32 0.0, %v532
    %534 = vdwg.mxu0
    %v543 = vunpack.c.l.b16 %v418
    %v544 = vunpack.c.h.b16 %v418
    %v545 = vunpack.c.l.b16 %v419
    %v546 = vunpack.c.h.b16 %v419
    %v547 = vunpack.c.l.b16 %v420
    %v548 = vunpack.c.h.b16 %v420
    %v549 = vunpack.c.l.b16 %v421
    %v550 = vunpack.c.h.b16 %v421
    %v551 = vunpack.c.l.b16 %v422
    %v552 = vunpack.c.h.b16 %v422
    %v553 = vunpack.c.l.b16 %v423
    %v554 = vunpack.c.h.b16 %v423
    %v555 = vunpack.c.l.b16 %v424
    %v556 = vunpack.c.h.b16 %v424
    %v557 = vunpack.c.l.b16 %v425
    %v558 = vunpack.c.h.b16 %v425
    %v559 = vpack.c.b16 %v545, %v543
    %v560 = vpack.c.b16 %v546, %v544
    %v561 = vpack.c.b16 %v549, %v547
    %v562 = vpack.c.b16 %v550, %v548
    %v563 = vpack.c.b16 %v553, %v551
    %v564 = vpack.c.b16 %v554, %v552
    %v565 = vpack.c.b16 %v557, %v555
    %v566 = vpack.c.b16 %v558, %v556
    %v576 = vsel %vm475, %v416, 0
    %v579 = vsel %vm475, %v417, 0
    %581 = vmatprep.subr.bf16.mxu0 %v560
    %582 = vmatpush1.bf16.msra.mxu0 %v559
    %583 = vmatprep.subr.bf16.mxu0 %v562
    %584 = vmatpush1.bf16.msra.mxu0 %v561
    %585 = vmatprep.subr.bf16.mxu0 %v564
    %586 = vmatpush1.bf16.msra.mxu0 %v563
    %587 = vmatprep.subr.bf16.mxu0 %v566
    %588 = vmatpush1.bf16.msra.mxu0 %v565
    %589 = vmatprep.subr.bf16.mxu0 0
    %590 = vmatpush1.bf16.msra.mxu0 0
    %591 = vmatprep.subr.bf16.mxu0 0
    %592 = vmatpush1.bf16.msra.mxu0 0
    %593 = vmatprep.subr.bf16.mxu0 0
    %594 = vmatpush1.bf16.msra.mxu0 0
    %595 = vmatprep.subr.bf16.mxu0 0
    %596 = vmatpush1.bf16.msra.mxu0 0
    %597 = vmatprep.subr.bf16.mxu0 0
    %598 = vmatpush1.bf16.msra.mxu0 0
    %599 = vmatprep.subr.bf16.mxu0 0
    %600 = vmatpush1.bf16.msra.mxu0 0
    %601 = vmatprep.subr.bf16.mxu0 0
    %602 = vmatpush1.bf16.msra.mxu0 0
    %603 = vmatprep.subr.bf16.mxu0 0
    %604 = vmatpush1.bf16.msra.mxu0 0
    %605 = vmatprep.subr.bf16.mxu0 0
    %606 = vmatpush1.bf16.msra.mxu0 0
    %607 = vmatprep.subr.bf16.mxu0 0
    %608 = vmatpush1.bf16.msra.mxu0 0
    %609 = vmatprep.subr.bf16.mxu0 0
    %610 = vmatpush1.bf16.msra.mxu0 0
    %611 = vmatprep.subr.bf16.mxu0 0
    %612 = vmatpush1.bf16.msra.mxu0 0
    %613 = vmatprep.mubr.bf16.mxu0 0
    %614 = vmatmul.mubr.bf16.gmra.mrb[0].mxu0 %v576
    %v615 = vpop.f32.mrb[0].mxu0
    %v616 = vadd.f32 %v517, %v615
    %v617 = vpop.f32.mrb[0].mxu0
    %v618 = vadd.f32 %v519, %v617
    %v619 = vpop.f32.mrb[0].mxu0
    %v620 = vadd.f32 %v521, %v619
    %v621 = vpop.f32.mrb[0].mxu0
    %v622 = vadd.f32 %v523, %v621
    %623 = vmatprep.mubr.bf16.mxu0 0
    %624 = vmatmul.mubr.bf16.gmra.mrb[0].mxu0 %v579
    %v625 = vpop.f32.mrb[0].mxu0
    %v626 = vadd.f32 %v527, %v625
    %v627 = vpop.f32.mrb[0].mxu0
    %v628 = vadd.f32 %v529, %v627
    %v629 = vpop.f32.mrb[0].mxu0
    %v630 = vadd.f32 %v531, %v629
    %v631 = vpop.f32.mrb[0].mxu0
    %v632 = vadd.f32 %v533, %v631
    %633 = vdwg.mxu0
    %s634 = scalar_lea.vmem [#allocation4], 32
    %v635 = vld [vmem:[%s634] sm:$0xf]
    %v636 = vld [vmem:[%s634 + $0x4] sm:$0xf]
    %v637 = vld [vmem:[%s634 + $0x8] sm:$0xf]
    %v638 = vld [vmem:[%s634 + $0xc] sm:$0xf]
    %v643 = vunpack.c.l.b16 %v635
    %v644 = vunpack.c.l.b16 %v636
    %v645 = vunpack.c.l.b16 %v637
    %v646 = vunpack.c.l.b16 %v638
    %v647 = vpack.c.b16 %v644, %v643
    %v648 = vpack.c.b16 %v646, %v645
    %v650 = vsel %vm360, %v647, 0
    %v653 = vsel %vm360, %v648, 0
    %655 = vmatprep.subr.bf16.mxu0 0
    %656 = vmatpush1.bf16.msra.mxu0 %v356
    %657 = vmatprep.subr.bf16.mxu0 0
    %658 = vmatpush1.bf16.msra.mxu0 %v357
    %659 = vmatprep.subr.bf16.mxu0 0
    %660 = vmatpush1.bf16.msra.mxu0 0
    %661 = vmatprep.subr.bf16.mxu0 0
    %662 = vmatpush1.bf16.msra.mxu0 0
    %663 = vmatprep.subr.bf16.mxu0 0
    %664 = vmatpush1.bf16.msra.mxu0 0
    %665 = vmatprep.subr.bf16.mxu0 0
    %666 = vmatpush1.bf16.msra.mxu0 0
    %667 = vmatprep.subr.bf16.mxu0 0
    %668 = vmatpush1.bf16.msra.mxu0 0
    %669 = vmatprep.subr.bf16.mxu0 0
    %670 = vmatpush1.bf16.msra.mxu0 0
    %671 = vmatprep.subr.bf16.mxu0 0
    %672 = vmatpush1.bf16.msra.mxu0 0
    %673 = vmatprep.subr.bf16.mxu0 0
    %674 = vmatpush1.bf16.msra.mxu0 0
    %675 = vmatprep.subr.bf16.mxu0 0
    %676 = vmatpush1.bf16.msra.mxu0 0
    %677 = vmatprep.subr.bf16.mxu0 0
    %678 = vmatpush1.bf16.msra.mxu0 0
    %679 = vmatprep.subr.bf16.mxu0 0
    %680 = vmatpush1.bf16.msra.mxu0 0
    %681 = vmatprep.subr.bf16.mxu0 0
    %682 = vmatpush1.bf16.msra.mxu0 0
    %683 = vmatprep.subr.bf16.mxu0 0
    %684 = vmatpush1.bf16.msra.mxu0 0
    %685 = vmatprep.subr.bf16.mxu0 0
    %686 = vmatpush1.bf16.msra.mxu0 0
    %687 = vmatprep.mubr.bf16.mxu0 0
    %688 = vmatmul.mubr.bf16.gmra.mrb[0].mxu0 %v650
    %v689 = vpop.f32.mrb[0].mxu0
    %v690 = vadd.f32 0.0, %v689
    %v691 = vpop.f32.mrb[0].mxu0
    %v692 = vpop.f32.mrb[0].mxu0
    %v693 = vadd.f32 0.0, %v692
    %v694 = vpop.f32.mrb[0].mxu0
    %695 = vmatprep.mubr.bf16.mxu0 0
    %696 = vmatmul.mubr.bf16.gmra.mrb[0].mxu0 %v653
    %v697 = vpop.f32.mrb[0].mxu0
    %v698 = vadd.f32 0.0, %v697
    %v699 = vpop.f32.mrb[0].mxu0
    %v700 = vpop.f32.mrb[0].mxu0
    %v701 = vadd.f32 0.0, %v700
    %v702 = vpop.f32.mrb[0].mxu0
    %703 = vdwg.mxu0
    %v704 = vpack.c.bf16 %v693, %v690
    %v705 = vpack.c.bf16 %v701, %v698
    %s706 = scalar_lea.vmem [#allocation8], 128
    %v707 = vld [vmem:[%s706] sm:$0xff]
    %v708 = vld [vmem:[%s706 + $0x8] sm:$0xff]
    %v709 = vld [vmem:[%s706 + $0x10] sm:$0xff]
    %v710 = vld [vmem:[%s706 + $0x18] sm:$0xff]
    %v711 = vld [vmem:[%s706 + $0x20] sm:$0xff]
    %v712 = vld [vmem:[%s706 + $0x28] sm:$0xff]
    %v713 = vld [vmem:[%s706 + $0x30] sm:$0xff]
    %v714 = vld [vmem:[%s706 + $0x38] sm:$0xff]
    %v723 = vunpack.c.l.b16 %v707
    %v724 = vunpack.c.h.b16 %v707
    %v725 = vunpack.c.l.b16 %v708
    %v726 = vunpack.c.h.b16 %v708
    %v727 = vunpack.c.l.b16 %v709
    %v728 = vunpack.c.h.b16 %v709
    %v729 = vunpack.c.l.b16 %v710
    %v730 = vunpack.c.h.b16 %v710
    %v731 = vunpack.c.l.b16 %v711
    %v732 = vunpack.c.h.b16 %v711
    %v733 = vunpack.c.l.b16 %v712
    %v734 = vunpack.c.h.b16 %v712
    %v735 = vunpack.c.l.b16 %v713
    %v736 = vunpack.c.h.b16 %v713
    %v737 = vunpack.c.l.b16 %v714
    %v738 = vunpack.c.h.b16 %v714
    %v739 = vpack.c.b16 %v725, %v723
    %v740 = vpack.c.b16 %v726, %v724
    %v741 = vpack.c.b16 %v729, %v727
    %v742 = vpack.c.b16 %v730, %v728
    %v743 = vpack.c.b16 %v733, %v731
    %v744 = vpack.c.b16 %v734, %v732
    %v745 = vpack.c.b16 %v737, %v735
    %v746 = vpack.c.b16 %v738, %v736
    %v756 = vsel %vm475, %v704, 0
    %v759 = vsel %vm475, %v705, 0
    %761 = vmatprep.subr.bf16.mxu0 %v740
    %762 = vmatpush1.bf16.msra.mxu0 %v739
    %763 = vmatprep.subr.bf16.mxu0 %v742
    %764 = vmatpush1.bf16.msra.mxu0 %v741
    %765 = vmatprep.subr.bf16.mxu0 %v744
    %766 = vmatpush1.bf16.msra.mxu0 %v743
    %767 = vmatprep.subr.bf16.mxu0 %v746
    %768 = vmatpush1.bf16.msra.mxu0 %v745
    %769 = vmatprep.subr.bf16.mxu0 0
    %770 = vmatpush1.bf16.msra.mxu0 0
    %771 = vmatprep.subr.bf16.mxu0 0
    %772 = vmatpush1.bf16.msra.mxu0 0
    %773 = vmatprep.subr.bf16.mxu0 0
    %774 = vmatpush1.bf16.msra.mxu0 0
    %775 = vmatprep.subr.bf16.mxu0 0
    %776 = vmatpush1.bf16.msra.mxu0 0
    %777 = vmatprep.subr.bf16.mxu0 0
    %778 = vmatpush1.bf16.msra.mxu0 0
    %779 = vmatprep.subr.bf16.mxu0 0
    %780 = vmatpush1.bf16.msra.mxu0 0
    %781 = vmatprep.subr.bf16.mxu0 0
    %782 = vmatpush1.bf16.msra.mxu0 0
    %783 = vmatprep.subr.bf16.mxu0 0
    %784 = vmatpush1.bf16.msra.mxu0 0
    %785 = vmatprep.subr.bf16.mxu0 0
    %786 = vmatpush1.bf16.msra.mxu0 0
    %787 = vmatprep.subr.bf16.mxu0 0
    %788 = vmatpush1.bf16.msra.mxu0 0
    %789 = vmatprep.subr.bf16.mxu0 0
    %790 = vmatpush1.bf16.msra.mxu0 0
    %791 = vmatprep.subr.bf16.mxu0 0
    %792 = vmatpush1.bf16.msra.mxu0 0
    %793 = vmatprep.mubr.bf16.mxu0 0
    %794 = vmatmul.mubr.bf16.gmra.mrb[0].mxu0 %v756
    %v795 = vpop.f32.mrb[0].mxu0
    %v796 = vadd.f32 0.0, %v795
    %v797 = vpop.f32.mrb[0].mxu0
    %v798 = vadd.f32 0.0, %v797
    %v799 = vpop.f32.mrb[0].mxu0
    %v800 = vadd.f32 0.0, %v799
    %v801 = vpop.f32.mrb[0].mxu0
    %v802 = vadd.f32 0.0, %v801
    %803 = vmatprep.mubr.bf16.mxu0 0
    %804 = vmatmul.mubr.bf16.gmra.mrb[0].mxu0 %v759
    %v805 = vpop.f32.mrb[0].mxu0
    %v806 = vadd.f32 0.0, %v805
    %v807 = vpop.f32.mrb[0].mxu0
    %v808 = vadd.f32 0.0, %v807
    %v809 = vpop.f32.mrb[0].mxu0
    %v810 = vadd.f32 0.0, %v809
    %v811 = vpop.f32.mrb[0].mxu0
    %v812 = vadd.f32 0.0, %v811
    %813 = vdwg.mxu0
    %v814 = vadd.f32 %v616, %v796
    %v815 = vadd.f32 %v618, %v798
    %v816 = vadd.f32 %v620, %v800
    %v817 = vadd.f32 %v622, %v802
    %v818 = vadd.f32 %v626, %v806
    %v819 = vadd.f32 %v628, %v808
    %v820 = vadd.f32 %v630, %v810
    %v821 = vadd.f32 %v632, %v812
    %v822 = vld [vmem:[#allocation6] ss:$8 sm:$0x3]
    %v824 = vlaneseq
    %v825 = vshrl.u32 %v824, 7
    %v826 = vsub.s32 0, %v825
    %v827 = vrot.slane %v822, %v826
    %v828 = vlaneseq
    %v829 = vshrl.u32 %v828, 7
    %v830 = vsub.s32 1, %v829
    %v831 = vrot.slane %v822, %v830
    %v834 = vadd.f32 %v814, %v827
    %v835 = vadd.f32 %v815, %v831
    %v836 = vadd.f32 %v816, %v827
    %v837 = vadd.f32 %v817, %v831
    %v838 = vadd.f32 %v818, %v827
    %v839 = vadd.f32 %v819, %v831
    %v840 = vadd.f32 %v820, %v827
    %v841 = vadd.f32 %v821, %v831
    %v842 = vmax.f32 %v834, 0.0
    %v843 = vmax.f32 %v835, 0.0
    %v844 = vmax.f32 %v836, 0.0
    %v845 = vmax.f32 %v837, 0.0
    %v846 = vmax.f32 %v838, 0.0
    %v847 = vmax.f32 %v839, 0.0
    %v848 = vmax.f32 %v840, 0.0
    %v849 = vmax.f32 %v841, 0.0
    %v850 = vpack.c.bf16 %v844, %v842
    %v851 = vpack.c.bf16 %v845, %v843
    %v852 = vpack.c.bf16 %v848, %v846
    %v853 = vpack.c.bf16 %v849, %v847
    %s854 = scalar_lea.vmem [#allocation4], 48
    %v855 = vld [vmem:[%s854] sm:$0xf]
    %v856 = vld [vmem:[%s854 + $0x4] sm:$0xf]
    %v857 = vld [vmem:[%s854 + $0x8] sm:$0xf]
    %v858 = vld [vmem:[%s854 + $0xc] sm:$0xf]
    %v863 = vunpack.c.l.b16 %v855
    %v864 = vunpack.c.l.b16 %v856
    %v865 = vunpack.c.l.b16 %v857
    %v866 = vunpack.c.l.b16 %v858
    %v867 = vpack.c.b16 %v864, %v863
    %v868 = vpack.c.b16 %v866, %v865
    %v870 = vsel %vm360, %v867, 0
    %v873 = vsel %vm360, %v868, 0
    %875 = vmatprep.subr.bf16.mxu0 %v851
    %876 = vmatpush1.bf16.msra.mxu0 %v850
    %877 = vmatprep.subr.bf16.mxu0 %v853
    %878 = vmatpush1.bf16.msra.mxu0 %v852
    %879 = vmatprep.subr.bf16.mxu0 0
    %880 = vmatpush1.bf16.msra.mxu0 0
    %881 = vmatprep.subr.bf16.mxu0 0
    %882 = vmatpush1.bf16.msra.mxu0 0
    %883 = vmatprep.subr.bf16.mxu0 0
    %884 = vmatpush1.bf16.msra.mxu0 0
    %885 = vmatprep.subr.bf16.mxu0 0
    %886 = vmatpush1.bf16.msra.mxu0 0
    %887 = vmatprep.subr.bf16.mxu0 0
    %888 = vmatpush1.bf16.msra.mxu0 0
    %889 = vmatprep.subr.bf16.mxu0 0
    %890 = vmatpush1.bf16.msra.mxu0 0
    %891 = vmatprep.subr.bf16.mxu0 0
    %892 = vmatpush1.bf16.msra.mxu0 0
    %893 = vmatprep.subr.bf16.mxu0 0
    %894 = vmatpush1.bf16.msra.mxu0 0
    %895 = vmatprep.subr.bf16.mxu0 0
    %896 = vmatpush1.bf16.msra.mxu0 0
    %897 = vmatprep.subr.bf16.mxu0 0
    %898 = vmatpush1.bf16.msra.mxu0 0
    %899 = vmatprep.subr.bf16.mxu0 0
    %900 = vmatpush1.bf16.msra.mxu0 0
    %901 = vmatprep.subr.bf16.mxu0 0
    %902 = vmatpush1.bf16.msra.mxu0 0
    %903 = vmatprep.subr.bf16.mxu0 0
    %904 = vmatpush1.bf16.msra.mxu0 0
    %905 = vmatprep.subr.bf16.mxu0 0
    %906 = vmatpush1.bf16.msra.mxu0 0
    %907 = vmatprep.mubr.bf16.mxu0 0
    %908 = vmatmul.mubr.bf16.gmra.mrb[0].mxu0 %v870
    %v909 = vpop.f32.mrb[0].mxu0
    %v910 = vadd.f32 0.0, %v909
    %v911 = vpop.f32.mrb[0].mxu0
    %v912 = vadd.f32 0.0, %v911
    %v913 = vpop.f32.mrb[0].mxu0
    %v914 = vadd.f32 0.0, %v913
    %v915 = vpop.f32.mrb[0].mxu0
    %v916 = vadd.f32 0.0, %v915
    %917 = vmatprep.mubr.bf16.mxu0 0
    %918 = vmatmul.mubr.bf16.gmra.mrb[0].mxu0 %v873
    %v919 = vpop.f32.mrb[0].mxu0
    %v920 = vadd.f32 0.0, %v919
    %v921 = vpop.f32.mrb[0].mxu0
    %v922 = vadd.f32 0.0, %v921
    %v923 = vpop.f32.mrb[0].mxu0
    %v924 = vadd.f32 0.0, %v923
    %v925 = vpop.f32.mrb[0].mxu0
    %v926 = vadd.f32 0.0, %v925
    %927 = vdwg.mxu0
    %v928 = vpack.c.bf16 %v914, %v910
    %v929 = vpack.c.bf16 %v916, %v912
    %v930 = vpack.c.bf16 %v924, %v920
    %v931 = vpack.c.bf16 %v926, %v922
    %v932 = vld [vmem:[#allocation9] sm:$0xff]
    %v933 = vld [vmem:[#allocation9 + $0x8] sm:$0xff]
    %v934 = vld [vmem:[#allocation9 + $0x10] sm:$0xff]
    %v935 = vld [vmem:[#allocation9 + $0x18] sm:$0xff]
    %v936 = vld [vmem:[#allocation9 + $0x20] sm:$0xff]
    %v937 = vld [vmem:[#allocation9 + $0x28] sm:$0xff]
    %v938 = vld [vmem:[#allocation9 + $0x30] sm:$0xff]
    %v939 = vld [vmem:[#allocation9 + $0x38] sm:$0xff]
    %v940 = vld [vmem:[#allocation9 + $0x40] sm:$0xff]
    %v941 = vld [vmem:[#allocation9 + $0x48] sm:$0xff]
    %v942 = vld [vmem:[#allocation9 + $0x50] sm:$0xff]
    %v943 = vld [vmem:[#allocation9 + $0x58] sm:$0xff]
    %v944 = vld [vmem:[#allocation9 + $0x60] sm:$0xff]
    %v945 = vld [vmem:[#allocation9 + $0x68] sm:$0xff]
    %v946 = vld [vmem:[#allocation9 + $0x70] sm:$0xff]
    %v947 = vld [vmem:[#allocation9 + $0x78] sm:$0xff]
    %v948 = vld [vmem:[#allocation9 + $0x80] sm:$0xff]
    %v949 = vld [vmem:[#allocation9 + $0x88] sm:$0xff]
    %v950 = vld [vmem:[#allocation9 + $0x90] sm:$0xff]
    %v951 = vld [vmem:[#allocation9 + $0x98] sm:$0xff]
    %v952 = vld [vmem:[#allocation9 + $0xa0] sm:$0xff]
    %v953 = vld [vmem:[#allocation9 + $0xa8] sm:$0xff]
    %v954 = vld [vmem:[#allocation9 + $0xb0] sm:$0xff]
    %v955 = vld [vmem:[#allocation9 + $0xb8] sm:$0xff]
    %v956 = vld [vmem:[#allocation9 + $0xc0] sm:$0xff]
    %v957 = vld [vmem:[#allocation9 + $0xc8] sm:$0xff]
    %v958 = vld [vmem:[#allocation9 + $0xd0] sm:$0xff]
    %v959 = vld [vmem:[#allocation9 + $0xd8] sm:$0xff]
    %v960 = vld [vmem:[#allocation9 + $0xe0] sm:$0xff]
    %v961 = vld [vmem:[#allocation9 + $0xe8] sm:$0xff]
    %v962 = vld [vmem:[#allocation9 + $0xf0] sm:$0xff]
    %v963 = vld [vmem:[#allocation9 + $0xf8] sm:$0xff]
    %s964 = scalar_lea.vmem [#allocation9], 256
    %v965 = vld [vmem:[%s964] sm:$0xff]
    %v966 = vld [vmem:[%s964 + $0x8] sm:$0xff]
    %v967 = vld [vmem:[%s964 + $0x10] sm:$0xff]
    %v968 = vld [vmem:[%s964 + $0x18] sm:$0xff]
    %v969 = vld [vmem:[%s964 + $0x20] sm:$0xff]
    %v970 = vld [vmem:[%s964 + $0x28] sm:$0xff]
    %v971 = vld [vmem:[%s964 + $0x30] sm:$0xff]
    %v972 = vld [vmem:[%s964 + $0x38] sm:$0xff]
    %v973 = vld [vmem:[%s964 + $0x40] sm:$0xff]
    %v974 = vld [vmem:[%s964 + $0x48] sm:$0xff]
    %v975 = vld [vmem:[%s964 + $0x50] sm:$0xff]
    %v976 = vld [vmem:[%s964 + $0x58] sm:$0xff]
    %v977 = vld [vmem:[%s964 + $0x60] sm:$0xff]
    %v978 = vld [vmem:[%s964 + $0x68] sm:$0xff]
    %v979 = vld [vmem:[%s964 + $0x70] sm:$0xff]
    %v980 = vld [vmem:[%s964 + $0x78] sm:$0xff]
    %v981 = vld [vmem:[%s964 + $0x80] sm:$0xff]
    %v982 = vld [vmem:[%s964 + $0x88] sm:$0xff]
    %v983 = vld [vmem:[%s964 + $0x90] sm:$0xff]
    %v984 = vld [vmem:[%s964 + $0x98] sm:$0xff]
    %v985 = vld [vmem:[%s964 + $0xa0] sm:$0xff]
    %v986 = vld [vmem:[%s964 + $0xa8] sm:$0xff]
    %v987 = vld [vmem:[%s964 + $0xb0] sm:$0xff]
    %v988 = vld [vmem:[%s964 + $0xb8] sm:$0xff]
    %v989 = vld [vmem:[%s964 + $0xc0] sm:$0xff]
    %v990 = vld [vmem:[%s964 + $0xc8] sm:$0xff]
    %v991 = vld [vmem:[%s964 + $0xd0] sm:$0xff]
    %v992 = vld [vmem:[%s964 + $0xd8] sm:$0xff]
    %v993 = vld [vmem:[%s964 + $0xe0] sm:$0xff]
    %v994 = vld [vmem:[%s964 + $0xe8] sm:$0xff]
    %v995 = vld [vmem:[%s964 + $0xf0] sm:$0xff]
    %v996 = vld [vmem:[%s964 + $0xf8] sm:$0xff]
    %v1029 = vunpack.c.l.b16 %v965
    %v1030 = vunpack.c.h.b16 %v965
    %v1031 = vunpack.c.l.b16 %v966
    %v1032 = vunpack.c.h.b16 %v966
    %v1033 = vunpack.c.l.b16 %v967
    %v1034 = vunpack.c.h.b16 %v967
    %v1035 = vunpack.c.l.b16 %v968
    %v1036 = vunpack.c.h.b16 %v968
    %v1037 = vunpack.c.l.b16 %v969
    %v1038 = vunpack.c.h.b16 %v969
    %v1039 = vunpack.c.l.b16 %v970
    %v1040 = vunpack.c.h.b16 %v970
    %v1041 = vunpack.c.l.b16 %v971
    %v1042 = vunpack.c.h.b16 %v971
    %v1043 = vunpack.c.l.b16 %v972
    %v1044 = vunpack.c.h.b16 %v972
    %v1045 = vunpack.c.l.b16 %v973
    %v1046 = vunpack.c.h.b16 %v973
    %v1047 = vunpack.c.l.b16 %v974
    %v1048 = vunpack.c.h.b16 %v974
    %v1049 = vunpack.c.l.b16 %v975
    %v1050 = vunpack.c.h.b16 %v975
    %v1051 = vunpack.c.l.b16 %v976
    %v1052 = vunpack.c.h.b16 %v976
    %v1053 = vunpack.c.l.b16 %v977
    %v1054 = vunpack.c.h.b16 %v977
    %v1055 = vunpack.c.l.b16 %v978
    %v1056 = vunpack.c.h.b16 %v978
    %v1057 = vunpack.c.l.b16 %v979
    %v1058 = vunpack.c.h.b16 %v979
    %v1059 = vunpack.c.l.b16 %v980
    %v1060 = vunpack.c.h.b16 %v980
    %v1061 = vunpack.c.l.b16 %v981
    %v1062 = vunpack.c.h.b16 %v981
    %v1063 = vunpack.c.l.b16 %v982
    %v1064 = vunpack.c.h.b16 %v982
    %v1065 = vunpack.c.l.b16 %v983
    %v1066 = vunpack.c.h.b16 %v983
    %v1067 = vunpack.c.l.b16 %v984
    %v1068 = vunpack.c.h.b16 %v984
    %v1069 = vunpack.c.l.b16 %v985
    %v1070 = vunpack.c.h.b16 %v985
    %v1071 = vunpack.c.l.b16 %v986
    %v1072 = vunpack.c.h.b16 %v986
    %v1073 = vunpack.c.l.b16 %v987
    %v1074 = vunpack.c.h.b16 %v987
    %v1075 = vunpack.c.l.b16 %v988
    %v1076 = vunpack.c.h.b16 %v988
    %v1077 = vunpack.c.l.b16 %v989
    %v1078 = vunpack.c.h.b16 %v989
    %v1079 = vunpack.c.l.b16 %v990
    %v1080 = vunpack.c.h.b16 %v990
    %v1081 = vunpack.c.l.b16 %v991
    %v1082 = vunpack.c.h.b16 %v991
    %v1083 = vunpack.c.l.b16 %v992
    %v1084 = vunpack.c.h.b16 %v992
    %v1085 = vunpack.c.l.b16 %v993
    %v1086 = vunpack.c.h.b16 %v993
    %v1087 = vunpack.c.l.b16 %v994
    %v1088 = vunpack.c.h.b16 %v994
    %v1089 = vunpack.c.l.b16 %v995
    %v1090 = vunpack.c.h.b16 %v995
    %v1091 = vunpack.c.l.b16 %v996
    %v1092 = vunpack.c.h.b16 %v996
    %v1093 = vpack.c.b16 %v1031, %v1029
    %v1094 = vpack.c.b16 %v1032, %v1030
    %v1095 = vpack.c.b16 %v1035, %v1033
    %v1096 = vpack.c.b16 %v1036, %v1034
    %v1097 = vpack.c.b16 %v1039, %v1037
    %v1098 = vpack.c.b16 %v1040, %v1038
    %v1099 = vpack.c.b16 %v1043, %v1041
    %v1100 = vpack.c.b16 %v1044, %v1042
    %v1101 = vpack.c.b16 %v1047, %v1045
    %v1102 = vpack.c.b16 %v1048, %v1046
    %v1103 = vpack.c.b16 %v1051, %v1049
    %v1104 = vpack.c.b16 %v1052, %v1050
    %v1105 = vpack.c.b16 %v1055, %v1053
    %v1106 = vpack.c.b16 %v1056, %v1054
    %v1107 = vpack.c.b16 %v1059, %v1057
    %v1108 = vpack.c.b16 %v1060, %v1058
    %v1109 = vpack.c.b16 %v1063, %v1061
    %v1110 = vpack.c.b16 %v1064, %v1062
    %v1111 = vpack.c.b16 %v1067, %v1065
    %v1112 = vpack.c.b16 %v1068, %v1066
    %v1113 = vpack.c.b16 %v1071, %v1069
    %v1114 = vpack.c.b16 %v1072, %v1070
    %v1115 = vpack.c.b16 %v1075, %v1073
    %v1116 = vpack.c.b16 %v1076, %v1074
    %v1117 = vpack.c.b16 %v1079, %v1077
    %v1118 = vpack.c.b16 %v1080, %v1078
    %v1119 = vpack.c.b16 %v1083, %v1081
    %v1120 = vpack.c.b16 %v1084, %v1082
    %v1121 = vpack.c.b16 %v1087, %v1085
    %v1122 = vpack.c.b16 %v1088, %v1086
    %v1123 = vpack.c.b16 %v1091, %v1089
    %v1124 = vpack.c.b16 %v1092, %v1090
    %1157 = vmatprep.subr.bf16.mxu0 %v1094
    %1158 = vmatpush1.bf16.msra.mxu0 %v1093
    %1159 = vmatprep.subr.bf16.mxu0 %v1096
    %1160 = vmatpush1.bf16.msra.mxu0 %v1095
    %1161 = vmatprep.subr.bf16.mxu0 %v1098
    %1162 = vmatpush1.bf16.msra.mxu0 %v1097
    %1163 = vmatprep.subr.bf16.mxu0 %v1100
    %1164 = vmatpush1.bf16.msra.mxu0 %v1099
    %1165 = vmatprep.subr.bf16.mxu0 %v1102
    %1166 = vmatpush1.bf16.msra.mxu0 %v1101
    %1167 = vmatprep.subr.bf16.mxu0 %v1104
    %1168 = vmatpush1.bf16.msra.mxu0 %v1103
    %1169 = vmatprep.subr.bf16.mxu0 %v1106
    %1170 = vmatpush1.bf16.msra.mxu0 %v1105
    %1171 = vmatprep.subr.bf16.mxu0 %v1108
    %1172 = vmatpush1.bf16.msra.mxu0 %v1107
    %1173 = vmatprep.subr.bf16.mxu0 %v1110
    %1174 = vmatpush1.bf16.msra.mxu0 %v1109
    %1175 = vmatprep.subr.bf16.mxu0 %v1112
    %1176 = vmatpush1.bf16.msra.mxu0 %v1111
    %1177 = vmatprep.subr.bf16.mxu0 %v1114
    %1178 = vmatpush1.bf16.msra.mxu0 %v1113
    %1179 = vmatprep.subr.bf16.mxu0 %v1116
    %1180 = vmatpush1.bf16.msra.mxu0 %v1115
    %1181 = vmatprep.subr.bf16.mxu0 %v1118
    %1182 = vmatpush1.bf16.msra.mxu0 %v1117
    %1183 = vmatprep.subr.bf16.mxu0 %v1120
    %1184 = vmatpush1.bf16.msra.mxu0 %v1119
    %1185 = vmatprep.subr.bf16.mxu0 %v1122
    %1186 = vmatpush1.bf16.msra.mxu0 %v1121
    %1187 = vmatprep.subr.bf16.mxu0 %v1124
    %1188 = vmatpush1.bf16.msra.mxu0 %v1123
    %1189 = vmatprep.mubr.bf16.mxu0 %v851
    %1190 = vmatmul.mubr.bf16.gmra.mrb[0].mxu0 %v850
    %v1191 = vpop.f32.mrb[0].mxu0
    %v1192 = vadd.f32 0.0, %v1191
    %v1193 = vpop.f32.mrb[0].mxu0
    %v1194 = vadd.f32 0.0, %v1193
    %v1195 = vpop.f32.mrb[0].mxu0
    %v1196 = vadd.f32 0.0, %v1195
    %v1197 = vpop.f32.mrb[0].mxu0
    %v1198 = vadd.f32 0.0, %v1197
    %1199 = vmatprep.mubr.bf16.mxu0 %v853
    %1200 = vmatmul.mubr.bf16.gmra.mrb[0].mxu0 %v852
    %v1201 = vpop.f32.mrb[0].mxu0
    %v1202 = vadd.f32 0.0, %v1201
    %v1203 = vpop.f32.mrb[0].mxu0
    %v1204 = vadd.f32 0.0, %v1203
    %v1205 = vpop.f32.mrb[0].mxu0
    %v1206 = vadd.f32 0.0, %v1205
    %v1207 = vpop.f32.mrb[0].mxu0
    %v1208 = vadd.f32 0.0, %v1207
    %1209 = vdwg.mxu0
    %v1242 = vunpack.c.l.b16 %v932
    %v1243 = vunpack.c.h.b16 %v932
    %v1244 = vunpack.c.l.b16 %v933
    %v1245 = vunpack.c.h.b16 %v933
    %v1246 = vunpack.c.l.b16 %v934
    %v1247 = vunpack.c.h.b16 %v934
    %v1248 = vunpack.c.l.b16 %v935
    %v1249 = vunpack.c.h.b16 %v935
    %v1250 = vunpack.c.l.b16 %v936
    %v1251 = vunpack.c.h.b16 %v936
    %v1252 = vunpack.c.l.b16 %v937
    %v1253 = vunpack.c.h.b16 %v937
    %v1254 = vunpack.c.l.b16 %v938
    %v1255 = vunpack.c.h.b16 %v938
    %v1256 = vunpack.c.l.b16 %v939
    %v1257 = vunpack.c.h.b16 %v939
    %v1258 = vunpack.c.l.b16 %v940
    %v1259 = vunpack.c.h.b16 %v940
    %v1260 = vunpack.c.l.b16 %v941
    %v1261 = vunpack.c.h.b16 %v941
    %v1262 = vunpack.c.l.b16 %v942
    %v1263 = vunpack.c.h.b16 %v942
    %v1264 = vunpack.c.l.b16 %v943
    %v1265 = vunpack.c.h.b16 %v943
    %v1266 = vunpack.c.l.b16 %v944
    %v1267 = vunpack.c.h.b16 %v944
    %v1268 = vunpack.c.l.b16 %v945
    %v1269 = vunpack.c.h.b16 %v945
    %v1270 = vunpack.c.l.b16 %v946
    %v1271 = vunpack.c.h.b16 %v946
    %v1272 = vunpack.c.l.b16 %v947
    %v1273 = vunpack.c.h.b16 %v947
    %v1274 = vunpack.c.l.b16 %v948
    %v1275 = vunpack.c.h.b16 %v948
    %v1276 = vunpack.c.l.b16 %v949
    %v1277 = vunpack.c.h.b16 %v949
    %v1278 = vunpack.c.l.b16 %v950
    %v1279 = vunpack.c.h.b16 %v950
    %v1280 = vunpack.c.l.b16 %v951
    %v1281 = vunpack.c.h.b16 %v951
    %v1282 = vunpack.c.l.b16 %v952
    %v1283 = vunpack.c.h.b16 %v952
    %v1284 = vunpack.c.l.b16 %v953
    %v1285 = vunpack.c.h.b16 %v953
    %v1286 = vunpack.c.l.b16 %v954
    %v1287 = vunpack.c.h.b16 %v954
    %v1288 = vunpack.c.l.b16 %v955
    %v1289 = vunpack.c.h.b16 %v955
    %v1290 = vunpack.c.l.b16 %v956
    %v1291 = vunpack.c.h.b16 %v956
    %v1292 = vunpack.c.l.b16 %v957
    %v1293 = vunpack.c.h.b16 %v957
    %v1294 = vunpack.c.l.b16 %v958
    %v1295 = vunpack.c.h.b16 %v958
    %v1296 = vunpack.c.l.b16 %v959
    %v1297 = vunpack.c.h.b16 %v959
    %v1298 = vunpack.c.l.b16 %v960
    %v1299 = vunpack.c.h.b16 %v960
    %v1300 = vunpack.c.l.b16 %v961
    %v1301 = vunpack.c.h.b16 %v961
    %v1302 = vunpack.c.l.b16 %v962
    %v1303 = vunpack.c.h.b16 %v962
    %v1304 = vunpack.c.l.b16 %v963
    %v1305 = vunpack.c.h.b16 %v963
    %v1306 = vpack.c.b16 %v1244, %v1242
    %v1307 = vpack.c.b16 %v1245, %v1243
    %v1308 = vpack.c.b16 %v1248, %v1246
    %v1309 = vpack.c.b16 %v1249, %v1247
    %v1310 = vpack.c.b16 %v1252, %v1250
    %v1311 = vpack.c.b16 %v1253, %v1251
    %v1312 = vpack.c.b16 %v1256, %v1254
    %v1313 = vpack.c.b16 %v1257, %v1255
    %v1314 = vpack.c.b16 %v1260, %v1258
    %v1315 = vpack.c.b16 %v1261, %v1259
    %v1316 = vpack.c.b16 %v1264, %v1262
    %v1317 = vpack.c.b16 %v1265, %v1263
    %v1318 = vpack.c.b16 %v1268, %v1266
    %v1319 = vpack.c.b16 %v1269, %v1267
    %v1320 = vpack.c.b16 %v1272, %v1270
    %v1321 = vpack.c.b16 %v1273, %v1271
    %v1322 = vpack.c.b16 %v1276, %v1274
    %v1323 = vpack.c.b16 %v1277, %v1275
    %v1324 = vpack.c.b16 %v1280, %v1278
    %v1325 = vpack.c.b16 %v1281, %v1279
    %v1326 = vpack.c.b16 %v1284, %v1282
    %v1327 = vpack.c.b16 %v1285, %v1283
    %v1328 = vpack.c.b16 %v1288, %v1286
    %v1329 = vpack.c.b16 %v1289, %v1287
    %v1330 = vpack.c.b16 %v1292, %v1290
    %v1331 = vpack.c.b16 %v1293, %v1291
    %v1332 = vpack.c.b16 %v1296, %v1294
    %v1333 = vpack.c.b16 %v1297, %v1295
    %v1334 = vpack.c.b16 %v1300, %v1298
    %v1335 = vpack.c.b16 %v1301, %v1299
    %v1336 = vpack.c.b16 %v1304, %v1302
    %v1337 = vpack.c.b16 %v1305, %v1303
    %1370 = vmatprep.subr.bf16.mxu0 %v1307
    %1371 = vmatpush1.bf16.msra.mxu0 %v1306
    %1372 = vmatprep.subr.bf16.mxu0 %v1309
    %1373 = vmatpush1.bf16.msra.mxu0 %v1308
    %1374 = vmatprep.subr.bf16.mxu0 %v1311
    %1375 = vmatpush1.bf16.msra.mxu0 %v1310
    %1376 = vmatprep.subr.bf16.mxu0 %v1313
    %1377 = vmatpush1.bf16.msra.mxu0 %v1312
    %1378 = vmatprep.subr.bf16.mxu0 %v1315
    %1379 = vmatpush1.bf16.msra.mxu0 %v1314
    %1380 = vmatprep.subr.bf16.mxu0 %v1317
    %1381 = vmatpush1.bf16.msra.mxu0 %v1316
    %1382 = vmatprep.subr.bf16.mxu0 %v1319
    %1383 = vmatpush1.bf16.msra.mxu0 %v1318
    %1384 = vmatprep.subr.bf16.mxu0 %v1321
    %1385 = vmatpush1.bf16.msra.mxu0 %v1320
    %1386 = vmatprep.subr.bf16.mxu0 %v1323
    %1387 = vmatpush1.bf16.msra.mxu0 %v1322
    %1388 = vmatprep.subr.bf16.mxu0 %v1325
    %1389 = vmatpush1.bf16.msra.mxu0 %v1324
    %1390 = vmatprep.subr.bf16.mxu0 %v1327
    %1391 = vmatpush1.bf16.msra.mxu0 %v1326
    %1392 = vmatprep.subr.bf16.mxu0 %v1329
    %1393 = vmatpush1.bf16.msra.mxu0 %v1328
    %1394 = vmatprep.subr.bf16.mxu0 %v1331
    %1395 = vmatpush1.bf16.msra.mxu0 %v1330
    %1396 = vmatprep.subr.bf16.mxu0 %v1333
    %1397 = vmatpush1.bf16.msra.mxu0 %v1332
    %1398 = vmatprep.subr.bf16.mxu0 %v1335
    %1399 = vmatpush1.bf16.msra.mxu0 %v1334
    %1400 = vmatprep.subr.bf16.mxu0 %v1337
    %1401 = vmatpush1.bf16.msra.mxu0 %v1336
    %1402 = vmatprep.mubr.bf16.mxu0 %v929
    %1403 = vmatmul.mubr.bf16.gmra.mrb[0].mxu0 %v928
    %v1404 = vpop.f32.mrb[0].mxu0
    %v1405 = vadd.f32 %v1192, %v1404
    %v1406 = vpop.f32.mrb[0].mxu0
    %v1407 = vadd.f32 %v1194, %v1406
    %v1408 = vpop.f32.mrb[0].mxu0
    %v1409 = vadd.f32 %v1196, %v1408
    %v1410 = vpop.f32.mrb[0].mxu0
    %v1411 = vadd.f32 %v1198, %v1410
    %1412 = vmatprep.mubr.bf16.mxu0 %v931
    %1413 = vmatmul.mubr.bf16.gmra.mrb[0].mxu0 %v930
    %v1414 = vpop.f32.mrb[0].mxu0
    %v1415 = vadd.f32 %v1202, %v1414
    %v1416 = vpop.f32.mrb[0].mxu0
    %v1417 = vadd.f32 %v1204, %v1416
    %v1418 = vpop.f32.mrb[0].mxu0
    %v1419 = vadd.f32 %v1206, %v1418
    %v1420 = vpop.f32.mrb[0].mxu0
    %v1421 = vadd.f32 %v1208, %v1420
    %1422 = vdwg.mxu0
    %s1423 = scalar_lea.vmem [#allocation4], 80
    %v1424 = vld [vmem:[%s1423] sm:$0xf]
    %v1425 = vld [vmem:[%s1423 + $0x4] sm:$0xf]
    %v1426 = vld [vmem:[%s1423 + $0x8] sm:$0xf]
    %v1427 = vld [vmem:[%s1423 + $0xc] sm:$0xf]
    %v1432 = vunpack.c.l.b16 %v1424
    %v1433 = vunpack.c.l.b16 %v1425
    %v1434 = vunpack.c.l.b16 %v1426
    %v1435 = vunpack.c.l.b16 %v1427
    %v1436 = vpack.c.b16 %v1433, %v1432
    %v1437 = vpack.c.b16 %v1435, %v1434
    %v1439 = vsel %vm360, %v1436, 0
    %v1442 = vsel %vm360, %v1437, 0
    %1444 = vmatprep.subr.bf16.mxu0 %v851
    %1445 = vmatpush1.bf16.msra.mxu0 %v850
    %1446 = vmatprep.subr.bf16.mxu0 %v853
    %1447 = vmatpush1.bf16.msra.mxu0 %v852
    %1448 = vmatprep.subr.bf16.mxu0 0
    %1449 = vmatpush1.bf16.msra.mxu0 0
    %1450 = vmatprep.subr.bf16.mxu0 0
    %1451 = vmatpush1.bf16.msra.mxu0 0
    %1452 = vmatprep.subr.bf16.mxu0 0
    %1453 = vmatpush1.bf16.msra.mxu0 0
    %1454 = vmatprep.subr.bf16.mxu0 0
    %1455 = vmatpush1.bf16.msra.mxu0 0
    %1456 = vmatprep.subr.bf16.mxu0 0
    %1457 = vmatpush1.bf16.msra.mxu0 0
    %1458 = vmatprep.subr.bf16.mxu0 0
    %1459 = vmatpush1.bf16.msra.mxu0 0
    %1460 = vmatprep.subr.bf16.mxu0 0
    %1461 = vmatpush1.bf16.msra.mxu0 0
    %1462 = vmatprep.subr.bf16.mxu0 0
    %1463 = vmatpush1.bf16.msra.mxu0 0
    %1464 = vmatprep.subr.bf16.mxu0 0
    %1465 = vmatpush1.bf16.msra.mxu0 0
    %1466 = vmatprep.subr.bf16.mxu0 0
    %1467 = vmatpush1.bf16.msra.mxu0 0
    %1468 = vmatprep.subr.bf16.mxu0 0
    %1469 = vmatpush1.bf16.msra.mxu0 0
    %1470 = vmatprep.subr.bf16.mxu0 0
    %1471 = vmatpush1.bf16.msra.mxu0 0
    %1472 = vmatprep.subr.bf16.mxu0 0
    %1473 = vmatpush1.bf16.msra.mxu0 0
    %1474 = vmatprep.subr.bf16.mxu0 0
    %1475 = vmatpush1.bf16.msra.mxu0 0
    %1476 = vmatprep.mubr.bf16.mxu0 0
    %1477 = vmatmul.mubr.bf16.gmra.mrb[0].mxu0 %v1439
    %v1478 = vpop.f32.mrb[0].mxu0
    %v1479 = vadd.f32 0.0, %v1478
    %v1480 = vpop.f32.mrb[0].mxu0
    %v1481 = vadd.f32 0.0, %v1480
    %v1482 = vpop.f32.mrb[0].mxu0
    %v1483 = vadd.f32 0.0, %v1482
    %v1484 = vpop.f32.mrb[0].mxu0
    %v1485 = vadd.f32 0.0, %v1484
    %1486 = vmatprep.mubr.bf16.mxu0 0
    %1487 = vmatmul.mubr.bf16.gmra.mrb[0].mxu0 %v1442
    %v1488 = vpop.f32.mrb[0].mxu0
    %v1489 = vadd.f32 0.0, %v1488
    %v1490 = vpop.f32.mrb[0].mxu0
    %v1491 = vadd.f32 0.0, %v1490
    %v1492 = vpop.f32.mrb[0].mxu0
    %v1493 = vadd.f32 0.0, %v1492
    %v1494 = vpop.f32.mrb[0].mxu0
    %v1495 = vadd.f32 0.0, %v1494
    %1496 = vdwg.mxu0
    %v1497 = vpack.c.bf16 %v1483, %v1479
    %v1498 = vpack.c.bf16 %v1485, %v1481
    %v1499 = vpack.c.bf16 %v1493, %v1489
    %v1500 = vpack.c.bf16 %v1495, %v1491
    %s1501 = scalar_lea.vmem [#allocation9], 512
    %v1502 = vld [vmem:[%s1501] sm:$0xff]
    %v1503 = vld [vmem:[%s1501 + $0x8] sm:$0xff]
    %v1504 = vld [vmem:[%s1501 + $0x10] sm:$0xff]
    %v1505 = vld [vmem:[%s1501 + $0x18] sm:$0xff]
    %v1506 = vld [vmem:[%s1501 + $0x20] sm:$0xff]
    %v1507 = vld [vmem:[%s1501 + $0x28] sm:$0xff]
    %v1508 = vld [vmem:[%s1501 + $0x30] sm:$0xff]
    %v1509 = vld [vmem:[%s1501 + $0x38] sm:$0xff]
    %v1510 = vld [vmem:[%s1501 + $0x40] sm:$0xff]
    %v1511 = vld [vmem:[%s1501 + $0x48] sm:$0xff]
    %v1512 = vld [vmem:[%s1501 + $0x50] sm:$0xff]
    %v1513 = vld [vmem:[%s1501 + $0x58] sm:$0xff]
    %v1514 = vld [vmem:[%s1501 + $0x60] sm:$0xff]
    %v1515 = vld [vmem:[%s1501 + $0x68] sm:$0xff]
    %v1516 = vld [vmem:[%s1501 + $0x70] sm:$0xff]
    %v1517 = vld [vmem:[%s1501 + $0x78] sm:$0xff]
    %v1518 = vld [vmem:[%s1501 + $0x80] sm:$0xff]
    %v1519 = vld [vmem:[%s1501 + $0x88] sm:$0xff]
    %v1520 = vld [vmem:[%s1501 + $0x90] sm:$0xff]
    %v1521 = vld [vmem:[%s1501 + $0x98] sm:$0xff]
    %v1522 = vld [vmem:[%s1501 + $0xa0] sm:$0xff]
    %v1523 = vld [vmem:[%s1501 + $0xa8] sm:$0xff]
    %v1524 = vld [vmem:[%s1501 + $0xb0] sm:$0xff]
    %v1525 = vld [vmem:[%s1501 + $0xb8] sm:$0xff]
    %v1526 = vld [vmem:[%s1501 + $0xc0] sm:$0xff]
    %v1527 = vld [vmem:[%s1501 + $0xc8] sm:$0xff]
    %v1528 = vld [vmem:[%s1501 + $0xd0] sm:$0xff]
    %v1529 = vld [vmem:[%s1501 + $0xd8] sm:$0xff]
    %v1530 = vld [vmem:[%s1501 + $0xe0] sm:$0xff]
    %v1531 = vld [vmem:[%s1501 + $0xe8] sm:$0xff]
    %v1532 = vld [vmem:[%s1501 + $0xf0] sm:$0xff]
    %v1533 = vld [vmem:[%s1501 + $0xf8] sm:$0xff]
    %v1566 = vunpack.c.l.b16 %v1502
    %v1567 = vunpack.c.h.b16 %v1502
    %v1568 = vunpack.c.l.b16 %v1503
    %v1569 = vunpack.c.h.b16 %v1503
    %v1570 = vunpack.c.l.b16 %v1504
    %v1571 = vunpack.c.h.b16 %v1504
    %v1572 = vunpack.c.l.b16 %v1505
    %v1573 = vunpack.c.h.b16 %v1505
    %v1574 = vunpack.c.l.b16 %v1506
    %v1575 = vunpack.c.h.b16 %v1506
    %v1576 = vunpack.c.l.b16 %v1507
    %v1577 = vunpack.c.h.b16 %v1507
    %v1578 = vunpack.c.l.b16 %v1508
    %v1579 = vunpack.c.h.b16 %v1508
    %v1580 = vunpack.c.l.b16 %v1509
    %v1581 = vunpack.c.h.b16 %v1509
    %v1582 = vunpack.c.l.b16 %v1510
    %v1583 = vunpack.c.h.b16 %v1510
    %v1584 = vunpack.c.l.b16 %v1511
    %v1585 = vunpack.c.h.b16 %v1511
    %v1586 = vunpack.c.l.b16 %v1512
    %v1587 = vunpack.c.h.b16 %v1512
    %v1588 = vunpack.c.l.b16 %v1513
    %v1589 = vunpack.c.h.b16 %v1513
    %v1590 = vunpack.c.l.b16 %v1514
    %v1591 = vunpack.c.h.b16 %v1514
    %v1592 = vunpack.c.l.b16 %v1515
    %v1593 = vunpack.c.h.b16 %v1515
    %v1594 = vunpack.c.l.b16 %v1516
    %v1595 = vunpack.c.h.b16 %v1516
    %v1596 = vunpack.c.l.b16 %v1517
    %v1597 = vunpack.c.h.b16 %v1517
    %v1598 = vunpack.c.l.b16 %v1518
    %v1599 = vunpack.c.h.b16 %v1518
    %v1600 = vunpack.c.l.b16 %v1519
    %v1601 = vunpack.c.h.b16 %v1519
    %v1602 = vunpack.c.l.b16 %v1520
    %v1603 = vunpack.c.h.b16 %v1520
    %v1604 = vunpack.c.l.b16 %v1521
    %v1605 = vunpack.c.h.b16 %v1521
    %v1606 = vunpack.c.l.b16 %v1522
    %v1607 = vunpack.c.h.b16 %v1522
    %v1608 = vunpack.c.l.b16 %v1523
    %v1609 = vunpack.c.h.b16 %v1523
    %v1610 = vunpack.c.l.b16 %v1524
    %v1611 = vunpack.c.h.b16 %v1524
    %v1612 = vunpack.c.l.b16 %v1525
    %v1613 = vunpack.c.h.b16 %v1525
    %v1614 = vunpack.c.l.b16 %v1526
    %v1615 = vunpack.c.h.b16 %v1526
    %v1616 = vunpack.c.l.b16 %v1527
    %v1617 = vunpack.c.h.b16 %v1527
    %v1618 = vunpack.c.l.b16 %v1528
    %v1619 = vunpack.c.h.b16 %v1528
    %v1620 = vunpack.c.l.b16 %v1529
    %v1621 = vunpack.c.h.b16 %v1529
    %v1622 = vunpack.c.l.b16 %v1530
    %v1623 = vunpack.c.h.b16 %v1530
    %v1624 = vunpack.c.l.b16 %v1531
    %v1625 = vunpack.c.h.b16 %v1531
    %v1626 = vunpack.c.l.b16 %v1532
    %v1627 = vunpack.c.h.b16 %v1532
    %v1628 = vunpack.c.l.b16 %v1533
    %v1629 = vunpack.c.h.b16 %v1533
    %v1630 = vpack.c.b16 %v1568, %v1566
    %v1631 = vpack.c.b16 %v1569, %v1567
    %v1632 = vpack.c.b16 %v1572, %v1570
    %v1633 = vpack.c.b16 %v1573, %v1571
    %v1634 = vpack.c.b16 %v1576, %v1574
    %v1635 = vpack.c.b16 %v1577, %v1575
    %v1636 = vpack.c.b16 %v1580, %v1578
    %v1637 = vpack.c.b16 %v1581, %v1579
    %v1638 = vpack.c.b16 %v1584, %v1582
    %v1639 = vpack.c.b16 %v1585, %v1583
    %v1640 = vpack.c.b16 %v1588, %v1586
    %v1641 = vpack.c.b16 %v1589, %v1587
    %v1642 = vpack.c.b16 %v1592, %v1590
    %v1643 = vpack.c.b16 %v1593, %v1591
    %v1644 = vpack.c.b16 %v1596, %v1594
    %v1645 = vpack.c.b16 %v1597, %v1595
    %v1646 = vpack.c.b16 %v1600, %v1598
    %v1647 = vpack.c.b16 %v1601, %v1599
    %v1648 = vpack.c.b16 %v1604, %v1602
    %v1649 = vpack.c.b16 %v1605, %v1603
    %v1650 = vpack.c.b16 %v1608, %v1606
    %v1651 = vpack.c.b16 %v1609, %v1607
    %v1652 = vpack.c.b16 %v1612, %v1610
    %v1653 = vpack.c.b16 %v1613, %v1611
    %v1654 = vpack.c.b16 %v1616, %v1614
    %v1655 = vpack.c.b16 %v1617, %v1615
    %v1656 = vpack.c.b16 %v1620, %v1618
    %v1657 = vpack.c.b16 %v1621, %v1619
    %v1658 = vpack.c.b16 %v1624, %v1622
    %v1659 = vpack.c.b16 %v1625, %v1623
    %v1660 = vpack.c.b16 %v1628, %v1626
    %v1661 = vpack.c.b16 %v1629, %v1627
    %1694 = vmatprep.subr.bf16.mxu0 %v1631
    %1695 = vmatpush1.bf16.msra.mxu0 %v1630
    %1696 = vmatprep.subr.bf16.mxu0 %v1633
    %1697 = vmatpush1.bf16.msra.mxu0 %v1632
    %1698 = vmatprep.subr.bf16.mxu0 %v1635
    %1699 = vmatpush1.bf16.msra.mxu0 %v1634
    %1700 = vmatprep.subr.bf16.mxu0 %v1637
    %1701 = vmatpush1.bf16.msra.mxu0 %v1636
    %1702 = vmatprep.subr.bf16.mxu0 %v1639
    %1703 = vmatpush1.bf16.msra.mxu0 %v1638
    %1704 = vmatprep.subr.bf16.mxu0 %v1641
    %1705 = vmatpush1.bf16.msra.mxu0 %v1640
    %1706 = vmatprep.subr.bf16.mxu0 %v1643
    %1707 = vmatpush1.bf16.msra.mxu0 %v1642
    %1708 = vmatprep.subr.bf16.mxu0 %v1645
    %1709 = vmatpush1.bf16.msra.mxu0 %v1644
    %1710 = vmatprep.subr.bf16.mxu0 %v1647
    %1711 = vmatpush1.bf16.msra.mxu0 %v1646
    %1712 = vmatprep.subr.bf16.mxu0 %v1649
    %1713 = vmatpush1.bf16.msra.mxu0 %v1648
    %1714 = vmatprep.subr.bf16.mxu0 %v1651
    %1715 = vmatpush1.bf16.msra.mxu0 %v1650
    %1716 = vmatprep.subr.bf16.mxu0 %v1653
    %1717 = vmatpush1.bf16.msra.mxu0 %v1652
    %1718 = vmatprep.subr.bf16.mxu0 %v1655
    %1719 = vmatpush1.bf16.msra.mxu0 %v1654
    %1720 = vmatprep.subr.bf16.mxu0 %v1657
    %1721 = vmatpush1.bf16.msra.mxu0 %v1656
    %1722 = vmatprep.subr.bf16.mxu0 %v1659
    %1723 = vmatpush1.bf16.msra.mxu0 %v1658
    %1724 = vmatprep.subr.bf16.mxu0 %v1661
    %1725 = vmatpush1.bf16.msra.mxu0 %v1660
    %1726 = vmatprep.mubr.bf16.mxu0 %v1498
    %1727 = vmatmul.mubr.bf16.gmra.mrb[0].mxu0 %v1497
    %v1728 = vpop.f32.mrb[0].mxu0
    %v1729 = vadd.f32 0.0, %v1728
    %v1730 = vpop.f32.mrb[0].mxu0
    %v1731 = vadd.f32 0.0, %v1730
    %v1732 = vpop.f32.mrb[0].mxu0
    %v1733 = vadd.f32 0.0, %v1732
    %v1734 = vpop.f32.mrb[0].mxu0
    %v1735 = vadd.f32 0.0, %v1734
    %1736 = vmatprep.mubr.bf16.mxu0 %v1500
    %1737 = vmatmul.mubr.bf16.gmra.mrb[0].mxu0 %v1499
    %v1738 = vpop.f32.mrb[0].mxu0
    %v1739 = vadd.f32 0.0, %v1738
    %v1740 = vpop.f32.mrb[0].mxu0
    %v1741 = vadd.f32 0.0, %v1740
    %v1742 = vpop.f32.mrb[0].mxu0
    %v1743 = vadd.f32 0.0, %v1742
    %v1744 = vpop.f32.mrb[0].mxu0
    %v1745 = vadd.f32 0.0, %v1744
    %1746 = vdwg.mxu0
    %v1747 = vadd.f32 %v1405, %v1729
    %v1748 = vadd.f32 %v1407, %v1731
    %v1749 = vadd.f32 %v1409, %v1733
    %v1750 = vadd.f32 %v1411, %v1735
    %v1751 = vadd.f32 %v1415, %v1739
    %v1752 = vadd.f32 %v1417, %v1741
    %v1753 = vadd.f32 %v1419, %v1743
    %v1754 = vadd.f32 %v1421, %v1745
    %s1755 = scalar_lea.vmem [#allocation6], 1
    %v1756 = vld [vmem:[%s1755] ss:$8 sm:$0x3]
    %v1758 = vlaneseq
    %v1759 = vshrl.u32 %v1758, 7
    %v1760 = vsub.s32 0, %v1759
    %v1761 = vrot.slane %v1756, %v1760
    %v1762 = vlaneseq
    %v1763 = vshrl.u32 %v1762, 7
    %v1764 = vsub.s32 1, %v1763
    %v1765 = vrot.slane %v1756, %v1764
    %v1768 = vadd.f32 %v1747, %v1761
    %v1769 = vadd.f32 %v1748, %v1765
    %v1770 = vadd.f32 %v1749, %v1761
    %v1771 = vadd.f32 %v1750, %v1765
    %v1772 = vadd.f32 %v1751, %v1761
    %v1773 = vadd.f32 %v1752, %v1765
    %v1774 = vadd.f32 %v1753, %v1761
    %v1775 = vadd.f32 %v1754, %v1765
    %v1776 = vmax.f32 %v1768, 0.0
    %v1777 = vmax.f32 %v1769, 0.0
    %v1778 = vmax.f32 %v1770, 0.0
    %v1779 = vmax.f32 %v1771, 0.0
    %v1780 = vmax.f32 %v1772, 0.0
    %v1781 = vmax.f32 %v1773, 0.0
    %v1782 = vmax.f32 %v1774, 0.0
    %v1783 = vmax.f32 %v1775, 0.0
    %v1784 = vpack.c.bf16 %v1778, %v1776
    %v1785 = vpack.c.bf16 %v1779, %v1777
    %v1786 = vpack.c.bf16 %v1782, %v1780
    %v1787 = vpack.c.bf16 %v1783, %v1781
    %s1788 = scalar_lea.vmem [#allocation4], 96
    %v1789 = vld [vmem:[%s1788] sm:$0xf]
    %v1790 = vld [vmem:[%s1788 + $0x4] sm:$0xf]
    %v1793 = vunpack.c.l.b16 %v1789
    %v1794 = vunpack.c.l.b16 %v1790
    %v1795 = vpack.c.b16 %v1794, %v1793
    %v1797 = vsel %vm360, %v1795, 0
    %1799 = vmatprep.subr.bf16.mxu0 %v1785
    %1800 = vmatpush1.bf16.msra.mxu0 %v1784
    %1801 = vmatprep.subr.bf16.mxu0 %v1787
    %1802 = vmatpush1.bf16.msra.mxu0 %v1786
    %1803 = vmatprep.subr.bf16.mxu0 0
    %1804 = vmatpush1.bf16.msra.mxu0 0
    %1805 = vmatprep.subr.bf16.mxu0 0
    %1806 = vmatpush1.bf16.msra.mxu0 0
    %1807 = vmatprep.subr.bf16.mxu0 0
    %1808 = vmatpush1.bf16.msra.mxu0 0
    %1809 = vmatprep.subr.bf16.mxu0 0
    %1810 = vmatpush1.bf16.msra.mxu0 0
    %1811 = vmatprep.subr.bf16.mxu0 0
    %1812 = vmatpush1.bf16.msra.mxu0 0
    %1813 = vmatprep.subr.bf16.mxu0 0
    %1814 = vmatpush1.bf16.msra.mxu0 0
    %1815 = vmatprep.subr.bf16.mxu0 0
    %1816 = vmatpush1.bf16.msra.mxu0 0
    %1817 = vmatprep.subr.bf16.mxu0 0
    %1818 = vmatpush1.bf16.msra.mxu0 0
    %1819 = vmatprep.subr.bf16.mxu0 0
    %1820 = vmatpush1.bf16.msra.mxu0 0
    %1821 = vmatprep.subr.bf16.mxu0 0
    %1822 = vmatpush1.bf16.msra.mxu0 0
    %1823 = vmatprep.subr.bf16.mxu0 0
    %1824 = vmatpush1.bf16.msra.mxu0 0
    %1825 = vmatprep.subr.bf16.mxu0 0
    %1826 = vmatpush1.bf16.msra.mxu0 0
    %1827 = vmatprep.subr.bf16.mxu0 0
    %1828 = vmatpush1.bf16.msra.mxu0 0
    %1829 = vmatprep.subr.bf16.mxu0 0
    %1830 = vmatpush1.bf16.msra.mxu0 0
    %1831 = vmatprep.mubr.bf16.mxu0 0
    %1832 = vmatmul.mubr.bf16.gmra.mrb[0].mxu0 %v1797
    %v1833 = vpop.f32.mrb[0].mxu0
    %v1834 = vadd.f32 0.0, %v1833
    %v1835 = vpop.f32.mrb[0].mxu0
    %v1836 = vadd.f32 0.0, %v1835
    %v1837 = vpop.f32.mrb[0].mxu0
    %v1838 = vadd.f32 0.0, %v1837
    %v1839 = vpop.f32.mrb[0].mxu0
    %v1840 = vadd.f32 0.0, %v1839
    %1841 = vdwg.mxu0
    %v1842 = vpack.c.bf16 %v1838, %v1834
    %v1843 = vpack.c.bf16 %v1840, %v1836
    %v1844 = vld [vmem:[#allocation11] sm:$0xff]
    %v1845 = vld [vmem:[#allocation11 + $0x8] sm:$0xff]
    %v1846 = vld [vmem:[#allocation11 + $0x10] sm:$0xff]
    %v1847 = vld [vmem:[#allocation11 + $0x18] sm:$0xff]
    %v1848 = vld [vmem:[#allocation11 + $0x20] sm:$0xff]
    %v1849 = vld [vmem:[#allocation11 + $0x28] sm:$0xff]
    %v1850 = vld [vmem:[#allocation11 + $0x30] sm:$0xff]
    %v1851 = vld [vmem:[#allocation11 + $0x38] sm:$0xff]
    %v1852 = vld [vmem:[#allocation11 + $0x40] sm:$0xff]
    %v1853 = vld [vmem:[#allocation11 + $0x48] sm:$0xff]
    %v1854 = vld [vmem:[#allocation11 + $0x50] sm:$0xff]
    %v1855 = vld [vmem:[#allocation11 + $0x58] sm:$0xff]
    %v1856 = vld [vmem:[#allocation11 + $0x60] sm:$0xff]
    %v1857 = vld [vmem:[#allocation11 + $0x68] sm:$0xff]
    %v1858 = vld [vmem:[#allocation11 + $0x70] sm:$0xff]
    %v1859 = vld [vmem:[#allocation11 + $0x78] sm:$0xff]
    %v1860 = vld [vmem:[#allocation11 + $0x80] sm:$0xff]
    %v1861 = vld [vmem:[#allocation11 + $0x88] sm:$0xff]
    %v1862 = vld [vmem:[#allocation11 + $0x90] sm:$0xff]
    %v1863 = vld [vmem:[#allocation11 + $0x98] sm:$0xff]
    %v1864 = vld [vmem:[#allocation11 + $0xa0] sm:$0xff]
    %v1865 = vld [vmem:[#allocation11 + $0xa8] sm:$0xff]
    %v1866 = vld [vmem:[#allocation11 + $0xb0] sm:$0xff]
    %v1867 = vld [vmem:[#allocation11 + $0xb8] sm:$0xff]
    %v1868 = vld [vmem:[#allocation11 + $0xc0] sm:$0xff]
    %v1869 = vld [vmem:[#allocation11 + $0xc8] sm:$0xff]
    %v1870 = vld [vmem:[#allocation11 + $0xd0] sm:$0xff]
    %v1871 = vld [vmem:[#allocation11 + $0xd8] sm:$0xff]
    %v1872 = vld [vmem:[#allocation11 + $0xe0] sm:$0xff]
    %v1873 = vld [vmem:[#allocation11 + $0xe8] sm:$0xff]
    %v1874 = vld [vmem:[#allocation11 + $0xf0] sm:$0xff]
    %v1875 = vld [vmem:[#allocation11 + $0xf8] sm:$0xff]
    %s1876 = scalar_lea.vmem [#allocation4], 112
    %v1877 = vld [vmem:[%s1876] sm:$0xf]
    %v1878 = vld [vmem:[%s1876 + $0x4] sm:$0xf]
    %v1881 = vunpack.c.l.b16 %v1877
    %v1882 = vunpack.c.l.b16 %v1878
    %v1883 = vpack.c.b16 %v1882, %v1881
    %v1885 = vsel %vm360, %v1883, 0
    %1887 = vmatprep.subr.bf16.mxu0 %v1785
    %1888 = vmatpush1.bf16.msra.mxu0 %v1784
    %1889 = vmatprep.subr.bf16.mxu0 %v1787
    %1890 = vmatpush1.bf16.msra.mxu0 %v1786
    %1891 = vmatprep.subr.bf16.mxu0 0
    %1892 = vmatpush1.bf16.msra.mxu0 0
    %1893 = vmatprep.subr.bf16.mxu0 0
    %1894 = vmatpush1.bf16.msra.mxu0 0
    %1895 = vmatprep.subr.bf16.mxu0 0
    %1896 = vmatpush1.bf16.msra.mxu0 0
    %1897 = vmatprep.subr.bf16.mxu0 0
    %1898 = vmatpush1.bf16.msra.mxu0 0
    %1899 = vmatprep.subr.bf16.mxu0 0
    %1900 = vmatpush1.bf16.msra.mxu0 0
    %1901 = vmatprep.subr.bf16.mxu0 0
    %1902 = vmatpush1.bf16.msra.mxu0 0
    %1903 = vmatprep.subr.bf16.mxu0 0
    %1904 = vmatpush1.bf16.msra.mxu0 0
    %1905 = vmatprep.subr.bf16.mxu0 0
    %1906 = vmatpush1.bf16.msra.mxu0 0
    %1907 = vmatprep.subr.bf16.mxu0 0
    %1908 = vmatpush1.bf16.msra.mxu0 0
    %1909 = vmatprep.subr.bf16.mxu0 0
    %1910 = vmatpush1.bf16.msra.mxu0 0
    %1911 = vmatprep.subr.bf16.mxu0 0
    %1912 = vmatpush1.bf16.msra.mxu0 0
    %1913 = vmatprep.subr.bf16.mxu0 0
    %1914 = vmatpush1.bf16.msra.mxu0 0
    %1915 = vmatprep.subr.bf16.mxu0 0
    %1916 = vmatpush1.bf16.msra.mxu0 0
    %1917 = vmatprep.subr.bf16.mxu0 0
    %1918 = vmatpush1.bf16.msra.mxu0 0
    %1919 = vmatprep.mubr.bf16.mxu0 0
    %1920 = vmatmul.mubr.bf16.gmra.mrb[0].mxu0 %v1885
    %v1921 = vpop.f32.mrb[0].mxu0
    %v1922 = vadd.f32 0.0, %v1921
    %v1923 = vpop.f32.mrb[0].mxu0
    %v1924 = vadd.f32 0.0, %v1923
    %v1925 = vpop.f32.mrb[0].mxu0
    %v1926 = vadd.f32 0.0, %v1925
    %v1927 = vpop.f32.mrb[0].mxu0
    %v1928 = vadd.f32 0.0, %v1927
    %1929 = vdwg.mxu0
    %v1930 = vpack.c.bf16 %v1926, %v1922
    %v1931 = vpack.c.bf16 %v1928, %v1924
    %s1932 = scalar_lea.vmem [#allocation11], 256
    %v1933 = vld [vmem:[%s1932] sm:$0xff]
    %v1934 = vld [vmem:[%s1932 + $0x8] sm:$0xff]
    %v1935 = vld [vmem:[%s1932 + $0x10] sm:$0xff]
    %v1936 = vld [vmem:[%s1932 + $0x18] sm:$0xff]
    %v1937 = vld [vmem:[%s1932 + $0x20] sm:$0xff]
    %v1938 = vld [vmem:[%s1932 + $0x28] sm:$0xff]
    %v1939 = vld [vmem:[%s1932 + $0x30] sm:$0xff]
    %v1940 = vld [vmem:[%s1932 + $0x38] sm:$0xff]
    %v1941 = vld [vmem:[%s1932 + $0x40] sm:$0xff]
    %v1942 = vld [vmem:[%s1932 + $0x48] sm:$0xff]
    %v1943 = vld [vmem:[%s1932 + $0x50] sm:$0xff]
    %v1944 = vld [vmem:[%s1932 + $0x58] sm:$0xff]
    %v1945 = vld [vmem:[%s1932 + $0x60] sm:$0xff]
    %v1946 = vld [vmem:[%s1932 + $0x68] sm:$0xff]
    %v1947 = vld [vmem:[%s1932 + $0x70] sm:$0xff]
    %v1948 = vld [vmem:[%s1932 + $0x78] sm:$0xff]
    %v1949 = vld [vmem:[%s1932 + $0x80] sm:$0xff]
    %v1950 = vld [vmem:[%s1932 + $0x88] sm:$0xff]
    %v1951 = vld [vmem:[%s1932 + $0x90] sm:$0xff]
    %v1952 = vld [vmem:[%s1932 + $0x98] sm:$0xff]
    %v1953 = vld [vmem:[%s1932 + $0xa0] sm:$0xff]
    %v1954 = vld [vmem:[%s1932 + $0xa8] sm:$0xff]
    %v1955 = vld [vmem:[%s1932 + $0xb0] sm:$0xff]
    %v1956 = vld [vmem:[%s1932 + $0xb8] sm:$0xff]
    %v1957 = vld [vmem:[%s1932 + $0xc0] sm:$0xff]
    %v1958 = vld [vmem:[%s1932 + $0xc8] sm:$0xff]
    %v1959 = vld [vmem:[%s1932 + $0xd0] sm:$0xff]
    %v1960 = vld [vmem:[%s1932 + $0xd8] sm:$0xff]
    %v1961 = vld [vmem:[%s1932 + $0xe0] sm:$0xff]
    %v1962 = vld [vmem:[%s1932 + $0xe8] sm:$0xff]
    %v1963 = vld [vmem:[%s1932 + $0xf0] sm:$0xff]
    %v1964 = vld [vmem:[%s1932 + $0xf8] sm:$0xff]
    %v1997 = vunpack.c.l.b16 %v1933
    %v1998 = vunpack.c.h.b16 %v1933
    %v1999 = vunpack.c.l.b16 %v1934
    %v2000 = vunpack.c.h.b16 %v1934
    %v2001 = vunpack.c.l.b16 %v1935
    %v2002 = vunpack.c.h.b16 %v1935
    %v2003 = vunpack.c.l.b16 %v1936
    %v2004 = vunpack.c.h.b16 %v1936
    %v2005 = vunpack.c.l.b16 %v1937
    %v2006 = vunpack.c.h.b16 %v1937
    %v2007 = vunpack.c.l.b16 %v1938
    %v2008 = vunpack.c.h.b16 %v1938
    %v2009 = vunpack.c.l.b16 %v1939
    %v2010 = vunpack.c.h.b16 %v1939
    %v2011 = vunpack.c.l.b16 %v1940
    %v2012 = vunpack.c.h.b16 %v1940
    %v2013 = vunpack.c.l.b16 %v1941
    %v2014 = vunpack.c.h.b16 %v1941
    %v2015 = vunpack.c.l.b16 %v1942
    %v2016 = vunpack.c.h.b16 %v1942
    %v2017 = vunpack.c.l.b16 %v1943
    %v2018 = vunpack.c.h.b16 %v1943
    %v2019 = vunpack.c.l.b16 %v1944
    %v2020 = vunpack.c.h.b16 %v1944
    %v2021 = vunpack.c.l.b16 %v1945
    %v2022 = vunpack.c.h.b16 %v1945
    %v2023 = vunpack.c.l.b16 %v1946
    %v2024 = vunpack.c.h.b16 %v1946
    %v2025 = vunpack.c.l.b16 %v1947
    %v2026 = vunpack.c.h.b16 %v1947
    %v2027 = vunpack.c.l.b16 %v1948
    %v2028 = vunpack.c.h.b16 %v1948
    %v2029 = vunpack.c.l.b16 %v1949
    %v2030 = vunpack.c.h.b16 %v1949
    %v2031 = vunpack.c.l.b16 %v1950
    %v2032 = vunpack.c.h.b16 %v1950
    %v2033 = vunpack.c.l.b16 %v1951
    %v2034 = vunpack.c.h.b16 %v1951
    %v2035 = vunpack.c.l.b16 %v1952
    %v2036 = vunpack.c.h.b16 %v1952
    %v2037 = vunpack.c.l.b16 %v1953
    %v2038 = vunpack.c.h.b16 %v1953
    %v2039 = vunpack.c.l.b16 %v1954
    %v2040 = vunpack.c.h.b16 %v1954
    %v2041 = vunpack.c.l.b16 %v1955
    %v2042 = vunpack.c.h.b16 %v1955
    %v2043 = vunpack.c.l.b16 %v1956
    %v2044 = vunpack.c.h.b16 %v1956
    %v2045 = vunpack.c.l.b16 %v1957
    %v2046 = vunpack.c.h.b16 %v1957
    %v2047 = vunpack.c.l.b16 %v1958
    %v2048 = vunpack.c.h.b16 %v1958
    %v2049 = vunpack.c.l.b16 %v1959
    %v2050 = vunpack.c.h.b16 %v1959
    %v2051 = vunpack.c.l.b16 %v1960
    %v2052 = vunpack.c.h.b16 %v1960
    %v2053 = vunpack.c.l.b16 %v1961
    %v2054 = vunpack.c.h.b16 %v1961
    %v2055 = vunpack.c.l.b16 %v1962
    %v2056 = vunpack.c.h.b16 %v1962
    %v2057 = vunpack.c.l.b16 %v1963
    %v2058 = vunpack.c.h.b16 %v1963
    %v2059 = vunpack.c.l.b16 %v1964
    %v2060 = vunpack.c.h.b16 %v1964
    %v2061 = vpack.c.b16 %v1999, %v1997
    %v2062 = vpack.c.b16 %v2000, %v1998
    %v2063 = vpack.c.b16 %v2003, %v2001
    %v2064 = vpack.c.b16 %v2004, %v2002
    %v2065 = vpack.c.b16 %v2007, %v2005
    %v2066 = vpack.c.b16 %v2008, %v2006
    %v2067 = vpack.c.b16 %v2011, %v2009
    %v2068 = vpack.c.b16 %v2012, %v2010
    %v2069 = vpack.c.b16 %v2015, %v2013
    %v2070 = vpack.c.b16 %v2016, %v2014
    %v2071 = vpack.c.b16 %v2019, %v2017
    %v2072 = vpack.c.b16 %v2020, %v2018
    %v2073 = vpack.c.b16 %v2023, %v2021
    %v2074 = vpack.c.b16 %v2024, %v2022
    %v2075 = vpack.c.b16 %v2027, %v2025
    %v2076 = vpack.c.b16 %v2028, %v2026
    %v2077 = vpack.c.b16 %v2031, %v2029
    %v2078 = vpack.c.b16 %v2032, %v2030
    %v2079 = vpack.c.b16 %v2035, %v2033
    %v2080 = vpack.c.b16 %v2036, %v2034
    %v2081 = vpack.c.b16 %v2039, %v2037
    %v2082 = vpack.c.b16 %v2040, %v2038
    %v2083 = vpack.c.b16 %v2043, %v2041
    %v2084 = vpack.c.b16 %v2044, %v2042
    %v2085 = vpack.c.b16 %v2047, %v2045
    %v2086 = vpack.c.b16 %v2048, %v2046
    %v2087 = vpack.c.b16 %v2051, %v2049
    %v2088 = vpack.c.b16 %v2052, %v2050
    %v2089 = vpack.c.b16 %v2055, %v2053
    %v2090 = vpack.c.b16 %v2056, %v2054
    %v2091 = vpack.c.b16 %v2059, %v2057
    %v2092 = vpack.c.b16 %v2060, %v2058
    %2125 = vmatprep.subr.bf16.mxu0 %v2062
    %2126 = vmatpush1.bf16.msra.mxu0 %v2061
    %2127 = vmatprep.subr.bf16.mxu0 %v2064
    %2128 = vmatpush1.bf16.msra.mxu0 %v2063
    %2129 = vmatprep.subr.bf16.mxu0 %v2066
    %2130 = vmatpush1.bf16.msra.mxu0 %v2065
    %2131 = vmatprep.subr.bf16.mxu0 %v2068
    %2132 = vmatpush1.bf16.msra.mxu0 %v2067
    %2133 = vmatprep.subr.bf16.mxu0 %v2070
    %2134 = vmatpush1.bf16.msra.mxu0 %v2069
    %2135 = vmatprep.subr.bf16.mxu0 %v2072
    %2136 = vmatpush1.bf16.msra.mxu0 %v2071
    %2137 = vmatprep.subr.bf16.mxu0 %v2074
    %2138 = vmatpush1.bf16.msra.mxu0 %v2073
    %2139 = vmatprep.subr.bf16.mxu0 %v2076
    %2140 = vmatpush1.bf16.msra.mxu0 %v2075
    %2141 = vmatprep.subr.bf16.mxu0 %v2078
    %2142 = vmatpush1.bf16.msra.mxu0 %v2077
    %2143 = vmatprep.subr.bf16.mxu0 %v2080
    %2144 = vmatpush1.bf16.msra.mxu0 %v2079
    %2145 = vmatprep.subr.bf16.mxu0 %v2082
    %2146 = vmatpush1.bf16.msra.mxu0 %v2081
    %2147 = vmatprep.subr.bf16.mxu0 %v2084
    %2148 = vmatpush1.bf16.msra.mxu0 %v2083
    %2149 = vmatprep.subr.bf16.mxu0 %v2086
    %2150 = vmatpush1.bf16.msra.mxu0 %v2085
    %2151 = vmatprep.subr.bf16.mxu0 %v2088
    %2152 = vmatpush1.bf16.msra.mxu0 %v2087
    %2153 = vmatprep.subr.bf16.mxu0 %v2090
    %2154 = vmatpush1.bf16.msra.mxu0 %v2089
    %2155 = vmatprep.subr.bf16.mxu0 %v2092
    %2156 = vmatpush1.bf16.msra.mxu0 %v2091
    %2157 = vmatprep.mubr.bf16.mxu0 %v1931
    %2158 = vmatmul.mubr.bf16.gmra.mrb[0].mxu0 %v1930
    %v2159 = vpop.f32.mrb[0].mxu0
    %v2160 = vadd.f32 0.0, %v2159
    %v2161 = vpop.f32.mrb[0].mxu0
    %v2162 = vadd.f32 0.0, %v2161
    %v2163 = vpop.f32.mrb[0].mxu0
    %v2164 = vadd.f32 0.0, %v2163
    %v2165 = vpop.f32.mrb[0].mxu0
    %v2166 = vadd.f32 0.0, %v2165
    %2167 = vdwg.mxu0
    %v2200 = vunpack.c.l.b16 %v1844
    %v2201 = vunpack.c.h.b16 %v1844
    %v2202 = vunpack.c.l.b16 %v1845
    %v2203 = vunpack.c.h.b16 %v1845
    %v2204 = vunpack.c.l.b16 %v1846
    %v2205 = vunpack.c.h.b16 %v1846
    %v2206 = vunpack.c.l.b16 %v1847
    %v2207 = vunpack.c.h.b16 %v1847
    %v2208 = vunpack.c.l.b16 %v1848
    %v2209 = vunpack.c.h.b16 %v1848
    %v2210 = vunpack.c.l.b16 %v1849
    %v2211 = vunpack.c.h.b16 %v1849
    %v2212 = vunpack.c.l.b16 %v1850
    %v2213 = vunpack.c.h.b16 %v1850
    %v2214 = vunpack.c.l.b16 %v1851
    %v2215 = vunpack.c.h.b16 %v1851
    %v2216 = vunpack.c.l.b16 %v1852
    %v2217 = vunpack.c.h.b16 %v1852
    %v2218 = vunpack.c.l.b16 %v1853
    %v2219 = vunpack.c.h.b16 %v1853
    %v2220 = vunpack.c.l.b16 %v1854
    %v2221 = vunpack.c.h.b16 %v1854
    %v2222 = vunpack.c.l.b16 %v1855
    %v2223 = vunpack.c.h.b16 %v1855
    %v2224 = vunpack.c.l.b16 %v1856
    %v2225 = vunpack.c.h.b16 %v1856
    %v2226 = vunpack.c.l.b16 %v1857
    %v2227 = vunpack.c.h.b16 %v1857
    %v2228 = vunpack.c.l.b16 %v1858
    %v2229 = vunpack.c.h.b16 %v1858
    %v2230 = vunpack.c.l.b16 %v1859
    %v2231 = vunpack.c.h.b16 %v1859
    %v2232 = vunpack.c.l.b16 %v1860
    %v2233 = vunpack.c.h.b16 %v1860
    %v2234 = vunpack.c.l.b16 %v1861
    %v2235 = vunpack.c.h.b16 %v1861
    %v2236 = vunpack.c.l.b16 %v1862
    %v2237 = vunpack.c.h.b16 %v1862
    %v2238 = vunpack.c.l.b16 %v1863
    %v2239 = vunpack.c.h.b16 %v1863
    %v2240 = vunpack.c.l.b16 %v1864
    %v2241 = vunpack.c.h.b16 %v1864
    %v2242 = vunpack.c.l.b16 %v1865
    %v2243 = vunpack.c.h.b16 %v1865
    %v2244 = vunpack.c.l.b16 %v1866
    %v2245 = vunpack.c.h.b16 %v1866
    %v2246 = vunpack.c.l.b16 %v1867
    %v2247 = vunpack.c.h.b16 %v1867
    %v2248 = vunpack.c.l.b16 %v1868
    %v2249 = vunpack.c.h.b16 %v1868
    %v2250 = vunpack.c.l.b16 %v1869
    %v2251 = vunpack.c.h.b16 %v1869
    %v2252 = vunpack.c.l.b16 %v1870
    %v2253 = vunpack.c.h.b16 %v1870
    %v2254 = vunpack.c.l.b16 %v1871
    %v2255 = vunpack.c.h.b16 %v1871
    %v2256 = vunpack.c.l.b16 %v1872
    %v2257 = vunpack.c.h.b16 %v1872
    %v2258 = vunpack.c.l.b16 %v1873
    %v2259 = vunpack.c.h.b16 %v1873
    %v2260 = vunpack.c.l.b16 %v1874
    %v2261 = vunpack.c.h.b16 %v1874
    %v2262 = vunpack.c.l.b16 %v1875
    %v2263 = vunpack.c.h.b16 %v1875
    %v2264 = vpack.c.b16 %v2202, %v2200
    %v2265 = vpack.c.b16 %v2203, %v2201
    %v2266 = vpack.c.b16 %v2206, %v2204
    %v2267 = vpack.c.b16 %v2207, %v2205
    %v2268 = vpack.c.b16 %v2210, %v2208
    %v2269 = vpack.c.b16 %v2211, %v2209
    %v2270 = vpack.c.b16 %v2214, %v2212
    %v2271 = vpack.c.b16 %v2215, %v2213
    %v2272 = vpack.c.b16 %v2218, %v2216
    %v2273 = vpack.c.b16 %v2219, %v2217
    %v2274 = vpack.c.b16 %v2222, %v2220
    %v2275 = vpack.c.b16 %v2223, %v2221
    %v2276 = vpack.c.b16 %v2226, %v2224
    %v2277 = vpack.c.b16 %v2227, %v2225
    %v2278 = vpack.c.b16 %v2230, %v2228
    %v2279 = vpack.c.b16 %v2231, %v2229
    %v2280 = vpack.c.b16 %v2234, %v2232
    %v2281 = vpack.c.b16 %v2235, %v2233
    %v2282 = vpack.c.b16 %v2238, %v2236
    %v2283 = vpack.c.b16 %v2239, %v2237
    %v2284 = vpack.c.b16 %v2242, %v2240
    %v2285 = vpack.c.b16 %v2243, %v2241
    %v2286 = vpack.c.b16 %v2246, %v2244
    %v2287 = vpack.c.b16 %v2247, %v2245
    %v2288 = vpack.c.b16 %v2250, %v2248
    %v2289 = vpack.c.b16 %v2251, %v2249
    %v2290 = vpack.c.b16 %v2254, %v2252
    %v2291 = vpack.c.b16 %v2255, %v2253
    %v2292 = vpack.c.b16 %v2258, %v2256
    %v2293 = vpack.c.b16 %v2259, %v2257
    %v2294 = vpack.c.b16 %v2262, %v2260
    %v2295 = vpack.c.b16 %v2263, %v2261
    %2328 = vmatprep.subr.bf16.mxu0 %v2265
    %2329 = vmatpush1.bf16.msra.mxu0 %v2264
    %2330 = vmatprep.subr.bf16.mxu0 %v2267
    %2331 = vmatpush1.bf16.msra.mxu0 %v2266
    %2332 = vmatprep.subr.bf16.mxu0 %v2269
    %2333 = vmatpush1.bf16.msra.mxu0 %v2268
    %2334 = vmatprep.subr.bf16.mxu0 %v2271
    %2335 = vmatpush1.bf16.msra.mxu0 %v2270
    %2336 = vmatprep.subr.bf16.mxu0 %v2273
    %2337 = vmatpush1.bf16.msra.mxu0 %v2272
    %2338 = vmatprep.subr.bf16.mxu0 %v2275
    %2339 = vmatpush1.bf16.msra.mxu0 %v2274
    %2340 = vmatprep.subr.bf16.mxu0 %v2277
    %2341 = vmatpush1.bf16.msra.mxu0 %v2276
    %2342 = vmatprep.subr.bf16.mxu0 %v2279
    %2343 = vmatpush1.bf16.msra.mxu0 %v2278
    %2344 = vmatprep.subr.bf16.mxu0 %v2281
    %2345 = vmatpush1.bf16.msra.mxu0 %v2280
    %2346 = vmatprep.subr.bf16.mxu0 %v2283
    %2347 = vmatpush1.bf16.msra.mxu0 %v2282
    %2348 = vmatprep.subr.bf16.mxu0 %v2285
    %2349 = vmatpush1.bf16.msra.mxu0 %v2284
    %2350 = vmatprep.subr.bf16.mxu0 %v2287
    %2351 = vmatpush1.bf16.msra.mxu0 %v2286
    %2352 = vmatprep.subr.bf16.mxu0 %v2289
    %2353 = vmatpush1.bf16.msra.mxu0 %v2288
    %2354 = vmatprep.subr.bf16.mxu0 %v2291
    %2355 = vmatpush1.bf16.msra.mxu0 %v2290
    %2356 = vmatprep.subr.bf16.mxu0 %v2293
    %2357 = vmatpush1.bf16.msra.mxu0 %v2292
    %2358 = vmatprep.subr.bf16.mxu0 %v2295
    %2359 = vmatpush1.bf16.msra.mxu0 %v2294
    %2360 = vmatprep.mubr.bf16.mxu0 %v1843
    %2361 = vmatmul.mubr.bf16.gmra.mrb[0].mxu0 %v1842
    %v2362 = vpop.f32.mrb[0].mxu0
    %v2363 = vadd.f32 %v2160, %v2362
    %v2364 = vpop.f32.mrb[0].mxu0
    %v2365 = vadd.f32 %v2162, %v2364
    %v2366 = vpop.f32.mrb[0].mxu0
    %v2367 = vadd.f32 %v2164, %v2366
    %v2368 = vpop.f32.mrb[0].mxu0
    %v2369 = vadd.f32 %v2166, %v2368
    %2370 = vdwg.mxu0
    %s2371 = scalar_lea.vmem [#allocation4], 128
    %v2372 = vld [vmem:[%s2371] sm:$0xf]
    %v2373 = vld [vmem:[%s2371 + $0x4] sm:$0xf]
    %v2376 = vunpack.c.l.b16 %v2372
    %v2377 = vunpack.c.l.b16 %v2373
    %v2378 = vpack.c.b16 %v2377, %v2376
    %v2380 = vsel %vm360, %v2378, 0
    %2382 = vmatprep.subr.bf16.mxu0 %v1785
    %2383 = vmatpush1.bf16.msra.mxu0 %v1784
    %2384 = vmatprep.subr.bf16.mxu0 %v1787
    %2385 = vmatpush1.bf16.msra.mxu0 %v1786
    %2386 = vmatprep.subr.bf16.mxu0 0
    %2387 = vmatpush1.bf16.msra.mxu0 0
    %2388 = vmatprep.subr.bf16.mxu0 0
    %2389 = vmatpush1.bf16.msra.mxu0 0
    %2390 = vmatprep.subr.bf16.mxu0 0
    %2391 = vmatpush1.bf16.msra.mxu0 0
    %2392 = vmatprep.subr.bf16.mxu0 0
    %2393 = vmatpush1.bf16.msra.mxu0 0
    %2394 = vmatprep.subr.bf16.mxu0 0
    %2395 = vmatpush1.bf16.msra.mxu0 0
    %2396 = vmatprep.subr.bf16.mxu0 0
    %2397 = vmatpush1.bf16.msra.mxu0 0
    %2398 = vmatprep.subr.bf16.mxu0 0
    %2399 = vmatpush1.bf16.msra.mxu0 0
    %2400 = vmatprep.subr.bf16.mxu0 0
    %2401 = vmatpush1.bf16.msra.mxu0 0
    %2402 = vmatprep.subr.bf16.mxu0 0
    %2403 = vmatpush1.bf16.msra.mxu0 0
    %2404 = vmatprep.subr.bf16.mxu0 0
    %2405 = vmatpush1.bf16.msra.mxu0 0
    %2406 = vmatprep.subr.bf16.mxu0 0
    %2407 = vmatpush1.bf16.msra.mxu0 0
    %2408 = vmatprep.subr.bf16.mxu0 0
    %2409 = vmatpush1.bf16.msra.mxu0 0
    %2410 = vmatprep.subr.bf16.mxu0 0
    %2411 = vmatpush1.bf16.msra.mxu0 0
    %2412 = vmatprep.subr.bf16.mxu0 0
    %2413 = vmatpush1.bf16.msra.mxu0 0
    %2414 = vmatprep.mubr.bf16.mxu0 0
    %2415 = vmatmul.mubr.bf16.gmra.mrb[0].mxu0 %v2380
    %v2416 = vpop.f32.mrb[0].mxu0
    %v2417 = vadd.f32 0.0, %v2416
    %v2418 = vpop.f32.mrb[0].mxu0
    %v2419 = vadd.f32 0.0, %v2418
    %v2420 = vpop.f32.mrb[0].mxu0
    %v2421 = vadd.f32 0.0, %v2420
    %v2422 = vpop.f32.mrb[0].mxu0
    %v2423 = vadd.f32 0.0, %v2422
    %2424 = vdwg.mxu0
    %v2425 = vpack.c.bf16 %v2421, %v2417
    %v2426 = vpack.c.bf16 %v2423, %v2419
    %s2427 = scalar_lea.vmem [#allocation11], 512
    %v2428 = vld [vmem:[%s2427] sm:$0xff]
    %v2429 = vld [vmem:[%s2427 + $0x8] sm:$0xff]
    %v2430 = vld [vmem:[%s2427 + $0x10] sm:$0xff]
    %v2431 = vld [vmem:[%s2427 + $0x18] sm:$0xff]
    %v2432 = vld [vmem:[%s2427 + $0x20] sm:$0xff]
    %v2433 = vld [vmem:[%s2427 + $0x28] sm:$0xff]
    %v2434 = vld [vmem:[%s2427 + $0x30] sm:$0xff]
    %v2435 = vld [vmem:[%s2427 + $0x38] sm:$0xff]
    %v2436 = vld [vmem:[%s2427 + $0x40] sm:$0xff]
    %v2437 = vld [vmem:[%s2427 + $0x48] sm:$0xff]
    %v2438 = vld [vmem:[%s2427 + $0x50] sm:$0xff]
    %v2439 = vld [vmem:[%s2427 + $0x58] sm:$0xff]
    %v2440 = vld [vmem:[%s2427 + $0x60] sm:$0xff]
    %v2441 = vld [vmem:[%s2427 + $0x68] sm:$0xff]
    %v2442 = vld [vmem:[%s2427 + $0x70] sm:$0xff]
    %v2443 = vld [vmem:[%s2427 + $0x78] sm:$0xff]
    %v2444 = vld [vmem:[%s2427 + $0x80] sm:$0xff]
    %v2445 = vld [vmem:[%s2427 + $0x88] sm:$0xff]
    %v2446 = vld [vmem:[%s2427 + $0x90] sm:$0xff]
    %v2447 = vld [vmem:[%s2427 + $0x98] sm:$0xff]
    %v2448 = vld [vmem:[%s2427 + $0xa0] sm:$0xff]
    %v2449 = vld [vmem:[%s2427 + $0xa8] sm:$0xff]
    %v2450 = vld [vmem:[%s2427 + $0xb0] sm:$0xff]
    %v2451 = vld [vmem:[%s2427 + $0xb8] sm:$0xff]
    %v2452 = vld [vmem:[%s2427 + $0xc0] sm:$0xff]
    %v2453 = vld [vmem:[%s2427 + $0xc8] sm:$0xff]
    %v2454 = vld [vmem:[%s2427 + $0xd0] sm:$0xff]
    %v2455 = vld [vmem:[%s2427 + $0xd8] sm:$0xff]
    %v2456 = vld [vmem:[%s2427 + $0xe0] sm:$0xff]
    %v2457 = vld [vmem:[%s2427 + $0xe8] sm:$0xff]
    %v2458 = vld [vmem:[%s2427 + $0xf0] sm:$0xff]
    %v2459 = vld [vmem:[%s2427 + $0xf8] sm:$0xff]
    %v2492 = vunpack.c.l.b16 %v2428
    %v2493 = vunpack.c.h.b16 %v2428
    %v2494 = vunpack.c.l.b16 %v2429
    %v2495 = vunpack.c.h.b16 %v2429
    %v2496 = vunpack.c.l.b16 %v2430
    %v2497 = vunpack.c.h.b16 %v2430
    %v2498 = vunpack.c.l.b16 %v2431
    %v2499 = vunpack.c.h.b16 %v2431
    %v2500 = vunpack.c.l.b16 %v2432
    %v2501 = vunpack.c.h.b16 %v2432
    %v2502 = vunpack.c.l.b16 %v2433
    %v2503 = vunpack.c.h.b16 %v2433
    %v2504 = vunpack.c.l.b16 %v2434
    %v2505 = vunpack.c.h.b16 %v2434
    %v2506 = vunpack.c.l.b16 %v2435
    %v2507 = vunpack.c.h.b16 %v2435
    %v2508 = vunpack.c.l.b16 %v2436
    %v2509 = vunpack.c.h.b16 %v2436
    %v2510 = vunpack.c.l.b16 %v2437
    %v2511 = vunpack.c.h.b16 %v2437
    %v2512 = vunpack.c.l.b16 %v2438
    %v2513 = vunpack.c.h.b16 %v2438
    %v2514 = vunpack.c.l.b16 %v2439
    %v2515 = vunpack.c.h.b16 %v2439
    %v2516 = vunpack.c.l.b16 %v2440
    %v2517 = vunpack.c.h.b16 %v2440
    %v2518 = vunpack.c.l.b16 %v2441
    %v2519 = vunpack.c.h.b16 %v2441
    %v2520 = vunpack.c.l.b16 %v2442
    %v2521 = vunpack.c.h.b16 %v2442
    %v2522 = vunpack.c.l.b16 %v2443
    %v2523 = vunpack.c.h.b16 %v2443
    %v2524 = vunpack.c.l.b16 %v2444
    %v2525 = vunpack.c.h.b16 %v2444
    %v2526 = vunpack.c.l.b16 %v2445
    %v2527 = vunpack.c.h.b16 %v2445
    %v2528 = vunpack.c.l.b16 %v2446
    %v2529 = vunpack.c.h.b16 %v2446
    %v2530 = vunpack.c.l.b16 %v2447
    %v2531 = vunpack.c.h.b16 %v2447
    %v2532 = vunpack.c.l.b16 %v2448
    %v2533 = vunpack.c.h.b16 %v2448
    %v2534 = vunpack.c.l.b16 %v2449
    %v2535 = vunpack.c.h.b16 %v2449
    %v2536 = vunpack.c.l.b16 %v2450
    %v2537 = vunpack.c.h.b16 %v2450
    %v2538 = vunpack.c.l.b16 %v2451
    %v2539 = vunpack.c.h.b16 %v2451
    %v2540 = vunpack.c.l.b16 %v2452
    %v2541 = vunpack.c.h.b16 %v2452
    %v2542 = vunpack.c.l.b16 %v2453
    %v2543 = vunpack.c.h.b16 %v2453
    %v2544 = vunpack.c.l.b16 %v2454
    %v2545 = vunpack.c.h.b16 %v2454
    %v2546 = vunpack.c.l.b16 %v2455
    %v2547 = vunpack.c.h.b16 %v2455
    %v2548 = vunpack.c.l.b16 %v2456
    %v2549 = vunpack.c.h.b16 %v2456
    %v2550 = vunpack.c.l.b16 %v2457
    %v2551 = vunpack.c.h.b16 %v2457
    %v2552 = vunpack.c.l.b16 %v2458
    %v2553 = vunpack.c.h.b16 %v2458
    %v2554 = vunpack.c.l.b16 %v2459
    %v2555 = vunpack.c.h.b16 %v2459
    %v2556 = vpack.c.b16 %v2494, %v2492
    %v2557 = vpack.c.b16 %v2495, %v2493
    %v2558 = vpack.c.b16 %v2498, %v2496
    %v2559 = vpack.c.b16 %v2499, %v2497
    %v2560 = vpack.c.b16 %v2502, %v2500
    %v2561 = vpack.c.b16 %v2503, %v2501
    %v2562 = vpack.c.b16 %v2506, %v2504
    %v2563 = vpack.c.b16 %v2507, %v2505
    %v2564 = vpack.c.b16 %v2510, %v2508
    %v2565 = vpack.c.b16 %v2511, %v2509
    %v2566 = vpack.c.b16 %v2514, %v2512
    %v2567 = vpack.c.b16 %v2515, %v2513
    %v2568 = vpack.c.b16 %v2518, %v2516
    %v2569 = vpack.c.b16 %v2519, %v2517
    %v2570 = vpack.c.b16 %v2522, %v2520
    %v2571 = vpack.c.b16 %v2523, %v2521
    %v2572 = vpack.c.b16 %v2526, %v2524
    %v2573 = vpack.c.b16 %v2527, %v2525
    %v2574 = vpack.c.b16 %v2530, %v2528
    %v2575 = vpack.c.b16 %v2531, %v2529
    %v2576 = vpack.c.b16 %v2534, %v2532
    %v2577 = vpack.c.b16 %v2535, %v2533
    %v2578 = vpack.c.b16 %v2538, %v2536
    %v2579 = vpack.c.b16 %v2539, %v2537
    %v2580 = vpack.c.b16 %v2542, %v2540
    %v2581 = vpack.c.b16 %v2543, %v2541
    %v2582 = vpack.c.b16 %v2546, %v2544
    %v2583 = vpack.c.b16 %v2547, %v2545
    %v2584 = vpack.c.b16 %v2550, %v2548
    %v2585 = vpack.c.b16 %v2551, %v2549
    %v2586 = vpack.c.b16 %v2554, %v2552
    %v2587 = vpack.c.b16 %v2555, %v2553
    %2620 = vmatprep.subr.bf16.mxu0 %v2557
    %2621 = vmatpush1.bf16.msra.mxu0 %v2556
    %2622 = vmatprep.subr.bf16.mxu0 %v2559
    %2623 = vmatpush1.bf16.msra.mxu0 %v2558
    %2624 = vmatprep.subr.bf16.mxu0 %v2561
    %2625 = vmatpush1.bf16.msra.mxu0 %v2560
    %2626 = vmatprep.subr.bf16.mxu0 %v2563
    %2627 = vmatpush1.bf16.msra.mxu0 %v2562
    %2628 = vmatprep.subr.bf16.mxu0 %v2565
    %2629 = vmatpush1.bf16.msra.mxu0 %v2564
    %2630 = vmatprep.subr.bf16.mxu0 %v2567
    %2631 = vmatpush1.bf16.msra.mxu0 %v2566
    %2632 = vmatprep.subr.bf16.mxu0 %v2569
    %2633 = vmatpush1.bf16.msra.mxu0 %v2568
    %2634 = vmatprep.subr.bf16.mxu0 %v2571
    %2635 = vmatpush1.bf16.msra.mxu0 %v2570
    %2636 = vmatprep.subr.bf16.mxu0 %v2573
    %2637 = vmatpush1.bf16.msra.mxu0 %v2572
    %2638 = vmatprep.subr.bf16.mxu0 %v2575
    %2639 = vmatpush1.bf16.msra.mxu0 %v2574
    %2640 = vmatprep.subr.bf16.mxu0 %v2577
    %2641 = vmatpush1.bf16.msra.mxu0 %v2576
    %2642 = vmatprep.subr.bf16.mxu0 %v2579
    %2643 = vmatpush1.bf16.msra.mxu0 %v2578
    %2644 = vmatprep.subr.bf16.mxu0 %v2581
    %2645 = vmatpush1.bf16.msra.mxu0 %v2580
    %2646 = vmatprep.subr.bf16.mxu0 %v2583
    %2647 = vmatpush1.bf16.msra.mxu0 %v2582
    %2648 = vmatprep.subr.bf16.mxu0 %v2585
    %2649 = vmatpush1.bf16.msra.mxu0 %v2584
    %2650 = vmatprep.subr.bf16.mxu0 %v2587
    %2651 = vmatpush1.bf16.msra.mxu0 %v2586
    %2652 = vmatprep.mubr.bf16.mxu0 %v2426
    %2653 = vmatmul.mubr.bf16.gmra.mrb[0].mxu0 %v2425
    %v2654 = vpop.f32.mrb[0].mxu0
    %v2655 = vadd.f32 0.0, %v2654
    %v2656 = vpop.f32.mrb[0].mxu0
    %v2657 = vadd.f32 0.0, %v2656
    %v2658 = vpop.f32.mrb[0].mxu0
    %v2659 = vadd.f32 0.0, %v2658
    %v2660 = vpop.f32.mrb[0].mxu0
    %v2661 = vadd.f32 0.0, %v2660
    %2662 = vdwg.mxu0
    %v2663 = vadd.f32 %v2363, %v2655
    %v2664 = vadd.f32 %v2365, %v2657
    %v2665 = vadd.f32 %v2367, %v2659
    %v2666 = vadd.f32 %v2369, %v2661
    %s2667 = scalar_lea.vmem [#allocation6], 2
    %v2668 = vld [vmem:[%s2667] ss:$8 sm:$0x3]
    %v2670 = vlaneseq
    %v2671 = vshrl.u32 %v2670, 7
    %v2672 = vsub.s32 0, %v2671
    %v2673 = vrot.slane %v2668, %v2672
    %v2674 = vlaneseq
    %v2675 = vshrl.u32 %v2674, 7
    %v2676 = vsub.s32 1, %v2675
    %v2677 = vrot.slane %v2668, %v2676
    %v2680 = vadd.f32 %v2663, %v2673
    %v2681 = vadd.f32 %v2664, %v2677
    %v2682 = vadd.f32 %v2665, %v2673
    %v2683 = vadd.f32 %v2666, %v2677
    %v2684 = vmax.f32 %v2680, 0.0
    %v2685 = vmax.f32 %v2681, 0.0
    %v2686 = vmax.f32 %v2682, 0.0
    %v2687 = vmax.f32 %v2683, 0.0
    %v2688 = vpack.c.bf16 %v2686, %v2684
    %v2689 = vpack.c.bf16 %v2687, %v2685
    %s2690 = scalar_lea.vmem [#allocation4], 144
    %v2691 = vld [vmem:[%s2690] sm:$0xf]
    %v2692 = vld [vmem:[%s2690 + $0x4] sm:$0xf]
    %v2695 = vunpack.c.l.b16 %v2691
    %v2696 = vunpack.c.l.b16 %v2692
    %v2697 = vpack.c.b16 %v2696, %v2695
    %vm2698 = vcmask 130048
    %v2700 = vsel %vm2698, %v2697, 0
    %2702 = vmatprep.subr.bf16.mxu0 %v2689
    %2703 = vmatpush1.bf16.msra.mxu0 %v2688
    %2704 = vmatprep.subr.bf16.mxu0 0
    %2705 = vmatpush1.bf16.msra.mxu0 0
    %2706 = vmatprep.subr.bf16.mxu0 0
    %2707 = vmatpush1.bf16.msra.mxu0 0
    %2708 = vmatprep.subr.bf16.mxu0 0
    %2709 = vmatpush1.bf16.msra.mxu0 0
    %2710 = vmatprep.subr.bf16.mxu0 0
    %2711 = vmatpush1.bf16.msra.mxu0 0
    %2712 = vmatprep.subr.bf16.mxu0 0
    %2713 = vmatpush1.bf16.msra.mxu0 0
    %2714 = vmatprep.subr.bf16.mxu0 0
    %2715 = vmatpush1.bf16.msra.mxu0 0
    %2716 = vmatprep.subr.bf16.mxu0 0
    %2717 = vmatpush1.bf16.msra.mxu0 0
    %2718 = vmatprep.subr.bf16.mxu0 0
    %2719 = vmatpush1.bf16.msra.mxu0 0
    %2720 = vmatprep.subr.bf16.mxu0 0
    %2721 = vmatpush1.bf16.msra.mxu0 0
    %2722 = vmatprep.subr.bf16.mxu0 0
    %2723 = vmatpush1.bf16.msra.mxu0 0
    %2724 = vmatprep.subr.bf16.mxu0 0
    %2725 = vmatpush1.bf16.msra.mxu0 0
    %2726 = vmatprep.subr.bf16.mxu0 0
    %2727 = vmatpush1.bf16.msra.mxu0 0
    %2728 = vmatprep.subr.bf16.mxu0 0
    %2729 = vmatpush1.bf16.msra.mxu0 0
    %2730 = vmatprep.subr.bf16.mxu0 0
    %2731 = vmatpush1.bf16.msra.mxu0 0
    %2732 = vmatprep.subr.bf16.mxu0 0
    %2733 = vmatpush1.bf16.msra.mxu0 0
    %2734 = vmatprep.mubr.bf16.mxu0 0
    %2735 = vmatmul.mubr.bf16.gmra.mrb[0].mxu0 %v2700
    %v2736 = vpop.f32.mrb[0].mxu0
    %v2737 = vadd.f32 0.0, %v2736
    %v2738 = vpop.f32.mrb[0].mxu0
    %v2739 = vadd.f32 0.0, %v2738
    %v2740 = vpop.f32.mrb[0].mxu0
    %v2741 = vadd.f32 0.0, %v2740
    %v2742 = vpop.f32.mrb[0].mxu0
    %v2743 = vadd.f32 0.0, %v2742
    %2744 = vdwg.mxu0
    %v2745 = vpack.c.bf16 %v2741, %v2737
    %v2746 = vpack.c.bf16 %v2743, %v2739
    %v2747 = vld [vmem:[#allocation12] sm:$0xff]
    %v2748 = vld [vmem:[#allocation12 + $0x8] sm:$0xff]
    %v2749 = vld [vmem:[#allocation12 + $0x10] sm:$0xff]
    %v2750 = vld [vmem:[#allocation12 + $0x18] sm:$0xff]
    %v2751 = vld [vmem:[#allocation12 + $0x20] sm:$0xff]
    %v2752 = vld [vmem:[#allocation12 + $0x28] sm:$0xff]
    %v2753 = vld [vmem:[#allocation12 + $0x30] sm:$0xff]
    %v2754 = vld [vmem:[#allocation12 + $0x38] sm:$0xff]
    %v2755 = vld [vmem:[#allocation12 + $0x40] sm:$0xff]
    %v2756 = vld [vmem:[#allocation12 + $0x48] sm:$0xff]
    %v2757 = vld [vmem:[#allocation12 + $0x50] sm:$0xff]
    %v2758 = vld [vmem:[#allocation12 + $0x58] sm:$0xff]
    %v2759 = vld [vmem:[#allocation12 + $0x60] sm:$0xff]
    %v2760 = vld [vmem:[#allocation12 + $0x68] sm:$0xff]
    %v2761 = vld [vmem:[#allocation12 + $0x70] sm:$0xff]
    %v2762 = vld [vmem:[#allocation12 + $0x78] sm:$0xff]
    %v2763 = vld [vmem:[#allocation12 + $0x80] sm:$0xff]
    %v2764 = vld [vmem:[#allocation12 + $0x88] sm:$0xff]
    %v2765 = vld [vmem:[#allocation12 + $0x90] sm:$0xff]
    %v2766 = vld [vmem:[#allocation12 + $0x98] sm:$0xff]
    %v2767 = vld [vmem:[#allocation12 + $0xa0] sm:$0xff]
    %v2768 = vld [vmem:[#allocation12 + $0xa8] sm:$0xff]
    %v2769 = vld [vmem:[#allocation12 + $0xb0] sm:$0xff]
    %v2770 = vld [vmem:[#allocation12 + $0xb8] sm:$0xff]
    %v2771 = vld [vmem:[#allocation12 + $0xc0] sm:$0xff]
    %v2772 = vld [vmem:[#allocation12 + $0xc8] sm:$0xff]
    %v2773 = vld [vmem:[#allocation12 + $0xd0] sm:$0xff]
    %v2774 = vld [vmem:[#allocation12 + $0xd8] sm:$0xff]
    %v2775 = vld [vmem:[#allocation12 + $0xe0] sm:$0xff]
    %v2776 = vld [vmem:[#allocation12 + $0xe8] sm:$0xff]
    %v2777 = vld [vmem:[#allocation12 + $0xf0] sm:$0xff]
    %v2778 = vld [vmem:[#allocation12 + $0xf8] sm:$0xff]
    %s2779 = scalar_lea.vmem [#allocation12], 256
    %v2780 = vld [vmem:[%s2779] sm:$0xff]
    %v2781 = vld [vmem:[%s2779 + $0x8] sm:$0xff]
    %v2782 = vld [vmem:[%s2779 + $0x10] sm:$0xff]
    %v2783 = vld [vmem:[%s2779 + $0x18] sm:$0xff]
    %v2784 = vld [vmem:[%s2779 + $0x20] sm:$0xff]
    %v2785 = vld [vmem:[%s2779 + $0x28] sm:$0xff]
    %v2786 = vld [vmem:[%s2779 + $0x30] sm:$0xff]
    %v2787 = vld [vmem:[%s2779 + $0x38] sm:$0xff]
    %v2788 = vld [vmem:[%s2779 + $0x40] sm:$0xff]
    %v2789 = vld [vmem:[%s2779 + $0x48] sm:$0xff]
    %v2790 = vld [vmem:[%s2779 + $0x50] sm:$0xff]
    %v2791 = vld [vmem:[%s2779 + $0x58] sm:$0xff]
    %v2792 = vld [vmem:[%s2779 + $0x60] sm:$0xff]
    %v2793 = vld [vmem:[%s2779 + $0x68] sm:$0xff]
    %v2794 = vld [vmem:[%s2779 + $0x70] sm:$0xff]
    %v2795 = vld [vmem:[%s2779 + $0x78] sm:$0xff]
    %v2796 = vld [vmem:[%s2779 + $0x80] sm:$0xff]
    %v2797 = vld [vmem:[%s2779 + $0x88] sm:$0xff]
    %v2798 = vld [vmem:[%s2779 + $0x90] sm:$0xff]
    %v2799 = vld [vmem:[%s2779 + $0x98] sm:$0xff]
    %v2800 = vld [vmem:[%s2779 + $0xa0] sm:$0xff]
    %v2801 = vld [vmem:[%s2779 + $0xa8] sm:$0xff]
    %v2802 = vld [vmem:[%s2779 + $0xb0] sm:$0xff]
    %v2803 = vld [vmem:[%s2779 + $0xb8] sm:$0xff]
    %v2804 = vld [vmem:[%s2779 + $0xc0] sm:$0xff]
    %v2805 = vld [vmem:[%s2779 + $0xc8] sm:$0xff]
    %v2806 = vld [vmem:[%s2779 + $0xd0] sm:$0xff]
    %v2807 = vld [vmem:[%s2779 + $0xd8] sm:$0xff]
    %v2808 = vld [vmem:[%s2779 + $0xe0] sm:$0xff]
    %v2809 = vld [vmem:[%s2779 + $0xe8] sm:$0xff]
    %v2810 = vld [vmem:[%s2779 + $0xf0] sm:$0xff]
    %v2811 = vld [vmem:[%s2779 + $0xf8] sm:$0xff]
    %v2844 = vunpack.c.l.b16 %v2780
    %v2845 = vunpack.c.h.b16 %v2780
    %v2846 = vunpack.c.l.b16 %v2781
    %v2847 = vunpack.c.h.b16 %v2781
    %v2848 = vunpack.c.l.b16 %v2782
    %v2849 = vunpack.c.h.b16 %v2782
    %v2850 = vunpack.c.l.b16 %v2783
    %v2851 = vunpack.c.h.b16 %v2783
    %v2852 = vunpack.c.l.b16 %v2784
    %v2853 = vunpack.c.h.b16 %v2784
    %v2854 = vunpack.c.l.b16 %v2785
    %v2855 = vunpack.c.h.b16 %v2785
    %v2856 = vunpack.c.l.b16 %v2786
    %v2857 = vunpack.c.h.b16 %v2786
    %v2858 = vunpack.c.l.b16 %v2787
    %v2859 = vunpack.c.h.b16 %v2787
    %v2860 = vunpack.c.l.b16 %v2788
    %v2861 = vunpack.c.h.b16 %v2788
    %v2862 = vunpack.c.l.b16 %v2789
    %v2863 = vunpack.c.h.b16 %v2789
    %v2864 = vunpack.c.l.b16 %v2790
    %v2865 = vunpack.c.h.b16 %v2790
    %v2866 = vunpack.c.l.b16 %v2791
    %v2867 = vunpack.c.h.b16 %v2791
    %v2868 = vunpack.c.l.b16 %v2792
    %v2869 = vunpack.c.h.b16 %v2792
    %v2870 = vunpack.c.l.b16 %v2793
    %v2871 = vunpack.c.h.b16 %v2793
    %v2872 = vunpack.c.l.b16 %v2794
    %v2873 = vunpack.c.h.b16 %v2794
    %v2874 = vunpack.c.l.b16 %v2795
    %v2875 = vunpack.c.h.b16 %v2795
    %v2876 = vunpack.c.l.b16 %v2796
    %v2877 = vunpack.c.h.b16 %v2796
    %v2878 = vunpack.c.l.b16 %v2797
    %v2879 = vunpack.c.h.b16 %v2797
    %v2880 = vunpack.c.l.b16 %v2798
    %v2881 = vunpack.c.h.b16 %v2798
    %v2882 = vunpack.c.l.b16 %v2799
    %v2883 = vunpack.c.h.b16 %v2799
    %v2884 = vunpack.c.l.b16 %v2800
    %v2885 = vunpack.c.h.b16 %v2800
    %v2886 = vunpack.c.l.b16 %v2801
    %v2887 = vunpack.c.h.b16 %v2801
    %v2888 = vunpack.c.l.b16 %v2802
    %v2889 = vunpack.c.h.b16 %v2802
    %v2890 = vunpack.c.l.b16 %v2803
    %v2891 = vunpack.c.h.b16 %v2803
    %v2892 = vunpack.c.l.b16 %v2804
    %v2893 = vunpack.c.h.b16 %v2804
    %v2894 = vunpack.c.l.b16 %v2805
    %v2895 = vunpack.c.h.b16 %v2805
    %v2896 = vunpack.c.l.b16 %v2806
    %v2897 = vunpack.c.h.b16 %v2806
    %v2898 = vunpack.c.l.b16 %v2807
    %v2899 = vunpack.c.h.b16 %v2807
    %v2900 = vunpack.c.l.b16 %v2808
    %v2901 = vunpack.c.h.b16 %v2808
    %v2902 = vunpack.c.l.b16 %v2809
    %v2903 = vunpack.c.h.b16 %v2809
    %v2904 = vunpack.c.l.b16 %v2810
    %v2905 = vunpack.c.h.b16 %v2810
    %v2906 = vunpack.c.l.b16 %v2811
    %v2907 = vunpack.c.h.b16 %v2811
    %v2908 = vpack.c.b16 %v2846, %v2844
    %v2909 = vpack.c.b16 %v2847, %v2845
    %v2910 = vpack.c.b16 %v2850, %v2848
    %v2911 = vpack.c.b16 %v2851, %v2849
    %v2912 = vpack.c.b16 %v2854, %v2852
    %v2913 = vpack.c.b16 %v2855, %v2853
    %v2914 = vpack.c.b16 %v2858, %v2856
    %v2915 = vpack.c.b16 %v2859, %v2857
    %v2916 = vpack.c.b16 %v2862, %v2860
    %v2917 = vpack.c.b16 %v2863, %v2861
    %v2918 = vpack.c.b16 %v2866, %v2864
    %v2919 = vpack.c.b16 %v2867, %v2865
    %v2920 = vpack.c.b16 %v2870, %v2868
    %v2921 = vpack.c.b16 %v2871, %v2869
    %v2922 = vpack.c.b16 %v2874, %v2872
    %v2923 = vpack.c.b16 %v2875, %v2873
    %v2924 = vpack.c.b16 %v2878, %v2876
    %v2925 = vpack.c.b16 %v2879, %v2877
    %v2926 = vpack.c.b16 %v2882, %v2880
    %v2927 = vpack.c.b16 %v2883, %v2881
    %v2928 = vpack.c.b16 %v2886, %v2884
    %v2929 = vpack.c.b16 %v2887, %v2885
    %v2930 = vpack.c.b16 %v2890, %v2888
    %v2931 = vpack.c.b16 %v2891, %v2889
    %v2932 = vpack.c.b16 %v2894, %v2892
    %v2933 = vpack.c.b16 %v2895, %v2893
    %v2934 = vpack.c.b16 %v2898, %v2896
    %v2935 = vpack.c.b16 %v2899, %v2897
    %v2936 = vpack.c.b16 %v2902, %v2900
    %v2937 = vpack.c.b16 %v2903, %v2901
    %v2938 = vpack.c.b16 %v2906, %v2904
    %v2939 = vpack.c.b16 %v2907, %v2905
    %2972 = vmatprep.subr.bf16.mxu0 %v2909
    %2973 = vmatpush1.bf16.msra.mxu0 %v2908
    %2974 = vmatprep.subr.bf16.mxu0 %v2911
    %2975 = vmatpush1.bf16.msra.mxu0 %v2910
    %2976 = vmatprep.subr.bf16.mxu0 %v2913
    %2977 = vmatpush1.bf16.msra.mxu0 %v2912
    %2978 = vmatprep.subr.bf16.mxu0 %v2915
    %2979 = vmatpush1.bf16.msra.mxu0 %v2914
    %2980 = vmatprep.subr.bf16.mxu0 %v2917
    %2981 = vmatpush1.bf16.msra.mxu0 %v2916
    %2982 = vmatprep.subr.bf16.mxu0 %v2919
    %2983 = vmatpush1.bf16.msra.mxu0 %v2918
    %2984 = vmatprep.subr.bf16.mxu0 %v2921
    %2985 = vmatpush1.bf16.msra.mxu0 %v2920
    %2986 = vmatprep.subr.bf16.mxu0 %v2923
    %2987 = vmatpush1.bf16.msra.mxu0 %v2922
    %2988 = vmatprep.subr.bf16.mxu0 %v2925
    %2989 = vmatpush1.bf16.msra.mxu0 %v2924
    %2990 = vmatprep.subr.bf16.mxu0 %v2927
    %2991 = vmatpush1.bf16.msra.mxu0 %v2926
    %2992 = vmatprep.subr.bf16.mxu0 %v2929
    %2993 = vmatpush1.bf16.msra.mxu0 %v2928
    %2994 = vmatprep.subr.bf16.mxu0 %v2931
    %2995 = vmatpush1.bf16.msra.mxu0 %v2930
    %2996 = vmatprep.subr.bf16.mxu0 %v2933
    %2997 = vmatpush1.bf16.msra.mxu0 %v2932
    %2998 = vmatprep.subr.bf16.mxu0 %v2935
    %2999 = vmatpush1.bf16.msra.mxu0 %v2934
    %3000 = vmatprep.subr.bf16.mxu0 %v2937
    %3001 = vmatpush1.bf16.msra.mxu0 %v2936
    %3002 = vmatprep.subr.bf16.mxu0 %v2939
    %3003 = vmatpush1.bf16.msra.mxu0 %v2938
    %3004 = vmatprep.mubr.bf16.mxu0 %v2689
    %3005 = vmatmul.mubr.bf16.gmra.mrb[0].mxu0 %v2688
    %v3006 = vpop.f32.mrb[0].mxu0
    %v3007 = vadd.f32 0.0, %v3006
    %v3008 = vpop.f32.mrb[0].mxu0
    %v3009 = vadd.f32 0.0, %v3008
    %v3010 = vpop.f32.mrb[0].mxu0
    %v3011 = vadd.f32 0.0, %v3010
    %v3012 = vpop.f32.mrb[0].mxu0
    %v3013 = vadd.f32 0.0, %v3012
    %3014 = vdwg.mxu0
    %v3047 = vunpack.c.l.b16 %v2747
    %v3048 = vunpack.c.h.b16 %v2747
    %v3049 = vunpack.c.l.b16 %v2748
    %v3050 = vunpack.c.h.b16 %v2748
    %v3051 = vunpack.c.l.b16 %v2749
    %v3052 = vunpack.c.h.b16 %v2749
    %v3053 = vunpack.c.l.b16 %v2750
    %v3054 = vunpack.c.h.b16 %v2750
    %v3055 = vunpack.c.l.b16 %v2751
    %v3056 = vunpack.c.h.b16 %v2751
    %v3057 = vunpack.c.l.b16 %v2752
    %v3058 = vunpack.c.h.b16 %v2752
    %v3059 = vunpack.c.l.b16 %v2753
    %v3060 = vunpack.c.h.b16 %v2753
    %v3061 = vunpack.c.l.b16 %v2754
    %v3062 = vunpack.c.h.b16 %v2754
    %v3063 = vunpack.c.l.b16 %v2755
    %v3064 = vunpack.c.h.b16 %v2755
    %v3065 = vunpack.c.l.b16 %v2756
    %v3066 = vunpack.c.h.b16 %v2756
    %v3067 = vunpack.c.l.b16 %v2757
    %v3068 = vunpack.c.h.b16 %v2757
    %v3069 = vunpack.c.l.b16 %v2758
    %v3070 = vunpack.c.h.b16 %v2758
    %v3071 = vunpack.c.l.b16 %v2759
    %v3072 = vunpack.c.h.b16 %v2759
    %v3073 = vunpack.c.l.b16 %v2760
    %v3074 = vunpack.c.h.b16 %v2760
    %v3075 = vunpack.c.l.b16 %v2761
    %v3076 = vunpack.c.h.b16 %v2761
    %v3077 = vunpack.c.l.b16 %v2762
    %v3078 = vunpack.c.h.b16 %v2762
    %v3079 = vunpack.c.l.b16 %v2763
    %v3080 = vunpack.c.h.b16 %v2763
    %v3081 = vunpack.c.l.b16 %v2764
    %v3082 = vunpack.c.h.b16 %v2764
    %v3083 = vunpack.c.l.b16 %v2765
    %v3084 = vunpack.c.h.b16 %v2765
    %v3085 = vunpack.c.l.b16 %v2766
    %v3086 = vunpack.c.h.b16 %v2766
    %v3087 = vunpack.c.l.b16 %v2767
    %v3088 = vunpack.c.h.b16 %v2767
    %v3089 = vunpack.c.l.b16 %v2768
    %v3090 = vunpack.c.h.b16 %v2768
    %v3091 = vunpack.c.l.b16 %v2769
    %v3092 = vunpack.c.h.b16 %v2769
    %v3093 = vunpack.c.l.b16 %v2770
    %v3094 = vunpack.c.h.b16 %v2770
    %v3095 = vunpack.c.l.b16 %v2771
    %v3096 = vunpack.c.h.b16 %v2771
    %v3097 = vunpack.c.l.b16 %v2772
    %v3098 = vunpack.c.h.b16 %v2772
    %v3099 = vunpack.c.l.b16 %v2773
    %v3100 = vunpack.c.h.b16 %v2773
    %v3101 = vunpack.c.l.b16 %v2774
    %v3102 = vunpack.c.h.b16 %v2774
    %v3103 = vunpack.c.l.b16 %v2775
    %v3104 = vunpack.c.h.b16 %v2775
    %v3105 = vunpack.c.l.b16 %v2776
    %v3106 = vunpack.c.h.b16 %v2776
    %v3107 = vunpack.c.l.b16 %v2777
    %v3108 = vunpack.c.h.b16 %v2777
    %v3109 = vunpack.c.l.b16 %v2778
    %v3110 = vunpack.c.h.b16 %v2778
    %v3111 = vpack.c.b16 %v3049, %v3047
    %v3112 = vpack.c.b16 %v3050, %v3048
    %v3113 = vpack.c.b16 %v3053, %v3051
    %v3114 = vpack.c.b16 %v3054, %v3052
    %v3115 = vpack.c.b16 %v3057, %v3055
    %v3116 = vpack.c.b16 %v3058, %v3056
    %v3117 = vpack.c.b16 %v3061, %v3059
    %v3118 = vpack.c.b16 %v3062, %v3060
    %v3119 = vpack.c.b16 %v3065, %v3063
    %v3120 = vpack.c.b16 %v3066, %v3064
    %v3121 = vpack.c.b16 %v3069, %v3067
    %v3122 = vpack.c.b16 %v3070, %v3068
    %v3123 = vpack.c.b16 %v3073, %v3071
    %v3124 = vpack.c.b16 %v3074, %v3072
    %v3125 = vpack.c.b16 %v3077, %v3075
    %v3126 = vpack.c.b16 %v3078, %v3076
    %v3127 = vpack.c.b16 %v3081, %v3079
    %v3128 = vpack.c.b16 %v3082, %v3080
    %v3129 = vpack.c.b16 %v3085, %v3083
    %v3130 = vpack.c.b16 %v3086, %v3084
    %v3131 = vpack.c.b16 %v3089, %v3087
    %v3132 = vpack.c.b16 %v3090, %v3088
    %v3133 = vpack.c.b16 %v3093, %v3091
    %v3134 = vpack.c.b16 %v3094, %v3092
    %v3135 = vpack.c.b16 %v3097, %v3095
    %v3136 = vpack.c.b16 %v3098, %v3096
    %v3137 = vpack.c.b16 %v3101, %v3099
    %v3138 = vpack.c.b16 %v3102, %v3100
    %v3139 = vpack.c.b16 %v3105, %v3103
    %v3140 = vpack.c.b16 %v3106, %v3104
    %v3141 = vpack.c.b16 %v3109, %v3107
    %v3142 = vpack.c.b16 %v3110, %v3108
    %3175 = vmatprep.subr.bf16.mxu0 %v3112
    %3176 = vmatpush1.bf16.msra.mxu0 %v3111
    %3177 = vmatprep.subr.bf16.mxu0 %v3114
    %3178 = vmatpush1.bf16.msra.mxu0 %v3113
    %3179 = vmatprep.subr.bf16.mxu0 %v3116
    %3180 = vmatpush1.bf16.msra.mxu0 %v3115
    %3181 = vmatprep.subr.bf16.mxu0 %v3118
    %3182 = vmatpush1.bf16.msra.mxu0 %v3117
    %3183 = vmatprep.subr.bf16.mxu0 %v3120
    %3184 = vmatpush1.bf16.msra.mxu0 %v3119
    %3185 = vmatprep.subr.bf16.mxu0 %v3122
    %3186 = vmatpush1.bf16.msra.mxu0 %v3121
    %3187 = vmatprep.subr.bf16.mxu0 %v3124
    %3188 = vmatpush1.bf16.msra.mxu0 %v3123
    %3189 = vmatprep.subr.bf16.mxu0 %v3126
    %3190 = vmatpush1.bf16.msra.mxu0 %v3125
    %3191 = vmatprep.subr.bf16.mxu0 %v3128
    %3192 = vmatpush1.bf16.msra.mxu0 %v3127
    %3193 = vmatprep.subr.bf16.mxu0 %v3130
    %3194 = vmatpush1.bf16.msra.mxu0 %v3129
    %3195 = vmatprep.subr.bf16.mxu0 %v3132
    %3196 = vmatpush1.bf16.msra.mxu0 %v3131
    %3197 = vmatprep.subr.bf16.mxu0 %v3134
    %3198 = vmatpush1.bf16.msra.mxu0 %v3133
    %3199 = vmatprep.subr.bf16.mxu0 %v3136
    %3200 = vmatpush1.bf16.msra.mxu0 %v3135
    %3201 = vmatprep.subr.bf16.mxu0 %v3138
    %3202 = vmatpush1.bf16.msra.mxu0 %v3137
    %3203 = vmatprep.subr.bf16.mxu0 %v3140
    %3204 = vmatpush1.bf16.msra.mxu0 %v3139
    %3205 = vmatprep.subr.bf16.mxu0 %v3142
    %3206 = vmatpush1.bf16.msra.mxu0 %v3141
    %3207 = vmatprep.mubr.bf16.mxu0 %v2746
    %3208 = vmatmul.mubr.bf16.gmra.mrb[0].mxu0 %v2745
    %v3209 = vpop.f32.mrb[0].mxu0
    %v3210 = vadd.f32 %v3007, %v3209
    %v3211 = vpop.f32.mrb[0].mxu0
    %v3212 = vadd.f32 %v3009, %v3211
    %v3213 = vpop.f32.mrb[0].mxu0
    %v3214 = vadd.f32 %v3011, %v3213
    %v3215 = vpop.f32.mrb[0].mxu0
    %v3216 = vadd.f32 %v3013, %v3215
    %3217 = vdwg.mxu0
    %s3218 = scalar_lea.vmem [#allocation4], 176
    %v3219 = vld [vmem:[%s3218] sm:$0xf]
    %v3220 = vld [vmem:[%s3218 + $0x4] sm:$0xf]
    %v3223 = vunpack.c.l.b16 %v3219
    %v3224 = vunpack.c.l.b16 %v3220
    %v3225 = vpack.c.b16 %v3224, %v3223
    %v3227 = vsel %vm2698, %v3225, 0
    %3229 = vmatprep.subr.bf16.mxu0 %v2689
    %3230 = vmatpush1.bf16.msra.mxu0 %v2688
    %3231 = vmatprep.subr.bf16.mxu0 0
    %3232 = vmatpush1.bf16.msra.mxu0 0
    %3233 = vmatprep.subr.bf16.mxu0 0
    %3234 = vmatpush1.bf16.msra.mxu0 0
    %3235 = vmatprep.subr.bf16.mxu0 0
    %3236 = vmatpush1.bf16.msra.mxu0 0
    %3237 = vmatprep.subr.bf16.mxu0 0
    %3238 = vmatpush1.bf16.msra.mxu0 0
    %3239 = vmatprep.subr.bf16.mxu0 0
    %3240 = vmatpush1.bf16.msra.mxu0 0
    %3241 = vmatprep.subr.bf16.mxu0 0
    %3242 = vmatpush1.bf16.msra.mxu0 0
    %3243 = vmatprep.subr.bf16.mxu0 0
    %3244 = vmatpush1.bf16.msra.mxu0 0
    %3245 = vmatprep.subr.bf16.mxu0 0
    %3246 = vmatpush1.bf16.msra.mxu0 0
    %3247 = vmatprep.subr.bf16.mxu0 0
    %3248 = vmatpush1.bf16.msra.mxu0 0
    %3249 = vmatprep.subr.bf16.mxu0 0
    %3250 = vmatpush1.bf16.msra.mxu0 0
    %3251 = vmatprep.subr.bf16.mxu0 0
    %3252 = vmatpush1.bf16.msra.mxu0 0
    %3253 = vmatprep.subr.bf16.mxu0 0
    %3254 = vmatpush1.bf16.msra.mxu0 0
    %3255 = vmatprep.subr.bf16.mxu0 0
    %3256 = vmatpush1.bf16.msra.mxu0 0
    %3257 = vmatprep.subr.bf16.mxu0 0
    %3258 = vmatpush1.bf16.msra.mxu0 0
    %3259 = vmatprep.subr.bf16.mxu0 0
    %3260 = vmatpush1.bf16.msra.mxu0 0
    %3261 = vmatprep.mubr.bf16.mxu0 0
    %3262 = vmatmul.mubr.bf16.gmra.mrb[0].mxu0 %v3227
    %v3263 = vpop.f32.mrb[0].mxu0
    %v3264 = vadd.f32 0.0, %v3263
    %v3265 = vpop.f32.mrb[0].mxu0
    %v3266 = vadd.f32 0.0, %v3265
    %v3267 = vpop.f32.mrb[0].mxu0
    %v3268 = vadd.f32 0.0, %v3267
    %v3269 = vpop.f32.mrb[0].mxu0
    %v3270 = vadd.f32 0.0, %v3269
    %3271 = vdwg.mxu0
    %v3272 = vpack.c.bf16 %v3268, %v3264
    %v3273 = vpack.c.bf16 %v3270, %v3266
    %s3274 = scalar_lea.vmem [#allocation12], 512
    %v3275 = vld [vmem:[%s3274] sm:$0xff]
    %v3276 = vld [vmem:[%s3274 + $0x8] sm:$0xff]
    %v3277 = vld [vmem:[%s3274 + $0x10] sm:$0xff]
    %v3278 = vld [vmem:[%s3274 + $0x18] sm:$0xff]
    %v3279 = vld [vmem:[%s3274 + $0x20] sm:$0xff]
    %v3280 = vld [vmem:[%s3274 + $0x28] sm:$0xff]
    %v3281 = vld [vmem:[%s3274 + $0x30] sm:$0xff]
    %v3282 = vld [vmem:[%s3274 + $0x38] sm:$0xff]
    %v3283 = vld [vmem:[%s3274 + $0x40] sm:$0xff]
    %v3284 = vld [vmem:[%s3274 + $0x48] sm:$0xff]
    %v3285 = vld [vmem:[%s3274 + $0x50] sm:$0xff]
    %v3286 = vld [vmem:[%s3274 + $0x58] sm:$0xff]
    %v3287 = vld [vmem:[%s3274 + $0x60] sm:$0xff]
    %v3288 = vld [vmem:[%s3274 + $0x68] sm:$0xff]
    %v3289 = vld [vmem:[%s3274 + $0x70] sm:$0xff]
    %v3290 = vld [vmem:[%s3274 + $0x78] sm:$0xff]
    %v3291 = vld [vmem:[%s3274 + $0x80] sm:$0xff]
    %v3292 = vld [vmem:[%s3274 + $0x88] sm:$0xff]
    %v3293 = vld [vmem:[%s3274 + $0x90] sm:$0xff]
    %v3294 = vld [vmem:[%s3274 + $0x98] sm:$0xff]
    %v3295 = vld [vmem:[%s3274 + $0xa0] sm:$0xff]
    %v3296 = vld [vmem:[%s3274 + $0xa8] sm:$0xff]
    %v3297 = vld [vmem:[%s3274 + $0xb0] sm:$0xff]
    %v3298 = vld [vmem:[%s3274 + $0xb8] sm:$0xff]
    %v3299 = vld [vmem:[%s3274 + $0xc0] sm:$0xff]
    %v3300 = vld [vmem:[%s3274 + $0xc8] sm:$0xff]
    %v3301 = vld [vmem:[%s3274 + $0xd0] sm:$0xff]
    %v3302 = vld [vmem:[%s3274 + $0xd8] sm:$0xff]
    %v3303 = vld [vmem:[%s3274 + $0xe0] sm:$0xff]
    %v3304 = vld [vmem:[%s3274 + $0xe8] sm:$0xff]
    %v3305 = vld [vmem:[%s3274 + $0xf0] sm:$0xff]
    %v3306 = vld [vmem:[%s3274 + $0xf8] sm:$0xff]
    %v3339 = vunpack.c.l.b16 %v3275
    %v3340 = vunpack.c.h.b16 %v3275
    %v3341 = vunpack.c.l.b16 %v3276
    %v3342 = vunpack.c.h.b16 %v3276
    %v3343 = vunpack.c.l.b16 %v3277
    %v3344 = vunpack.c.h.b16 %v3277
    %v3345 = vunpack.c.l.b16 %v3278
    %v3346 = vunpack.c.h.b16 %v3278
    %v3347 = vunpack.c.l.b16 %v3279
    %v3348 = vunpack.c.h.b16 %v3279
    %v3349 = vunpack.c.l.b16 %v3280
    %v3350 = vunpack.c.h.b16 %v3280
    %v3351 = vunpack.c.l.b16 %v3281
    %v3352 = vunpack.c.h.b16 %v3281
    %v3353 = vunpack.c.l.b16 %v3282
    %v3354 = vunpack.c.h.b16 %v3282
    %v3355 = vunpack.c.l.b16 %v3283
    %v3356 = vunpack.c.h.b16 %v3283
    %v3357 = vunpack.c.l.b16 %v3284
    %v3358 = vunpack.c.h.b16 %v3284
    %v3359 = vunpack.c.l.b16 %v3285
    %v3360 = vunpack.c.h.b16 %v3285
    %v3361 = vunpack.c.l.b16 %v3286
    %v3362 = vunpack.c.h.b16 %v3286
    %v3363 = vunpack.c.l.b16 %v3287
    %v3364 = vunpack.c.h.b16 %v3287
    %v3365 = vunpack.c.l.b16 %v3288
    %v3366 = vunpack.c.h.b16 %v3288
    %v3367 = vunpack.c.l.b16 %v3289
    %v3368 = vunpack.c.h.b16 %v3289
    %v3369 = vunpack.c.l.b16 %v3290
    %v3370 = vunpack.c.h.b16 %v3290
    %v3371 = vunpack.c.l.b16 %v3291
    %v3372 = vunpack.c.h.b16 %v3291
    %v3373 = vunpack.c.l.b16 %v3292
    %v3374 = vunpack.c.h.b16 %v3292
    %v3375 = vunpack.c.l.b16 %v3293
    %v3376 = vunpack.c.h.b16 %v3293
    %v3377 = vunpack.c.l.b16 %v3294
    %v3378 = vunpack.c.h.b16 %v3294
    %v3379 = vunpack.c.l.b16 %v3295
    %v3380 = vunpack.c.h.b16 %v3295
    %v3381 = vunpack.c.l.b16 %v3296
    %v3382 = vunpack.c.h.b16 %v3296
    %v3383 = vunpack.c.l.b16 %v3297
    %v3384 = vunpack.c.h.b16 %v3297
    %v3385 = vunpack.c.l.b16 %v3298
    %v3386 = vunpack.c.h.b16 %v3298
    %v3387 = vunpack.c.l.b16 %v3299
    %v3388 = vunpack.c.h.b16 %v3299
    %v3389 = vunpack.c.l.b16 %v3300
    %v3390 = vunpack.c.h.b16 %v3300
    %v3391 = vunpack.c.l.b16 %v3301
    %v3392 = vunpack.c.h.b16 %v3301
    %v3393 = vunpack.c.l.b16 %v3302
    %v3394 = vunpack.c.h.b16 %v3302
    %v3395 = vunpack.c.l.b16 %v3303
    %v3396 = vunpack.c.h.b16 %v3303
    %v3397 = vunpack.c.l.b16 %v3304
    %v3398 = vunpack.c.h.b16 %v3304
    %v3399 = vunpack.c.l.b16 %v3305
    %v3400 = vunpack.c.h.b16 %v3305
    %v3401 = vunpack.c.l.b16 %v3306
    %v3402 = vunpack.c.h.b16 %v3306
    %v3403 = vpack.c.b16 %v3341, %v3339
    %v3404 = vpack.c.b16 %v3342, %v3340
    %v3405 = vpack.c.b16 %v3345, %v3343
    %v3406 = vpack.c.b16 %v3346, %v3344
    %v3407 = vpack.c.b16 %v3349, %v3347
    %v3408 = vpack.c.b16 %v3350, %v3348
    %v3409 = vpack.c.b16 %v3353, %v3351
    %v3410 = vpack.c.b16 %v3354, %v3352
    %v3411 = vpack.c.b16 %v3357, %v3355
    %v3412 = vpack.c.b16 %v3358, %v3356
    %v3413 = vpack.c.b16 %v3361, %v3359
    %v3414 = vpack.c.b16 %v3362, %v3360
    %v3415 = vpack.c.b16 %v3365, %v3363
    %v3416 = vpack.c.b16 %v3366, %v3364
    %v3417 = vpack.c.b16 %v3369, %v3367
    %v3418 = vpack.c.b16 %v3370, %v3368
    %v3419 = vpack.c.b16 %v3373, %v3371
    %v3420 = vpack.c.b16 %v3374, %v3372
    %v3421 = vpack.c.b16 %v3377, %v3375
    %v3422 = vpack.c.b16 %v3378, %v3376
    %v3423 = vpack.c.b16 %v3381, %v3379
    %v3424 = vpack.c.b16 %v3382, %v3380
    %v3425 = vpack.c.b16 %v3385, %v3383
    %v3426 = vpack.c.b16 %v3386, %v3384
    %v3427 = vpack.c.b16 %v3389, %v3387
    %v3428 = vpack.c.b16 %v3390, %v3388
    %v3429 = vpack.c.b16 %v3393, %v3391
    %v3430 = vpack.c.b16 %v3394, %v3392
    %v3431 = vpack.c.b16 %v3397, %v3395
    %v3432 = vpack.c.b16 %v3398, %v3396
    %v3433 = vpack.c.b16 %v3401, %v3399
    %v3434 = vpack.c.b16 %v3402, %v3400
    %3467 = vmatprep.subr.bf16.mxu0 %v3404
    %3468 = vmatpush1.bf16.msra.mxu0 %v3403
    %3469 = vmatprep.subr.bf16.mxu0 %v3406
    %3470 = vmatpush1.bf16.msra.mxu0 %v3405
    %3471 = vmatprep.subr.bf16.mxu0 %v3408
    %3472 = vmatpush1.bf16.msra.mxu0 %v3407
    %3473 = vmatprep.subr.bf16.mxu0 %v3410
    %3474 = vmatpush1.bf16.msra.mxu0 %v3409
    %3475 = vmatprep.subr.bf16.mxu0 %v3412
    %3476 = vmatpush1.bf16.msra.mxu0 %v3411
    %3477 = vmatprep.subr.bf16.mxu0 %v3414
    %3478 = vmatpush1.bf16.msra.mxu0 %v3413
    %3479 = vmatprep.subr.bf16.mxu0 %v3416
    %3480 = vmatpush1.bf16.msra.mxu0 %v3415
    %3481 = vmatprep.subr.bf16.mxu0 %v3418
    %3482 = vmatpush1.bf16.msra.mxu0 %v3417
    %3483 = vmatprep.subr.bf16.mxu0 %v3420
    %3484 = vmatpush1.bf16.msra.mxu0 %v3419
    %3485 = vmatprep.subr.bf16.mxu0 %v3422
    %3486 = vmatpush1.bf16.msra.mxu0 %v3421
    %3487 = vmatprep.subr.bf16.mxu0 %v3424
    %3488 = vmatpush1.bf16.msra.mxu0 %v3423
    %3489 = vmatprep.subr.bf16.mxu0 %v3426
    %3490 = vmatpush1.bf16.msra.mxu0 %v3425
    %3491 = vmatprep.subr.bf16.mxu0 %v3428
    %3492 = vmatpush1.bf16.msra.mxu0 %v3427
    %3493 = vmatprep.subr.bf16.mxu0 %v3430
    %3494 = vmatpush1.bf16.msra.mxu0 %v3429
    %3495 = vmatprep.subr.bf16.mxu0 %v3432
    %3496 = vmatpush1.bf16.msra.mxu0 %v3431
    %3497 = vmatprep.subr.bf16.mxu0 %v3434
    %3498 = vmatpush1.bf16.msra.mxu0 %v3433
    %3499 = vmatprep.mubr.bf16.mxu0 %v3273
    %3500 = vmatmul.mubr.bf16.gmra.mrb[0].mxu0 %v3272
    %v3501 = vpop.f32.mrb[0].mxu0
    %v3502 = vadd.f32 0.0, %v3501
    %v3503 = vpop.f32.mrb[0].mxu0
    %v3504 = vadd.f32 0.0, %v3503
    %v3505 = vpop.f32.mrb[0].mxu0
    %v3506 = vadd.f32 0.0, %v3505
    %v3507 = vpop.f32.mrb[0].mxu0
    %v3508 = vadd.f32 0.0, %v3507
    %3509 = vdwg.mxu0
    %v3510 = vadd.f32 %v3210, %v3502
    %v3511 = vadd.f32 %v3212, %v3504
    %v3512 = vadd.f32 %v3214, %v3506
    %v3513 = vadd.f32 %v3216, %v3508
    %s3514 = scalar_lea.vmem [#allocation6], 3
    %v3515 = vld [vmem:[%s3514] ss:$8 sm:$0x3]
    %v3517 = vlaneseq
    %v3518 = vshrl.u32 %v3517, 7
    %v3519 = vsub.s32 0, %v3518
    %v3520 = vrot.slane %v3515, %v3519
    %v3521 = vlaneseq
    %v3522 = vshrl.u32 %v3521, 7
    %v3523 = vsub.s32 1, %v3522
    %v3524 = vrot.slane %v3515, %v3523
    %v3527 = vadd.f32 %v3510, %v3520
    %v3528 = vadd.f32 %v3511, %v3524
    %v3529 = vadd.f32 %v3512, %v3520
    %v3530 = vadd.f32 %v3513, %v3524
    %v3531 = vmax.f32 %v3527, 0.0
    %v3532 = vmax.f32 %v3528, 0.0
    %v3533 = vmax.f32 %v3529, 0.0
    %v3534 = vmax.f32 %v3530, 0.0
    %v3535 = vpack.c.bf16 %v3533, %v3531
    %v3536 = vpack.c.bf16 %v3534, %v3532
    %s3537 = scalar_lea.vmem [#allocation4], 192
    %v3538 = vld [vmem:[%s3537] sm:$0xf]
    %v3539 = vld [vmem:[%s3537 + $0x4] sm:$0xf]
    %v3542 = vunpack.c.l.b16 %v3538
    %v3543 = vunpack.c.l.b16 %v3539
    %v3544 = vpack.c.b16 %v3543, %v3542
    %v3546 = vsel %vm2698, %v3544, 0
    %3548 = vmatprep.subr.bf16.mxu0 %v3536
    %3549 = vmatpush1.bf16.msra.mxu0 %v3535
    %3550 = vmatprep.subr.bf16.mxu0 0
    %3551 = vmatpush1.bf16.msra.mxu0 0
    %3552 = vmatprep.subr.bf16.mxu0 0
    %3553 = vmatpush1.bf16.msra.mxu0 0
    %3554 = vmatprep.subr.bf16.mxu0 0
    %3555 = vmatpush1.bf16.msra.mxu0 0
    %3556 = vmatprep.subr.bf16.mxu0 0
    %3557 = vmatpush1.bf16.msra.mxu0 0
    %3558 = vmatprep.subr.bf16.mxu0 0
    %3559 = vmatpush1.bf16.msra.mxu0 0
    %3560 = vmatprep.subr.bf16.mxu0 0
    %3561 = vmatpush1.bf16.msra.mxu0 0
    %3562 = vmatprep.subr.bf16.mxu0 0
    %3563 = vmatpush1.bf16.msra.mxu0 0
    %3564 = vmatprep.subr.bf16.mxu0 0
    %3565 = vmatpush1.bf16.msra.mxu0 0
    %3566 = vmatprep.subr.bf16.mxu0 0
    %3567 = vmatpush1.bf16.msra.mxu0 0
    %3568 = vmatprep.subr.bf16.mxu0 0
    %3569 = vmatpush1.bf16.msra.mxu0 0
    %3570 = vmatprep.subr.bf16.mxu0 0
    %3571 = vmatpush1.bf16.msra.mxu0 0
    %3572 = vmatprep.subr.bf16.mxu0 0
    %3573 = vmatpush1.bf16.msra.mxu0 0
    %3574 = vmatprep.subr.bf16.mxu0 0
    %3575 = vmatpush1.bf16.msra.mxu0 0
    %3576 = vmatprep.subr.bf16.mxu0 0
    %3577 = vmatpush1.bf16.msra.mxu0 0
    %3578 = vmatprep.subr.bf16.mxu0 0
    %3579 = vmatpush1.bf16.msra.mxu0 0
    %3580 = vmatprep.mubr.bf16.mxu0 0
    %3581 = vmatmul.mubr.bf16.gmra.mrb[0].mxu0 %v3546
    %v3582 = vpop.f32.mrb[0].mxu0
    %v3583 = vadd.f32 0.0, %v3582
    %v3584 = vpop.f32.mrb[0].mxu0
    %v3585 = vadd.f32 0.0, %v3584
    %v3586 = vpop.f32.mrb[0].mxu0
    %v3587 = vadd.f32 0.0, %v3586
    %v3588 = vpop.f32.mrb[0].mxu0
    %v3589 = vadd.f32 0.0, %v3588
    %3590 = vdwg.mxu0
    %v3591 = vpack.c.bf16 %v3587, %v3583
    %v3592 = vpack.c.bf16 %v3589, %v3585
    %v3593 = vld [vmem:[#allocation14] sm:$0xff]
    %v3594 = vld [vmem:[#allocation14 + $0x8] sm:$0xff]
    %v3595 = vld [vmem:[#allocation14 + $0x10] sm:$0xff]
    %v3596 = vld [vmem:[#allocation14 + $0x18] sm:$0xff]
    %v3597 = vld [vmem:[#allocation14 + $0x20] sm:$0xff]
    %v3598 = vld [vmem:[#allocation14 + $0x28] sm:$0xff]
    %v3599 = vld [vmem:[#allocation14 + $0x30] sm:$0xff]
    %v3600 = vld [vmem:[#allocation14 + $0x38] sm:$0xff]
    %v3601 = vld [vmem:[#allocation14 + $0x40] sm:$0xff]
    %v3602 = vld [vmem:[#allocation14 + $0x48] sm:$0xff]
    %v3603 = vld [vmem:[#allocation14 + $0x50] sm:$0xff]
    %v3604 = vld [vmem:[#allocation14 + $0x58] sm:$0xff]
    %v3605 = vld [vmem:[#allocation14 + $0x60] sm:$0xff]
    %v3606 = vld [vmem:[#allocation14 + $0x68] sm:$0xff]
    %v3607 = vld [vmem:[#allocation14 + $0x70] sm:$0xff]
    %v3608 = vld [vmem:[#allocation14 + $0x78] sm:$0xff]
    %v3609 = vld [vmem:[#allocation14 + $0x80] sm:$0xff]
    %v3610 = vld [vmem:[#allocation14 + $0x88] sm:$0xff]
    %v3611 = vld [vmem:[#allocation14 + $0x90] sm:$0xff]
    %v3612 = vld [vmem:[#allocation14 + $0x98] sm:$0xff]
    %v3613 = vld [vmem:[#allocation14 + $0xa0] sm:$0xff]
    %v3614 = vld [vmem:[#allocation14 + $0xa8] sm:$0xff]
    %v3615 = vld [vmem:[#allocation14 + $0xb0] sm:$0xff]
    %v3616 = vld [vmem:[#allocation14 + $0xb8] sm:$0xff]
    %v3617 = vld [vmem:[#allocation14 + $0xc0] sm:$0xff]
    %v3618 = vld [vmem:[#allocation14 + $0xc8] sm:$0xff]
    %v3619 = vld [vmem:[#allocation14 + $0xd0] sm:$0xff]
    %v3620 = vld [vmem:[#allocation14 + $0xd8] sm:$0xff]
    %v3621 = vld [vmem:[#allocation14 + $0xe0] sm:$0xff]
    %v3622 = vld [vmem:[#allocation14 + $0xe8] sm:$0xff]
    %v3623 = vld [vmem:[#allocation14 + $0xf0] sm:$0xff]
    %v3624 = vld [vmem:[#allocation14 + $0xf8] sm:$0xff]
    %s3625 = scalar_lea.vmem [#allocation14], 256
    %v3626 = vld [vmem:[%s3625] sm:$0xff]
    %v3627 = vld [vmem:[%s3625 + $0x8] sm:$0xff]
    %v3628 = vld [vmem:[%s3625 + $0x10] sm:$0xff]
    %v3629 = vld [vmem:[%s3625 + $0x18] sm:$0xff]
    %v3630 = vld [vmem:[%s3625 + $0x20] sm:$0xff]
    %v3631 = vld [vmem:[%s3625 + $0x28] sm:$0xff]
    %v3632 = vld [vmem:[%s3625 + $0x30] sm:$0xff]
    %v3633 = vld [vmem:[%s3625 + $0x38] sm:$0xff]
    %v3634 = vld [vmem:[%s3625 + $0x40] sm:$0xff]
    %v3635 = vld [vmem:[%s3625 + $0x48] sm:$0xff]
    %v3636 = vld [vmem:[%s3625 + $0x50] sm:$0xff]
    %v3637 = vld [vmem:[%s3625 + $0x58] sm:$0xff]
    %v3638 = vld [vmem:[%s3625 + $0x60] sm:$0xff]
    %v3639 = vld [vmem:[%s3625 + $0x68] sm:$0xff]
    %v3640 = vld [vmem:[%s3625 + $0x70] sm:$0xff]
    %v3641 = vld [vmem:[%s3625 + $0x78] sm:$0xff]
    %v3642 = vld [vmem:[%s3625 + $0x80] sm:$0xff]
    %v3643 = vld [vmem:[%s3625 + $0x88] sm:$0xff]
    %v3644 = vld [vmem:[%s3625 + $0x90] sm:$0xff]
    %v3645 = vld [vmem:[%s3625 + $0x98] sm:$0xff]
    %v3646 = vld [vmem:[%s3625 + $0xa0] sm:$0xff]
    %v3647 = vld [vmem:[%s3625 + $0xa8] sm:$0xff]
    %v3648 = vld [vmem:[%s3625 + $0xb0] sm:$0xff]
    %v3649 = vld [vmem:[%s3625 + $0xb8] sm:$0xff]
    %v3650 = vld [vmem:[%s3625 + $0xc0] sm:$0xff]
    %v3651 = vld [vmem:[%s3625 + $0xc8] sm:$0xff]
    %v3652 = vld [vmem:[%s3625 + $0xd0] sm:$0xff]
    %v3653 = vld [vmem:[%s3625 + $0xd8] sm:$0xff]
    %v3654 = vld [vmem:[%s3625 + $0xe0] sm:$0xff]
    %v3655 = vld [vmem:[%s3625 + $0xe8] sm:$0xff]
    %v3656 = vld [vmem:[%s3625 + $0xf0] sm:$0xff]
    %v3657 = vld [vmem:[%s3625 + $0xf8] sm:$0xff]
    %v3690 = vunpack.c.l.b16 %v3626
    %v3691 = vunpack.c.h.b16 %v3626
    %v3692 = vunpack.c.l.b16 %v3627
    %v3693 = vunpack.c.h.b16 %v3627
    %v3694 = vunpack.c.l.b16 %v3628
    %v3695 = vunpack.c.h.b16 %v3628
    %v3696 = vunpack.c.l.b16 %v3629
    %v3697 = vunpack.c.h.b16 %v3629
    %v3698 = vunpack.c.l.b16 %v3630
    %v3699 = vunpack.c.h.b16 %v3630
    %v3700 = vunpack.c.l.b16 %v3631
    %v3701 = vunpack.c.h.b16 %v3631
    %v3702 = vunpack.c.l.b16 %v3632
    %v3703 = vunpack.c.h.b16 %v3632
    %v3704 = vunpack.c.l.b16 %v3633
    %v3705 = vunpack.c.h.b16 %v3633
    %v3706 = vunpack.c.l.b16 %v3634
    %v3707 = vunpack.c.h.b16 %v3634
    %v3708 = vunpack.c.l.b16 %v3635
    %v3709 = vunpack.c.h.b16 %v3635
    %v3710 = vunpack.c.l.b16 %v3636
    %v3711 = vunpack.c.h.b16 %v3636
    %v3712 = vunpack.c.l.b16 %v3637
    %v3713 = vunpack.c.h.b16 %v3637
    %v3714 = vunpack.c.l.b16 %v3638
    %v3715 = vunpack.c.h.b16 %v3638
    %v3716 = vunpack.c.l.b16 %v3639
    %v3717 = vunpack.c.h.b16 %v3639
    %v3718 = vunpack.c.l.b16 %v3640
    %v3719 = vunpack.c.h.b16 %v3640
    %v3720 = vunpack.c.l.b16 %v3641
    %v3721 = vunpack.c.h.b16 %v3641
    %v3722 = vunpack.c.l.b16 %v3642
    %v3723 = vunpack.c.h.b16 %v3642
    %v3724 = vunpack.c.l.b16 %v3643
    %v3725 = vunpack.c.h.b16 %v3643
    %v3726 = vunpack.c.l.b16 %v3644
    %v3727 = vunpack.c.h.b16 %v3644
    %v3728 = vunpack.c.l.b16 %v3645
    %v3729 = vunpack.c.h.b16 %v3645
    %v3730 = vunpack.c.l.b16 %v3646
    %v3731 = vunpack.c.h.b16 %v3646
    %v3732 = vunpack.c.l.b16 %v3647
    %v3733 = vunpack.c.h.b16 %v3647
    %v3734 = vunpack.c.l.b16 %v3648
    %v3735 = vunpack.c.h.b16 %v3648
    %v3736 = vunpack.c.l.b16 %v3649
    %v3737 = vunpack.c.h.b16 %v3649
    %v3738 = vunpack.c.l.b16 %v3650
    %v3739 = vunpack.c.h.b16 %v3650
    %v3740 = vunpack.c.l.b16 %v3651
    %v3741 = vunpack.c.h.b16 %v3651
    %v3742 = vunpack.c.l.b16 %v3652
    %v3743 = vunpack.c.h.b16 %v3652
    %v3744 = vunpack.c.l.b16 %v3653
    %v3745 = vunpack.c.h.b16 %v3653
    %v3746 = vunpack.c.l.b16 %v3654
    %v3747 = vunpack.c.h.b16 %v3654
    %v3748 = vunpack.c.l.b16 %v3655
    %v3749 = vunpack.c.h.b16 %v3655
    %v3750 = vunpack.c.l.b16 %v3656
    %v3751 = vunpack.c.h.b16 %v3656
    %v3752 = vunpack.c.l.b16 %v3657
    %v3753 = vunpack.c.h.b16 %v3657
    %v3754 = vpack.c.b16 %v3692, %v3690
    %v3755 = vpack.c.b16 %v3693, %v3691
    %v3756 = vpack.c.b16 %v3696, %v3694
    %v3757 = vpack.c.b16 %v3697, %v3695
    %v3758 = vpack.c.b16 %v3700, %v3698
    %v3759 = vpack.c.b16 %v3701, %v3699
    %v3760 = vpack.c.b16 %v3704, %v3702
    %v3761 = vpack.c.b16 %v3705, %v3703
    %v3762 = vpack.c.b16 %v3708, %v3706
    %v3763 = vpack.c.b16 %v3709, %v3707
    %v3764 = vpack.c.b16 %v3712, %v3710
    %v3765 = vpack.c.b16 %v3713, %v3711
    %v3766 = vpack.c.b16 %v3716, %v3714
    %v3767 = vpack.c.b16 %v3717, %v3715
    %v3768 = vpack.c.b16 %v3720, %v3718
    %v3769 = vpack.c.b16 %v3721, %v3719
    %v3770 = vpack.c.b16 %v3724, %v3722
    %v3771 = vpack.c.b16 %v3725, %v3723
    %v3772 = vpack.c.b16 %v3728, %v3726
    %v3773 = vpack.c.b16 %v3729, %v3727
    %v3774 = vpack.c.b16 %v3732, %v3730
    %v3775 = vpack.c.b16 %v3733, %v3731
    %v3776 = vpack.c.b16 %v3736, %v3734
    %v3777 = vpack.c.b16 %v3737, %v3735
    %v3778 = vpack.c.b16 %v3740, %v3738
    %v3779 = vpack.c.b16 %v3741, %v3739
    %v3780 = vpack.c.b16 %v3744, %v3742
    %v3781 = vpack.c.b16 %v3745, %v3743
    %v3782 = vpack.c.b16 %v3748, %v3746
    %v3783 = vpack.c.b16 %v3749, %v3747
    %v3784 = vpack.c.b16 %v3752, %v3750
    %v3785 = vpack.c.b16 %v3753, %v3751
    %3818 = vmatprep.subr.bf16.mxu0 %v3755
    %3819 = vmatpush1.bf16.msra.mxu0 %v3754
    %3820 = vmatprep.subr.bf16.mxu0 %v3757
    %3821 = vmatpush1.bf16.msra.mxu0 %v3756
    %3822 = vmatprep.subr.bf16.mxu0 %v3759
    %3823 = vmatpush1.bf16.msra.mxu0 %v3758
    %3824 = vmatprep.subr.bf16.mxu0 %v3761
    %3825 = vmatpush1.bf16.msra.mxu0 %v3760
    %3826 = vmatprep.subr.bf16.mxu0 %v3763
    %3827 = vmatpush1.bf16.msra.mxu0 %v3762
    %3828 = vmatprep.subr.bf16.mxu0 %v3765
    %3829 = vmatpush1.bf16.msra.mxu0 %v3764
    %3830 = vmatprep.subr.bf16.mxu0 %v3767
    %3831 = vmatpush1.bf16.msra.mxu0 %v3766
    %3832 = vmatprep.subr.bf16.mxu0 %v3769
    %3833 = vmatpush1.bf16.msra.mxu0 %v3768
    %3834 = vmatprep.subr.bf16.mxu0 %v3771
    %3835 = vmatpush1.bf16.msra.mxu0 %v3770
    %3836 = vmatprep.subr.bf16.mxu0 %v3773
    %3837 = vmatpush1.bf16.msra.mxu0 %v3772
    %3838 = vmatprep.subr.bf16.mxu0 %v3775
    %3839 = vmatpush1.bf16.msra.mxu0 %v3774
    %3840 = vmatprep.subr.bf16.mxu0 %v3777
    %3841 = vmatpush1.bf16.msra.mxu0 %v3776
    %3842 = vmatprep.subr.bf16.mxu0 %v3779
    %3843 = vmatpush1.bf16.msra.mxu0 %v3778
    %3844 = vmatprep.subr.bf16.mxu0 %v3781
    %3845 = vmatpush1.bf16.msra.mxu0 %v3780
    %3846 = vmatprep.subr.bf16.mxu0 %v3783
    %3847 = vmatpush1.bf16.msra.mxu0 %v3782
    %3848 = vmatprep.subr.bf16.mxu0 %v3785
    %3849 = vmatpush1.bf16.msra.mxu0 %v3784
    %3850 = vmatprep.mubr.bf16.mxu0 %v3536
    %3851 = vmatmul.mubr.bf16.gmra.mrb[0].mxu0 %v3535
    %v3852 = vpop.f32.mrb[0].mxu0
    %v3853 = vadd.f32 0.0, %v3852
    %v3854 = vpop.f32.mrb[0].mxu0
    %v3855 = vadd.f32 0.0, %v3854
    %v3856 = vpop.f32.mrb[0].mxu0
    %v3857 = vadd.f32 0.0, %v3856
    %v3858 = vpop.f32.mrb[0].mxu0
    %v3859 = vadd.f32 0.0, %v3858
    %3860 = vdwg.mxu0
    %v3893 = vunpack.c.l.b16 %v3593
    %v3894 = vunpack.c.h.b16 %v3593
    %v3895 = vunpack.c.l.b16 %v3594
    %v3896 = vunpack.c.h.b16 %v3594
    %v3897 = vunpack.c.l.b16 %v3595
    %v3898 = vunpack.c.h.b16 %v3595
    %v3899 = vunpack.c.l.b16 %v3596
    %v3900 = vunpack.c.h.b16 %v3596
    %v3901 = vunpack.c.l.b16 %v3597
    %v3902 = vunpack.c.h.b16 %v3597
    %v3903 = vunpack.c.l.b16 %v3598
    %v3904 = vunpack.c.h.b16 %v3598
    %v3905 = vunpack.c.l.b16 %v3599
    %v3906 = vunpack.c.h.b16 %v3599
    %v3907 = vunpack.c.l.b16 %v3600
    %v3908 = vunpack.c.h.b16 %v3600
    %v3909 = vunpack.c.l.b16 %v3601
    %v3910 = vunpack.c.h.b16 %v3601
    %v3911 = vunpack.c.l.b16 %v3602
    %v3912 = vunpack.c.h.b16 %v3602
    %v3913 = vunpack.c.l.b16 %v3603
    %v3914 = vunpack.c.h.b16 %v3603
    %v3915 = vunpack.c.l.b16 %v3604
    %v3916 = vunpack.c.h.b16 %v3604
    %v3917 = vunpack.c.l.b16 %v3605
    %v3918 = vunpack.c.h.b16 %v3605
    %v3919 = vunpack.c.l.b16 %v3606
    %v3920 = vunpack.c.h.b16 %v3606
    %v3921 = vunpack.c.l.b16 %v3607
    %v3922 = vunpack.c.h.b16 %v3607
    %v3923 = vunpack.c.l.b16 %v3608
    %v3924 = vunpack.c.h.b16 %v3608
    %v3925 = vunpack.c.l.b16 %v3609
    %v3926 = vunpack.c.h.b16 %v3609
    %v3927 = vunpack.c.l.b16 %v3610
    %v3928 = vunpack.c.h.b16 %v3610
    %v3929 = vunpack.c.l.b16 %v3611
    %v3930 = vunpack.c.h.b16 %v3611
    %v3931 = vunpack.c.l.b16 %v3612
    %v3932 = vunpack.c.h.b16 %v3612
    %v3933 = vunpack.c.l.b16 %v3613
    %v3934 = vunpack.c.h.b16 %v3613
    %v3935 = vunpack.c.l.b16 %v3614
    %v3936 = vunpack.c.h.b16 %v3614
    %v3937 = vunpack.c.l.b16 %v3615
    %v3938 = vunpack.c.h.b16 %v3615
    %v3939 = vunpack.c.l.b16 %v3616
    %v3940 = vunpack.c.h.b16 %v3616
    %v3941 = vunpack.c.l.b16 %v3617
    %v3942 = vunpack.c.h.b16 %v3617
    %v3943 = vunpack.c.l.b16 %v3618
    %v3944 = vunpack.c.h.b16 %v3618
    %v3945 = vunpack.c.l.b16 %v3619
    %v3946 = vunpack.c.h.b16 %v3619
    %v3947 = vunpack.c.l.b16 %v3620
    %v3948 = vunpack.c.h.b16 %v3620
    %v3949 = vunpack.c.l.b16 %v3621
    %v3950 = vunpack.c.h.b16 %v3621
    %v3951 = vunpack.c.l.b16 %v3622
    %v3952 = vunpack.c.h.b16 %v3622
    %v3953 = vunpack.c.l.b16 %v3623
    %v3954 = vunpack.c.h.b16 %v3623
    %v3955 = vunpack.c.l.b16 %v3624
    %v3956 = vunpack.c.h.b16 %v3624
    %v3957 = vpack.c.b16 %v3895, %v3893
    %v3958 = vpack.c.b16 %v3896, %v3894
    %v3959 = vpack.c.b16 %v3899, %v3897
    %v3960 = vpack.c.b16 %v3900, %v3898
    %v3961 = vpack.c.b16 %v3903, %v3901
    %v3962 = vpack.c.b16 %v3904, %v3902
    %v3963 = vpack.c.b16 %v3907, %v3905
    %v3964 = vpack.c.b16 %v3908, %v3906
    %v3965 = vpack.c.b16 %v3911, %v3909
    %v3966 = vpack.c.b16 %v3912, %v3910
    %v3967 = vpack.c.b16 %v3915, %v3913
    %v3968 = vpack.c.b16 %v3916, %v3914
    %v3969 = vpack.c.b16 %v3919, %v3917
    %v3970 = vpack.c.b16 %v3920, %v3918
    %v3971 = vpack.c.b16 %v3923, %v3921
    %v3972 = vpack.c.b16 %v3924, %v3922
    %v3973 = vpack.c.b16 %v3927, %v3925
    %v3974 = vpack.c.b16 %v3928, %v3926
    %v3975 = vpack.c.b16 %v3931, %v3929
    %v3976 = vpack.c.b16 %v3932, %v3930
    %v3977 = vpack.c.b16 %v3935, %v3933
    %v3978 = vpack.c.b16 %v3936, %v3934
    %v3979 = vpack.c.b16 %v3939, %v3937
    %v3980 = vpack.c.b16 %v3940, %v3938
    %v3981 = vpack.c.b16 %v3943, %v3941
    %v3982 = vpack.c.b16 %v3944, %v3942
    %v3983 = vpack.c.b16 %v3947, %v3945
    %v3984 = vpack.c.b16 %v3948, %v3946
    %v3985 = vpack.c.b16 %v3951, %v3949
    %v3986 = vpack.c.b16 %v3952, %v3950
    %v3987 = vpack.c.b16 %v3955, %v3953
    %v3988 = vpack.c.b16 %v3956, %v3954
    %4021 = vmatprep.subr.bf16.mxu0 %v3958
    %4022 = vmatpush1.bf16.msra.mxu0 %v3957
    %4023 = vmatprep.subr.bf16.mxu0 %v3960
    %4024 = vmatpush1.bf16.msra.mxu0 %v3959
    %4025 = vmatprep.subr.bf16.mxu0 %v3962
    %4026 = vmatpush1.bf16.msra.mxu0 %v3961
    %4027 = vmatprep.subr.bf16.mxu0 %v3964
    %4028 = vmatpush1.bf16.msra.mxu0 %v3963
    %4029 = vmatprep.subr.bf16.mxu0 %v3966
    %4030 = vmatpush1.bf16.msra.mxu0 %v3965
    %4031 = vmatprep.subr.bf16.mxu0 %v3968
    %4032 = vmatpush1.bf16.msra.mxu0 %v3967
    %4033 = vmatprep.subr.bf16.mxu0 %v3970
    %4034 = vmatpush1.bf16.msra.mxu0 %v3969
    %4035 = vmatprep.subr.bf16.mxu0 %v3972
    %4036 = vmatpush1.bf16.msra.mxu0 %v3971
    %4037 = vmatprep.subr.bf16.mxu0 %v3974
    %4038 = vmatpush1.bf16.msra.mxu0 %v3973
    %4039 = vmatprep.subr.bf16.mxu0 %v3976
    %4040 = vmatpush1.bf16.msra.mxu0 %v3975
    %4041 = vmatprep.subr.bf16.mxu0 %v3978
    %4042 = vmatpush1.bf16.msra.mxu0 %v3977
    %4043 = vmatprep.subr.bf16.mxu0 %v3980
    %4044 = vmatpush1.bf16.msra.mxu0 %v3979
    %4045 = vmatprep.subr.bf16.mxu0 %v3982
    %4046 = vmatpush1.bf16.msra.mxu0 %v3981
    %4047 = vmatprep.subr.bf16.mxu0 %v3984
    %4048 = vmatpush1.bf16.msra.mxu0 %v3983
    %4049 = vmatprep.subr.bf16.mxu0 %v3986
    %4050 = vmatpush1.bf16.msra.mxu0 %v3985
    %4051 = vmatprep.subr.bf16.mxu0 %v3988
    %4052 = vmatpush1.bf16.msra.mxu0 %v3987
    %4053 = vmatprep.mubr.bf16.mxu0 %v3592
    %4054 = vmatmul.mubr.bf16.gmra.mrb[0].mxu0 %v3591
    %v4055 = vpop.f32.mrb[0].mxu0
    %v4056 = vadd.f32 %v3853, %v4055
    %v4057 = vpop.f32.mrb[0].mxu0
    %v4058 = vadd.f32 %v3855, %v4057
    %v4059 = vpop.f32.mrb[0].mxu0
    %v4060 = vadd.f32 %v3857, %v4059
    %v4061 = vpop.f32.mrb[0].mxu0
    %v4062 = vadd.f32 %v3859, %v4061
    %4063 = vdwg.mxu0
    %s4064 = scalar_lea.vmem [#allocation4], 224
    %v4065 = vld [vmem:[%s4064] sm:$0xf]
    %v4066 = vld [vmem:[%s4064 + $0x4] sm:$0xf]
    %v4069 = vunpack.c.l.b16 %v4065
    %v4070 = vunpack.c.l.b16 %v4066
    %v4071 = vpack.c.b16 %v4070, %v4069
    %v4073 = vsel %vm2698, %v4071, 0
    %4075 = vmatprep.subr.bf16.mxu0 %v3536
    %4076 = vmatpush1.bf16.msra.mxu0 %v3535
    %4077 = vmatprep.subr.bf16.mxu0 0
    %4078 = vmatpush1.bf16.msra.mxu0 0
    %4079 = vmatprep.subr.bf16.mxu0 0
    %4080 = vmatpush1.bf16.msra.mxu0 0
    %4081 = vmatprep.subr.bf16.mxu0 0
    %4082 = vmatpush1.bf16.msra.mxu0 0
    %4083 = vmatprep.subr.bf16.mxu0 0
    %4084 = vmatpush1.bf16.msra.mxu0 0
    %4085 = vmatprep.subr.bf16.mxu0 0
    %4086 = vmatpush1.bf16.msra.mxu0 0
    %4087 = vmatprep.subr.bf16.mxu0 0
    %4088 = vmatpush1.bf16.msra.mxu0 0
    %4089 = vmatprep.subr.bf16.mxu0 0
    %4090 = vmatpush1.bf16.msra.mxu0 0
    %4091 = vmatprep.subr.bf16.mxu0 0
    %4092 = vmatpush1.bf16.msra.mxu0 0
    %4093 = vmatprep.subr.bf16.mxu0 0
    %4094 = vmatpush1.bf16.msra.mxu0 0
    %4095 = vmatprep.subr.bf16.mxu0 0
    %4096 = vmatpush1.bf16.msra.mxu0 0
    %4097 = vmatprep.subr.bf16.mxu0 0
    %4098 = vmatpush1.bf16.msra.mxu0 0
    %4099 = vmatprep.subr.bf16.mxu0 0
    %4100 = vmatpush1.bf16.msra.mxu0 0
    %4101 = vmatprep.subr.bf16.mxu0 0
    %4102 = vmatpush1.bf16.msra.mxu0 0
    %4103 = vmatprep.subr.bf16.mxu0 0
    %4104 = vmatpush1.bf16.msra.mxu0 0
    %4105 = vmatprep.subr.bf16.mxu0 0
    %4106 = vmatpush1.bf16.msra.mxu0 0
    %4107 = vmatprep.mubr.bf16.mxu0 0
    %4108 = vmatmul.mubr.bf16.gmra.mrb[0].mxu0 %v4073
    %v4109 = vpop.f32.mrb[0].mxu0
    %v4110 = vadd.f32 0.0, %v4109
    %v4111 = vpop.f32.mrb[0].mxu0
    %v4112 = vadd.f32 0.0, %v4111
    %v4113 = vpop.f32.mrb[0].mxu0
    %v4114 = vadd.f32 0.0, %v4113
    %v4115 = vpop.f32.mrb[0].mxu0
    %v4116 = vadd.f32 0.0, %v4115
    %4117 = vdwg.mxu0
    %v4118 = vpack.c.bf16 %v4114, %v4110
    %v4119 = vpack.c.bf16 %v4116, %v4112
    %s4120 = scalar_lea.vmem [#allocation14], 512
    %v4121 = vld [vmem:[%s4120] sm:$0xff]
    %v4122 = vld [vmem:[%s4120 + $0x8] sm:$0xff]
    %v4123 = vld [vmem:[%s4120 + $0x10] sm:$0xff]
    %v4124 = vld [vmem:[%s4120 + $0x18] sm:$0xff]
    %v4125 = vld [vmem:[%s4120 + $0x20] sm:$0xff]
    %v4126 = vld [vmem:[%s4120 + $0x28] sm:$0xff]
    %v4127 = vld [vmem:[%s4120 + $0x30] sm:$0xff]
    %v4128 = vld [vmem:[%s4120 + $0x38] sm:$0xff]
    %v4129 = vld [vmem:[%s4120 + $0x40] sm:$0xff]
    %v4130 = vld [vmem:[%s4120 + $0x48] sm:$0xff]
    %v4131 = vld [vmem:[%s4120 + $0x50] sm:$0xff]
    %v4132 = vld [vmem:[%s4120 + $0x58] sm:$0xff]
    %v4133 = vld [vmem:[%s4120 + $0x60] sm:$0xff]
    %v4134 = vld [vmem:[%s4120 + $0x68] sm:$0xff]
    %v4135 = vld [vmem:[%s4120 + $0x70] sm:$0xff]
    %v4136 = vld [vmem:[%s4120 + $0x78] sm:$0xff]
    %v4137 = vld [vmem:[%s4120 + $0x80] sm:$0xff]
    %v4138 = vld [vmem:[%s4120 + $0x88] sm:$0xff]
    %v4139 = vld [vmem:[%s4120 + $0x90] sm:$0xff]
    %v4140 = vld [vmem:[%s4120 + $0x98] sm:$0xff]
    %v4141 = vld [vmem:[%s4120 + $0xa0] sm:$0xff]
    %v4142 = vld [vmem:[%s4120 + $0xa8] sm:$0xff]
    %v4143 = vld [vmem:[%s4120 + $0xb0] sm:$0xff]
    %v4144 = vld [vmem:[%s4120 + $0xb8] sm:$0xff]
    %v4145 = vld [vmem:[%s4120 + $0xc0] sm:$0xff]
    %v4146 = vld [vmem:[%s4120 + $0xc8] sm:$0xff]
    %v4147 = vld [vmem:[%s4120 + $0xd0] sm:$0xff]
    %v4148 = vld [vmem:[%s4120 + $0xd8] sm:$0xff]
    %v4149 = vld [vmem:[%s4120 + $0xe0] sm:$0xff]
    %v4150 = vld [vmem:[%s4120 + $0xe8] sm:$0xff]
    %v4151 = vld [vmem:[%s4120 + $0xf0] sm:$0xff]
    %v4152 = vld [vmem:[%s4120 + $0xf8] sm:$0xff]
    %v4185 = vunpack.c.l.b16 %v4121
    %v4186 = vunpack.c.h.b16 %v4121
    %v4187 = vunpack.c.l.b16 %v4122
    %v4188 = vunpack.c.h.b16 %v4122
    %v4189 = vunpack.c.l.b16 %v4123
    %v4190 = vunpack.c.h.b16 %v4123
    %v4191 = vunpack.c.l.b16 %v4124
    %v4192 = vunpack.c.h.b16 %v4124
    %v4193 = vunpack.c.l.b16 %v4125
    %v4194 = vunpack.c.h.b16 %v4125
    %v4195 = vunpack.c.l.b16 %v4126
    %v4196 = vunpack.c.h.b16 %v4126
    %v4197 = vunpack.c.l.b16 %v4127
    %v4198 = vunpack.c.h.b16 %v4127
    %v4199 = vunpack.c.l.b16 %v4128
    %v4200 = vunpack.c.h.b16 %v4128
    %v4201 = vunpack.c.l.b16 %v4129
    %v4202 = vunpack.c.h.b16 %v4129
    %v4203 = vunpack.c.l.b16 %v4130
    %v4204 = vunpack.c.h.b16 %v4130
    %v4205 = vunpack.c.l.b16 %v4131
    %v4206 = vunpack.c.h.b16 %v4131
    %v4207 = vunpack.c.l.b16 %v4132
    %v4208 = vunpack.c.h.b16 %v4132
    %v4209 = vunpack.c.l.b16 %v4133
    %v4210 = vunpack.c.h.b16 %v4133
    %v4211 = vunpack.c.l.b16 %v4134
    %v4212 = vunpack.c.h.b16 %v4134
    %v4213 = vunpack.c.l.b16 %v4135
    %v4214 = vunpack.c.h.b16 %v4135
    %v4215 = vunpack.c.l.b16 %v4136
    %v4216 = vunpack.c.h.b16 %v4136
    %v4217 = vunpack.c.l.b16 %v4137
    %v4218 = vunpack.c.h.b16 %v4137
    %v4219 = vunpack.c.l.b16 %v4138
    %v4220 = vunpack.c.h.b16 %v4138
    %v4221 = vunpack.c.l.b16 %v4139
    %v4222 = vunpack.c.h.b16 %v4139
    %v4223 = vunpack.c.l.b16 %v4140
    %v4224 = vunpack.c.h.b16 %v4140
    %v4225 = vunpack.c.l.b16 %v4141
    %v4226 = vunpack.c.h.b16 %v4141
    %v4227 = vunpack.c.l.b16 %v4142
    %v4228 = vunpack.c.h.b16 %v4142
    %v4229 = vunpack.c.l.b16 %v4143
    %v4230 = vunpack.c.h.b16 %v4143
    %v4231 = vunpack.c.l.b16 %v4144
    %v4232 = vunpack.c.h.b16 %v4144
    %v4233 = vunpack.c.l.b16 %v4145
    %v4234 = vunpack.c.h.b16 %v4145
    %v4235 = vunpack.c.l.b16 %v4146
    %v4236 = vunpack.c.h.b16 %v4146
    %v4237 = vunpack.c.l.b16 %v4147
    %v4238 = vunpack.c.h.b16 %v4147
    %v4239 = vunpack.c.l.b16 %v4148
    %v4240 = vunpack.c.h.b16 %v4148
    %v4241 = vunpack.c.l.b16 %v4149
    %v4242 = vunpack.c.h.b16 %v4149
    %v4243 = vunpack.c.l.b16 %v4150
    %v4244 = vunpack.c.h.b16 %v4150
    %v4245 = vunpack.c.l.b16 %v4151
    %v4246 = vunpack.c.h.b16 %v4151
    %v4247 = vunpack.c.l.b16 %v4152
    %v4248 = vunpack.c.h.b16 %v4152
    %v4249 = vpack.c.b16 %v4187, %v4185
    %v4250 = vpack.c.b16 %v4188, %v4186
    %v4251 = vpack.c.b16 %v4191, %v4189
    %v4252 = vpack.c.b16 %v4192, %v4190
    %v4253 = vpack.c.b16 %v4195, %v4193
    %v4254 = vpack.c.b16 %v4196, %v4194
    %v4255 = vpack.c.b16 %v4199, %v4197
    %v4256 = vpack.c.b16 %v4200, %v4198
    %v4257 = vpack.c.b16 %v4203, %v4201
    %v4258 = vpack.c.b16 %v4204, %v4202
    %v4259 = vpack.c.b16 %v4207, %v4205
    %v4260 = vpack.c.b16 %v4208, %v4206
    %v4261 = vpack.c.b16 %v4211, %v4209
    %v4262 = vpack.c.b16 %v4212, %v4210
    %v4263 = vpack.c.b16 %v4215, %v4213
    %v4264 = vpack.c.b16 %v4216, %v4214
    %v4265 = vpack.c.b16 %v4219, %v4217
    %v4266 = vpack.c.b16 %v4220, %v4218
    %v4267 = vpack.c.b16 %v4223, %v4221
    %v4268 = vpack.c.b16 %v4224, %v4222
    %v4269 = vpack.c.b16 %v4227, %v4225
    %v4270 = vpack.c.b16 %v4228, %v4226
    %v4271 = vpack.c.b16 %v4231, %v4229
    %v4272 = vpack.c.b16 %v4232, %v4230
    %v4273 = vpack.c.b16 %v4235, %v4233
    %v4274 = vpack.c.b16 %v4236, %v4234
    %v4275 = vpack.c.b16 %v4239, %v4237
    %v4276 = vpack.c.b16 %v4240, %v4238
    %v4277 = vpack.c.b16 %v4243, %v4241
    %v4278 = vpack.c.b16 %v4244, %v4242
    %v4279 = vpack.c.b16 %v4247, %v4245
    %v4280 = vpack.c.b16 %v4248, %v4246
    %4313 = vmatprep.subr.bf16.mxu0 %v4250
    %4314 = vmatpush1.bf16.msra.mxu0 %v4249
    %4315 = vmatprep.subr.bf16.mxu0 %v4252
    %4316 = vmatpush1.bf16.msra.mxu0 %v4251
    %4317 = vmatprep.subr.bf16.mxu0 %v4254
    %4318 = vmatpush1.bf16.msra.mxu0 %v4253
    %4319 = vmatprep.subr.bf16.mxu0 %v4256
    %4320 = vmatpush1.bf16.msra.mxu0 %v4255
    %4321 = vmatprep.subr.bf16.mxu0 %v4258
    %4322 = vmatpush1.bf16.msra.mxu0 %v4257
    %4323 = vmatprep.subr.bf16.mxu0 %v4260
    %4324 = vmatpush1.bf16.msra.mxu0 %v4259
    %4325 = vmatprep.subr.bf16.mxu0 %v4262
    %4326 = vmatpush1.bf16.msra.mxu0 %v4261
    %4327 = vmatprep.subr.bf16.mxu0 %v4264
    %4328 = vmatpush1.bf16.msra.mxu0 %v4263
    %4329 = vmatprep.subr.bf16.mxu0 %v4266
    %4330 = vmatpush1.bf16.msra.mxu0 %v4265
    %4331 = vmatprep.subr.bf16.mxu0 %v4268
    %4332 = vmatpush1.bf16.msra.mxu0 %v4267
    %4333 = vmatprep.subr.bf16.mxu0 %v4270
    %4334 = vmatpush1.bf16.msra.mxu0 %v4269
    %4335 = vmatprep.subr.bf16.mxu0 %v4272
    %4336 = vmatpush1.bf16.msra.mxu0 %v4271
    %4337 = vmatprep.subr.bf16.mxu0 %v4274
    %4338 = vmatpush1.bf16.msra.mxu0 %v4273
    %4339 = vmatprep.subr.bf16.mxu0 %v4276
    %4340 = vmatpush1.bf16.msra.mxu0 %v4275
    %4341 = vmatprep.subr.bf16.mxu0 %v4278
    %4342 = vmatpush1.bf16.msra.mxu0 %v4277
    %4343 = vmatprep.subr.bf16.mxu0 %v4280
    %4344 = vmatpush1.bf16.msra.mxu0 %v4279
    %4345 = vmatprep.mubr.bf16.mxu0 %v4119
    %4346 = vmatmul.mubr.bf16.gmra.mrb[0].mxu0 %v4118
    %v4347 = vpop.f32.mrb[0].mxu0
    %v4348 = vadd.f32 0.0, %v4347
    %v4349 = vpop.f32.mrb[0].mxu0
    %v4350 = vadd.f32 0.0, %v4349
    %v4351 = vpop.f32.mrb[0].mxu0
    %v4352 = vadd.f32 0.0, %v4351
    %v4353 = vpop.f32.mrb[0].mxu0
    %v4354 = vadd.f32 0.0, %v4353
    %4355 = vdwg.mxu0
    %v4356 = vadd.f32 %v4056, %v4348
    %v4357 = vadd.f32 %v4058, %v4350
    %v4358 = vadd.f32 %v4060, %v4352
    %v4359 = vadd.f32 %v4062, %v4354
    %s4360 = scalar_lea.vmem [#allocation6], 4
    %v4361 = vld [vmem:[%s4360] ss:$8 sm:$0x3]
    %v4363 = vlaneseq
    %v4364 = vshrl.u32 %v4363, 7
    %v4365 = vsub.s32 0, %v4364
    %v4366 = vrot.slane %v4361, %v4365
    %v4367 = vlaneseq
    %v4368 = vshrl.u32 %v4367, 7
    %v4369 = vsub.s32 1, %v4368
    %v4370 = vrot.slane %v4361, %v4369
    %v4373 = vadd.f32 %v4356, %v4366
    %v4374 = vadd.f32 %v4357, %v4370
    %v4375 = vadd.f32 %v4358, %v4366
    %v4376 = vadd.f32 %v4359, %v4370
    %v4377 = vmax.f32 %v4373, 0.0
    %v4378 = vmax.f32 %v4374, 0.0
    %v4379 = vmax.f32 %v4375, 0.0
    %v4380 = vmax.f32 %v4376, 0.0
    %v4381 = vpack.c.bf16 %v4379, %v4377
    %v4382 = vpack.c.bf16 %v4380, %v4378
    %s4383 = scalar_lea.vmem [#allocation4], 240
    %v4384 = vld [vmem:[%s4383] sm:$0xf]
    %v4386 = vsel %vm2698, %v4384, 0
    %4388 = vmatprep.subr.bf16.mxu0 %v4382
    %4389 = vmatpush1.bf16.msra.mxu0 %v4381
    %4390 = vmatprep.subr.bf16.mxu0 0
    %4391 = vmatpush1.bf16.msra.mxu0 0
    %4392 = vmatprep.subr.bf16.mxu0 0
    %4393 = vmatpush1.bf16.msra.mxu0 0
    %4394 = vmatprep.subr.bf16.mxu0 0
    %4395 = vmatpush1.bf16.msra.mxu0 0
    %4396 = vmatprep.subr.bf16.mxu0 0
    %4397 = vmatpush1.bf16.msra.mxu0 0
    %4398 = vmatprep.subr.bf16.mxu0 0
    %4399 = vmatpush1.bf16.msra.mxu0 0
    %4400 = vmatprep.subr.bf16.mxu0 0
    %4401 = vmatpush1.bf16.msra.mxu0 0
    %4402 = vmatprep.subr.bf16.mxu0 0
    %4403 = vmatpush1.bf16.msra.mxu0 0
    %4404 = vmatprep.subr.bf16.mxu0 0
    %4405 = vmatpush1.bf16.msra.mxu0 0
    %4406 = vmatprep.subr.bf16.mxu0 0
    %4407 = vmatpush1.bf16.msra.mxu0 0
    %4408 = vmatprep.subr.bf16.mxu0 0
    %4409 = vmatpush1.bf16.msra.mxu0 0
    %4410 = vmatprep.subr.bf16.mxu0 0
    %4411 = vmatpush1.bf16.msra.mxu0 0
    %4412 = vmatprep.subr.bf16.mxu0 0
    %4413 = vmatpush1.bf16.msra.mxu0 0
    %4414 = vmatprep.subr.bf16.mxu0 0
    %4415 = vmatpush1.bf16.msra.mxu0 0
    %4416 = vmatprep.subr.bf16.mxu0 0
    %4417 = vmatpush1.bf16.msra.mxu0 0
    %4418 = vmatprep.subr.bf16.mxu0 0
    %4419 = vmatpush1.bf16.msra.mxu0 0
    %4420 = vmatprep.mubr.bf16.mxu0 0
    %4421 = vmatmul.mubr.bf16.gmra.mrb[0].mxu0 %v4386
    %v4422 = vpop.f32.mrb[0].mxu0
    %v4423 = vadd.f32 0.0, %v4422
    %v4424 = vpop.f32.mrb[0].mxu0
    %v4425 = vadd.f32 0.0, %v4424
    %v4426 = vpop.f32.mrb[0].mxu0
    %v4427 = vpop.f32.mrb[0].mxu0
    %4428 = vdwg.mxu0
    %v4429 = vpack.c.bf16 %v4423, %v4423
    %v4430 = vpack.c.bf16 %v4425, %v4425
    %v4431 = vld [vmem:[#allocation15] sm:$0xff]
    %v4432 = vld [vmem:[#allocation15 + $0x8] sm:$0xff]
    %v4433 = vld [vmem:[#allocation15 + $0x10] sm:$0xff]
    %v4434 = vld [vmem:[#allocation15 + $0x18] sm:$0xff]
    %v4435 = vld [vmem:[#allocation15 + $0x20] sm:$0xff]
    %v4436 = vld [vmem:[#allocation15 + $0x28] sm:$0xff]
    %v4437 = vld [vmem:[#allocation15 + $0x30] sm:$0xff]
    %v4438 = vld [vmem:[#allocation15 + $0x38] sm:$0xff]
    %v4439 = vld [vmem:[#allocation15 + $0x40] sm:$0xff]
    %v4440 = vld [vmem:[#allocation15 + $0x48] sm:$0xff]
    %v4441 = vld [vmem:[#allocation15 + $0x50] sm:$0xff]
    %v4442 = vld [vmem:[#allocation15 + $0x58] sm:$0xff]
    %v4443 = vld [vmem:[#allocation15 + $0x60] sm:$0xff]
    %v4444 = vld [vmem:[#allocation15 + $0x68] sm:$0xff]
    %v4445 = vld [vmem:[#allocation15 + $0x70] sm:$0xff]
    %v4446 = vld [vmem:[#allocation15 + $0x78] sm:$0xff]
    %v4447 = vld [vmem:[#allocation15 + $0x80] sm:$0xff]
    %v4448 = vld [vmem:[#allocation15 + $0x88] sm:$0xff]
    %v4449 = vld [vmem:[#allocation15 + $0x90] sm:$0xff]
    %v4450 = vld [vmem:[#allocation15 + $0x98] sm:$0xff]
    %v4451 = vld [vmem:[#allocation15 + $0xa0] sm:$0xff]
    %v4452 = vld [vmem:[#allocation15 + $0xa8] sm:$0xff]
    %v4453 = vld [vmem:[#allocation15 + $0xb0] sm:$0xff]
    %v4454 = vld [vmem:[#allocation15 + $0xb8] sm:$0xff]
    %v4455 = vld [vmem:[#allocation15 + $0xc0] sm:$0xff]
    %v4456 = vld [vmem:[#allocation15 + $0xc8] sm:$0xff]
    %v4457 = vld [vmem:[#allocation15 + $0xd0] sm:$0xff]
    %v4458 = vld [vmem:[#allocation15 + $0xd8] sm:$0xff]
    %v4459 = vld [vmem:[#allocation15 + $0xe0] sm:$0xff]
    %v4460 = vld [vmem:[#allocation15 + $0xe8] sm:$0xff]
    %v4461 = vld [vmem:[#allocation15 + $0xf0] sm:$0xff]
    %v4462 = vld [vmem:[#allocation15 + $0xf8] sm:$0xff]
    %s4463 = scalar_lea.vmem [#allocation4], 256
    %v4464 = vld [vmem:[%s4463] sm:$0xf]
    %v4466 = vsel %vm2698, %v4464, 0
    %4468 = vmatprep.subr.bf16.mxu0 %v4382
    %4469 = vmatpush1.bf16.msra.mxu0 %v4381
    %4470 = vmatprep.subr.bf16.mxu0 0
    %4471 = vmatpush1.bf16.msra.mxu0 0
    %4472 = vmatprep.subr.bf16.mxu0 0
    %4473 = vmatpush1.bf16.msra.mxu0 0
    %4474 = vmatprep.subr.bf16.mxu0 0
    %4475 = vmatpush1.bf16.msra.mxu0 0
    %4476 = vmatprep.subr.bf16.mxu0 0
    %4477 = vmatpush1.bf16.msra.mxu0 0
    %4478 = vmatprep.subr.bf16.mxu0 0
    %4479 = vmatpush1.bf16.msra.mxu0 0
    %4480 = vmatprep.subr.bf16.mxu0 0
    %4481 = vmatpush1.bf16.msra.mxu0 0
    %4482 = vmatprep.subr.bf16.mxu0 0
    %4483 = vmatpush1.bf16.msra.mxu0 0
    %4484 = vmatprep.subr.bf16.mxu0 0
    %4485 = vmatpush1.bf16.msra.mxu0 0
    %4486 = vmatprep.subr.bf16.mxu0 0
    %4487 = vmatpush1.bf16.msra.mxu0 0
    %4488 = vmatprep.subr.bf16.mxu0 0
    %4489 = vmatpush1.bf16.msra.mxu0 0
    %4490 = vmatprep.subr.bf16.mxu0 0
    %4491 = vmatpush1.bf16.msra.mxu0 0
    %4492 = vmatprep.subr.bf16.mxu0 0
    %4493 = vmatpush1.bf16.msra.mxu0 0
    %4494 = vmatprep.subr.bf16.mxu0 0
    %4495 = vmatpush1.bf16.msra.mxu0 0
    %4496 = vmatprep.subr.bf16.mxu0 0
    %4497 = vmatpush1.bf16.msra.mxu0 0
    %4498 = vmatprep.subr.bf16.mxu0 0
    %4499 = vmatpush1.bf16.msra.mxu0 0
    %4500 = vmatprep.mubr.bf16.mxu0 0
    %4501 = vmatmul.mubr.bf16.gmra.mrb[0].mxu0 %v4466
    %v4502 = vpop.f32.mrb[0].mxu0
    %v4503 = vadd.f32 0.0, %v4502
    %v4504 = vpop.f32.mrb[0].mxu0
    %v4505 = vadd.f32 0.0, %v4504
    %v4506 = vpop.f32.mrb[0].mxu0
    %v4507 = vpop.f32.mrb[0].mxu0
    %4508 = vdwg.mxu0
    %v4509 = vpack.c.bf16 %v4503, %v4503
    %v4510 = vpack.c.bf16 %v4505, %v4505
    %s4511 = scalar_lea.vmem [#allocation15], 256
    %v4512 = vld [vmem:[%s4511] sm:$0xff]
    %v4513 = vld [vmem:[%s4511 + $0x8] sm:$0xff]
    %v4514 = vld [vmem:[%s4511 + $0x10] sm:$0xff]
    %v4515 = vld [vmem:[%s4511 + $0x18] sm:$0xff]
    %v4516 = vld [vmem:[%s4511 + $0x20] sm:$0xff]
    %v4517 = vld [vmem:[%s4511 + $0x28] sm:$0xff]
    %v4518 = vld [vmem:[%s4511 + $0x30] sm:$0xff]
    %v4519 = vld [vmem:[%s4511 + $0x38] sm:$0xff]
    %v4520 = vld [vmem:[%s4511 + $0x40] sm:$0xff]
    %v4521 = vld [vmem:[%s4511 + $0x48] sm:$0xff]
    %v4522 = vld [vmem:[%s4511 + $0x50] sm:$0xff]
    %v4523 = vld [vmem:[%s4511 + $0x58] sm:$0xff]
    %v4524 = vld [vmem:[%s4511 + $0x60] sm:$0xff]
    %v4525 = vld [vmem:[%s4511 + $0x68] sm:$0xff]
    %v4526 = vld [vmem:[%s4511 + $0x70] sm:$0xff]
    %v4527 = vld [vmem:[%s4511 + $0x78] sm:$0xff]
    %v4528 = vld [vmem:[%s4511 + $0x80] sm:$0xff]
    %v4529 = vld [vmem:[%s4511 + $0x88] sm:$0xff]
    %v4530 = vld [vmem:[%s4511 + $0x90] sm:$0xff]
    %v4531 = vld [vmem:[%s4511 + $0x98] sm:$0xff]
    %v4532 = vld [vmem:[%s4511 + $0xa0] sm:$0xff]
    %v4533 = vld [vmem:[%s4511 + $0xa8] sm:$0xff]
    %v4534 = vld [vmem:[%s4511 + $0xb0] sm:$0xff]
    %v4535 = vld [vmem:[%s4511 + $0xb8] sm:$0xff]
    %v4536 = vld [vmem:[%s4511 + $0xc0] sm:$0xff]
    %v4537 = vld [vmem:[%s4511 + $0xc8] sm:$0xff]
    %v4538 = vld [vmem:[%s4511 + $0xd0] sm:$0xff]
    %v4539 = vld [vmem:[%s4511 + $0xd8] sm:$0xff]
    %v4540 = vld [vmem:[%s4511 + $0xe0] sm:$0xff]
    %v4541 = vld [vmem:[%s4511 + $0xe8] sm:$0xff]
    %v4542 = vld [vmem:[%s4511 + $0xf0] sm:$0xff]
    %v4543 = vld [vmem:[%s4511 + $0xf8] sm:$0xff]
    %v4576 = vunpack.c.l.b16 %v4512
    %v4577 = vunpack.c.h.b16 %v4512
    %v4578 = vunpack.c.l.b16 %v4513
    %v4579 = vunpack.c.h.b16 %v4513
    %v4580 = vunpack.c.l.b16 %v4514
    %v4581 = vunpack.c.h.b16 %v4514
    %v4582 = vunpack.c.l.b16 %v4515
    %v4583 = vunpack.c.h.b16 %v4515
    %v4584 = vunpack.c.l.b16 %v4516
    %v4585 = vunpack.c.h.b16 %v4516
    %v4586 = vunpack.c.l.b16 %v4517
    %v4587 = vunpack.c.h.b16 %v4517
    %v4588 = vunpack.c.l.b16 %v4518
    %v4589 = vunpack.c.h.b16 %v4518
    %v4590 = vunpack.c.l.b16 %v4519
    %v4591 = vunpack.c.h.b16 %v4519
    %v4592 = vunpack.c.l.b16 %v4520
    %v4593 = vunpack.c.h.b16 %v4520
    %v4594 = vunpack.c.l.b16 %v4521
    %v4595 = vunpack.c.h.b16 %v4521
    %v4596 = vunpack.c.l.b16 %v4522
    %v4597 = vunpack.c.h.b16 %v4522
    %v4598 = vunpack.c.l.b16 %v4523
    %v4599 = vunpack.c.h.b16 %v4523
    %v4600 = vunpack.c.l.b16 %v4524
    %v4601 = vunpack.c.h.b16 %v4524
    %v4602 = vunpack.c.l.b16 %v4525
    %v4603 = vunpack.c.h.b16 %v4525
    %v4604 = vunpack.c.l.b16 %v4526
    %v4605 = vunpack.c.h.b16 %v4526
    %v4606 = vunpack.c.l.b16 %v4527
    %v4607 = vunpack.c.h.b16 %v4527
    %v4608 = vunpack.c.l.b16 %v4528
    %v4609 = vunpack.c.h.b16 %v4528
    %v4610 = vunpack.c.l.b16 %v4529
    %v4611 = vunpack.c.h.b16 %v4529
    %v4612 = vunpack.c.l.b16 %v4530
    %v4613 = vunpack.c.h.b16 %v4530
    %v4614 = vunpack.c.l.b16 %v4531
    %v4615 = vunpack.c.h.b16 %v4531
    %v4616 = vunpack.c.l.b16 %v4532
    %v4617 = vunpack.c.h.b16 %v4532
    %v4618 = vunpack.c.l.b16 %v4533
    %v4619 = vunpack.c.h.b16 %v4533
    %v4620 = vunpack.c.l.b16 %v4534
    %v4621 = vunpack.c.h.b16 %v4534
    %v4622 = vunpack.c.l.b16 %v4535
    %v4623 = vunpack.c.h.b16 %v4535
    %v4624 = vunpack.c.l.b16 %v4536
    %v4625 = vunpack.c.h.b16 %v4536
    %v4626 = vunpack.c.l.b16 %v4537
    %v4627 = vunpack.c.h.b16 %v4537
    %v4628 = vunpack.c.l.b16 %v4538
    %v4629 = vunpack.c.h.b16 %v4538
    %v4630 = vunpack.c.l.b16 %v4539
    %v4631 = vunpack.c.h.b16 %v4539
    %v4632 = vunpack.c.l.b16 %v4540
    %v4633 = vunpack.c.h.b16 %v4540
    %v4634 = vunpack.c.l.b16 %v4541
    %v4635 = vunpack.c.h.b16 %v4541
    %v4636 = vunpack.c.l.b16 %v4542
    %v4637 = vunpack.c.h.b16 %v4542
    %v4638 = vunpack.c.l.b16 %v4543
    %v4639 = vunpack.c.h.b16 %v4543
    %v4640 = vpack.c.b16 %v4578, %v4576
    %v4641 = vpack.c.b16 %v4579, %v4577
    %v4642 = vpack.c.b16 %v4582, %v4580
    %v4643 = vpack.c.b16 %v4583, %v4581
    %v4644 = vpack.c.b16 %v4586, %v4584
    %v4645 = vpack.c.b16 %v4587, %v4585
    %v4646 = vpack.c.b16 %v4590, %v4588
    %v4647 = vpack.c.b16 %v4591, %v4589
    %v4648 = vpack.c.b16 %v4594, %v4592
    %v4649 = vpack.c.b16 %v4595, %v4593
    %v4650 = vpack.c.b16 %v4598, %v4596
    %v4651 = vpack.c.b16 %v4599, %v4597
    %v4652 = vpack.c.b16 %v4602, %v4600
    %v4653 = vpack.c.b16 %v4603, %v4601
    %v4654 = vpack.c.b16 %v4606, %v4604
    %v4655 = vpack.c.b16 %v4607, %v4605
    %v4656 = vpack.c.b16 %v4610, %v4608
    %v4657 = vpack.c.b16 %v4611, %v4609
    %v4658 = vpack.c.b16 %v4614, %v4612
    %v4659 = vpack.c.b16 %v4615, %v4613
    %v4660 = vpack.c.b16 %v4618, %v4616
    %v4661 = vpack.c.b16 %v4619, %v4617
    %v4662 = vpack.c.b16 %v4622, %v4620
    %v4663 = vpack.c.b16 %v4623, %v4621
    %v4664 = vpack.c.b16 %v4626, %v4624
    %v4665 = vpack.c.b16 %v4627, %v4625
    %v4666 = vpack.c.b16 %v4630, %v4628
    %v4667 = vpack.c.b16 %v4631, %v4629
    %v4668 = vpack.c.b16 %v4634, %v4632
    %v4669 = vpack.c.b16 %v4635, %v4633
    %v4670 = vpack.c.b16 %v4638, %v4636
    %v4671 = vpack.c.b16 %v4639, %v4637
    %4704 = vmatprep.subr.bf16.mxu0 %v4641
    %4705 = vmatpush1.bf16.msra.mxu0 %v4640
    %4706 = vmatprep.subr.bf16.mxu0 %v4643
    %4707 = vmatpush1.bf16.msra.mxu0 %v4642
    %4708 = vmatprep.subr.bf16.mxu0 %v4645
    %4709 = vmatpush1.bf16.msra.mxu0 %v4644
    %4710 = vmatprep.subr.bf16.mxu0 %v4647
    %4711 = vmatpush1.bf16.msra.mxu0 %v4646
    %4712 = vmatprep.subr.bf16.mxu0 %v4649
    %4713 = vmatpush1.bf16.msra.mxu0 %v4648
    %4714 = vmatprep.subr.bf16.mxu0 %v4651
    %4715 = vmatpush1.bf16.msra.mxu0 %v4650
    %4716 = vmatprep.subr.bf16.mxu0 %v4653
    %4717 = vmatpush1.bf16.msra.mxu0 %v4652
    %4718 = vmatprep.subr.bf16.mxu0 %v4655
    %4719 = vmatpush1.bf16.msra.mxu0 %v4654
    %4720 = vmatprep.subr.bf16.mxu0 %v4657
    %4721 = vmatpush1.bf16.msra.mxu0 %v4656
    %4722 = vmatprep.subr.bf16.mxu0 %v4659
    %4723 = vmatpush1.bf16.msra.mxu0 %v4658
    %4724 = vmatprep.subr.bf16.mxu0 %v4661
    %4725 = vmatpush1.bf16.msra.mxu0 %v4660
    %4726 = vmatprep.subr.bf16.mxu0 %v4663
    %4727 = vmatpush1.bf16.msra.mxu0 %v4662
    %4728 = vmatprep.subr.bf16.mxu0 %v4665
    %4729 = vmatpush1.bf16.msra.mxu0 %v4664
    %4730 = vmatprep.subr.bf16.mxu0 %v4667
    %4731 = vmatpush1.bf16.msra.mxu0 %v4666
    %4732 = vmatprep.subr.bf16.mxu0 %v4669
    %4733 = vmatpush1.bf16.msra.mxu0 %v4668
    %4734 = vmatprep.subr.bf16.mxu0 %v4671
    %4735 = vmatpush1.bf16.msra.mxu0 %v4670
    %4736 = vmatprep.mubr.bf16.mxu0 %v4510
    %4737 = vmatmul.mubr.bf16.gmra.mrb[0].mxu0 %v4509
    %v4738 = vpop.f32.mrb[0].mxu0
    %v4739 = vadd.f32 0.0, %v4738
    %v4740 = vpop.f32.mrb[0].mxu0
    %v4741 = vadd.f32 0.0, %v4740
    %v4742 = vpop.f32.mrb[0].mxu0
    %v4743 = vpop.f32.mrb[0].mxu0
    %4744 = vdwg.mxu0
    %v4777 = vunpack.c.l.b16 %v4431
    %v4778 = vunpack.c.h.b16 %v4431
    %v4779 = vunpack.c.l.b16 %v4432
    %v4780 = vunpack.c.h.b16 %v4432
    %v4781 = vunpack.c.l.b16 %v4433
    %v4782 = vunpack.c.h.b16 %v4433
    %v4783 = vunpack.c.l.b16 %v4434
    %v4784 = vunpack.c.h.b16 %v4434
    %v4785 = vunpack.c.l.b16 %v4435
    %v4786 = vunpack.c.h.b16 %v4435
    %v4787 = vunpack.c.l.b16 %v4436
    %v4788 = vunpack.c.h.b16 %v4436
    %v4789 = vunpack.c.l.b16 %v4437
    %v4790 = vunpack.c.h.b16 %v4437
    %v4791 = vunpack.c.l.b16 %v4438
    %v4792 = vunpack.c.h.b16 %v4438
    %v4793 = vunpack.c.l.b16 %v4439
    %v4794 = vunpack.c.h.b16 %v4439
    %v4795 = vunpack.c.l.b16 %v4440
    %v4796 = vunpack.c.h.b16 %v4440
    %v4797 = vunpack.c.l.b16 %v4441
    %v4798 = vunpack.c.h.b16 %v4441
    %v4799 = vunpack.c.l.b16 %v4442
    %v4800 = vunpack.c.h.b16 %v4442
    %v4801 = vunpack.c.l.b16 %v4443
    %v4802 = vunpack.c.h.b16 %v4443
    %v4803 = vunpack.c.l.b16 %v4444
    %v4804 = vunpack.c.h.b16 %v4444
    %v4805 = vunpack.c.l.b16 %v4445
    %v4806 = vunpack.c.h.b16 %v4445
    %v4807 = vunpack.c.l.b16 %v4446
    %v4808 = vunpack.c.h.b16 %v4446
    %v4809 = vunpack.c.l.b16 %v4447
    %v4810 = vunpack.c.h.b16 %v4447
    %v4811 = vunpack.c.l.b16 %v4448
    %v4812 = vunpack.c.h.b16 %v4448
    %v4813 = vunpack.c.l.b16 %v4449
    %v4814 = vunpack.c.h.b16 %v4449
    %v4815 = vunpack.c.l.b16 %v4450
    %v4816 = vunpack.c.h.b16 %v4450
    %v4817 = vunpack.c.l.b16 %v4451
    %v4818 = vunpack.c.h.b16 %v4451
    %v4819 = vunpack.c.l.b16 %v4452
    %v4820 = vunpack.c.h.b16 %v4452
    %v4821 = vunpack.c.l.b16 %v4453
    %v4822 = vunpack.c.h.b16 %v4453
    %v4823 = vunpack.c.l.b16 %v4454
    %v4824 = vunpack.c.h.b16 %v4454
    %v4825 = vunpack.c.l.b16 %v4455
    %v4826 = vunpack.c.h.b16 %v4455
    %v4827 = vunpack.c.l.b16 %v4456
    %v4828 = vunpack.c.h.b16 %v4456
    %v4829 = vunpack.c.l.b16 %v4457
    %v4830 = vunpack.c.h.b16 %v4457
    %v4831 = vunpack.c.l.b16 %v4458
    %v4832 = vunpack.c.h.b16 %v4458
    %v4833 = vunpack.c.l.b16 %v4459
    %v4834 = vunpack.c.h.b16 %v4459
    %v4835 = vunpack.c.l.b16 %v4460
    %v4836 = vunpack.c.h.b16 %v4460
    %v4837 = vunpack.c.l.b16 %v4461
    %v4838 = vunpack.c.h.b16 %v4461
    %v4839 = vunpack.c.l.b16 %v4462
    %v4840 = vunpack.c.h.b16 %v4462
    %v4841 = vpack.c.b16 %v4779, %v4777
    %v4842 = vpack.c.b16 %v4780, %v4778
    %v4843 = vpack.c.b16 %v4783, %v4781
    %v4844 = vpack.c.b16 %v4784, %v4782
    %v4845 = vpack.c.b16 %v4787, %v4785
    %v4846 = vpack.c.b16 %v4788, %v4786
    %v4847 = vpack.c.b16 %v4791, %v4789
    %v4848 = vpack.c.b16 %v4792, %v4790
    %v4849 = vpack.c.b16 %v4795, %v4793
    %v4850 = vpack.c.b16 %v4796, %v4794
    %v4851 = vpack.c.b16 %v4799, %v4797
    %v4852 = vpack.c.b16 %v4800, %v4798
    %v4853 = vpack.c.b16 %v4803, %v4801
    %v4854 = vpack.c.b16 %v4804, %v4802
    %v4855 = vpack.c.b16 %v4807, %v4805
    %v4856 = vpack.c.b16 %v4808, %v4806
    %v4857 = vpack.c.b16 %v4811, %v4809
    %v4858 = vpack.c.b16 %v4812, %v4810
    %v4859 = vpack.c.b16 %v4815, %v4813
    %v4860 = vpack.c.b16 %v4816, %v4814
    %v4861 = vpack.c.b16 %v4819, %v4817
    %v4862 = vpack.c.b16 %v4820, %v4818
    %v4863 = vpack.c.b16 %v4823, %v4821
    %v4864 = vpack.c.b16 %v4824, %v4822
    %v4865 = vpack.c.b16 %v4827, %v4825
    %v4866 = vpack.c.b16 %v4828, %v4826
    %v4867 = vpack.c.b16 %v4831, %v4829
    %v4868 = vpack.c.b16 %v4832, %v4830
    %v4869 = vpack.c.b16 %v4835, %v4833
    %v4870 = vpack.c.b16 %v4836, %v4834
    %v4871 = vpack.c.b16 %v4839, %v4837
    %v4872 = vpack.c.b16 %v4840, %v4838
    %4905 = vmatprep.subr.bf16.mxu0 %v4842
    %4906 = vmatpush1.bf16.msra.mxu0 %v4841
    %4907 = vmatprep.subr.bf16.mxu0 %v4844
    %4908 = vmatpush1.bf16.msra.mxu0 %v4843
    %4909 = vmatprep.subr.bf16.mxu0 %v4846
    %4910 = vmatpush1.bf16.msra.mxu0 %v4845
    %4911 = vmatprep.subr.bf16.mxu0 %v4848
    %4912 = vmatpush1.bf16.msra.mxu0 %v4847
    %4913 = vmatprep.subr.bf16.mxu0 %v4850
    %4914 = vmatpush1.bf16.msra.mxu0 %v4849
    %4915 = vmatprep.subr.bf16.mxu0 %v4852
    %4916 = vmatpush1.bf16.msra.mxu0 %v4851
    %4917 = vmatprep.subr.bf16.mxu0 %v4854
    %4918 = vmatpush1.bf16.msra.mxu0 %v4853
    %4919 = vmatprep.subr.bf16.mxu0 %v4856
    %4920 = vmatpush1.bf16.msra.mxu0 %v4855
    %4921 = vmatprep.subr.bf16.mxu0 %v4858
    %4922 = vmatpush1.bf16.msra.mxu0 %v4857
    %4923 = vmatprep.subr.bf16.mxu0 %v4860
    %4924 = vmatpush1.bf16.msra.mxu0 %v4859
    %4925 = vmatprep.subr.bf16.mxu0 %v4862
    %4926 = vmatpush1.bf16.msra.mxu0 %v4861
    %4927 = vmatprep.subr.bf16.mxu0 %v4864
    %4928 = vmatpush1.bf16.msra.mxu0 %v4863
    %4929 = vmatprep.subr.bf16.mxu0 %v4866
    %4930 = vmatpush1.bf16.msra.mxu0 %v4865
    %4931 = vmatprep.subr.bf16.mxu0 %v4868
    %4932 = vmatpush1.bf16.msra.mxu0 %v4867
    %4933 = vmatprep.subr.bf16.mxu0 %v4870
    %4934 = vmatpush1.bf16.msra.mxu0 %v4869
    %4935 = vmatprep.subr.bf16.mxu0 %v4872
    %4936 = vmatpush1.bf16.msra.mxu0 %v4871
    %4937 = vmatprep.mubr.bf16.mxu0 %v4430
    %4938 = vmatmul.mubr.bf16.gmra.mrb[0].mxu0 %v4429
    %v4939 = vpop.f32.mrb[0].mxu0
    %v4940 = vadd.f32 %v4739, %v4939
    %v4941 = vpop.f32.mrb[0].mxu0
    %v4942 = vadd.f32 %v4741, %v4941
    %v4943 = vpop.f32.mrb[0].mxu0
    %v4944 = vpop.f32.mrb[0].mxu0
    %4945 = vdwg.mxu0
    %s4946 = scalar_lea.vmem [#allocation4], 272
    %v4947 = vld [vmem:[%s4946] sm:$0xf]
    %v4949 = vsel %vm2698, %v4947, 0
    %4951 = vmatprep.subr.bf16.mxu0 %v4382
    %4952 = vmatpush1.bf16.msra.mxu0 %v4381
    %4953 = vmatprep.subr.bf16.mxu0 0
    %4954 = vmatpush1.bf16.msra.mxu0 0
    %4955 = vmatprep.subr.bf16.mxu0 0
    %4956 = vmatpush1.bf16.msra.mxu0 0
    %4957 = vmatprep.subr.bf16.mxu0 0
    %4958 = vmatpush1.bf16.msra.mxu0 0
    %4959 = vmatprep.subr.bf16.mxu0 0
    %4960 = vmatpush1.bf16.msra.mxu0 0
    %4961 = vmatprep.subr.bf16.mxu0 0
    %4962 = vmatpush1.bf16.msra.mxu0 0
    %4963 = vmatprep.subr.bf16.mxu0 0
    %4964 = vmatpush1.bf16.msra.mxu0 0
    %4965 = vmatprep.subr.bf16.mxu0 0
    %4966 = vmatpush1.bf16.msra.mxu0 0
    %4967 = vmatprep.subr.bf16.mxu0 0
    %4968 = vmatpush1.bf16.msra.mxu0 0
    %4969 = vmatprep.subr.bf16.mxu0 0
    %4970 = vmatpush1.bf16.msra.mxu0 0
    %4971 = vmatprep.subr.bf16.mxu0 0
    %4972 = vmatpush1.bf16.msra.mxu0 0
    %4973 = vmatprep.subr.bf16.mxu0 0
    %4974 = vmatpush1.bf16.msra.mxu0 0
    %4975 = vmatprep.subr.bf16.mxu0 0
    %4976 = vmatpush1.bf16.msra.mxu0 0
    %4977 = vmatprep.subr.bf16.mxu0 0
    %4978 = vmatpush1.bf16.msra.mxu0 0
    %4979 = vmatprep.subr.bf16.mxu0 0
    %4980 = vmatpush1.bf16.msra.mxu0 0
    %4981 = vmatprep.subr.bf16.mxu0 0
    %4982 = vmatpush1.bf16.msra.mxu0 0
    %4983 = vmatprep.mubr.bf16.mxu0 0
    %4984 = vmatmul.mubr.bf16.gmra.mrb[0].mxu0 %v4949
    %v4985 = vpop.f32.mrb[0].mxu0
    %v4986 = vadd.f32 0.0, %v4985
    %v4987 = vpop.f32.mrb[0].mxu0
    %v4988 = vadd.f32 0.0, %v4987
    %v4989 = vpop.f32.mrb[0].mxu0
    %v4990 = vpop.f32.mrb[0].mxu0
    %4991 = vdwg.mxu0
    %v4992 = vpack.c.bf16 %v4986, %v4986
    %v4993 = vpack.c.bf16 %v4988, %v4988
    %s4994 = scalar_lea.vmem [#allocation15], 512
    %v4995 = vld [vmem:[%s4994] sm:$0xff]
    %v4996 = vld [vmem:[%s4994 + $0x8] sm:$0xff]
    %v4997 = vld [vmem:[%s4994 + $0x10] sm:$0xff]
    %v4998 = vld [vmem:[%s4994 + $0x18] sm:$0xff]
    %v4999 = vld [vmem:[%s4994 + $0x20] sm:$0xff]
    %v5000 = vld [vmem:[%s4994 + $0x28] sm:$0xff]
    %v5001 = vld [vmem:[%s4994 + $0x30] sm:$0xff]
    %v5002 = vld [vmem:[%s4994 + $0x38] sm:$0xff]
    %v5003 = vld [vmem:[%s4994 + $0x40] sm:$0xff]
    %v5004 = vld [vmem:[%s4994 + $0x48] sm:$0xff]
    %v5005 = vld [vmem:[%s4994 + $0x50] sm:$0xff]
    %v5006 = vld [vmem:[%s4994 + $0x58] sm:$0xff]
    %v5007 = vld [vmem:[%s4994 + $0x60] sm:$0xff]
    %v5008 = vld [vmem:[%s4994 + $0x68] sm:$0xff]
    %v5009 = vld [vmem:[%s4994 + $0x70] sm:$0xff]
    %v5010 = vld [vmem:[%s4994 + $0x78] sm:$0xff]
    %v5011 = vld [vmem:[%s4994 + $0x80] sm:$0xff]
    %v5012 = vld [vmem:[%s4994 + $0x88] sm:$0xff]
    %v5013 = vld [vmem:[%s4994 + $0x90] sm:$0xff]
    %v5014 = vld [vmem:[%s4994 + $0x98] sm:$0xff]
    %v5015 = vld [vmem:[%s4994 + $0xa0] sm:$0xff]
    %v5016 = vld [vmem:[%s4994 + $0xa8] sm:$0xff]
    %v5017 = vld [vmem:[%s4994 + $0xb0] sm:$0xff]
    %v5018 = vld [vmem:[%s4994 + $0xb8] sm:$0xff]
    %v5019 = vld [vmem:[%s4994 + $0xc0] sm:$0xff]
    %v5020 = vld [vmem:[%s4994 + $0xc8] sm:$0xff]
    %v5021 = vld [vmem:[%s4994 + $0xd0] sm:$0xff]
    %v5022 = vld [vmem:[%s4994 + $0xd8] sm:$0xff]
    %v5023 = vld [vmem:[%s4994 + $0xe0] sm:$0xff]
    %v5024 = vld [vmem:[%s4994 + $0xe8] sm:$0xff]
    %v5025 = vld [vmem:[%s4994 + $0xf0] sm:$0xff]
    %v5026 = vld [vmem:[%s4994 + $0xf8] sm:$0xff]
    %v5059 = vunpack.c.l.b16 %v4995
    %v5060 = vunpack.c.h.b16 %v4995
    %v5061 = vunpack.c.l.b16 %v4996
    %v5062 = vunpack.c.h.b16 %v4996
    %v5063 = vunpack.c.l.b16 %v4997
    %v5064 = vunpack.c.h.b16 %v4997
    %v5065 = vunpack.c.l.b16 %v4998
    %v5066 = vunpack.c.h.b16 %v4998
    %v5067 = vunpack.c.l.b16 %v4999
    %v5068 = vunpack.c.h.b16 %v4999
    %v5069 = vunpack.c.l.b16 %v5000
    %v5070 = vunpack.c.h.b16 %v5000
    %v5071 = vunpack.c.l.b16 %v5001
    %v5072 = vunpack.c.h.b16 %v5001
    %v5073 = vunpack.c.l.b16 %v5002
    %v5074 = vunpack.c.h.b16 %v5002
    %v5075 = vunpack.c.l.b16 %v5003
    %v5076 = vunpack.c.h.b16 %v5003
    %v5077 = vunpack.c.l.b16 %v5004
    %v5078 = vunpack.c.h.b16 %v5004
    %v5079 = vunpack.c.l.b16 %v5005
    %v5080 = vunpack.c.h.b16 %v5005
    %v5081 = vunpack.c.l.b16 %v5006
    %v5082 = vunpack.c.h.b16 %v5006
    %v5083 = vunpack.c.l.b16 %v5007
    %v5084 = vunpack.c.h.b16 %v5007
    %v5085 = vunpack.c.l.b16 %v5008
    %v5086 = vunpack.c.h.b16 %v5008
    %v5087 = vunpack.c.l.b16 %v5009
    %v5088 = vunpack.c.h.b16 %v5009
    %v5089 = vunpack.c.l.b16 %v5010
    %v5090 = vunpack.c.h.b16 %v5010
    %v5091 = vunpack.c.l.b16 %v5011
    %v5092 = vunpack.c.h.b16 %v5011
    %v5093 = vunpack.c.l.b16 %v5012
    %v5094 = vunpack.c.h.b16 %v5012
    %v5095 = vunpack.c.l.b16 %v5013
    %v5096 = vunpack.c.h.b16 %v5013
    %v5097 = vunpack.c.l.b16 %v5014
    %v5098 = vunpack.c.h.b16 %v5014
    %v5099 = vunpack.c.l.b16 %v5015
    %v5100 = vunpack.c.h.b16 %v5015
    %v5101 = vunpack.c.l.b16 %v5016
    %v5102 = vunpack.c.h.b16 %v5016
    %v5103 = vunpack.c.l.b16 %v5017
    %v5104 = vunpack.c.h.b16 %v5017
    %v5105 = vunpack.c.l.b16 %v5018
    %v5106 = vunpack.c.h.b16 %v5018
    %v5107 = vunpack.c.l.b16 %v5019
    %v5108 = vunpack.c.h.b16 %v5019
    %v5109 = vunpack.c.l.b16 %v5020
    %v5110 = vunpack.c.h.b16 %v5020
    %v5111 = vunpack.c.l.b16 %v5021
    %v5112 = vunpack.c.h.b16 %v5021
    %v5113 = vunpack.c.l.b16 %v5022
    %v5114 = vunpack.c.h.b16 %v5022
    %v5115 = vunpack.c.l.b16 %v5023
    %v5116 = vunpack.c.h.b16 %v5023
    %v5117 = vunpack.c.l.b16 %v5024
    %v5118 = vunpack.c.h.b16 %v5024
    %v5119 = vunpack.c.l.b16 %v5025
    %v5120 = vunpack.c.h.b16 %v5025
    %v5121 = vunpack.c.l.b16 %v5026
    %v5122 = vunpack.c.h.b16 %v5026
    %v5123 = vpack.c.b16 %v5061, %v5059
    %v5124 = vpack.c.b16 %v5062, %v5060
    %v5125 = vpack.c.b16 %v5065, %v5063
    %v5126 = vpack.c.b16 %v5066, %v5064
    %v5127 = vpack.c.b16 %v5069, %v5067
    %v5128 = vpack.c.b16 %v5070, %v5068
    %v5129 = vpack.c.b16 %v5073, %v5071
    %v5130 = vpack.c.b16 %v5074, %v5072
    %v5131 = vpack.c.b16 %v5077, %v5075
    %v5132 = vpack.c.b16 %v5078, %v5076
    %v5133 = vpack.c.b16 %v5081, %v5079
    %v5134 = vpack.c.b16 %v5082, %v5080
    %v5135 = vpack.c.b16 %v5085, %v5083
    %v5136 = vpack.c.b16 %v5086, %v5084
    %v5137 = vpack.c.b16 %v5089, %v5087
    %v5138 = vpack.c.b16 %v5090, %v5088
    %v5139 = vpack.c.b16 %v5093, %v5091
    %v5140 = vpack.c.b16 %v5094, %v5092
    %v5141 = vpack.c.b16 %v5097, %v5095
    %v5142 = vpack.c.b16 %v5098, %v5096
    %v5143 = vpack.c.b16 %v5101, %v5099
    %v5144 = vpack.c.b16 %v5102, %v5100
    %v5145 = vpack.c.b16 %v5105, %v5103
    %v5146 = vpack.c.b16 %v5106, %v5104
    %v5147 = vpack.c.b16 %v5109, %v5107
    %v5148 = vpack.c.b16 %v5110, %v5108
    %v5149 = vpack.c.b16 %v5113, %v5111
    %v5150 = vpack.c.b16 %v5114, %v5112
    %v5151 = vpack.c.b16 %v5117, %v5115
    %v5152 = vpack.c.b16 %v5118, %v5116
    %v5153 = vpack.c.b16 %v5121, %v5119
    %v5154 = vpack.c.b16 %v5122, %v5120
    %5187 = vmatprep.subr.bf16.mxu0 %v5124
    %5188 = vmatpush1.bf16.msra.mxu0 %v5123
    %5189 = vmatprep.subr.bf16.mxu0 %v5126
    %5190 = vmatpush1.bf16.msra.mxu0 %v5125
    %5191 = vmatprep.subr.bf16.mxu0 %v5128
    %5192 = vmatpush1.bf16.msra.mxu0 %v5127
    %5193 = vmatprep.subr.bf16.mxu0 %v5130
    %5194 = vmatpush1.bf16.msra.mxu0 %v5129
    %5195 = vmatprep.subr.bf16.mxu0 %v5132
    %5196 = vmatpush1.bf16.msra.mxu0 %v5131
    %5197 = vmatprep.subr.bf16.mxu0 %v5134
    %5198 = vmatpush1.bf16.msra.mxu0 %v5133
    %5199 = vmatprep.subr.bf16.mxu0 %v5136
    %5200 = vmatpush1.bf16.msra.mxu0 %v5135
    %5201 = vmatprep.subr.bf16.mxu0 %v5138
    %5202 = vmatpush1.bf16.msra.mxu0 %v5137
    %5203 = vmatprep.subr.bf16.mxu0 %v5140
    %5204 = vmatpush1.bf16.msra.mxu0 %v5139
    %5205 = vmatprep.subr.bf16.mxu0 %v5142
    %5206 = vmatpush1.bf16.msra.mxu0 %v5141
    %5207 = vmatprep.subr.bf16.mxu0 %v5144
    %5208 = vmatpush1.bf16.msra.mxu0 %v5143
    %5209 = vmatprep.subr.bf16.mxu0 %v5146
    %5210 = vmatpush1.bf16.msra.mxu0 %v5145
    %5211 = vmatprep.subr.bf16.mxu0 %v5148
    %5212 = vmatpush1.bf16.msra.mxu0 %v5147
    %5213 = vmatprep.subr.bf16.mxu0 %v5150
    %5214 = vmatpush1.bf16.msra.mxu0 %v5149
    %5215 = vmatprep.subr.bf16.mxu0 %v5152
    %5216 = vmatpush1.bf16.msra.mxu0 %v5151
    %5217 = vmatprep.subr.bf16.mxu0 %v5154
    %5218 = vmatpush1.bf16.msra.mxu0 %v5153
    %5219 = vmatprep.mubr.bf16.mxu0 %v4993
    %5220 = vmatmul.mubr.bf16.gmra.mrb[0].mxu0 %v4992
    %v5221 = vpop.f32.mrb[0].mxu0
    %v5222 = vadd.f32 0.0, %v5221
    %v5223 = vpop.f32.mrb[0].mxu0
    %v5224 = vadd.f32 0.0, %v5223
    %v5225 = vpop.f32.mrb[0].mxu0
    %v5226 = vpop.f32.mrb[0].mxu0
    %5227 = vdwg.mxu0
    %v5228 = vadd.f32 %v4940, %v5222
    %v5229 = vadd.f32 %v4942, %v5224
    %s5230 = scalar_lea.vmem [#allocation6], 5
    %v5231 = vld [vmem:[%s5230] ss:$8 sm:$0x3]
    %v5233 = vlaneseq
    %v5234 = vshrl.u32 %v5233, 7
    %v5235 = vsub.s32 0, %v5234
    %v5236 = vrot.slane %v5231, %v5235
    %v5237 = vlaneseq
    %v5238 = vshrl.u32 %v5237, 7
    %v5239 = vsub.s32 1, %v5238
    %v5240 = vrot.slane %v5231, %v5239
    %v5243 = vadd.f32 %v5228, %v5236
    %v5244 = vadd.f32 %v5229, %v5240
    %v5245 = vmax.f32 %v5243, 0.0
    %v5246 = vmax.f32 %v5244, 0.0
    %v5247 = vpack.c.bf16 %v5245, %v5245
    %v5248 = vpack.c.bf16 %v5246, %v5246
    %s5249 = scalar_lea.vmem [#allocation4], 288
    %v5250 = vld [vmem:[%s5249] sm:$0xf]
    %vm5251 = vcmask 64512
    %v5253 = vsel %vm5251, %v5250, 0
    %vm5255 = vcmask 1043456
    %v5257 = vsel %vm5255, %v5247, 0
    %v5260 = vsel %vm5255, %v5248, 0
    %5262 = vmatprep.subr.bf16.mxu0 %v5260
    %5263 = vmatpush1.bf16.msra.mxu0 %v5257
    %5264 = vmatprep.subr.bf16.mxu0 0
    %5265 = vmatpush1.bf16.msra.mxu0 0
    %5266 = vmatprep.subr.bf16.mxu0 0
    %5267 = vmatpush1.bf16.msra.mxu0 0
    %5268 = vmatprep.subr.bf16.mxu0 0
    %5269 = vmatpush1.bf16.msra.mxu0 0
    %5270 = vmatprep.subr.bf16.mxu0 0
    %5271 = vmatpush1.bf16.msra.mxu0 0
    %5272 = vmatprep.subr.bf16.mxu0 0
    %5273 = vmatpush1.bf16.msra.mxu0 0
    %5274 = vmatprep.subr.bf16.mxu0 0
    %5275 = vmatpush1.bf16.msra.mxu0 0
    %5276 = vmatprep.subr.bf16.mxu0 0
    %5277 = vmatpush1.bf16.msra.mxu0 0
    %5278 = vmatprep.subr.bf16.mxu0 0
    %5279 = vmatpush1.bf16.msra.mxu0 0
    %5280 = vmatprep.subr.bf16.mxu0 0
    %5281 = vmatpush1.bf16.msra.mxu0 0
    %5282 = vmatprep.subr.bf16.mxu0 0
    %5283 = vmatpush1.bf16.msra.mxu0 0
    %5284 = vmatprep.subr.bf16.mxu0 0
    %5285 = vmatpush1.bf16.msra.mxu0 0
    %5286 = vmatprep.subr.bf16.mxu0 0
    %5287 = vmatpush1.bf16.msra.mxu0 0
    %5288 = vmatprep.subr.bf16.mxu0 0
    %5289 = vmatpush1.bf16.msra.mxu0 0
    %5290 = vmatprep.subr.bf16.mxu0 0
    %5291 = vmatpush1.bf16.msra.mxu0 0
    %5292 = vmatprep.subr.bf16.mxu0 0
    %5293 = vmatpush1.bf16.msra.mxu0 0
    %5294 = vmatprep.mubr.bf16.mxu0 0
    %5295 = vmatmul.mubr.bf16.gmra.mrb[0].mxu0 %v5253
    %v5296 = vpop.f32.mrb[0].mxu0
    %v5297 = vadd.f32 0.0, %v5296
    %v5298 = vpop.f32.mrb[0].mxu0
    %v5299 = vadd.f32 0.0, %v5298
    %v5300 = vpop.f32.mrb[0].mxu0
    %v5301 = vpop.f32.mrb[0].mxu0
    %5302 = vdwg.mxu0
    %v5303 = vpack.c.bf16 %v5297, %v5297
    %v5304 = vpack.c.bf16 %v5299, %v5299
    %v5305 = vld [vmem:[#allocation17] sm:$0xff]
    %v5306 = vld [vmem:[#allocation17 + $0x8] sm:$0xff]
    %v5307 = vld [vmem:[#allocation17 + $0x10] sm:$0xff]
    %v5308 = vld [vmem:[#allocation17 + $0x18] sm:$0xff]
    %v5309 = vld [vmem:[#allocation17 + $0x20] sm:$0xff]
    %v5310 = vld [vmem:[#allocation17 + $0x28] sm:$0xff]
    %v5311 = vld [vmem:[#allocation17 + $0x30] sm:$0xff]
    %v5312 = vld [vmem:[#allocation17 + $0x38] sm:$0xff]
    %v5313 = vld [vmem:[#allocation17 + $0x40] sm:$0xff]
    %v5314 = vld [vmem:[#allocation17 + $0x48] sm:$0xff]
    %v5315 = vld [vmem:[#allocation17 + $0x50] sm:$0xff]
    %v5316 = vld [vmem:[#allocation17 + $0x58] sm:$0xff]
    %v5317 = vld [vmem:[#allocation17 + $0x60] sm:$0xff]
    %v5318 = vld [vmem:[#allocation17 + $0x68] sm:$0xff]
    %v5319 = vld [vmem:[#allocation17 + $0x70] sm:$0xff]
    %v5320 = vld [vmem:[#allocation17 + $0x78] sm:$0xff]
    %v5321 = vld [vmem:[#allocation17 + $0x80] sm:$0xff]
    %v5322 = vld [vmem:[#allocation17 + $0x88] sm:$0xff]
    %v5323 = vld [vmem:[#allocation17 + $0x90] sm:$0xff]
    %v5324 = vld [vmem:[#allocation17 + $0x98] sm:$0xff]
    %v5325 = vld [vmem:[#allocation17 + $0xa0] sm:$0xff]
    %v5326 = vld [vmem:[#allocation17 + $0xa8] sm:$0xff]
    %v5327 = vld [vmem:[#allocation17 + $0xb0] sm:$0xff]
    %v5328 = vld [vmem:[#allocation17 + $0xb8] sm:$0xff]
    %v5329 = vld [vmem:[#allocation17 + $0xc0] sm:$0xff]
    %v5330 = vld [vmem:[#allocation17 + $0xc8] sm:$0xff]
    %v5331 = vld [vmem:[#allocation17 + $0xd0] sm:$0xff]
    %v5332 = vld [vmem:[#allocation17 + $0xd8] sm:$0xff]
    %v5333 = vld [vmem:[#allocation17 + $0xe0] sm:$0xff]
    %v5334 = vld [vmem:[#allocation17 + $0xe8] sm:$0xff]
    %v5335 = vld [vmem:[#allocation17 + $0xf0] sm:$0xff]
    %v5336 = vld [vmem:[#allocation17 + $0xf8] sm:$0xff]
    %s5337 = scalar_lea.vmem [#allocation17], 256
    %v5338 = vld [vmem:[%s5337] sm:$0xff]
    %v5339 = vld [vmem:[%s5337 + $0x8] sm:$0xff]
    %v5340 = vld [vmem:[%s5337 + $0x10] sm:$0xff]
    %v5341 = vld [vmem:[%s5337 + $0x18] sm:$0xff]
    %v5342 = vld [vmem:[%s5337 + $0x20] sm:$0xff]
    %v5343 = vld [vmem:[%s5337 + $0x28] sm:$0xff]
    %v5344 = vld [vmem:[%s5337 + $0x30] sm:$0xff]
    %v5345 = vld [vmem:[%s5337 + $0x38] sm:$0xff]
    %v5346 = vld [vmem:[%s5337 + $0x40] sm:$0xff]
    %v5347 = vld [vmem:[%s5337 + $0x48] sm:$0xff]
    %v5348 = vld [vmem:[%s5337 + $0x50] sm:$0xff]
    %v5349 = vld [vmem:[%s5337 + $0x58] sm:$0xff]
    %v5350 = vld [vmem:[%s5337 + $0x60] sm:$0xff]
    %v5351 = vld [vmem:[%s5337 + $0x68] sm:$0xff]
    %v5352 = vld [vmem:[%s5337 + $0x70] sm:$0xff]
    %v5353 = vld [vmem:[%s5337 + $0x78] sm:$0xff]
    %v5354 = vld [vmem:[%s5337 + $0x80] sm:$0xff]
    %v5355 = vld [vmem:[%s5337 + $0x88] sm:$0xff]
    %v5356 = vld [vmem:[%s5337 + $0x90] sm:$0xff]
    %v5357 = vld [vmem:[%s5337 + $0x98] sm:$0xff]
    %v5358 = vld [vmem:[%s5337 + $0xa0] sm:$0xff]
    %v5359 = vld [vmem:[%s5337 + $0xa8] sm:$0xff]
    %v5360 = vld [vmem:[%s5337 + $0xb0] sm:$0xff]
    %v5361 = vld [vmem:[%s5337 + $0xb8] sm:$0xff]
    %v5362 = vld [vmem:[%s5337 + $0xc0] sm:$0xff]
    %v5363 = vld [vmem:[%s5337 + $0xc8] sm:$0xff]
    %v5364 = vld [vmem:[%s5337 + $0xd0] sm:$0xff]
    %v5365 = vld [vmem:[%s5337 + $0xd8] sm:$0xff]
    %v5366 = vld [vmem:[%s5337 + $0xe0] sm:$0xff]
    %v5367 = vld [vmem:[%s5337 + $0xe8] sm:$0xff]
    %v5368 = vld [vmem:[%s5337 + $0xf0] sm:$0xff]
    %v5369 = vld [vmem:[%s5337 + $0xf8] sm:$0xff]
    %v5402 = vunpack.c.l.b16 %v5338
    %v5403 = vunpack.c.h.b16 %v5338
    %v5404 = vunpack.c.l.b16 %v5339
    %v5405 = vunpack.c.h.b16 %v5339
    %v5406 = vunpack.c.l.b16 %v5340
    %v5407 = vunpack.c.h.b16 %v5340
    %v5408 = vunpack.c.l.b16 %v5341
    %v5409 = vunpack.c.h.b16 %v5341
    %v5410 = vunpack.c.l.b16 %v5342
    %v5411 = vunpack.c.h.b16 %v5342
    %v5412 = vunpack.c.l.b16 %v5343
    %v5413 = vunpack.c.h.b16 %v5343
    %v5414 = vunpack.c.l.b16 %v5344
    %v5415 = vunpack.c.h.b16 %v5344
    %v5416 = vunpack.c.l.b16 %v5345
    %v5417 = vunpack.c.h.b16 %v5345
    %v5418 = vunpack.c.l.b16 %v5346
    %v5419 = vunpack.c.h.b16 %v5346
    %v5420 = vunpack.c.l.b16 %v5347
    %v5421 = vunpack.c.h.b16 %v5347
    %v5422 = vunpack.c.l.b16 %v5348
    %v5423 = vunpack.c.h.b16 %v5348
    %v5424 = vunpack.c.l.b16 %v5349
    %v5425 = vunpack.c.h.b16 %v5349
    %v5426 = vunpack.c.l.b16 %v5350
    %v5427 = vunpack.c.h.b16 %v5350
    %v5428 = vunpack.c.l.b16 %v5351
    %v5429 = vunpack.c.h.b16 %v5351
    %v5430 = vunpack.c.l.b16 %v5352
    %v5431 = vunpack.c.h.b16 %v5352
    %v5432 = vunpack.c.l.b16 %v5353
    %v5433 = vunpack.c.h.b16 %v5353
    %v5434 = vunpack.c.l.b16 %v5354
    %v5435 = vunpack.c.h.b16 %v5354
    %v5436 = vunpack.c.l.b16 %v5355
    %v5437 = vunpack.c.h.b16 %v5355
    %v5438 = vunpack.c.l.b16 %v5356
    %v5439 = vunpack.c.h.b16 %v5356
    %v5440 = vunpack.c.l.b16 %v5357
    %v5441 = vunpack.c.h.b16 %v5357
    %v5442 = vunpack.c.l.b16 %v5358
    %v5443 = vunpack.c.h.b16 %v5358
    %v5444 = vunpack.c.l.b16 %v5359
    %v5445 = vunpack.c.h.b16 %v5359
    %v5446 = vunpack.c.l.b16 %v5360
    %v5447 = vunpack.c.h.b16 %v5360
    %v5448 = vunpack.c.l.b16 %v5361
    %v5449 = vunpack.c.h.b16 %v5361
    %v5450 = vunpack.c.l.b16 %v5362
    %v5451 = vunpack.c.h.b16 %v5362
    %v5452 = vunpack.c.l.b16 %v5363
    %v5453 = vunpack.c.h.b16 %v5363
    %v5454 = vunpack.c.l.b16 %v5364
    %v5455 = vunpack.c.h.b16 %v5364
    %v5456 = vunpack.c.l.b16 %v5365
    %v5457 = vunpack.c.h.b16 %v5365
    %v5458 = vunpack.c.l.b16 %v5366
    %v5459 = vunpack.c.h.b16 %v5366
    %v5460 = vunpack.c.l.b16 %v5367
    %v5461 = vunpack.c.h.b16 %v5367
    %v5462 = vunpack.c.l.b16 %v5368
    %v5463 = vunpack.c.h.b16 %v5368
    %v5464 = vunpack.c.l.b16 %v5369
    %v5465 = vunpack.c.h.b16 %v5369
    %v5466 = vpack.c.b16 %v5404, %v5402
    %v5467 = vpack.c.b16 %v5405, %v5403
    %v5468 = vpack.c.b16 %v5408, %v5406
    %v5469 = vpack.c.b16 %v5409, %v5407
    %v5470 = vpack.c.b16 %v5412, %v5410
    %v5471 = vpack.c.b16 %v5413, %v5411
    %v5472 = vpack.c.b16 %v5416, %v5414
    %v5473 = vpack.c.b16 %v5417, %v5415
    %v5474 = vpack.c.b16 %v5420, %v5418
    %v5475 = vpack.c.b16 %v5421, %v5419
    %v5476 = vpack.c.b16 %v5424, %v5422
    %v5477 = vpack.c.b16 %v5425, %v5423
    %v5478 = vpack.c.b16 %v5428, %v5426
    %v5479 = vpack.c.b16 %v5429, %v5427
    %v5480 = vpack.c.b16 %v5432, %v5430
    %v5481 = vpack.c.b16 %v5433, %v5431
    %v5482 = vpack.c.b16 %v5436, %v5434
    %v5483 = vpack.c.b16 %v5437, %v5435
    %v5484 = vpack.c.b16 %v5440, %v5438
    %v5485 = vpack.c.b16 %v5441, %v5439
    %v5486 = vpack.c.b16 %v5444, %v5442
    %v5487 = vpack.c.b16 %v5445, %v5443
    %v5488 = vpack.c.b16 %v5448, %v5446
    %v5489 = vpack.c.b16 %v5449, %v5447
    %v5490 = vpack.c.b16 %v5452, %v5450
    %v5491 = vpack.c.b16 %v5453, %v5451
    %v5492 = vpack.c.b16 %v5456, %v5454
    %v5493 = vpack.c.b16 %v5457, %v5455
    %v5494 = vpack.c.b16 %v5460, %v5458
    %v5495 = vpack.c.b16 %v5461, %v5459
    %v5496 = vpack.c.b16 %v5464, %v5462
    %v5497 = vpack.c.b16 %v5465, %v5463
    %5530 = vmatprep.subr.bf16.mxu0 %v5467
    %5531 = vmatpush1.bf16.msra.mxu0 %v5466
    %5532 = vmatprep.subr.bf16.mxu0 %v5469
    %5533 = vmatpush1.bf16.msra.mxu0 %v5468
    %5534 = vmatprep.subr.bf16.mxu0 %v5471
    %5535 = vmatpush1.bf16.msra.mxu0 %v5470
    %5536 = vmatprep.subr.bf16.mxu0 %v5473
    %5537 = vmatpush1.bf16.msra.mxu0 %v5472
    %5538 = vmatprep.subr.bf16.mxu0 %v5475
    %5539 = vmatpush1.bf16.msra.mxu0 %v5474
    %5540 = vmatprep.subr.bf16.mxu0 %v5477
    %5541 = vmatpush1.bf16.msra.mxu0 %v5476
    %5542 = vmatprep.subr.bf16.mxu0 %v5479
    %5543 = vmatpush1.bf16.msra.mxu0 %v5478
    %5544 = vmatprep.subr.bf16.mxu0 %v5481
    %5545 = vmatpush1.bf16.msra.mxu0 %v5480
    %5546 = vmatprep.subr.bf16.mxu0 %v5483
    %5547 = vmatpush1.bf16.msra.mxu0 %v5482
    %5548 = vmatprep.subr.bf16.mxu0 %v5485
    %5549 = vmatpush1.bf16.msra.mxu0 %v5484
    %5550 = vmatprep.subr.bf16.mxu0 %v5487
    %5551 = vmatpush1.bf16.msra.mxu0 %v5486
    %5552 = vmatprep.subr.bf16.mxu0 %v5489
    %5553 = vmatpush1.bf16.msra.mxu0 %v5488
    %5554 = vmatprep.subr.bf16.mxu0 %v5491
    %5555 = vmatpush1.bf16.msra.mxu0 %v5490
    %5556 = vmatprep.subr.bf16.mxu0 %v5493
    %5557 = vmatpush1.bf16.msra.mxu0 %v5492
    %5558 = vmatprep.subr.bf16.mxu0 %v5495
    %5559 = vmatpush1.bf16.msra.mxu0 %v5494
    %5560 = vmatprep.subr.bf16.mxu0 %v5497
    %5561 = vmatpush1.bf16.msra.mxu0 %v5496
    %5562 = vmatprep.mubr.bf16.mxu0 %v5248
    %5563 = vmatmul.mubr.bf16.gmra.mrb[0].mxu0 %v5247
    %v5564 = vpop.f32.mrb[0].mxu0
    %v5565 = vadd.f32 0.0, %v5564
    %v5566 = vpop.f32.mrb[0].mxu0
    %v5567 = vadd.f32 0.0, %v5566
    %v5568 = vpop.f32.mrb[0].mxu0
    %v5569 = vpop.f32.mrb[0].mxu0
    %5570 = vdwg.mxu0
    %v5603 = vunpack.c.l.b16 %v5305
    %v5604 = vunpack.c.h.b16 %v5305
    %v5605 = vunpack.c.l.b16 %v5306
    %v5606 = vunpack.c.h.b16 %v5306
    %v5607 = vunpack.c.l.b16 %v5307
    %v5608 = vunpack.c.h.b16 %v5307
    %v5609 = vunpack.c.l.b16 %v5308
    %v5610 = vunpack.c.h.b16 %v5308
    %v5611 = vunpack.c.l.b16 %v5309
    %v5612 = vunpack.c.h.b16 %v5309
    %v5613 = vunpack.c.l.b16 %v5310
    %v5614 = vunpack.c.h.b16 %v5310
    %v5615 = vunpack.c.l.b16 %v5311
    %v5616 = vunpack.c.h.b16 %v5311
    %v5617 = vunpack.c.l.b16 %v5312
    %v5618 = vunpack.c.h.b16 %v5312
    %v5619 = vunpack.c.l.b16 %v5313
    %v5620 = vunpack.c.h.b16 %v5313
    %v5621 = vunpack.c.l.b16 %v5314
    %v5622 = vunpack.c.h.b16 %v5314
    %v5623 = vunpack.c.l.b16 %v5315
    %v5624 = vunpack.c.h.b16 %v5315
    %v5625 = vunpack.c.l.b16 %v5316
    %v5626 = vunpack.c.h.b16 %v5316
    %v5627 = vunpack.c.l.b16 %v5317
    %v5628 = vunpack.c.h.b16 %v5317
    %v5629 = vunpack.c.l.b16 %v5318
    %v5630 = vunpack.c.h.b16 %v5318
    %v5631 = vunpack.c.l.b16 %v5319
    %v5632 = vunpack.c.h.b16 %v5319
    %v5633 = vunpack.c.l.b16 %v5320
    %v5634 = vunpack.c.h.b16 %v5320
    %v5635 = vunpack.c.l.b16 %v5321
    %v5636 = vunpack.c.h.b16 %v5321
    %v5637 = vunpack.c.l.b16 %v5322
    %v5638 = vunpack.c.h.b16 %v5322
    %v5639 = vunpack.c.l.b16 %v5323
    %v5640 = vunpack.c.h.b16 %v5323
    %v5641 = vunpack.c.l.b16 %v5324
    %v5642 = vunpack.c.h.b16 %v5324
    %v5643 = vunpack.c.l.b16 %v5325
    %v5644 = vunpack.c.h.b16 %v5325
    %v5645 = vunpack.c.l.b16 %v5326
    %v5646 = vunpack.c.h.b16 %v5326
    %v5647 = vunpack.c.l.b16 %v5327
    %v5648 = vunpack.c.h.b16 %v5327
    %v5649 = vunpack.c.l.b16 %v5328
    %v5650 = vunpack.c.h.b16 %v5328
    %v5651 = vunpack.c.l.b16 %v5329
    %v5652 = vunpack.c.h.b16 %v5329
    %v5653 = vunpack.c.l.b16 %v5330
    %v5654 = vunpack.c.h.b16 %v5330
    %v5655 = vunpack.c.l.b16 %v5331
    %v5656 = vunpack.c.h.b16 %v5331
    %v5657 = vunpack.c.l.b16 %v5332
    %v5658 = vunpack.c.h.b16 %v5332
    %v5659 = vunpack.c.l.b16 %v5333
    %v5660 = vunpack.c.h.b16 %v5333
    %v5661 = vunpack.c.l.b16 %v5334
    %v5662 = vunpack.c.h.b16 %v5334
    %v5663 = vunpack.c.l.b16 %v5335
    %v5664 = vunpack.c.h.b16 %v5335
    %v5665 = vunpack.c.l.b16 %v5336
    %v5666 = vunpack.c.h.b16 %v5336
    %v5667 = vpack.c.b16 %v5605, %v5603
    %v5668 = vpack.c.b16 %v5606, %v5604
    %v5669 = vpack.c.b16 %v5609, %v5607
    %v5670 = vpack.c.b16 %v5610, %v5608
    %v5671 = vpack.c.b16 %v5613, %v5611
    %v5672 = vpack.c.b16 %v5614, %v5612
    %v5673 = vpack.c.b16 %v5617, %v5615
    %v5674 = vpack.c.b16 %v5618, %v5616
    %v5675 = vpack.c.b16 %v5621, %v5619
    %v5676 = vpack.c.b16 %v5622, %v5620
    %v5677 = vpack.c.b16 %v5625, %v5623
    %v5678 = vpack.c.b16 %v5626, %v5624
    %v5679 = vpack.c.b16 %v5629, %v5627
    %v5680 = vpack.c.b16 %v5630, %v5628
    %v5681 = vpack.c.b16 %v5633, %v5631
    %v5682 = vpack.c.b16 %v5634, %v5632
    %v5683 = vpack.c.b16 %v5637, %v5635
    %v5684 = vpack.c.b16 %v5638, %v5636
    %v5685 = vpack.c.b16 %v5641, %v5639
    %v5686 = vpack.c.b16 %v5642, %v5640
    %v5687 = vpack.c.b16 %v5645, %v5643
    %v5688 = vpack.c.b16 %v5646, %v5644
    %v5689 = vpack.c.b16 %v5649, %v5647
    %v5690 = vpack.c.b16 %v5650, %v5648
    %v5691 = vpack.c.b16 %v5653, %v5651
    %v5692 = vpack.c.b16 %v5654, %v5652
    %v5693 = vpack.c.b16 %v5657, %v5655
    %v5694 = vpack.c.b16 %v5658, %v5656
    %v5695 = vpack.c.b16 %v5661, %v5659
    %v5696 = vpack.c.b16 %v5662, %v5660
    %v5697 = vpack.c.b16 %v5665, %v5663
    %v5698 = vpack.c.b16 %v5666, %v5664
    %5731 = vmatprep.subr.bf16.mxu0 %v5668
    %5732 = vmatpush1.bf16.msra.mxu0 %v5667
    %5733 = vmatprep.subr.bf16.mxu0 %v5670
    %5734 = vmatpush1.bf16.msra.mxu0 %v5669
    %5735 = vmatprep.subr.bf16.mxu0 %v5672
    %5736 = vmatpush1.bf16.msra.mxu0 %v5671
    %5737 = vmatprep.subr.bf16.mxu0 %v5674
    %5738 = vmatpush1.bf16.msra.mxu0 %v5673
    %5739 = vmatprep.subr.bf16.mxu0 %v5676
    %5740 = vmatpush1.bf16.msra.mxu0 %v5675
    %5741 = vmatprep.subr.bf16.mxu0 %v5678
    %5742 = vmatpush1.bf16.msra.mxu0 %v5677
    %5743 = vmatprep.subr.bf16.mxu0 %v5680
    %5744 = vmatpush1.bf16.msra.mxu0 %v5679
    %5745 = vmatprep.subr.bf16.mxu0 %v5682
    %5746 = vmatpush1.bf16.msra.mxu0 %v5681
    %5747 = vmatprep.subr.bf16.mxu0 %v5684
    %5748 = vmatpush1.bf16.msra.mxu0 %v5683
    %5749 = vmatprep.subr.bf16.mxu0 %v5686
    %5750 = vmatpush1.bf16.msra.mxu0 %v5685
    %5751 = vmatprep.subr.bf16.mxu0 %v5688
    %5752 = vmatpush1.bf16.msra.mxu0 %v5687
    %5753 = vmatprep.subr.bf16.mxu0 %v5690
    %5754 = vmatpush1.bf16.msra.mxu0 %v5689
    %5755 = vmatprep.subr.bf16.mxu0 %v5692
    %5756 = vmatpush1.bf16.msra.mxu0 %v5691
    %5757 = vmatprep.subr.bf16.mxu0 %v5694
    %5758 = vmatpush1.bf16.msra.mxu0 %v5693
    %5759 = vmatprep.subr.bf16.mxu0 %v5696
    %5760 = vmatpush1.bf16.msra.mxu0 %v5695
    %5761 = vmatprep.subr.bf16.mxu0 %v5698
    %5762 = vmatpush1.bf16.msra.mxu0 %v5697
    %5763 = vmatprep.mubr.bf16.mxu0 %v5304
    %5764 = vmatmul.mubr.bf16.gmra.mrb[0].mxu0 %v5303
    %v5765 = vpop.f32.mrb[0].mxu0
    %v5766 = vadd.f32 %v5565, %v5765
    %v5767 = vpop.f32.mrb[0].mxu0
    %v5768 = vadd.f32 %v5567, %v5767
    %v5769 = vpop.f32.mrb[0].mxu0
    %v5770 = vpop.f32.mrb[0].mxu0
    %5771 = vdwg.mxu0
    %s5772 = scalar_lea.vmem [#allocation4], 320
    %v5773 = vld [vmem:[%s5772] sm:$0xf]
    %v5775 = vsel %vm5251, %v5773, 0
    %5777 = vmatprep.subr.bf16.mxu0 %v5260
    %5778 = vmatpush1.bf16.msra.mxu0 %v5257
    %5779 = vmatprep.subr.bf16.mxu0 0
    %5780 = vmatpush1.bf16.msra.mxu0 0
    %5781 = vmatprep.subr.bf16.mxu0 0
    %5782 = vmatpush1.bf16.msra.mxu0 0
    %5783 = vmatprep.subr.bf16.mxu0 0
    %5784 = vmatpush1.bf16.msra.mxu0 0
    %5785 = vmatprep.subr.bf16.mxu0 0
    %5786 = vmatpush1.bf16.msra.mxu0 0
    %5787 = vmatprep.subr.bf16.mxu0 0
    %5788 = vmatpush1.bf16.msra.mxu0 0
    %5789 = vmatprep.subr.bf16.mxu0 0
    %5790 = vmatpush1.bf16.msra.mxu0 0
    %5791 = vmatprep.subr.bf16.mxu0 0
    %5792 = vmatpush1.bf16.msra.mxu0 0
    %5793 = vmatprep.subr.bf16.mxu0 0
    %5794 = vmatpush1.bf16.msra.mxu0 0
    %5795 = vmatprep.subr.bf16.mxu0 0
    %5796 = vmatpush1.bf16.msra.mxu0 0
    %5797 = vmatprep.subr.bf16.mxu0 0
    %5798 = vmatpush1.bf16.msra.mxu0 0
    %5799 = vmatprep.subr.bf16.mxu0 0
    %5800 = vmatpush1.bf16.msra.mxu0 0
    %5801 = vmatprep.subr.bf16.mxu0 0
    %5802 = vmatpush1.bf16.msra.mxu0 0
    %5803 = vmatprep.subr.bf16.mxu0 0
    %5804 = vmatpush1.bf16.msra.mxu0 0
    %5805 = vmatprep.subr.bf16.mxu0 0
    %5806 = vmatpush1.bf16.msra.mxu0 0
    %5807 = vmatprep.subr.bf16.mxu0 0
    %5808 = vmatpush1.bf16.msra.mxu0 0
    %5809 = vmatprep.mubr.bf16.mxu0 0
    %5810 = vmatmul.mubr.bf16.gmra.mrb[0].mxu0 %v5775
    %v5811 = vpop.f32.mrb[0].mxu0
    %v5812 = vadd.f32 0.0, %v5811
    %v5813 = vpop.f32.mrb[0].mxu0
    %v5814 = vadd.f32 0.0, %v5813
    %v5815 = vpop.f32.mrb[0].mxu0
    %v5816 = vpop.f32.mrb[0].mxu0
    %5817 = vdwg.mxu0
    %v5818 = vpack.c.bf16 %v5812, %v5812
    %v5819 = vpack.c.bf16 %v5814, %v5814
    %s5820 = scalar_lea.vmem [#allocation17], 512
    %v5821 = vld [vmem:[%s5820] sm:$0xff]
    %v5822 = vld [vmem:[%s5820 + $0x8] sm:$0xff]
    %v5823 = vld [vmem:[%s5820 + $0x10] sm:$0xff]
    %v5824 = vld [vmem:[%s5820 + $0x18] sm:$0xff]
    %v5825 = vld [vmem:[%s5820 + $0x20] sm:$0xff]
    %v5826 = vld [vmem:[%s5820 + $0x28] sm:$0xff]
    %v5827 = vld [vmem:[%s5820 + $0x30] sm:$0xff]
    %v5828 = vld [vmem:[%s5820 + $0x38] sm:$0xff]
    %v5829 = vld [vmem:[%s5820 + $0x40] sm:$0xff]
    %v5830 = vld [vmem:[%s5820 + $0x48] sm:$0xff]
    %v5831 = vld [vmem:[%s5820 + $0x50] sm:$0xff]
    %v5832 = vld [vmem:[%s5820 + $0x58] sm:$0xff]
    %v5833 = vld [vmem:[%s5820 + $0x60] sm:$0xff]
    %v5834 = vld [vmem:[%s5820 + $0x68] sm:$0xff]
    %v5835 = vld [vmem:[%s5820 + $0x70] sm:$0xff]
    %v5836 = vld [vmem:[%s5820 + $0x78] sm:$0xff]
    %v5837 = vld [vmem:[%s5820 + $0x80] sm:$0xff]
    %v5838 = vld [vmem:[%s5820 + $0x88] sm:$0xff]
    %v5839 = vld [vmem:[%s5820 + $0x90] sm:$0xff]
    %v5840 = vld [vmem:[%s5820 + $0x98] sm:$0xff]
    %v5841 = vld [vmem:[%s5820 + $0xa0] sm:$0xff]
    %v5842 = vld [vmem:[%s5820 + $0xa8] sm:$0xff]
    %v5843 = vld [vmem:[%s5820 + $0xb0] sm:$0xff]
    %v5844 = vld [vmem:[%s5820 + $0xb8] sm:$0xff]
    %v5845 = vld [vmem:[%s5820 + $0xc0] sm:$0xff]
    %v5846 = vld [vmem:[%s5820 + $0xc8] sm:$0xff]
    %v5847 = vld [vmem:[%s5820 + $0xd0] sm:$0xff]
    %v5848 = vld [vmem:[%s5820 + $0xd8] sm:$0xff]
    %v5849 = vld [vmem:[%s5820 + $0xe0] sm:$0xff]
    %v5850 = vld [vmem:[%s5820 + $0xe8] sm:$0xff]
    %v5851 = vld [vmem:[%s5820 + $0xf0] sm:$0xff]
    %v5852 = vld [vmem:[%s5820 + $0xf8] sm:$0xff]
    %v5885 = vunpack.c.l.b16 %v5821
    %v5886 = vunpack.c.h.b16 %v5821
    %v5887 = vunpack.c.l.b16 %v5822
    %v5888 = vunpack.c.h.b16 %v5822
    %v5889 = vunpack.c.l.b16 %v5823
    %v5890 = vunpack.c.h.b16 %v5823
    %v5891 = vunpack.c.l.b16 %v5824
    %v5892 = vunpack.c.h.b16 %v5824
    %v5893 = vunpack.c.l.b16 %v5825
    %v5894 = vunpack.c.h.b16 %v5825
    %v5895 = vunpack.c.l.b16 %v5826
    %v5896 = vunpack.c.h.b16 %v5826
    %v5897 = vunpack.c.l.b16 %v5827
    %v5898 = vunpack.c.h.b16 %v5827
    %v5899 = vunpack.c.l.b16 %v5828
    %v5900 = vunpack.c.h.b16 %v5828
    %v5901 = vunpack.c.l.b16 %v5829
    %v5902 = vunpack.c.h.b16 %v5829
    %v5903 = vunpack.c.l.b16 %v5830
    %v5904 = vunpack.c.h.b16 %v5830
    %v5905 = vunpack.c.l.b16 %v5831
    %v5906 = vunpack.c.h.b16 %v5831
    %v5907 = vunpack.c.l.b16 %v5832
    %v5908 = vunpack.c.h.b16 %v5832
    %v5909 = vunpack.c.l.b16 %v5833
    %v5910 = vunpack.c.h.b16 %v5833
    %v5911 = vunpack.c.l.b16 %v5834
    %v5912 = vunpack.c.h.b16 %v5834
    %v5913 = vunpack.c.l.b16 %v5835
    %v5914 = vunpack.c.h.b16 %v5835
    %v5915 = vunpack.c.l.b16 %v5836
    %v5916 = vunpack.c.h.b16 %v5836
    %v5917 = vunpack.c.l.b16 %v5837
    %v5918 = vunpack.c.h.b16 %v5837
    %v5919 = vunpack.c.l.b16 %v5838
    %v5920 = vunpack.c.h.b16 %v5838
    %v5921 = vunpack.c.l.b16 %v5839
    %v5922 = vunpack.c.h.b16 %v5839
    %v5923 = vunpack.c.l.b16 %v5840
    %v5924 = vunpack.c.h.b16 %v5840
    %v5925 = vunpack.c.l.b16 %v5841
    %v5926 = vunpack.c.h.b16 %v5841
    %v5927 = vunpack.c.l.b16 %v5842
    %v5928 = vunpack.c.h.b16 %v5842
    %v5929 = vunpack.c.l.b16 %v5843
    %v5930 = vunpack.c.h.b16 %v5843
    %v5931 = vunpack.c.l.b16 %v5844
    %v5932 = vunpack.c.h.b16 %v5844
    %v5933 = vunpack.c.l.b16 %v5845
    %v5934 = vunpack.c.h.b16 %v5845
    %v5935 = vunpack.c.l.b16 %v5846
    %v5936 = vunpack.c.h.b16 %v5846
    %v5937 = vunpack.c.l.b16 %v5847
    %v5938 = vunpack.c.h.b16 %v5847
    %v5939 = vunpack.c.l.b16 %v5848
    %v5940 = vunpack.c.h.b16 %v5848
    %v5941 = vunpack.c.l.b16 %v5849
    %v5942 = vunpack.c.h.b16 %v5849
    %v5943 = vunpack.c.l.b16 %v5850
    %v5944 = vunpack.c.h.b16 %v5850
    %v5945 = vunpack.c.l.b16 %v5851
    %v5946 = vunpack.c.h.b16 %v5851
    %v5947 = vunpack.c.l.b16 %v5852
    %v5948 = vunpack.c.h.b16 %v5852
    %v5949 = vpack.c.b16 %v5887, %v5885
    %v5950 = vpack.c.b16 %v5888, %v5886
    %v5951 = vpack.c.b16 %v5891, %v5889
    %v5952 = vpack.c.b16 %v5892, %v5890
    %v5953 = vpack.c.b16 %v5895, %v5893
    %v5954 = vpack.c.b16 %v5896, %v5894
    %v5955 = vpack.c.b16 %v5899, %v5897
    %v5956 = vpack.c.b16 %v5900, %v5898
    %v5957 = vpack.c.b16 %v5903, %v5901
    %v5958 = vpack.c.b16 %v5904, %v5902
    %v5959 = vpack.c.b16 %v5907, %v5905
    %v5960 = vpack.c.b16 %v5908, %v5906
    %v5961 = vpack.c.b16 %v5911, %v5909
    %v5962 = vpack.c.b16 %v5912, %v5910
    %v5963 = vpack.c.b16 %v5915, %v5913
    %v5964 = vpack.c.b16 %v5916, %v5914
    %v5965 = vpack.c.b16 %v5919, %v5917
    %v5966 = vpack.c.b16 %v5920, %v5918
    %v5967 = vpack.c.b16 %v5923, %v5921
    %v5968 = vpack.c.b16 %v5924, %v5922
    %v5969 = vpack.c.b16 %v5927, %v5925
    %v5970 = vpack.c.b16 %v5928, %v5926
    %v5971 = vpack.c.b16 %v5931, %v5929
    %v5972 = vpack.c.b16 %v5932, %v5930
    %v5973 = vpack.c.b16 %v5935, %v5933
    %v5974 = vpack.c.b16 %v5936, %v5934
    %v5975 = vpack.c.b16 %v5939, %v5937
    %v5976 = vpack.c.b16 %v5940, %v5938
    %v5977 = vpack.c.b16 %v5943, %v5941
    %v5978 = vpack.c.b16 %v5944, %v5942
    %v5979 = vpack.c.b16 %v5947, %v5945
    %v5980 = vpack.c.b16 %v5948, %v5946
    %6013 = vmatprep.subr.bf16.mxu0 %v5950
    %6014 = vmatpush1.bf16.msra.mxu0 %v5949
    %6015 = vmatprep.subr.bf16.mxu0 %v5952
    %6016 = vmatpush1.bf16.msra.mxu0 %v5951
    %6017 = vmatprep.subr.bf16.mxu0 %v5954
    %6018 = vmatpush1.bf16.msra.mxu0 %v5953
    %6019 = vmatprep.subr.bf16.mxu0 %v5956
    %6020 = vmatpush1.bf16.msra.mxu0 %v5955
    %6021 = vmatprep.subr.bf16.mxu0 %v5958
    %6022 = vmatpush1.bf16.msra.mxu0 %v5957
    %6023 = vmatprep.subr.bf16.mxu0 %v5960
    %6024 = vmatpush1.bf16.msra.mxu0 %v5959
    %6025 = vmatprep.subr.bf16.mxu0 %v5962
    %6026 = vmatpush1.bf16.msra.mxu0 %v5961
    %6027 = vmatprep.subr.bf16.mxu0 %v5964
    %6028 = vmatpush1.bf16.msra.mxu0 %v5963
    %6029 = vmatprep.subr.bf16.mxu0 %v5966
    %6030 = vmatpush1.bf16.msra.mxu0 %v5965
    %6031 = vmatprep.subr.bf16.mxu0 %v5968
    %6032 = vmatpush1.bf16.msra.mxu0 %v5967
    %6033 = vmatprep.subr.bf16.mxu0 %v5970
    %6034 = vmatpush1.bf16.msra.mxu0 %v5969
    %6035 = vmatprep.subr.bf16.mxu0 %v5972
    %6036 = vmatpush1.bf16.msra.mxu0 %v5971
    %6037 = vmatprep.subr.bf16.mxu0 %v5974
    %6038 = vmatpush1.bf16.msra.mxu0 %v5973
    %6039 = vmatprep.subr.bf16.mxu0 %v5976
    %6040 = vmatpush1.bf16.msra.mxu0 %v5975
    %6041 = vmatprep.subr.bf16.mxu0 %v5978
    %6042 = vmatpush1.bf16.msra.mxu0 %v5977
    %6043 = vmatprep.subr.bf16.mxu0 %v5980
    %6044 = vmatpush1.bf16.msra.mxu0 %v5979
    %6045 = vmatprep.mubr.bf16.mxu0 %v5819
    %6046 = vmatmul.mubr.bf16.gmra.mrb[0].mxu0 %v5818
    %v6047 = vpop.f32.mrb[0].mxu0
    %v6048 = vadd.f32 0.0, %v6047
    %v6049 = vpop.f32.mrb[0].mxu0
    %v6050 = vadd.f32 0.0, %v6049
    %v6051 = vpop.f32.mrb[0].mxu0
    %v6052 = vpop.f32.mrb[0].mxu0
    %6053 = vdwg.mxu0
    %v6054 = vadd.f32 %v5766, %v6048
    %v6055 = vadd.f32 %v5768, %v6050
    %s6056 = scalar_lea.vmem [#allocation6], 6
    %v6057 = vld [vmem:[%s6056] ss:$8 sm:$0x3]
    %v6059 = vlaneseq
    %v6060 = vshrl.u32 %v6059, 7
    %v6061 = vsub.s32 0, %v6060
    %v6062 = vrot.slane %v6057, %v6061
    %v6063 = vlaneseq
    %v6064 = vshrl.u32 %v6063, 7
    %v6065 = vsub.s32 1, %v6064
    %v6066 = vrot.slane %v6057, %v6065
    %v6069 = vadd.f32 %v6054, %v6062
    %v6070 = vadd.f32 %v6055, %v6066
    %v6071 = vmax.f32 %v6069, 0.0
    %v6072 = vmax.f32 %v6070, 0.0
    %v6073 = vpack.c.bf16 %v6071, %v6071
    %v6074 = vpack.c.bf16 %v6072, %v6072
    %s6075 = scalar_lea.vmem [#allocation4], 336
    %v6076 = vld [vmem:[%s6075] sm:$0xf]
    %v6078 = vsel %vm5251, %v6076, 0
    %v6081 = vsel %vm5255, %v6073, 0
    %v6084 = vsel %vm5255, %v6074, 0
    %6086 = vmatprep.subr.bf16.mxu0 %v6084
    %6087 = vmatpush1.bf16.msra.mxu0 %v6081
    %6088 = vmatprep.subr.bf16.mxu0 0
    %6089 = vmatpush1.bf16.msra.mxu0 0
    %6090 = vmatprep.subr.bf16.mxu0 0
    %6091 = vmatpush1.bf16.msra.mxu0 0
    %6092 = vmatprep.subr.bf16.mxu0 0
    %6093 = vmatpush1.bf16.msra.mxu0 0
    %6094 = vmatprep.subr.bf16.mxu0 0
    %6095 = vmatpush1.bf16.msra.mxu0 0
    %6096 = vmatprep.subr.bf16.mxu0 0
    %6097 = vmatpush1.bf16.msra.mxu0 0
    %6098 = vmatprep.subr.bf16.mxu0 0
    %6099 = vmatpush1.bf16.msra.mxu0 0
    %6100 = vmatprep.subr.bf16.mxu0 0
    %6101 = vmatpush1.bf16.msra.mxu0 0
    %6102 = vmatprep.subr.bf16.mxu0 0
    %6103 = vmatpush1.bf16.msra.mxu0 0
    %6104 = vmatprep.subr.bf16.mxu0 0
    %6105 = vmatpush1.bf16.msra.mxu0 0
    %6106 = vmatprep.subr.bf16.mxu0 0
    %6107 = vmatpush1.bf16.msra.mxu0 0
    %6108 = vmatprep.subr.bf16.mxu0 0
    %6109 = vmatpush1.bf16.msra.mxu0 0
    %6110 = vmatprep.subr.bf16.mxu0 0
    %6111 = vmatpush1.bf16.msra.mxu0 0
    %6112 = vmatprep.subr.bf16.mxu0 0
    %6113 = vmatpush1.bf16.msra.mxu0 0
    %6114 = vmatprep.subr.bf16.mxu0 0
    %6115 = vmatpush1.bf16.msra.mxu0 0
    %6116 = vmatprep.subr.bf16.mxu0 0
    %6117 = vmatpush1.bf16.msra.mxu0 0
    %6118 = vmatprep.mubr.bf16.mxu0 0
    %6119 = vmatmul.mubr.bf16.gmra.mrb[0].mxu0 %v6078
    %v6120 = vpop.f32.mrb[0].mxu0
    %v6121 = vadd.f32 0.0, %v6120
    %v6122 = vpop.f32.mrb[0].mxu0
    %v6123 = vadd.f32 0.0, %v6122
    %v6124 = vpop.f32.mrb[0].mxu0
    %v6125 = vpop.f32.mrb[0].mxu0
    %6126 = vdwg.mxu0
    %v6127 = vpack.c.bf16 %v6121, %v6121
    %v6128 = vpack.c.bf16 %v6123, %v6123
    %v6129 = vld [vmem:[#allocation18] sm:$0xff]
    %v6130 = vld [vmem:[#allocation18 + $0x8] sm:$0xff]
    %v6131 = vld [vmem:[#allocation18 + $0x10] sm:$0xff]
    %v6132 = vld [vmem:[#allocation18 + $0x18] sm:$0xff]
    %v6133 = vld [vmem:[#allocation18 + $0x20] sm:$0xff]
    %v6134 = vld [vmem:[#allocation18 + $0x28] sm:$0xff]
    %v6135 = vld [vmem:[#allocation18 + $0x30] sm:$0xff]
    %v6136 = vld [vmem:[#allocation18 + $0x38] sm:$0xff]
    %v6137 = vld [vmem:[#allocation18 + $0x40] sm:$0xff]
    %v6138 = vld [vmem:[#allocation18 + $0x48] sm:$0xff]
    %v6139 = vld [vmem:[#allocation18 + $0x50] sm:$0xff]
    %v6140 = vld [vmem:[#allocation18 + $0x58] sm:$0xff]
    %v6141 = vld [vmem:[#allocation18 + $0x60] sm:$0xff]
    %v6142 = vld [vmem:[#allocation18 + $0x68] sm:$0xff]
    %v6143 = vld [vmem:[#allocation18 + $0x70] sm:$0xff]
    %v6144 = vld [vmem:[#allocation18 + $0x78] sm:$0xff]
    %v6145 = vld [vmem:[#allocation18 + $0x80] sm:$0xff]
    %v6146 = vld [vmem:[#allocation18 + $0x88] sm:$0xff]
    %v6147 = vld [vmem:[#allocation18 + $0x90] sm:$0xff]
    %v6148 = vld [vmem:[#allocation18 + $0x98] sm:$0xff]
    %v6149 = vld [vmem:[#allocation18 + $0xa0] sm:$0xff]
    %v6150 = vld [vmem:[#allocation18 + $0xa8] sm:$0xff]
    %v6151 = vld [vmem:[#allocation18 + $0xb0] sm:$0xff]
    %v6152 = vld [vmem:[#allocation18 + $0xb8] sm:$0xff]
    %v6153 = vld [vmem:[#allocation18 + $0xc0] sm:$0xff]
    %v6154 = vld [vmem:[#allocation18 + $0xc8] sm:$0xff]
    %v6155 = vld [vmem:[#allocation18 + $0xd0] sm:$0xff]
    %v6156 = vld [vmem:[#allocation18 + $0xd8] sm:$0xff]
    %v6157 = vld [vmem:[#allocation18 + $0xe0] sm:$0xff]
    %v6158 = vld [vmem:[#allocation18 + $0xe8] sm:$0xff]
    %v6159 = vld [vmem:[#allocation18 + $0xf0] sm:$0xff]
    %v6160 = vld [vmem:[#allocation18 + $0xf8] sm:$0xff]
    %s6161 = scalar_lea.vmem [#allocation18], 256
    %v6162 = vld [vmem:[%s6161] sm:$0xff]
    %v6163 = vld [vmem:[%s6161 + $0x8] sm:$0xff]
    %v6164 = vld [vmem:[%s6161 + $0x10] sm:$0xff]
    %v6165 = vld [vmem:[%s6161 + $0x18] sm:$0xff]
    %v6166 = vld [vmem:[%s6161 + $0x20] sm:$0xff]
    %v6167 = vld [vmem:[%s6161 + $0x28] sm:$0xff]
    %v6168 = vld [vmem:[%s6161 + $0x30] sm:$0xff]
    %v6169 = vld [vmem:[%s6161 + $0x38] sm:$0xff]
    %v6170 = vld [vmem:[%s6161 + $0x40] sm:$0xff]
    %v6171 = vld [vmem:[%s6161 + $0x48] sm:$0xff]
    %v6172 = vld [vmem:[%s6161 + $0x50] sm:$0xff]
    %v6173 = vld [vmem:[%s6161 + $0x58] sm:$0xff]
    %v6174 = vld [vmem:[%s6161 + $0x60] sm:$0xff]
    %v6175 = vld [vmem:[%s6161 + $0x68] sm:$0xff]
    %v6176 = vld [vmem:[%s6161 + $0x70] sm:$0xff]
    %v6177 = vld [vmem:[%s6161 + $0x78] sm:$0xff]
    %v6178 = vld [vmem:[%s6161 + $0x80] sm:$0xff]
    %v6179 = vld [vmem:[%s6161 + $0x88] sm:$0xff]
    %v6180 = vld [vmem:[%s6161 + $0x90] sm:$0xff]
    %v6181 = vld [vmem:[%s6161 + $0x98] sm:$0xff]
    %v6182 = vld [vmem:[%s6161 + $0xa0] sm:$0xff]
    %v6183 = vld [vmem:[%s6161 + $0xa8] sm:$0xff]
    %v6184 = vld [vmem:[%s6161 + $0xb0] sm:$0xff]
    %v6185 = vld [vmem:[%s6161 + $0xb8] sm:$0xff]
    %v6186 = vld [vmem:[%s6161 + $0xc0] sm:$0xff]
    %v6187 = vld [vmem:[%s6161 + $0xc8] sm:$0xff]
    %v6188 = vld [vmem:[%s6161 + $0xd0] sm:$0xff]
    %v6189 = vld [vmem:[%s6161 + $0xd8] sm:$0xff]
    %v6190 = vld [vmem:[%s6161 + $0xe0] sm:$0xff]
    %v6191 = vld [vmem:[%s6161 + $0xe8] sm:$0xff]
    %v6192 = vld [vmem:[%s6161 + $0xf0] sm:$0xff]
    %v6193 = vld [vmem:[%s6161 + $0xf8] sm:$0xff]
    %v6226 = vunpack.c.l.b16 %v6162
    %v6227 = vunpack.c.h.b16 %v6162
    %v6228 = vunpack.c.l.b16 %v6163
    %v6229 = vunpack.c.h.b16 %v6163
    %v6230 = vunpack.c.l.b16 %v6164
    %v6231 = vunpack.c.h.b16 %v6164
    %v6232 = vunpack.c.l.b16 %v6165
    %v6233 = vunpack.c.h.b16 %v6165
    %v6234 = vunpack.c.l.b16 %v6166
    %v6235 = vunpack.c.h.b16 %v6166
    %v6236 = vunpack.c.l.b16 %v6167
    %v6237 = vunpack.c.h.b16 %v6167
    %v6238 = vunpack.c.l.b16 %v6168
    %v6239 = vunpack.c.h.b16 %v6168
    %v6240 = vunpack.c.l.b16 %v6169
    %v6241 = vunpack.c.h.b16 %v6169
    %v6242 = vunpack.c.l.b16 %v6170
    %v6243 = vunpack.c.h.b16 %v6170
    %v6244 = vunpack.c.l.b16 %v6171
    %v6245 = vunpack.c.h.b16 %v6171
    %v6246 = vunpack.c.l.b16 %v6172
    %v6247 = vunpack.c.h.b16 %v6172
    %v6248 = vunpack.c.l.b16 %v6173
    %v6249 = vunpack.c.h.b16 %v6173
    %v6250 = vunpack.c.l.b16 %v6174
    %v6251 = vunpack.c.h.b16 %v6174
    %v6252 = vunpack.c.l.b16 %v6175
    %v6253 = vunpack.c.h.b16 %v6175
    %v6254 = vunpack.c.l.b16 %v6176
    %v6255 = vunpack.c.h.b16 %v6176
    %v6256 = vunpack.c.l.b16 %v6177
    %v6257 = vunpack.c.h.b16 %v6177
    %v6258 = vunpack.c.l.b16 %v6178
    %v6259 = vunpack.c.h.b16 %v6178
    %v6260 = vunpack.c.l.b16 %v6179
    %v6261 = vunpack.c.h.b16 %v6179
    %v6262 = vunpack.c.l.b16 %v6180
    %v6263 = vunpack.c.h.b16 %v6180
    %v6264 = vunpack.c.l.b16 %v6181
    %v6265 = vunpack.c.h.b16 %v6181
    %v6266 = vunpack.c.l.b16 %v6182
    %v6267 = vunpack.c.h.b16 %v6182
    %v6268 = vunpack.c.l.b16 %v6183
    %v6269 = vunpack.c.h.b16 %v6183
    %v6270 = vunpack.c.l.b16 %v6184
    %v6271 = vunpack.c.h.b16 %v6184
    %v6272 = vunpack.c.l.b16 %v6185
    %v6273 = vunpack.c.h.b16 %v6185
    %v6274 = vunpack.c.l.b16 %v6186
    %v6275 = vunpack.c.h.b16 %v6186
    %v6276 = vunpack.c.l.b16 %v6187
    %v6277 = vunpack.c.h.b16 %v6187
    %v6278 = vunpack.c.l.b16 %v6188
    %v6279 = vunpack.c.h.b16 %v6188
    %v6280 = vunpack.c.l.b16 %v6189
    %v6281 = vunpack.c.h.b16 %v6189
    %v6282 = vunpack.c.l.b16 %v6190
    %v6283 = vunpack.c.h.b16 %v6190
    %v6284 = vunpack.c.l.b16 %v6191
    %v6285 = vunpack.c.h.b16 %v6191
    %v6286 = vunpack.c.l.b16 %v6192
    %v6287 = vunpack.c.h.b16 %v6192
    %v6288 = vunpack.c.l.b16 %v6193
    %v6289 = vunpack.c.h.b16 %v6193
    %v6290 = vpack.c.b16 %v6228, %v6226
    %v6291 = vpack.c.b16 %v6229, %v6227
    %v6292 = vpack.c.b16 %v6232, %v6230
    %v6293 = vpack.c.b16 %v6233, %v6231
    %v6294 = vpack.c.b16 %v6236, %v6234
    %v6295 = vpack.c.b16 %v6237, %v6235
    %v6296 = vpack.c.b16 %v6240, %v6238
    %v6297 = vpack.c.b16 %v6241, %v6239
    %v6298 = vpack.c.b16 %v6244, %v6242
    %v6299 = vpack.c.b16 %v6245, %v6243
    %v6300 = vpack.c.b16 %v6248, %v6246
    %v6301 = vpack.c.b16 %v6249, %v6247
    %v6302 = vpack.c.b16 %v6252, %v6250
    %v6303 = vpack.c.b16 %v6253, %v6251
    %v6304 = vpack.c.b16 %v6256, %v6254
    %v6305 = vpack.c.b16 %v6257, %v6255
    %v6306 = vpack.c.b16 %v6260, %v6258
    %v6307 = vpack.c.b16 %v6261, %v6259
    %v6308 = vpack.c.b16 %v6264, %v6262
    %v6309 = vpack.c.b16 %v6265, %v6263
    %v6310 = vpack.c.b16 %v6268, %v6266
    %v6311 = vpack.c.b16 %v6269, %v6267
    %v6312 = vpack.c.b16 %v6272, %v6270
    %v6313 = vpack.c.b16 %v6273, %v6271
    %v6314 = vpack.c.b16 %v6276, %v6274
    %v6315 = vpack.c.b16 %v6277, %v6275
    %v6316 = vpack.c.b16 %v6280, %v6278
    %v6317 = vpack.c.b16 %v6281, %v6279
    %v6318 = vpack.c.b16 %v6284, %v6282
    %v6319 = vpack.c.b16 %v6285, %v6283
    %v6320 = vpack.c.b16 %v6288, %v6286
    %v6321 = vpack.c.b16 %v6289, %v6287
    %6354 = vmatprep.subr.bf16.mxu0 %v6291
    %6355 = vmatpush1.bf16.msra.mxu0 %v6290
    %6356 = vmatprep.subr.bf16.mxu0 %v6293
    %6357 = vmatpush1.bf16.msra.mxu0 %v6292
    %6358 = vmatprep.subr.bf16.mxu0 %v6295
    %6359 = vmatpush1.bf16.msra.mxu0 %v6294
    %6360 = vmatprep.subr.bf16.mxu0 %v6297
    %6361 = vmatpush1.bf16.msra.mxu0 %v6296
    %6362 = vmatprep.subr.bf16.mxu0 %v6299
    %6363 = vmatpush1.bf16.msra.mxu0 %v6298
    %6364 = vmatprep.subr.bf16.mxu0 %v6301
    %6365 = vmatpush1.bf16.msra.mxu0 %v6300
    %6366 = vmatprep.subr.bf16.mxu0 %v6303
    %6367 = vmatpush1.bf16.msra.mxu0 %v6302
    %6368 = vmatprep.subr.bf16.mxu0 %v6305
    %6369 = vmatpush1.bf16.msra.mxu0 %v6304
    %6370 = vmatprep.subr.bf16.mxu0 %v6307
    %6371 = vmatpush1.bf16.msra.mxu0 %v6306
    %6372 = vmatprep.subr.bf16.mxu0 %v6309
    %6373 = vmatpush1.bf16.msra.mxu0 %v6308
    %6374 = vmatprep.subr.bf16.mxu0 %v6311
    %6375 = vmatpush1.bf16.msra.mxu0 %v6310
    %6376 = vmatprep.subr.bf16.mxu0 %v6313
    %6377 = vmatpush1.bf16.msra.mxu0 %v6312
    %6378 = vmatprep.subr.bf16.mxu0 %v6315
    %6379 = vmatpush1.bf16.msra.mxu0 %v6314
    %6380 = vmatprep.subr.bf16.mxu0 %v6317
    %6381 = vmatpush1.bf16.msra.mxu0 %v6316
    %6382 = vmatprep.subr.bf16.mxu0 %v6319
    %6383 = vmatpush1.bf16.msra.mxu0 %v6318
    %6384 = vmatprep.subr.bf16.mxu0 %v6321
    %6385 = vmatpush1.bf16.msra.mxu0 %v6320
    %6386 = vmatprep.mubr.bf16.mxu0 %v6074
    %6387 = vmatmul.mubr.bf16.gmra.mrb[0].mxu0 %v6073
    %v6388 = vpop.f32.mrb[0].mxu0
    %v6389 = vadd.f32 0.0, %v6388
    %v6390 = vpop.f32.mrb[0].mxu0
    %v6391 = vadd.f32 0.0, %v6390
    %v6392 = vpop.f32.mrb[0].mxu0
    %v6393 = vpop.f32.mrb[0].mxu0
    %6394 = vdwg.mxu0
    %v6427 = vunpack.c.l.b16 %v6129
    %v6428 = vunpack.c.h.b16 %v6129
    %v6429 = vunpack.c.l.b16 %v6130
    %v6430 = vunpack.c.h.b16 %v6130
    %v6431 = vunpack.c.l.b16 %v6131
    %v6432 = vunpack.c.h.b16 %v6131
    %v6433 = vunpack.c.l.b16 %v6132
    %v6434 = vunpack.c.h.b16 %v6132
    %v6435 = vunpack.c.l.b16 %v6133
    %v6436 = vunpack.c.h.b16 %v6133
    %v6437 = vunpack.c.l.b16 %v6134
    %v6438 = vunpack.c.h.b16 %v6134
    %v6439 = vunpack.c.l.b16 %v6135
    %v6440 = vunpack.c.h.b16 %v6135
    %v6441 = vunpack.c.l.b16 %v6136
    %v6442 = vunpack.c.h.b16 %v6136
    %v6443 = vunpack.c.l.b16 %v6137
    %v6444 = vunpack.c.h.b16 %v6137
    %v6445 = vunpack.c.l.b16 %v6138
    %v6446 = vunpack.c.h.b16 %v6138
    %v6447 = vunpack.c.l.b16 %v6139
    %v6448 = vunpack.c.h.b16 %v6139
    %v6449 = vunpack.c.l.b16 %v6140
    %v6450 = vunpack.c.h.b16 %v6140
    %v6451 = vunpack.c.l.b16 %v6141
    %v6452 = vunpack.c.h.b16 %v6141
    %v6453 = vunpack.c.l.b16 %v6142
    %v6454 = vunpack.c.h.b16 %v6142
    %v6455 = vunpack.c.l.b16 %v6143
    %v6456 = vunpack.c.h.b16 %v6143
    %v6457 = vunpack.c.l.b16 %v6144
    %v6458 = vunpack.c.h.b16 %v6144
    %v6459 = vunpack.c.l.b16 %v6145
    %v6460 = vunpack.c.h.b16 %v6145
    %v6461 = vunpack.c.l.b16 %v6146
    %v6462 = vunpack.c.h.b16 %v6146
    %v6463 = vunpack.c.l.b16 %v6147
    %v6464 = vunpack.c.h.b16 %v6147
    %v6465 = vunpack.c.l.b16 %v6148
    %v6466 = vunpack.c.h.b16 %v6148
    %v6467 = vunpack.c.l.b16 %v6149
    %v6468 = vunpack.c.h.b16 %v6149
    %v6469 = vunpack.c.l.b16 %v6150
    %v6470 = vunpack.c.h.b16 %v6150
    %v6471 = vunpack.c.l.b16 %v6151
    %v6472 = vunpack.c.h.b16 %v6151
    %v6473 = vunpack.c.l.b16 %v6152
    %v6474 = vunpack.c.h.b16 %v6152
    %v6475 = vunpack.c.l.b16 %v6153
    %v6476 = vunpack.c.h.b16 %v6153
    %v6477 = vunpack.c.l.b16 %v6154
    %v6478 = vunpack.c.h.b16 %v6154
    %v6479 = vunpack.c.l.b16 %v6155
    %v6480 = vunpack.c.h.b16 %v6155
    %v6481 = vunpack.c.l.b16 %v6156
    %v6482 = vunpack.c.h.b16 %v6156
    %v6483 = vunpack.c.l.b16 %v6157
    %v6484 = vunpack.c.h.b16 %v6157
    %v6485 = vunpack.c.l.b16 %v6158
    %v6486 = vunpack.c.h.b16 %v6158
    %v6487 = vunpack.c.l.b16 %v6159
    %v6488 = vunpack.c.h.b16 %v6159
    %v6489 = vunpack.c.l.b16 %v6160
    %v6490 = vunpack.c.h.b16 %v6160
    %v6491 = vpack.c.b16 %v6429, %v6427
    %v6492 = vpack.c.b16 %v6430, %v6428
    %v6493 = vpack.c.b16 %v6433, %v6431
    %v6494 = vpack.c.b16 %v6434, %v6432
    %v6495 = vpack.c.b16 %v6437, %v6435
    %v6496 = vpack.c.b16 %v6438, %v6436
    %v6497 = vpack.c.b16 %v6441, %v6439
    %v6498 = vpack.c.b16 %v6442, %v6440
    %v6499 = vpack.c.b16 %v6445, %v6443
    %v6500 = vpack.c.b16 %v6446, %v6444
    %v6501 = vpack.c.b16 %v6449, %v6447
    %v6502 = vpack.c.b16 %v6450, %v6448
    %v6503 = vpack.c.b16 %v6453, %v6451
    %v6504 = vpack.c.b16 %v6454, %v6452
    %v6505 = vpack.c.b16 %v6457, %v6455
    %v6506 = vpack.c.b16 %v6458, %v6456
    %v6507 = vpack.c.b16 %v6461, %v6459
    %v6508 = vpack.c.b16 %v6462, %v6460
    %v6509 = vpack.c.b16 %v6465, %v6463
    %v6510 = vpack.c.b16 %v6466, %v6464
    %v6511 = vpack.c.b16 %v6469, %v6467
    %v6512 = vpack.c.b16 %v6470, %v6468
    %v6513 = vpack.c.b16 %v6473, %v6471
    %v6514 = vpack.c.b16 %v6474, %v6472
    %v6515 = vpack.c.b16 %v6477, %v6475
    %v6516 = vpack.c.b16 %v6478, %v6476
    %v6517 = vpack.c.b16 %v6481, %v6479
    %v6518 = vpack.c.b16 %v6482, %v6480
    %v6519 = vpack.c.b16 %v6485, %v6483
    %v6520 = vpack.c.b16 %v6486, %v6484
    %v6521 = vpack.c.b16 %v6489, %v6487
    %v6522 = vpack.c.b16 %v6490, %v6488
    %6555 = vmatprep.subr.bf16.mxu0 %v6492
    %6556 = vmatpush1.bf16.msra.mxu0 %v6491
    %6557 = vmatprep.subr.bf16.mxu0 %v6494
    %6558 = vmatpush1.bf16.msra.mxu0 %v6493
    %6559 = vmatprep.subr.bf16.mxu0 %v6496
    %6560 = vmatpush1.bf16.msra.mxu0 %v6495
    %6561 = vmatprep.subr.bf16.mxu0 %v6498
    %6562 = vmatpush1.bf16.msra.mxu0 %v6497
    %6563 = vmatprep.subr.bf16.mxu0 %v6500
    %6564 = vmatpush1.bf16.msra.mxu0 %v6499
    %6565 = vmatprep.subr.bf16.mxu0 %v6502
    %6566 = vmatpush1.bf16.msra.mxu0 %v6501
    %6567 = vmatprep.subr.bf16.mxu0 %v6504
    %6568 = vmatpush1.bf16.msra.mxu0 %v6503
    %6569 = vmatprep.subr.bf16.mxu0 %v6506
    %6570 = vmatpush1.bf16.msra.mxu0 %v6505
    %6571 = vmatprep.subr.bf16.mxu0 %v6508
    %6572 = vmatpush1.bf16.msra.mxu0 %v6507
    %6573 = vmatprep.subr.bf16.mxu0 %v6510
    %6574 = vmatpush1.bf16.msra.mxu0 %v6509
    %6575 = vmatprep.subr.bf16.mxu0 %v6512
    %6576 = vmatpush1.bf16.msra.mxu0 %v6511
    %6577 = vmatprep.subr.bf16.mxu0 %v6514
    %6578 = vmatpush1.bf16.msra.mxu0 %v6513
    %6579 = vmatprep.subr.bf16.mxu0 %v6516
    %6580 = vmatpush1.bf16.msra.mxu0 %v6515
    %6581 = vmatprep.subr.bf16.mxu0 %v6518
    %6582 = vmatpush1.bf16.msra.mxu0 %v6517
    %6583 = vmatprep.subr.bf16.mxu0 %v6520
    %6584 = vmatpush1.bf16.msra.mxu0 %v6519
    %6585 = vmatprep.subr.bf16.mxu0 %v6522
    %6586 = vmatpush1.bf16.msra.mxu0 %v6521
    %6587 = vmatprep.mubr.bf16.mxu0 %v6128
    %6588 = vmatmul.mubr.bf16.gmra.mrb[0].mxu0 %v6127
    %v6589 = vpop.f32.mrb[0].mxu0
    %v6590 = vadd.f32 %v6389, %v6589
    %v6591 = vpop.f32.mrb[0].mxu0
    %v6592 = vadd.f32 %v6391, %v6591
    %v6593 = vpop.f32.mrb[0].mxu0
    %v6594 = vpop.f32.mrb[0].mxu0
    %6595 = vdwg.mxu0
    %s6596 = scalar_lea.vmem [#allocation4], 368
    %v6597 = vld [vmem:[%s6596] sm:$0xf]
    %v6599 = vsel %vm5251, %v6597, 0
    %6601 = vmatprep.subr.bf16.mxu0 %v6084
    %6602 = vmatpush1.bf16.msra.mxu0 %v6081
    %6603 = vmatprep.subr.bf16.mxu0 0
    %6604 = vmatpush1.bf16.msra.mxu0 0
    %6605 = vmatprep.subr.bf16.mxu0 0
    %6606 = vmatpush1.bf16.msra.mxu0 0
    %6607 = vmatprep.subr.bf16.mxu0 0
    %6608 = vmatpush1.bf16.msra.mxu0 0
    %6609 = vmatprep.subr.bf16.mxu0 0
    %6610 = vmatpush1.bf16.msra.mxu0 0
    %6611 = vmatprep.subr.bf16.mxu0 0
    %6612 = vmatpush1.bf16.msra.mxu0 0
    %6613 = vmatprep.subr.bf16.mxu0 0
    %6614 = vmatpush1.bf16.msra.mxu0 0
    %6615 = vmatprep.subr.bf16.mxu0 0
    %6616 = vmatpush1.bf16.msra.mxu0 0
    %6617 = vmatprep.subr.bf16.mxu0 0
    %6618 = vmatpush1.bf16.msra.mxu0 0
    %6619 = vmatprep.subr.bf16.mxu0 0
    %6620 = vmatpush1.bf16.msra.mxu0 0
    %6621 = vmatprep.subr.bf16.mxu0 0
    %6622 = vmatpush1.bf16.msra.mxu0 0
    %6623 = vmatprep.subr.bf16.mxu0 0
    %6624 = vmatpush1.bf16.msra.mxu0 0
    %6625 = vmatprep.subr.bf16.mxu0 0
    %6626 = vmatpush1.bf16.msra.mxu0 0
    %6627 = vmatprep.subr.bf16.mxu0 0
    %6628 = vmatpush1.bf16.msra.mxu0 0
    %6629 = vmatprep.subr.bf16.mxu0 0
    %6630 = vmatpush1.bf16.msra.mxu0 0
    %6631 = vmatprep.subr.bf16.mxu0 0
    %6632 = vmatpush1.bf16.msra.mxu0 0
    %6633 = vmatprep.mubr.bf16.mxu0 0
    %6634 = vmatmul.mubr.bf16.gmra.mrb[0].mxu0 %v6599
    %v6635 = vpop.f32.mrb[0].mxu0
    %v6636 = vadd.f32 0.0, %v6635
    %v6637 = vpop.f32.mrb[0].mxu0
    %v6638 = vadd.f32 0.0, %v6637
    %v6639 = vpop.f32.mrb[0].mxu0
    %v6640 = vpop.f32.mrb[0].mxu0
    %6641 = vdwg.mxu0
    %v6642 = vpack.c.bf16 %v6636, %v6636
    %v6643 = vpack.c.bf16 %v6638, %v6638
    %s6644 = scalar_lea.vmem [#allocation18], 512
    %v6645 = vld [vmem:[%s6644] sm:$0xff]
    %v6646 = vld [vmem:[%s6644 + $0x8] sm:$0xff]
    %v6647 = vld [vmem:[%s6644 + $0x10] sm:$0xff]
    %v6648 = vld [vmem:[%s6644 + $0x18] sm:$0xff]
    %v6649 = vld [vmem:[%s6644 + $0x20] sm:$0xff]
    %v6650 = vld [vmem:[%s6644 + $0x28] sm:$0xff]
    %v6651 = vld [vmem:[%s6644 + $0x30] sm:$0xff]
    %v6652 = vld [vmem:[%s6644 + $0x38] sm:$0xff]
    %v6653 = vld [vmem:[%s6644 + $0x40] sm:$0xff]
    %v6654 = vld [vmem:[%s6644 + $0x48] sm:$0xff]
    %v6655 = vld [vmem:[%s6644 + $0x50] sm:$0xff]
    %v6656 = vld [vmem:[%s6644 + $0x58] sm:$0xff]
    %v6657 = vld [vmem:[%s6644 + $0x60] sm:$0xff]
    %v6658 = vld [vmem:[%s6644 + $0x68] sm:$0xff]
    %v6659 = vld [vmem:[%s6644 + $0x70] sm:$0xff]
    %v6660 = vld [vmem:[%s6644 + $0x78] sm:$0xff]
    %v6661 = vld [vmem:[%s6644 + $0x80] sm:$0xff]
    %v6662 = vld [vmem:[%s6644 + $0x88] sm:$0xff]
    %v6663 = vld [vmem:[%s6644 + $0x90] sm:$0xff]
    %v6664 = vld [vmem:[%s6644 + $0x98] sm:$0xff]
    %v6665 = vld [vmem:[%s6644 + $0xa0] sm:$0xff]
    %v6666 = vld [vmem:[%s6644 + $0xa8] sm:$0xff]
    %v6667 = vld [vmem:[%s6644 + $0xb0] sm:$0xff]
    %v6668 = vld [vmem:[%s6644 + $0xb8] sm:$0xff]
    %v6669 = vld [vmem:[%s6644 + $0xc0] sm:$0xff]
    %v6670 = vld [vmem:[%s6644 + $0xc8] sm:$0xff]
    %v6671 = vld [vmem:[%s6644 + $0xd0] sm:$0xff]
    %v6672 = vld [vmem:[%s6644 + $0xd8] sm:$0xff]
    %v6673 = vld [vmem:[%s6644 + $0xe0] sm:$0xff]
    %v6674 = vld [vmem:[%s6644 + $0xe8] sm:$0xff]
    %v6675 = vld [vmem:[%s6644 + $0xf0] sm:$0xff]
    %v6676 = vld [vmem:[%s6644 + $0xf8] sm:$0xff]
    %v6709 = vunpack.c.l.b16 %v6645
    %v6710 = vunpack.c.h.b16 %v6645
    %v6711 = vunpack.c.l.b16 %v6646
    %v6712 = vunpack.c.h.b16 %v6646
    %v6713 = vunpack.c.l.b16 %v6647
    %v6714 = vunpack.c.h.b16 %v6647
    %v6715 = vunpack.c.l.b16 %v6648
    %v6716 = vunpack.c.h.b16 %v6648
    %v6717 = vunpack.c.l.b16 %v6649
    %v6718 = vunpack.c.h.b16 %v6649
    %v6719 = vunpack.c.l.b16 %v6650
    %v6720 = vunpack.c.h.b16 %v6650
    %v6721 = vunpack.c.l.b16 %v6651
    %v6722 = vunpack.c.h.b16 %v6651
    %v6723 = vunpack.c.l.b16 %v6652
    %v6724 = vunpack.c.h.b16 %v6652
    %v6725 = vunpack.c.l.b16 %v6653
    %v6726 = vunpack.c.h.b16 %v6653
    %v6727 = vunpack.c.l.b16 %v6654
    %v6728 = vunpack.c.h.b16 %v6654
    %v6729 = vunpack.c.l.b16 %v6655
    %v6730 = vunpack.c.h.b16 %v6655
    %v6731 = vunpack.c.l.b16 %v6656
    %v6732 = vunpack.c.h.b16 %v6656
    %v6733 = vunpack.c.l.b16 %v6657
    %v6734 = vunpack.c.h.b16 %v6657
    %v6735 = vunpack.c.l.b16 %v6658
    %v6736 = vunpack.c.h.b16 %v6658
    %v6737 = vunpack.c.l.b16 %v6659
    %v6738 = vunpack.c.h.b16 %v6659
    %v6739 = vunpack.c.l.b16 %v6660
    %v6740 = vunpack.c.h.b16 %v6660
    %v6741 = vunpack.c.l.b16 %v6661
    %v6742 = vunpack.c.h.b16 %v6661
    %v6743 = vunpack.c.l.b16 %v6662
    %v6744 = vunpack.c.h.b16 %v6662
    %v6745 = vunpack.c.l.b16 %v6663
    %v6746 = vunpack.c.h.b16 %v6663
    %v6747 = vunpack.c.l.b16 %v6664
    %v6748 = vunpack.c.h.b16 %v6664
    %v6749 = vunpack.c.l.b16 %v6665
    %v6750 = vunpack.c.h.b16 %v6665
    %v6751 = vunpack.c.l.b16 %v6666
    %v6752 = vunpack.c.h.b16 %v6666
    %v6753 = vunpack.c.l.b16 %v6667
    %v6754 = vunpack.c.h.b16 %v6667
    %v6755 = vunpack.c.l.b16 %v6668
    %v6756 = vunpack.c.h.b16 %v6668
    %v6757 = vunpack.c.l.b16 %v6669
    %v6758 = vunpack.c.h.b16 %v6669
    %v6759 = vunpack.c.l.b16 %v6670
    %v6760 = vunpack.c.h.b16 %v6670
    %v6761 = vunpack.c.l.b16 %v6671
    %v6762 = vunpack.c.h.b16 %v6671
    %v6763 = vunpack.c.l.b16 %v6672
    %v6764 = vunpack.c.h.b16 %v6672
    %v6765 = vunpack.c.l.b16 %v6673
    %v6766 = vunpack.c.h.b16 %v6673
    %v6767 = vunpack.c.l.b16 %v6674
    %v6768 = vunpack.c.h.b16 %v6674
    %v6769 = vunpack.c.l.b16 %v6675
    %v6770 = vunpack.c.h.b16 %v6675
    %v6771 = vunpack.c.l.b16 %v6676
    %v6772 = vunpack.c.h.b16 %v6676
    %v6773 = vpack.c.b16 %v6711, %v6709
    %v6774 = vpack.c.b16 %v6712, %v6710
    %v6775 = vpack.c.b16 %v6715, %v6713
    %v6776 = vpack.c.b16 %v6716, %v6714
    %v6777 = vpack.c.b16 %v6719, %v6717
    %v6778 = vpack.c.b16 %v6720, %v6718
    %v6779 = vpack.c.b16 %v6723, %v6721
    %v6780 = vpack.c.b16 %v6724, %v6722
    %v6781 = vpack.c.b16 %v6727, %v6725
    %v6782 = vpack.c.b16 %v6728, %v6726
    %v6783 = vpack.c.b16 %v6731, %v6729
    %v6784 = vpack.c.b16 %v6732, %v6730
    %v6785 = vpack.c.b16 %v6735, %v6733
    %v6786 = vpack.c.b16 %v6736, %v6734
    %v6787 = vpack.c.b16 %v6739, %v6737
    %v6788 = vpack.c.b16 %v6740, %v6738
    %v6789 = vpack.c.b16 %v6743, %v6741
    %v6790 = vpack.c.b16 %v6744, %v6742
    %v6791 = vpack.c.b16 %v6747, %v6745
    %v6792 = vpack.c.b16 %v6748, %v6746
    %v6793 = vpack.c.b16 %v6751, %v6749
    %v6794 = vpack.c.b16 %v6752, %v6750
    %v6795 = vpack.c.b16 %v6755, %v6753
    %v6796 = vpack.c.b16 %v6756, %v6754
    %v6797 = vpack.c.b16 %v6759, %v6757
    %v6798 = vpack.c.b16 %v6760, %v6758
    %v6799 = vpack.c.b16 %v6763, %v6761
    %v6800 = vpack.c.b16 %v6764, %v6762
    %v6801 = vpack.c.b16 %v6767, %v6765
    %v6802 = vpack.c.b16 %v6768, %v6766
    %v6803 = vpack.c.b16 %v6771, %v6769
    %v6804 = vpack.c.b16 %v6772, %v6770
    %6837 = vmatprep.subr.bf16.mxu0 %v6774
    %6838 = vmatpush1.bf16.msra.mxu0 %v6773
    %6839 = vmatprep.subr.bf16.mxu0 %v6776
    %6840 = vmatpush1.bf16.msra.mxu0 %v6775
    %6841 = vmatprep.subr.bf16.mxu0 %v6778
    %6842 = vmatpush1.bf16.msra.mxu0 %v6777
    %6843 = vmatprep.subr.bf16.mxu0 %v6780
    %6844 = vmatpush1.bf16.msra.mxu0 %v6779
    %6845 = vmatprep.subr.bf16.mxu0 %v6782
    %6846 = vmatpush1.bf16.msra.mxu0 %v6781
    %6847 = vmatprep.subr.bf16.mxu0 %v6784
    %6848 = vmatpush1.bf16.msra.mxu0 %v6783
    %6849 = vmatprep.subr.bf16.mxu0 %v6786
    %6850 = vmatpush1.bf16.msra.mxu0 %v6785
    %6851 = vmatprep.subr.bf16.mxu0 %v6788
    %6852 = vmatpush1.bf16.msra.mxu0 %v6787
    %6853 = vmatprep.subr.bf16.mxu0 %v6790
    %6854 = vmatpush1.bf16.msra.mxu0 %v6789
    %6855 = vmatprep.subr.bf16.mxu0 %v6792
    %6856 = vmatpush1.bf16.msra.mxu0 %v6791
    %6857 = vmatprep.subr.bf16.mxu0 %v6794
    %6858 = vmatpush1.bf16.msra.mxu0 %v6793
    %6859 = vmatprep.subr.bf16.mxu0 %v6796
    %6860 = vmatpush1.bf16.msra.mxu0 %v6795
    %6861 = vmatprep.subr.bf16.mxu0 %v6798
    %6862 = vmatpush1.bf16.msra.mxu0 %v6797
    %6863 = vmatprep.subr.bf16.mxu0 %v6800
    %6864 = vmatpush1.bf16.msra.mxu0 %v6799
    %6865 = vmatprep.subr.bf16.mxu0 %v6802
    %6866 = vmatpush1.bf16.msra.mxu0 %v6801
    %6867 = vmatprep.subr.bf16.mxu0 %v6804
    %6868 = vmatpush1.bf16.msra.mxu0 %v6803
    %6869 = vmatprep.mubr.bf16.mxu0 %v6643
    %6870 = vmatmul.mubr.bf16.gmra.mrb[0].mxu0 %v6642
    %v6871 = vpop.f32.mrb[0].mxu0
    %v6872 = vadd.f32 0.0, %v6871
    %v6873 = vpop.f32.mrb[0].mxu0
    %v6874 = vadd.f32 0.0, %v6873
    %v6875 = vpop.f32.mrb[0].mxu0
    %v6876 = vpop.f32.mrb[0].mxu0
    %6877 = vdwg.mxu0
    %v6878 = vadd.f32 %v6590, %v6872
    %v6879 = vadd.f32 %v6592, %v6874
    %s6880 = scalar_lea.vmem [#allocation6], 7
    %v6881 = vld [vmem:[%s6880] ss:$8 sm:$0x3]
    %v6883 = vlaneseq
    %v6884 = vshrl.u32 %v6883, 7
    %v6885 = vsub.s32 0, %v6884
    %v6886 = vrot.slane %v6881, %v6885
    %v6887 = vlaneseq
    %v6888 = vshrl.u32 %v6887, 7
    %v6889 = vsub.s32 1, %v6888
    %v6890 = vrot.slane %v6881, %v6889
    %v6893 = vadd.f32 %v6878, %v6886
    %v6894 = vadd.f32 %v6879, %v6890
    %v6895 = vmax.f32 %v6893, 0.0
    %v6896 = vmax.f32 %v6894, 0.0
    %6897 = vst [vmem:[%s19] sm:$0xff] %v6895
    %6898 = vst [vmem:[%s19 + $0x8] sm:$0xff] %v6896
    %v6899 = vpack.c.bf16 %v6895, %v6895
    %v6900 = vpack.c.bf16 %v6896, %v6896
    %s6901 = scalar_lea.vmem [#allocation4], 384
    %v6902 = vld [vmem:[%s6901] sm:$0x3]
    %v6904 = vsel %vm5251, %v6902, 0
    %v6907 = vsel %vm5255, %v6899, 0
    %v6910 = vsel %vm5255, %v6900, 0
    %6912 = vmatprep.subr.bf16.mxu0 %v6910
    %6913 = vmatpush1.bf16.msra.mxu0 %v6907
    %6914 = vmatprep.subr.bf16.mxu0 0
    %6915 = vmatpush1.bf16.msra.mxu0 0
    %6916 = vmatprep.subr.bf16.mxu0 0
    %6917 = vmatpush1.bf16.msra.mxu0 0
    %6918 = vmatprep.subr.bf16.mxu0 0
    %6919 = vmatpush1.bf16.msra.mxu0 0
    %6920 = vmatprep.subr.bf16.mxu0 0
    %6921 = vmatpush1.bf16.msra.mxu0 0
    %6922 = vmatprep.subr.bf16.mxu0 0
    %6923 = vmatpush1.bf16.msra.mxu0 0
    %6924 = vmatprep.subr.bf16.mxu0 0
    %6925 = vmatpush1.bf16.msra.mxu0 0
    %6926 = vmatprep.subr.bf16.mxu0 0
    %6927 = vmatpush1.bf16.msra.mxu0 0
    %6928 = vmatprep.subr.bf16.mxu0 0
    %6929 = vmatpush1.bf16.msra.mxu0 0
    %6930 = vmatprep.subr.bf16.mxu0 0
    %6931 = vmatpush1.bf16.msra.mxu0 0
    %6932 = vmatprep.subr.bf16.mxu0 0
    %6933 = vmatpush1.bf16.msra.mxu0 0
    %6934 = vmatprep.subr.bf16.mxu0 0
    %6935 = vmatpush1.bf16.msra.mxu0 0
    %6936 = vmatprep.subr.bf16.mxu0 0
    %6937 = vmatpush1.bf16.msra.mxu0 0
    %6938 = vmatprep.subr.bf16.mxu0 0
    %6939 = vmatpush1.bf16.msra.mxu0 0
    %6940 = vmatprep.subr.bf16.mxu0 0
    %6941 = vmatpush1.bf16.msra.mxu0 0
    %6942 = vmatprep.subr.bf16.mxu0 0
    %6943 = vmatpush1.bf16.msra.mxu0 0
    %6944 = vmatprep.mubr.bf16.mxu0 0
    %6945 = vmatmul.mubr.bf16.gmra.mrb[0].mxu0 %v6904
    %v6946 = vpop.f32.mrb[0].mxu0
    %v6947 = vadd.f32 0.0, %v6946
    %v6948 = vpop.f32.mrb[0].mxu0
    %v6949 = vadd.f32 0.0, %v6948
    %v6950 = vpop.f32.mrb[0].mxu0
    %v6951 = vpop.f32.mrb[0].mxu0
    %6952 = vdwg.mxu0
    %v6953 = vpack.c.bf16 %v6947, %v6947
    %v6954 = vpack.c.bf16 %v6949, %v6949
    %v6955 = vld [vmem:[#allocation20] sm:$0xff]
    %v6956 = vld [vmem:[#allocation20 + $0x8] sm:$0xff]
    %v6957 = vld [vmem:[#allocation20 + $0x10] sm:$0xff]
    %v6958 = vld [vmem:[#allocation20 + $0x18] sm:$0xff]
    %v6959 = vld [vmem:[#allocation20 + $0x20] sm:$0xff]
    %v6960 = vld [vmem:[#allocation20 + $0x28] sm:$0xff]
    %v6961 = vld [vmem:[#allocation20 + $0x30] sm:$0xff]
    %v6962 = vld [vmem:[#allocation20 + $0x38] sm:$0xff]
    %v6963 = vld [vmem:[#allocation20 + $0x40] sm:$0xff]
    %v6964 = vld [vmem:[#allocation20 + $0x48] sm:$0xff]
    %v6965 = vld [vmem:[#allocation20 + $0x50] sm:$0xff]
    %v6966 = vld [vmem:[#allocation20 + $0x58] sm:$0xff]
    %v6967 = vld [vmem:[#allocation20 + $0x60] sm:$0xff]
    %v6968 = vld [vmem:[#allocation20 + $0x68] sm:$0xff]
    %v6969 = vld [vmem:[#allocation20 + $0x70] sm:$0xff]
    %v6970 = vld [vmem:[#allocation20 + $0x78] sm:$0xff]
    %v6971 = vld [vmem:[#allocation20 + $0x80] sm:$0xff]
    %v6972 = vld [vmem:[#allocation20 + $0x88] sm:$0xff]
    %v6973 = vld [vmem:[#allocation20 + $0x90] sm:$0xff]
    %v6974 = vld [vmem:[#allocation20 + $0x98] sm:$0xff]
    %v6975 = vld [vmem:[#allocation20 + $0xa0] sm:$0xff]
    %v6976 = vld [vmem:[#allocation20 + $0xa8] sm:$0xff]
    %v6977 = vld [vmem:[#allocation20 + $0xb0] sm:$0xff]
    %v6978 = vld [vmem:[#allocation20 + $0xb8] sm:$0xff]
    %v6979 = vld [vmem:[#allocation20 + $0xc0] sm:$0xff]
    %v6980 = vld [vmem:[#allocation20 + $0xc8] sm:$0xff]
    %v6981 = vld [vmem:[#allocation20 + $0xd0] sm:$0xff]
    %v6982 = vld [vmem:[#allocation20 + $0xd8] sm:$0xff]
    %v6983 = vld [vmem:[#allocation20 + $0xe0] sm:$0xff]
    %v6984 = vld [vmem:[#allocation20 + $0xe8] sm:$0xff]
    %v6985 = vld [vmem:[#allocation20 + $0xf0] sm:$0xff]
    %v6986 = vld [vmem:[#allocation20 + $0xf8] sm:$0xff]
    %s6987 = scalar_lea.vmem [#allocation4], 400
    %v6988 = vld [vmem:[%s6987] sm:$0x3]
    %v6990 = vsel %vm5251, %v6988, 0
    %6992 = vmatprep.subr.bf16.mxu0 %v6910
    %6993 = vmatpush1.bf16.msra.mxu0 %v6907
    %6994 = vmatprep.subr.bf16.mxu0 0
    %6995 = vmatpush1.bf16.msra.mxu0 0
    %6996 = vmatprep.subr.bf16.mxu0 0
    %6997 = vmatpush1.bf16.msra.mxu0 0
    %6998 = vmatprep.subr.bf16.mxu0 0
    %6999 = vmatpush1.bf16.msra.mxu0 0
    %7000 = vmatprep.subr.bf16.mxu0 0
    %7001 = vmatpush1.bf16.msra.mxu0 0
    %7002 = vmatprep.subr.bf16.mxu0 0
    %7003 = vmatpush1.bf16.msra.mxu0 0
    %7004 = vmatprep.subr.bf16.mxu0 0
    %7005 = vmatpush1.bf16.msra.mxu0 0
    %7006 = vmatprep.subr.bf16.mxu0 0
    %7007 = vmatpush1.bf16.msra.mxu0 0
    %7008 = vmatprep.subr.bf16.mxu0 0
    %7009 = vmatpush1.bf16.msra.mxu0 0
    %7010 = vmatprep.subr.bf16.mxu0 0
    %7011 = vmatpush1.bf16.msra.mxu0 0
    %7012 = vmatprep.subr.bf16.mxu0 0
    %7013 = vmatpush1.bf16.msra.mxu0 0
    %7014 = vmatprep.subr.bf16.mxu0 0
    %7015 = vmatpush1.bf16.msra.mxu0 0
    %7016 = vmatprep.subr.bf16.mxu0 0
    %7017 = vmatpush1.bf16.msra.mxu0 0
    %7018 = vmatprep.subr.bf16.mxu0 0
    %7019 = vmatpush1.bf16.msra.mxu0 0
    %7020 = vmatprep.subr.bf16.mxu0 0
    %7021 = vmatpush1.bf16.msra.mxu0 0
    %7022 = vmatprep.subr.bf16.mxu0 0
    %7023 = vmatpush1.bf16.msra.mxu0 0
    %7024 = vmatprep.mubr.bf16.mxu0 0
    %7025 = vmatmul.mubr.bf16.gmra.mrb[0].mxu0 %v6990
    %v7026 = vpop.f32.mrb[0].mxu0
    %v7027 = vadd.f32 0.0, %v7026
    %v7028 = vpop.f32.mrb[0].mxu0
    %v7029 = vadd.f32 0.0, %v7028
    %v7030 = vpop.f32.mrb[0].mxu0
    %v7031 = vpop.f32.mrb[0].mxu0
    %7032 = vdwg.mxu0
    %v7033 = vpack.c.bf16 %v7027, %v7027
    %v7034 = vpack.c.bf16 %v7029, %v7029
    %s7035 = scalar_lea.vmem [#allocation20], 256
    %v7036 = vld [vmem:[%s7035] sm:$0xff]
    %v7037 = vld [vmem:[%s7035 + $0x8] sm:$0xff]
    %v7038 = vld [vmem:[%s7035 + $0x10] sm:$0xff]
    %v7039 = vld [vmem:[%s7035 + $0x18] sm:$0xff]
    %v7040 = vld [vmem:[%s7035 + $0x20] sm:$0xff]
    %v7041 = vld [vmem:[%s7035 + $0x28] sm:$0xff]
    %v7042 = vld [vmem:[%s7035 + $0x30] sm:$0xff]
    %v7043 = vld [vmem:[%s7035 + $0x38] sm:$0xff]
    %v7044 = vld [vmem:[%s7035 + $0x40] sm:$0xff]
    %v7045 = vld [vmem:[%s7035 + $0x48] sm:$0xff]
    %v7046 = vld [vmem:[%s7035 + $0x50] sm:$0xff]
    %v7047 = vld [vmem:[%s7035 + $0x58] sm:$0xff]
    %v7048 = vld [vmem:[%s7035 + $0x60] sm:$0xff]
    %v7049 = vld [vmem:[%s7035 + $0x68] sm:$0xff]
    %v7050 = vld [vmem:[%s7035 + $0x70] sm:$0xff]
    %v7051 = vld [vmem:[%s7035 + $0x78] sm:$0xff]
    %v7052 = vld [vmem:[%s7035 + $0x80] sm:$0xff]
    %v7053 = vld [vmem:[%s7035 + $0x88] sm:$0xff]
    %v7054 = vld [vmem:[%s7035 + $0x90] sm:$0xff]
    %v7055 = vld [vmem:[%s7035 + $0x98] sm:$0xff]
    %v7056 = vld [vmem:[%s7035 + $0xa0] sm:$0xff]
    %v7057 = vld [vmem:[%s7035 + $0xa8] sm:$0xff]
    %v7058 = vld [vmem:[%s7035 + $0xb0] sm:$0xff]
    %v7059 = vld [vmem:[%s7035 + $0xb8] sm:$0xff]
    %v7060 = vld [vmem:[%s7035 + $0xc0] sm:$0xff]
    %v7061 = vld [vmem:[%s7035 + $0xc8] sm:$0xff]
    %v7062 = vld [vmem:[%s7035 + $0xd0] sm:$0xff]
    %v7063 = vld [vmem:[%s7035 + $0xd8] sm:$0xff]
    %v7064 = vld [vmem:[%s7035 + $0xe0] sm:$0xff]
    %v7065 = vld [vmem:[%s7035 + $0xe8] sm:$0xff]
    %v7066 = vld [vmem:[%s7035 + $0xf0] sm:$0xff]
    %v7067 = vld [vmem:[%s7035 + $0xf8] sm:$0xff]
    %v7100 = vunpack.c.l.b16 %v7036
    %v7101 = vunpack.c.h.b16 %v7036
    %v7102 = vunpack.c.l.b16 %v7037
    %v7103 = vunpack.c.h.b16 %v7037
    %v7104 = vunpack.c.l.b16 %v7038
    %v7105 = vunpack.c.h.b16 %v7038
    %v7106 = vunpack.c.l.b16 %v7039
    %v7107 = vunpack.c.h.b16 %v7039
    %v7108 = vunpack.c.l.b16 %v7040
    %v7109 = vunpack.c.h.b16 %v7040
    %v7110 = vunpack.c.l.b16 %v7041
    %v7111 = vunpack.c.h.b16 %v7041
    %v7112 = vunpack.c.l.b16 %v7042
    %v7113 = vunpack.c.h.b16 %v7042
    %v7114 = vunpack.c.l.b16 %v7043
    %v7115 = vunpack.c.h.b16 %v7043
    %v7116 = vunpack.c.l.b16 %v7044
    %v7117 = vunpack.c.h.b16 %v7044
    %v7118 = vunpack.c.l.b16 %v7045
    %v7119 = vunpack.c.h.b16 %v7045
    %v7120 = vunpack.c.l.b16 %v7046
    %v7121 = vunpack.c.h.b16 %v7046
    %v7122 = vunpack.c.l.b16 %v7047
    %v7123 = vunpack.c.h.b16 %v7047
    %v7124 = vunpack.c.l.b16 %v7048
    %v7125 = vunpack.c.h.b16 %v7048
    %v7126 = vunpack.c.l.b16 %v7049
    %v7127 = vunpack.c.h.b16 %v7049
    %v7128 = vunpack.c.l.b16 %v7050
    %v7129 = vunpack.c.h.b16 %v7050
    %v7130 = vunpack.c.l.b16 %v7051
    %v7131 = vunpack.c.h.b16 %v7051
    %v7132 = vunpack.c.l.b16 %v7052
    %v7133 = vunpack.c.h.b16 %v7052
    %v7134 = vunpack.c.l.b16 %v7053
    %v7135 = vunpack.c.h.b16 %v7053
    %v7136 = vunpack.c.l.b16 %v7054
    %v7137 = vunpack.c.h.b16 %v7054
    %v7138 = vunpack.c.l.b16 %v7055
    %v7139 = vunpack.c.h.b16 %v7055
    %v7140 = vunpack.c.l.b16 %v7056
    %v7141 = vunpack.c.h.b16 %v7056
    %v7142 = vunpack.c.l.b16 %v7057
    %v7143 = vunpack.c.h.b16 %v7057
    %v7144 = vunpack.c.l.b16 %v7058
    %v7145 = vunpack.c.h.b16 %v7058
    %v7146 = vunpack.c.l.b16 %v7059
    %v7147 = vunpack.c.h.b16 %v7059
    %v7148 = vunpack.c.l.b16 %v7060
    %v7149 = vunpack.c.h.b16 %v7060
    %v7150 = vunpack.c.l.b16 %v7061
    %v7151 = vunpack.c.h.b16 %v7061
    %v7152 = vunpack.c.l.b16 %v7062
    %v7153 = vunpack.c.h.b16 %v7062
    %v7154 = vunpack.c.l.b16 %v7063
    %v7155 = vunpack.c.h.b16 %v7063
    %v7156 = vunpack.c.l.b16 %v7064
    %v7157 = vunpack.c.h.b16 %v7064
    %v7158 = vunpack.c.l.b16 %v7065
    %v7159 = vunpack.c.h.b16 %v7065
    %v7160 = vunpack.c.l.b16 %v7066
    %v7161 = vunpack.c.h.b16 %v7066
    %v7162 = vunpack.c.l.b16 %v7067
    %v7163 = vunpack.c.h.b16 %v7067
    %v7164 = vpack.c.b16 %v7102, %v7100
    %v7165 = vpack.c.b16 %v7103, %v7101
    %v7166 = vpack.c.b16 %v7106, %v7104
    %v7167 = vpack.c.b16 %v7107, %v7105
    %v7168 = vpack.c.b16 %v7110, %v7108
    %v7169 = vpack.c.b16 %v7111, %v7109
    %v7170 = vpack.c.b16 %v7114, %v7112
    %v7171 = vpack.c.b16 %v7115, %v7113
    %v7172 = vpack.c.b16 %v7118, %v7116
    %v7173 = vpack.c.b16 %v7119, %v7117
    %v7174 = vpack.c.b16 %v7122, %v7120
    %v7175 = vpack.c.b16 %v7123, %v7121
    %v7176 = vpack.c.b16 %v7126, %v7124
    %v7177 = vpack.c.b16 %v7127, %v7125
    %v7178 = vpack.c.b16 %v7130, %v7128
    %v7179 = vpack.c.b16 %v7131, %v7129
    %v7180 = vpack.c.b16 %v7134, %v7132
    %v7181 = vpack.c.b16 %v7135, %v7133
    %v7182 = vpack.c.b16 %v7138, %v7136
    %v7183 = vpack.c.b16 %v7139, %v7137
    %v7184 = vpack.c.b16 %v7142, %v7140
    %v7185 = vpack.c.b16 %v7143, %v7141
    %v7186 = vpack.c.b16 %v7146, %v7144
    %v7187 = vpack.c.b16 %v7147, %v7145
    %v7188 = vpack.c.b16 %v7150, %v7148
    %v7189 = vpack.c.b16 %v7151, %v7149
    %v7190 = vpack.c.b16 %v7154, %v7152
    %v7191 = vpack.c.b16 %v7155, %v7153
    %v7192 = vpack.c.b16 %v7158, %v7156
    %v7193 = vpack.c.b16 %v7159, %v7157
    %v7194 = vpack.c.b16 %v7162, %v7160
    %v7195 = vpack.c.b16 %v7163, %v7161
    %7228 = vmatprep.subr.bf16.mxu0 %v7165
    %7229 = vmatpush1.bf16.msra.mxu0 %v7164
    %7230 = vmatprep.subr.bf16.mxu0 %v7167
    %7231 = vmatpush1.bf16.msra.mxu0 %v7166
    %7232 = vmatprep.subr.bf16.mxu0 %v7169
    %7233 = vmatpush1.bf16.msra.mxu0 %v7168
    %7234 = vmatprep.subr.bf16.mxu0 %v7171
    %7235 = vmatpush1.bf16.msra.mxu0 %v7170
    %7236 = vmatprep.subr.bf16.mxu0 %v7173
    %7237 = vmatpush1.bf16.msra.mxu0 %v7172
    %7238 = vmatprep.subr.bf16.mxu0 %v7175
    %7239 = vmatpush1.bf16.msra.mxu0 %v7174
    %7240 = vmatprep.subr.bf16.mxu0 %v7177
    %7241 = vmatpush1.bf16.msra.mxu0 %v7176
    %7242 = vmatprep.subr.bf16.mxu0 %v7179
    %7243 = vmatpush1.bf16.msra.mxu0 %v7178
    %7244 = vmatprep.subr.bf16.mxu0 %v7181
    %7245 = vmatpush1.bf16.msra.mxu0 %v7180
    %7246 = vmatprep.subr.bf16.mxu0 %v7183
    %7247 = vmatpush1.bf16.msra.mxu0 %v7182
    %7248 = vmatprep.subr.bf16.mxu0 %v7185
    %7249 = vmatpush1.bf16.msra.mxu0 %v7184
    %7250 = vmatprep.subr.bf16.mxu0 %v7187
    %7251 = vmatpush1.bf16.msra.mxu0 %v7186
    %7252 = vmatprep.subr.bf16.mxu0 %v7189
    %7253 = vmatpush1.bf16.msra.mxu0 %v7188
    %7254 = vmatprep.subr.bf16.mxu0 %v7191
    %7255 = vmatpush1.bf16.msra.mxu0 %v7190
    %7256 = vmatprep.subr.bf16.mxu0 %v7193
    %7257 = vmatpush1.bf16.msra.mxu0 %v7192
    %7258 = vmatprep.subr.bf16.mxu0 %v7195
    %7259 = vmatpush1.bf16.msra.mxu0 %v7194
    %7260 = vmatprep.mubr.bf16.mxu0 %v7034
    %7261 = vmatmul.mubr.bf16.gmra.mrb[0].mxu0 %v7033
    %v7262 = vpop.f32.mrb[0].mxu0
    %v7263 = vadd.f32 0.0, %v7262
    %v7264 = vpop.f32.mrb[0].mxu0
    %v7265 = vadd.f32 0.0, %v7264
    %v7266 = vpop.f32.mrb[0].mxu0
    %v7267 = vpop.f32.mrb[0].mxu0
    %7268 = vdwg.mxu0
    %v7301 = vunpack.c.l.b16 %v6955
    %v7302 = vunpack.c.h.b16 %v6955
    %v7303 = vunpack.c.l.b16 %v6956
    %v7304 = vunpack.c.h.b16 %v6956
    %v7305 = vunpack.c.l.b16 %v6957
    %v7306 = vunpack.c.h.b16 %v6957
    %v7307 = vunpack.c.l.b16 %v6958
    %v7308 = vunpack.c.h.b16 %v6958
    %v7309 = vunpack.c.l.b16 %v6959
    %v7310 = vunpack.c.h.b16 %v6959
    %v7311 = vunpack.c.l.b16 %v6960
    %v7312 = vunpack.c.h.b16 %v6960
    %v7313 = vunpack.c.l.b16 %v6961
    %v7314 = vunpack.c.h.b16 %v6961
    %v7315 = vunpack.c.l.b16 %v6962
    %v7316 = vunpack.c.h.b16 %v6962
    %v7317 = vunpack.c.l.b16 %v6963
    %v7318 = vunpack.c.h.b16 %v6963
    %v7319 = vunpack.c.l.b16 %v6964
    %v7320 = vunpack.c.h.b16 %v6964
    %v7321 = vunpack.c.l.b16 %v6965
    %v7322 = vunpack.c.h.b16 %v6965
    %v7323 = vunpack.c.l.b16 %v6966
    %v7324 = vunpack.c.h.b16 %v6966
    %v7325 = vunpack.c.l.b16 %v6967
    %v7326 = vunpack.c.h.b16 %v6967
    %v7327 = vunpack.c.l.b16 %v6968
    %v7328 = vunpack.c.h.b16 %v6968
    %v7329 = vunpack.c.l.b16 %v6969
    %v7330 = vunpack.c.h.b16 %v6969
    %v7331 = vunpack.c.l.b16 %v6970
    %v7332 = vunpack.c.h.b16 %v6970
    %v7333 = vunpack.c.l.b16 %v6971
    %v7334 = vunpack.c.h.b16 %v6971
    %v7335 = vunpack.c.l.b16 %v6972
    %v7336 = vunpack.c.h.b16 %v6972
    %v7337 = vunpack.c.l.b16 %v6973
    %v7338 = vunpack.c.h.b16 %v6973
    %v7339 = vunpack.c.l.b16 %v6974
    %v7340 = vunpack.c.h.b16 %v6974
    %v7341 = vunpack.c.l.b16 %v6975
    %v7342 = vunpack.c.h.b16 %v6975
    %v7343 = vunpack.c.l.b16 %v6976
    %v7344 = vunpack.c.h.b16 %v6976
    %v7345 = vunpack.c.l.b16 %v6977
    %v7346 = vunpack.c.h.b16 %v6977
    %v7347 = vunpack.c.l.b16 %v6978
    %v7348 = vunpack.c.h.b16 %v6978
    %v7349 = vunpack.c.l.b16 %v6979
    %v7350 = vunpack.c.h.b16 %v6979
    %v7351 = vunpack.c.l.b16 %v6980
    %v7352 = vunpack.c.h.b16 %v6980
    %v7353 = vunpack.c.l.b16 %v6981
    %v7354 = vunpack.c.h.b16 %v6981
    %v7355 = vunpack.c.l.b16 %v6982
    %v7356 = vunpack.c.h.b16 %v6982
    %v7357 = vunpack.c.l.b16 %v6983
    %v7358 = vunpack.c.h.b16 %v6983
    %v7359 = vunpack.c.l.b16 %v6984
    %v7360 = vunpack.c.h.b16 %v6984
    %v7361 = vunpack.c.l.b16 %v6985
    %v7362 = vunpack.c.h.b16 %v6985
    %v7363 = vunpack.c.l.b16 %v6986
    %v7364 = vunpack.c.h.b16 %v6986
    %v7365 = vpack.c.b16 %v7303, %v7301
    %v7366 = vpack.c.b16 %v7304, %v7302
    %v7367 = vpack.c.b16 %v7307, %v7305
    %v7368 = vpack.c.b16 %v7308, %v7306
    %v7369 = vpack.c.b16 %v7311, %v7309
    %v7370 = vpack.c.b16 %v7312, %v7310
    %v7371 = vpack.c.b16 %v7315, %v7313
    %v7372 = vpack.c.b16 %v7316, %v7314
    %v7373 = vpack.c.b16 %v7319, %v7317
    %v7374 = vpack.c.b16 %v7320, %v7318
    %v7375 = vpack.c.b16 %v7323, %v7321
    %v7376 = vpack.c.b16 %v7324, %v7322
    %v7377 = vpack.c.b16 %v7327, %v7325
    %v7378 = vpack.c.b16 %v7328, %v7326
    %v7379 = vpack.c.b16 %v7331, %v7329
    %v7380 = vpack.c.b16 %v7332, %v7330
    %v7381 = vpack.c.b16 %v7335, %v7333
    %v7382 = vpack.c.b16 %v7336, %v7334
    %v7383 = vpack.c.b16 %v7339, %v7337
    %v7384 = vpack.c.b16 %v7340, %v7338
    %v7385 = vpack.c.b16 %v7343, %v7341
    %v7386 = vpack.c.b16 %v7344, %v7342
    %v7387 = vpack.c.b16 %v7347, %v7345
    %v7388 = vpack.c.b16 %v7348, %v7346
    %v7389 = vpack.c.b16 %v7351, %v7349
    %v7390 = vpack.c.b16 %v7352, %v7350
    %v7391 = vpack.c.b16 %v7355, %v7353
    %v7392 = vpack.c.b16 %v7356, %v7354
    %v7393 = vpack.c.b16 %v7359, %v7357
    %v7394 = vpack.c.b16 %v7360, %v7358
    %v7395 = vpack.c.b16 %v7363, %v7361
    %v7396 = vpack.c.b16 %v7364, %v7362
    %7429 = vmatprep.subr.bf16.mxu0 %v7366
    %7430 = vmatpush1.bf16.msra.mxu0 %v7365
    %7431 = vmatprep.subr.bf16.mxu0 %v7368
    %7432 = vmatpush1.bf16.msra.mxu0 %v7367
    %7433 = vmatprep.subr.bf16.mxu0 %v7370
    %7434 = vmatpush1.bf16.msra.mxu0 %v7369
    %7435 = vmatprep.subr.bf16.mxu0 %v7372
    %7436 = vmatpush1.bf16.msra.mxu0 %v7371
    %7437 = vmatprep.subr.bf16.mxu0 %v7374
    %7438 = vmatpush1.bf16.msra.mxu0 %v7373
    %7439 = vmatprep.subr.bf16.mxu0 %v7376
    %7440 = vmatpush1.bf16.msra.mxu0 %v7375
    %7441 = vmatprep.subr.bf16.mxu0 %v7378
    %7442 = vmatpush1.bf16.msra.mxu0 %v7377
    %7443 = vmatprep.subr.bf16.mxu0 %v7380
    %7444 = vmatpush1.bf16.msra.mxu0 %v7379
    %7445 = vmatprep.subr.bf16.mxu0 %v7382
    %7446 = vmatpush1.bf16.msra.mxu0 %v7381
    %7447 = vmatprep.subr.bf16.mxu0 %v7384
    %7448 = vmatpush1.bf16.msra.mxu0 %v7383
    %7449 = vmatprep.subr.bf16.mxu0 %v7386
    %7450 = vmatpush1.bf16.msra.mxu0 %v7385
    %7451 = vmatprep.subr.bf16.mxu0 %v7388
    %7452 = vmatpush1.bf16.msra.mxu0 %v7387
    %7453 = vmatprep.subr.bf16.mxu0 %v7390
    %7454 = vmatpush1.bf16.msra.mxu0 %v7389
    %7455 = vmatprep.subr.bf16.mxu0 %v7392
    %7456 = vmatpush1.bf16.msra.mxu0 %v7391
    %7457 = vmatprep.subr.bf16.mxu0 %v7394
    %7458 = vmatpush1.bf16.msra.mxu0 %v7393
    %7459 = vmatprep.subr.bf16.mxu0 %v7396
    %7460 = vmatpush1.bf16.msra.mxu0 %v7395
    %7461 = vmatprep.mubr.bf16.mxu0 %v6954
    %7462 = vmatmul.mubr.bf16.gmra.mrb[0].mxu0 %v6953
    %v7463 = vpop.f32.mrb[0].mxu0
    %v7464 = vadd.f32 %v7263, %v7463
    %v7465 = vpop.f32.mrb[0].mxu0
    %v7466 = vadd.f32 %v7265, %v7465
    %v7467 = vpop.f32.mrb[0].mxu0
    %v7468 = vpop.f32.mrb[0].mxu0
    %7469 = vdwg.mxu0
    %s7470 = scalar_lea.vmem [#allocation4], 416
    %v7471 = vld [vmem:[%s7470] sm:$0x3]
    %v7473 = vsel %vm5251, %v7471, 0
    %7475 = vmatprep.subr.bf16.mxu0 %v6910
    %7476 = vmatpush1.bf16.msra.mxu0 %v6907
    %7477 = vmatprep.subr.bf16.mxu0 0
    %7478 = vmatpush1.bf16.msra.mxu0 0
    %7479 = vmatprep.subr.bf16.mxu0 0
    %7480 = vmatpush1.bf16.msra.mxu0 0
    %7481 = vmatprep.subr.bf16.mxu0 0
    %7482 = vmatpush1.bf16.msra.mxu0 0
    %7483 = vmatprep.subr.bf16.mxu0 0
    %7484 = vmatpush1.bf16.msra.mxu0 0
    %7485 = vmatprep.subr.bf16.mxu0 0
    %7486 = vmatpush1.bf16.msra.mxu0 0
    %7487 = vmatprep.subr.bf16.mxu0 0
    %7488 = vmatpush1.bf16.msra.mxu0 0
    %7489 = vmatprep.subr.bf16.mxu0 0
    %7490 = vmatpush1.bf16.msra.mxu0 0
    %7491 = vmatprep.subr.bf16.mxu0 0
    %7492 = vmatpush1.bf16.msra.mxu0 0
    %7493 = vmatprep.subr.bf16.mxu0 0
    %7494 = vmatpush1.bf16.msra.mxu0 0
    %7495 = vmatprep.subr.bf16.mxu0 0
    %7496 = vmatpush1.bf16.msra.mxu0 0
    %7497 = vmatprep.subr.bf16.mxu0 0
    %7498 = vmatpush1.bf16.msra.mxu0 0
    %7499 = vmatprep.subr.bf16.mxu0 0
    %7500 = vmatpush1.bf16.msra.mxu0 0
    %7501 = vmatprep.subr.bf16.mxu0 0
    %7502 = vmatpush1.bf16.msra.mxu0 0
    %7503 = vmatprep.subr.bf16.mxu0 0
    %7504 = vmatpush1.bf16.msra.mxu0 0
    %7505 = vmatprep.subr.bf16.mxu0 0
    %7506 = vmatpush1.bf16.msra.mxu0 0
    %7507 = vmatprep.mubr.bf16.mxu0 0
    %7508 = vmatmul.mubr.bf16.gmra.mrb[0].mxu0 %v7473
    %v7509 = vpop.f32.mrb[0].mxu0
    %v7510 = vadd.f32 0.0, %v7509
    %v7511 = vpop.f32.mrb[0].mxu0
    %v7512 = vadd.f32 0.0, %v7511
    %v7513 = vpop.f32.mrb[0].mxu0
    %v7514 = vpop.f32.mrb[0].mxu0
    %7515 = vdwg.mxu0
    %v7516 = vpack.c.bf16 %v7510, %v7510
    %v7517 = vpack.c.bf16 %v7512, %v7512
    %s7518 = scalar_lea.vmem [#allocation20], 512
    %v7519 = vld [vmem:[%s7518] sm:$0xff]
    %v7520 = vld [vmem:[%s7518 + $0x8] sm:$0xff]
    %v7521 = vld [vmem:[%s7518 + $0x10] sm:$0xff]
    %v7522 = vld [vmem:[%s7518 + $0x18] sm:$0xff]
    %v7523 = vld [vmem:[%s7518 + $0x20] sm:$0xff]
    %v7524 = vld [vmem:[%s7518 + $0x28] sm:$0xff]
    %v7525 = vld [vmem:[%s7518 + $0x30] sm:$0xff]
    %v7526 = vld [vmem:[%s7518 + $0x38] sm:$0xff]
    %v7527 = vld [vmem:[%s7518 + $0x40] sm:$0xff]
    %v7528 = vld [vmem:[%s7518 + $0x48] sm:$0xff]
    %v7529 = vld [vmem:[%s7518 + $0x50] sm:$0xff]
    %v7530 = vld [vmem:[%s7518 + $0x58] sm:$0xff]
    %v7531 = vld [vmem:[%s7518 + $0x60] sm:$0xff]
    %v7532 = vld [vmem:[%s7518 + $0x68] sm:$0xff]
    %v7533 = vld [vmem:[%s7518 + $0x70] sm:$0xff]
    %v7534 = vld [vmem:[%s7518 + $0x78] sm:$0xff]
    %v7535 = vld [vmem:[%s7518 + $0x80] sm:$0xff]
    %v7536 = vld [vmem:[%s7518 + $0x88] sm:$0xff]
    %v7537 = vld [vmem:[%s7518 + $0x90] sm:$0xff]
    %v7538 = vld [vmem:[%s7518 + $0x98] sm:$0xff]
    %v7539 = vld [vmem:[%s7518 + $0xa0] sm:$0xff]
    %v7540 = vld [vmem:[%s7518 + $0xa8] sm:$0xff]
    %v7541 = vld [vmem:[%s7518 + $0xb0] sm:$0xff]
    %v7542 = vld [vmem:[%s7518 + $0xb8] sm:$0xff]
    %v7543 = vld [vmem:[%s7518 + $0xc0] sm:$0xff]
    %v7544 = vld [vmem:[%s7518 + $0xc8] sm:$0xff]
    %v7545 = vld [vmem:[%s7518 + $0xd0] sm:$0xff]
    %v7546 = vld [vmem:[%s7518 + $0xd8] sm:$0xff]
    %v7547 = vld [vmem:[%s7518 + $0xe0] sm:$0xff]
    %v7548 = vld [vmem:[%s7518 + $0xe8] sm:$0xff]
    %v7549 = vld [vmem:[%s7518 + $0xf0] sm:$0xff]
    %v7550 = vld [vmem:[%s7518 + $0xf8] sm:$0xff]
    %v7583 = vunpack.c.l.b16 %v7519
    %v7584 = vunpack.c.h.b16 %v7519
    %v7585 = vunpack.c.l.b16 %v7520
    %v7586 = vunpack.c.h.b16 %v7520
    %v7587 = vunpack.c.l.b16 %v7521
    %v7588 = vunpack.c.h.b16 %v7521
    %v7589 = vunpack.c.l.b16 %v7522
    %v7590 = vunpack.c.h.b16 %v7522
    %v7591 = vunpack.c.l.b16 %v7523
    %v7592 = vunpack.c.h.b16 %v7523
    %v7593 = vunpack.c.l.b16 %v7524
    %v7594 = vunpack.c.h.b16 %v7524
    %v7595 = vunpack.c.l.b16 %v7525
    %v7596 = vunpack.c.h.b16 %v7525
    %v7597 = vunpack.c.l.b16 %v7526
    %v7598 = vunpack.c.h.b16 %v7526
    %v7599 = vunpack.c.l.b16 %v7527
    %v7600 = vunpack.c.h.b16 %v7527
    %v7601 = vunpack.c.l.b16 %v7528
    %v7602 = vunpack.c.h.b16 %v7528
    %v7603 = vunpack.c.l.b16 %v7529
    %v7604 = vunpack.c.h.b16 %v7529
    %v7605 = vunpack.c.l.b16 %v7530
    %v7606 = vunpack.c.h.b16 %v7530
    %v7607 = vunpack.c.l.b16 %v7531
    %v7608 = vunpack.c.h.b16 %v7531
    %v7609 = vunpack.c.l.b16 %v7532
    %v7610 = vunpack.c.h.b16 %v7532
    %v7611 = vunpack.c.l.b16 %v7533
    %v7612 = vunpack.c.h.b16 %v7533
    %v7613 = vunpack.c.l.b16 %v7534
    %v7614 = vunpack.c.h.b16 %v7534
    %v7615 = vunpack.c.l.b16 %v7535
    %v7616 = vunpack.c.h.b16 %v7535
    %v7617 = vunpack.c.l.b16 %v7536
    %v7618 = vunpack.c.h.b16 %v7536
    %v7619 = vunpack.c.l.b16 %v7537
    %v7620 = vunpack.c.h.b16 %v7537
    %v7621 = vunpack.c.l.b16 %v7538
    %v7622 = vunpack.c.h.b16 %v7538
    %v7623 = vunpack.c.l.b16 %v7539
    %v7624 = vunpack.c.h.b16 %v7539
    %v7625 = vunpack.c.l.b16 %v7540
    %v7626 = vunpack.c.h.b16 %v7540
    %v7627 = vunpack.c.l.b16 %v7541
    %v7628 = vunpack.c.h.b16 %v7541
    %v7629 = vunpack.c.l.b16 %v7542
    %v7630 = vunpack.c.h.b16 %v7542
    %v7631 = vunpack.c.l.b16 %v7543
    %v7632 = vunpack.c.h.b16 %v7543
    %v7633 = vunpack.c.l.b16 %v7544
    %v7634 = vunpack.c.h.b16 %v7544
    %v7635 = vunpack.c.l.b16 %v7545
    %v7636 = vunpack.c.h.b16 %v7545
    %v7637 = vunpack.c.l.b16 %v7546
    %v7638 = vunpack.c.h.b16 %v7546
    %v7639 = vunpack.c.l.b16 %v7547
    %v7640 = vunpack.c.h.b16 %v7547
    %v7641 = vunpack.c.l.b16 %v7548
    %v7642 = vunpack.c.h.b16 %v7548
    %v7643 = vunpack.c.l.b16 %v7549
    %v7644 = vunpack.c.h.b16 %v7549
    %v7645 = vunpack.c.l.b16 %v7550
    %v7646 = vunpack.c.h.b16 %v7550
    %v7647 = vpack.c.b16 %v7585, %v7583
    %v7648 = vpack.c.b16 %v7586, %v7584
    %v7649 = vpack.c.b16 %v7589, %v7587
    %v7650 = vpack.c.b16 %v7590, %v7588
    %v7651 = vpack.c.b16 %v7593, %v7591
    %v7652 = vpack.c.b16 %v7594, %v7592
    %v7653 = vpack.c.b16 %v7597, %v7595
    %v7654 = vpack.c.b16 %v7598, %v7596
    %v7655 = vpack.c.b16 %v7601, %v7599
    %v7656 = vpack.c.b16 %v7602, %v7600
    %v7657 = vpack.c.b16 %v7605, %v7603
    %v7658 = vpack.c.b16 %v7606, %v7604
    %v7659 = vpack.c.b16 %v7609, %v7607
    %v7660 = vpack.c.b16 %v7610, %v7608
    %v7661 = vpack.c.b16 %v7613, %v7611
    %v7662 = vpack.c.b16 %v7614, %v7612
    %v7663 = vpack.c.b16 %v7617, %v7615
    %v7664 = vpack.c.b16 %v7618, %v7616
    %v7665 = vpack.c.b16 %v7621, %v7619
    %v7666 = vpack.c.b16 %v7622, %v7620
    %v7667 = vpack.c.b16 %v7625, %v7623
    %v7668 = vpack.c.b16 %v7626, %v7624
    %v7669 = vpack.c.b16 %v7629, %v7627
    %v7670 = vpack.c.b16 %v7630, %v7628
    %v7671 = vpack.c.b16 %v7633, %v7631
    %v7672 = vpack.c.b16 %v7634, %v7632
    %v7673 = vpack.c.b16 %v7637, %v7635
    %v7674 = vpack.c.b16 %v7638, %v7636
    %v7675 = vpack.c.b16 %v7641, %v7639
    %v7676 = vpack.c.b16 %v7642, %v7640
    %v7677 = vpack.c.b16 %v7645, %v7643
    %v7678 = vpack.c.b16 %v7646, %v7644
    %7711 = vmatprep.subr.bf16.mxu0 %v7648
    %7712 = vmatpush1.bf16.msra.mxu0 %v7647
    %7713 = vmatprep.subr.bf16.mxu0 %v7650
    %7714 = vmatpush1.bf16.msra.mxu0 %v7649
    %7715 = vmatprep.subr.bf16.mxu0 %v7652
    %7716 = vmatpush1.bf16.msra.mxu0 %v7651
    %7717 = vmatprep.subr.bf16.mxu0 %v7654
    %7718 = vmatpush1.bf16.msra.mxu0 %v7653
    %7719 = vmatprep.subr.bf16.mxu0 %v7656
    %7720 = vmatpush1.bf16.msra.mxu0 %v7655
    %7721 = vmatprep.subr.bf16.mxu0 %v7658
    %7722 = vmatpush1.bf16.msra.mxu0 %v7657
    %7723 = vmatprep.subr.bf16.mxu0 %v7660
    %7724 = vmatpush1.bf16.msra.mxu0 %v7659
    %7725 = vmatprep.subr.bf16.mxu0 %v7662
    %7726 = vmatpush1.bf16.msra.mxu0 %v7661
    %7727 = vmatprep.subr.bf16.mxu0 %v7664
    %7728 = vmatpush1.bf16.msra.mxu0 %v7663
    %7729 = vmatprep.subr.bf16.mxu0 %v7666
    %7730 = vmatpush1.bf16.msra.mxu0 %v7665
    %7731 = vmatprep.subr.bf16.mxu0 %v7668
    %7732 = vmatpush1.bf16.msra.mxu0 %v7667
    %7733 = vmatprep.subr.bf16.mxu0 %v7670
    %7734 = vmatpush1.bf16.msra.mxu0 %v7669
    %7735 = vmatprep.subr.bf16.mxu0 %v7672
    %7736 = vmatpush1.bf16.msra.mxu0 %v7671
    %7737 = vmatprep.subr.bf16.mxu0 %v7674
    %7738 = vmatpush1.bf16.msra.mxu0 %v7673
    %7739 = vmatprep.subr.bf16.mxu0 %v7676
    %7740 = vmatpush1.bf16.msra.mxu0 %v7675
    %7741 = vmatprep.subr.bf16.mxu0 %v7678
    %7742 = vmatpush1.bf16.msra.mxu0 %v7677
    %7743 = vmatprep.mubr.bf16.mxu0 %v7517
    %7744 = vmatmul.mubr.bf16.gmra.mrb[0].mxu0 %v7516
    %v7745 = vpop.f32.mrb[0].mxu0
    %v7746 = vadd.f32 0.0, %v7745
    %v7747 = vpop.f32.mrb[0].mxu0
    %v7748 = vadd.f32 0.0, %v7747
    %v7749 = vpop.f32.mrb[0].mxu0
    %v7750 = vpop.f32.mrb[0].mxu0
    %7751 = vdwg.mxu0
    %v7752 = vadd.f32 %v7464, %v7746
    %v7753 = vadd.f32 %v7466, %v7748
    %s7754 = scalar_lea.vmem [#allocation6], 32
    %v7755 = vld [vmem:[%s7754] ss:$8 sm:$0x3]
    %v7757 = vlaneseq
    %v7758 = vshrl.u32 %v7757, 7
    %v7759 = vsub.s32 0, %v7758
    %v7760 = vrot.slane %v7755, %v7759
    %v7761 = vlaneseq
    %v7762 = vshrl.u32 %v7761, 7
    %v7763 = vsub.s32 1, %v7762
    %v7764 = vrot.slane %v7755, %v7763
    %v7767 = vadd.f32 %v7752, %v7760
    %v7768 = vadd.f32 %v7753, %v7764
    %v7769 = vmax.f32 %v7767, 0.0
    %v7770 = vmax.f32 %v7768, 0.0
    %v7771 = vpack.c.bf16 %v7769, %v7769
    %v7772 = vpack.c.bf16 %v7770, %v7770
    %s7773 = scalar_lea.vmem [#allocation4], 432
    %v7774 = vld [vmem:[%s7773] sm:$0x3]
    %vm7775 = vcmask 31744
    %v7777 = vsel %vm7775, %v7774, 0
    %vm7779 = vcmask 1041408
    %v7781 = vsel %vm7779, %v7771, 0
    %v7784 = vsel %vm7779, %v7772, 0
    %7786 = vmatprep.subr.bf16.mxu0 %v7784
    %7787 = vmatpush1.bf16.msra.mxu0 %v7781
    %7788 = vmatprep.subr.bf16.mxu0 0
    %7789 = vmatpush1.bf16.msra.mxu0 0
    %7790 = vmatprep.subr.bf16.mxu0 0
    %7791 = vmatpush1.bf16.msra.mxu0 0
    %7792 = vmatprep.subr.bf16.mxu0 0
    %7793 = vmatpush1.bf16.msra.mxu0 0
    %7794 = vmatprep.subr.bf16.mxu0 0
    %7795 = vmatpush1.bf16.msra.mxu0 0
    %7796 = vmatprep.subr.bf16.mxu0 0
    %7797 = vmatpush1.bf16.msra.mxu0 0
    %7798 = vmatprep.subr.bf16.mxu0 0
    %7799 = vmatpush1.bf16.msra.mxu0 0
    %7800 = vmatprep.subr.bf16.mxu0 0
    %7801 = vmatpush1.bf16.msra.mxu0 0
    %7802 = vmatprep.subr.bf16.mxu0 0
    %7803 = vmatpush1.bf16.msra.mxu0 0
    %7804 = vmatprep.subr.bf16.mxu0 0
    %7805 = vmatpush1.bf16.msra.mxu0 0
    %7806 = vmatprep.subr.bf16.mxu0 0
    %7807 = vmatpush1.bf16.msra.mxu0 0
    %7808 = vmatprep.subr.bf16.mxu0 0
    %7809 = vmatpush1.bf16.msra.mxu0 0
    %7810 = vmatprep.subr.bf16.mxu0 0
    %7811 = vmatpush1.bf16.msra.mxu0 0
    %7812 = vmatprep.subr.bf16.mxu0 0
    %7813 = vmatpush1.bf16.msra.mxu0 0
    %7814 = vmatprep.subr.bf16.mxu0 0
    %7815 = vmatpush1.bf16.msra.mxu0 0
    %7816 = vmatprep.subr.bf16.mxu0 0
    %7817 = vmatpush1.bf16.msra.mxu0 0
    %7818 = vmatprep.mubr.bf16.mxu0 0
    %7819 = vmatmul.mubr.bf16.gmra.mrb[0].mxu0 %v7777
    %v7820 = vpop.f32.mrb[0].mxu0
    %v7821 = vadd.f32 0.0, %v7820
    %v7822 = vpop.f32.mrb[0].mxu0
    %v7823 = vadd.f32 0.0, %v7822
    %v7824 = vpop.f32.mrb[0].mxu0
    %v7825 = vpop.f32.mrb[0].mxu0
    %7826 = vdwg.mxu0
    %v7827 = vpack.c.bf16 %v7821, %v7821
    %v7828 = vpack.c.bf16 %v7823, %v7823
    %v7829 = vld [vmem:[#allocation21] sm:$0xff]
    %v7830 = vld [vmem:[#allocation21 + $0x8] sm:$0xff]
    %v7831 = vld [vmem:[#allocation21 + $0x10] sm:$0xff]
    %v7832 = vld [vmem:[#allocation21 + $0x18] sm:$0xff]
    %v7833 = vld [vmem:[#allocation21 + $0x20] sm:$0xff]
    %v7834 = vld [vmem:[#allocation21 + $0x28] sm:$0xff]
    %v7835 = vld [vmem:[#allocation21 + $0x30] sm:$0xff]
    %v7836 = vld [vmem:[#allocation21 + $0x38] sm:$0xff]
    %v7837 = vld [vmem:[#allocation21 + $0x40] sm:$0xff]
    %v7838 = vld [vmem:[#allocation21 + $0x48] sm:$0xff]
    %v7839 = vld [vmem:[#allocation21 + $0x50] sm:$0xff]
    %v7840 = vld [vmem:[#allocation21 + $0x58] sm:$0xff]
    %v7841 = vld [vmem:[#allocation21 + $0x60] sm:$0xff]
    %v7842 = vld [vmem:[#allocation21 + $0x68] sm:$0xff]
    %v7843 = vld [vmem:[#allocation21 + $0x70] sm:$0xff]
    %v7844 = vld [vmem:[#allocation21 + $0x78] sm:$0xff]
    %v7845 = vld [vmem:[#allocation21 + $0x80] sm:$0xff]
    %v7846 = vld [vmem:[#allocation21 + $0x88] sm:$0xff]
    %v7847 = vld [vmem:[#allocation21 + $0x90] sm:$0xff]
    %v7848 = vld [vmem:[#allocation21 + $0x98] sm:$0xff]
    %v7849 = vld [vmem:[#allocation21 + $0xa0] sm:$0xff]
    %v7850 = vld [vmem:[#allocation21 + $0xa8] sm:$0xff]
    %v7851 = vld [vmem:[#allocation21 + $0xb0] sm:$0xff]
    %v7852 = vld [vmem:[#allocation21 + $0xb8] sm:$0xff]
    %v7853 = vld [vmem:[#allocation21 + $0xc0] sm:$0xff]
    %v7854 = vld [vmem:[#allocation21 + $0xc8] sm:$0xff]
    %v7855 = vld [vmem:[#allocation21 + $0xd0] sm:$0xff]
    %v7856 = vld [vmem:[#allocation21 + $0xd8] sm:$0xff]
    %v7857 = vld [vmem:[#allocation21 + $0xe0] sm:$0xff]
    %v7858 = vld [vmem:[#allocation21 + $0xe8] sm:$0xff]
    %v7859 = vld [vmem:[#allocation21 + $0xf0] sm:$0xff]
    %v7860 = vld [vmem:[#allocation21 + $0xf8] sm:$0xff]
    %s7861 = scalar_lea.vmem [#allocation21], 256
    %v7862 = vld [vmem:[%s7861] sm:$0xff]
    %v7863 = vld [vmem:[%s7861 + $0x8] sm:$0xff]
    %v7864 = vld [vmem:[%s7861 + $0x10] sm:$0xff]
    %v7865 = vld [vmem:[%s7861 + $0x18] sm:$0xff]
    %v7866 = vld [vmem:[%s7861 + $0x20] sm:$0xff]
    %v7867 = vld [vmem:[%s7861 + $0x28] sm:$0xff]
    %v7868 = vld [vmem:[%s7861 + $0x30] sm:$0xff]
    %v7869 = vld [vmem:[%s7861 + $0x38] sm:$0xff]
    %v7870 = vld [vmem:[%s7861 + $0x40] sm:$0xff]
    %v7871 = vld [vmem:[%s7861 + $0x48] sm:$0xff]
    %v7872 = vld [vmem:[%s7861 + $0x50] sm:$0xff]
    %v7873 = vld [vmem:[%s7861 + $0x58] sm:$0xff]
    %v7874 = vld [vmem:[%s7861 + $0x60] sm:$0xff]
    %v7875 = vld [vmem:[%s7861 + $0x68] sm:$0xff]
    %v7876 = vld [vmem:[%s7861 + $0x70] sm:$0xff]
    %v7877 = vld [vmem:[%s7861 + $0x78] sm:$0xff]
    %v7878 = vld [vmem:[%s7861 + $0x80] sm:$0xff]
    %v7879 = vld [vmem:[%s7861 + $0x88] sm:$0xff]
    %v7880 = vld [vmem:[%s7861 + $0x90] sm:$0xff]
    %v7881 = vld [vmem:[%s7861 + $0x98] sm:$0xff]
    %v7882 = vld [vmem:[%s7861 + $0xa0] sm:$0xff]
    %v7883 = vld [vmem:[%s7861 + $0xa8] sm:$0xff]
    %v7884 = vld [vmem:[%s7861 + $0xb0] sm:$0xff]
    %v7885 = vld [vmem:[%s7861 + $0xb8] sm:$0xff]
    %v7886 = vld [vmem:[%s7861 + $0xc0] sm:$0xff]
    %v7887 = vld [vmem:[%s7861 + $0xc8] sm:$0xff]
    %v7888 = vld [vmem:[%s7861 + $0xd0] sm:$0xff]
    %v7889 = vld [vmem:[%s7861 + $0xd8] sm:$0xff]
    %v7890 = vld [vmem:[%s7861 + $0xe0] sm:$0xff]
    %v7891 = vld [vmem:[%s7861 + $0xe8] sm:$0xff]
    %v7892 = vld [vmem:[%s7861 + $0xf0] sm:$0xff]
    %v7893 = vld [vmem:[%s7861 + $0xf8] sm:$0xff]
    %v7926 = vunpack.c.l.b16 %v7862
    %v7927 = vunpack.c.h.b16 %v7862
    %v7928 = vunpack.c.l.b16 %v7863
    %v7929 = vunpack.c.h.b16 %v7863
    %v7930 = vunpack.c.l.b16 %v7864
    %v7931 = vunpack.c.h.b16 %v7864
    %v7932 = vunpack.c.l.b16 %v7865
    %v7933 = vunpack.c.h.b16 %v7865
    %v7934 = vunpack.c.l.b16 %v7866
    %v7935 = vunpack.c.h.b16 %v7866
    %v7936 = vunpack.c.l.b16 %v7867
    %v7937 = vunpack.c.h.b16 %v7867
    %v7938 = vunpack.c.l.b16 %v7868
    %v7939 = vunpack.c.h.b16 %v7868
    %v7940 = vunpack.c.l.b16 %v7869
    %v7941 = vunpack.c.h.b16 %v7869
    %v7942 = vunpack.c.l.b16 %v7870
    %v7943 = vunpack.c.h.b16 %v7870
    %v7944 = vunpack.c.l.b16 %v7871
    %v7945 = vunpack.c.h.b16 %v7871
    %v7946 = vunpack.c.l.b16 %v7872
    %v7947 = vunpack.c.h.b16 %v7872
    %v7948 = vunpack.c.l.b16 %v7873
    %v7949 = vunpack.c.h.b16 %v7873
    %v7950 = vunpack.c.l.b16 %v7874
    %v7951 = vunpack.c.h.b16 %v7874
    %v7952 = vunpack.c.l.b16 %v7875
    %v7953 = vunpack.c.h.b16 %v7875
    %v7954 = vunpack.c.l.b16 %v7876
    %v7955 = vunpack.c.h.b16 %v7876
    %v7956 = vunpack.c.l.b16 %v7877
    %v7957 = vunpack.c.h.b16 %v7877
    %v7958 = vunpack.c.l.b16 %v7878
    %v7959 = vunpack.c.h.b16 %v7878
    %v7960 = vunpack.c.l.b16 %v7879
    %v7961 = vunpack.c.h.b16 %v7879
    %v7962 = vunpack.c.l.b16 %v7880
    %v7963 = vunpack.c.h.b16 %v7880
    %v7964 = vunpack.c.l.b16 %v7881
    %v7965 = vunpack.c.h.b16 %v7881
    %v7966 = vunpack.c.l.b16 %v7882
    %v7967 = vunpack.c.h.b16 %v7882
    %v7968 = vunpack.c.l.b16 %v7883
    %v7969 = vunpack.c.h.b16 %v7883
    %v7970 = vunpack.c.l.b16 %v7884
    %v7971 = vunpack.c.h.b16 %v7884
    %v7972 = vunpack.c.l.b16 %v7885
    %v7973 = vunpack.c.h.b16 %v7885
    %v7974 = vunpack.c.l.b16 %v7886
    %v7975 = vunpack.c.h.b16 %v7886
    %v7976 = vunpack.c.l.b16 %v7887
    %v7977 = vunpack.c.h.b16 %v7887
    %v7978 = vunpack.c.l.b16 %v7888
    %v7979 = vunpack.c.h.b16 %v7888
    %v7980 = vunpack.c.l.b16 %v7889
    %v7981 = vunpack.c.h.b16 %v7889
    %v7982 = vunpack.c.l.b16 %v7890
    %v7983 = vunpack.c.h.b16 %v7890
    %v7984 = vunpack.c.l.b16 %v7891
    %v7985 = vunpack.c.h.b16 %v7891
    %v7986 = vunpack.c.l.b16 %v7892
    %v7987 = vunpack.c.h.b16 %v7892
    %v7988 = vunpack.c.l.b16 %v7893
    %v7989 = vunpack.c.h.b16 %v7893
    %v7990 = vpack.c.b16 %v7928, %v7926
    %v7991 = vpack.c.b16 %v7929, %v7927
    %v7992 = vpack.c.b16 %v7932, %v7930
    %v7993 = vpack.c.b16 %v7933, %v7931
    %v7994 = vpack.c.b16 %v7936, %v7934
    %v7995 = vpack.c.b16 %v7937, %v7935
    %v7996 = vpack.c.b16 %v7940, %v7938
    %v7997 = vpack.c.b16 %v7941, %v7939
    %v7998 = vpack.c.b16 %v7944, %v7942
    %v7999 = vpack.c.b16 %v7945, %v7943
    %v8000 = vpack.c.b16 %v7948, %v7946
    %v8001 = vpack.c.b16 %v7949, %v7947
    %v8002 = vpack.c.b16 %v7952, %v7950
    %v8003 = vpack.c.b16 %v7953, %v7951
    %v8004 = vpack.c.b16 %v7956, %v7954
    %v8005 = vpack.c.b16 %v7957, %v7955
    %v8006 = vpack.c.b16 %v7960, %v7958
    %v8007 = vpack.c.b16 %v7961, %v7959
    %v8008 = vpack.c.b16 %v7964, %v7962
    %v8009 = vpack.c.b16 %v7965, %v7963
    %v8010 = vpack.c.b16 %v7968, %v7966
    %v8011 = vpack.c.b16 %v7969, %v7967
    %v8012 = vpack.c.b16 %v7972, %v7970
    %v8013 = vpack.c.b16 %v7973, %v7971
    %v8014 = vpack.c.b16 %v7976, %v7974
    %v8015 = vpack.c.b16 %v7977, %v7975
    %v8016 = vpack.c.b16 %v7980, %v7978
    %v8017 = vpack.c.b16 %v7981, %v7979
    %v8018 = vpack.c.b16 %v7984, %v7982
    %v8019 = vpack.c.b16 %v7985, %v7983
    %v8020 = vpack.c.b16 %v7988, %v7986
    %v8021 = vpack.c.b16 %v7989, %v7987
    %8054 = vmatprep.subr.bf16.mxu0 %v7991
    %8055 = vmatpush1.bf16.msra.mxu0 %v7990
    %8056 = vmatprep.subr.bf16.mxu0 %v7993
    %8057 = vmatpush1.bf16.msra.mxu0 %v7992
    %8058 = vmatprep.subr.bf16.mxu0 %v7995
    %8059 = vmatpush1.bf16.msra.mxu0 %v7994
    %8060 = vmatprep.subr.bf16.mxu0 %v7997
    %8061 = vmatpush1.bf16.msra.mxu0 %v7996
    %8062 = vmatprep.subr.bf16.mxu0 %v7999
    %8063 = vmatpush1.bf16.msra.mxu0 %v7998
    %8064 = vmatprep.subr.bf16.mxu0 %v8001
    %8065 = vmatpush1.bf16.msra.mxu0 %v8000
    %8066 = vmatprep.subr.bf16.mxu0 %v8003
    %8067 = vmatpush1.bf16.msra.mxu0 %v8002
    %8068 = vmatprep.subr.bf16.mxu0 %v8005
    %8069 = vmatpush1.bf16.msra.mxu0 %v8004
    %8070 = vmatprep.subr.bf16.mxu0 %v8007
    %8071 = vmatpush1.bf16.msra.mxu0 %v8006
    %8072 = vmatprep.subr.bf16.mxu0 %v8009
    %8073 = vmatpush1.bf16.msra.mxu0 %v8008
    %8074 = vmatprep.subr.bf16.mxu0 %v8011
    %8075 = vmatpush1.bf16.msra.mxu0 %v8010
    %8076 = vmatprep.subr.bf16.mxu0 %v8013
    %8077 = vmatpush1.bf16.msra.mxu0 %v8012
    %8078 = vmatprep.subr.bf16.mxu0 %v8015
    %8079 = vmatpush1.bf16.msra.mxu0 %v8014
    %8080 = vmatprep.subr.bf16.mxu0 %v8017
    %8081 = vmatpush1.bf16.msra.mxu0 %v8016
    %8082 = vmatprep.subr.bf16.mxu0 %v8019
    %8083 = vmatpush1.bf16.msra.mxu0 %v8018
    %8084 = vmatprep.subr.bf16.mxu0 %v8021
    %8085 = vmatpush1.bf16.msra.mxu0 %v8020
    %8086 = vmatprep.mubr.bf16.mxu0 %v7772
    %8087 = vmatmul.mubr.bf16.gmra.mrb[0].mxu0 %v7771
    %v8088 = vpop.f32.mrb[0].mxu0
    %v8089 = vadd.f32 0.0, %v8088
    %v8090 = vpop.f32.mrb[0].mxu0
    %v8091 = vadd.f32 0.0, %v8090
    %v8092 = vpop.f32.mrb[0].mxu0
    %v8093 = vpop.f32.mrb[0].mxu0
    %8094 = vdwg.mxu0
    %v8127 = vunpack.c.l.b16 %v7829
    %v8128 = vunpack.c.h.b16 %v7829
    %v8129 = vunpack.c.l.b16 %v7830
    %v8130 = vunpack.c.h.b16 %v7830
    %v8131 = vunpack.c.l.b16 %v7831
    %v8132 = vunpack.c.h.b16 %v7831
    %v8133 = vunpack.c.l.b16 %v7832
    %v8134 = vunpack.c.h.b16 %v7832
    %v8135 = vunpack.c.l.b16 %v7833
    %v8136 = vunpack.c.h.b16 %v7833
    %v8137 = vunpack.c.l.b16 %v7834
    %v8138 = vunpack.c.h.b16 %v7834
    %v8139 = vunpack.c.l.b16 %v7835
    %v8140 = vunpack.c.h.b16 %v7835
    %v8141 = vunpack.c.l.b16 %v7836
    %v8142 = vunpack.c.h.b16 %v7836
    %v8143 = vunpack.c.l.b16 %v7837
    %v8144 = vunpack.c.h.b16 %v7837
    %v8145 = vunpack.c.l.b16 %v7838
    %v8146 = vunpack.c.h.b16 %v7838
    %v8147 = vunpack.c.l.b16 %v7839
    %v8148 = vunpack.c.h.b16 %v7839
    %v8149 = vunpack.c.l.b16 %v7840
    %v8150 = vunpack.c.h.b16 %v7840
    %v8151 = vunpack.c.l.b16 %v7841
    %v8152 = vunpack.c.h.b16 %v7841
    %v8153 = vunpack.c.l.b16 %v7842
    %v8154 = vunpack.c.h.b16 %v7842
    %v8155 = vunpack.c.l.b16 %v7843
    %v8156 = vunpack.c.h.b16 %v7843
    %v8157 = vunpack.c.l.b16 %v7844
    %v8158 = vunpack.c.h.b16 %v7844
    %v8159 = vunpack.c.l.b16 %v7845
    %v8160 = vunpack.c.h.b16 %v7845
    %v8161 = vunpack.c.l.b16 %v7846
    %v8162 = vunpack.c.h.b16 %v7846
    %v8163 = vunpack.c.l.b16 %v7847
    %v8164 = vunpack.c.h.b16 %v7847
    %v8165 = vunpack.c.l.b16 %v7848
    %v8166 = vunpack.c.h.b16 %v7848
    %v8167 = vunpack.c.l.b16 %v7849
    %v8168 = vunpack.c.h.b16 %v7849
    %v8169 = vunpack.c.l.b16 %v7850
    %v8170 = vunpack.c.h.b16 %v7850
    %v8171 = vunpack.c.l.b16 %v7851
    %v8172 = vunpack.c.h.b16 %v7851
    %v8173 = vunpack.c.l.b16 %v7852
    %v8174 = vunpack.c.h.b16 %v7852
    %v8175 = vunpack.c.l.b16 %v7853
    %v8176 = vunpack.c.h.b16 %v7853
    %v8177 = vunpack.c.l.b16 %v7854
    %v8178 = vunpack.c.h.b16 %v7854
    %v8179 = vunpack.c.l.b16 %v7855
    %v8180 = vunpack.c.h.b16 %v7855
    %v8181 = vunpack.c.l.b16 %v7856
    %v8182 = vunpack.c.h.b16 %v7856
    %v8183 = vunpack.c.l.b16 %v7857
    %v8184 = vunpack.c.h.b16 %v7857
    %v8185 = vunpack.c.l.b16 %v7858
    %v8186 = vunpack.c.h.b16 %v7858
    %v8187 = vunpack.c.l.b16 %v7859
    %v8188 = vunpack.c.h.b16 %v7859
    %v8189 = vunpack.c.l.b16 %v7860
    %v8190 = vunpack.c.h.b16 %v7860
    %v8191 = vpack.c.b16 %v8129, %v8127
    %v8192 = vpack.c.b16 %v8130, %v8128
    %v8193 = vpack.c.b16 %v8133, %v8131
    %v8194 = vpack.c.b16 %v8134, %v8132
    %v8195 = vpack.c.b16 %v8137, %v8135
    %v8196 = vpack.c.b16 %v8138, %v8136
    %v8197 = vpack.c.b16 %v8141, %v8139
    %v8198 = vpack.c.b16 %v8142, %v8140
    %v8199 = vpack.c.b16 %v8145, %v8143
    %v8200 = vpack.c.b16 %v8146, %v8144
    %v8201 = vpack.c.b16 %v8149, %v8147
    %v8202 = vpack.c.b16 %v8150, %v8148
    %v8203 = vpack.c.b16 %v8153, %v8151
    %v8204 = vpack.c.b16 %v8154, %v8152
    %v8205 = vpack.c.b16 %v8157, %v8155
    %v8206 = vpack.c.b16 %v8158, %v8156
    %v8207 = vpack.c.b16 %v8161, %v8159
    %v8208 = vpack.c.b16 %v8162, %v8160
    %v8209 = vpack.c.b16 %v8165, %v8163
    %v8210 = vpack.c.b16 %v8166, %v8164
    %v8211 = vpack.c.b16 %v8169, %v8167
    %v8212 = vpack.c.b16 %v8170, %v8168
    %v8213 = vpack.c.b16 %v8173, %v8171
    %v8214 = vpack.c.b16 %v8174, %v8172
    %v8215 = vpack.c.b16 %v8177, %v8175
    %v8216 = vpack.c.b16 %v8178, %v8176
    %v8217 = vpack.c.b16 %v8181, %v8179
    %v8218 = vpack.c.b16 %v8182, %v8180
    %v8219 = vpack.c.b16 %v8185, %v8183
    %v8220 = vpack.c.b16 %v8186, %v8184
    %v8221 = vpack.c.b16 %v8189, %v8187
    %v8222 = vpack.c.b16 %v8190, %v8188
    %8255 = vmatprep.subr.bf16.mxu0 %v8192
    %8256 = vmatpush1.bf16.msra.mxu0 %v8191
    %8257 = vmatprep.subr.bf16.mxu0 %v8194
    %8258 = vmatpush1.bf16.msra.mxu0 %v8193
    %8259 = vmatprep.subr.bf16.mxu0 %v8196
    %8260 = vmatpush1.bf16.msra.mxu0 %v8195
    %8261 = vmatprep.subr.bf16.mxu0 %v8198
    %8262 = vmatpush1.bf16.msra.mxu0 %v8197
    %8263 = vmatprep.subr.bf16.mxu0 %v8200
    %8264 = vmatpush1.bf16.msra.mxu0 %v8199
    %8265 = vmatprep.subr.bf16.mxu0 %v8202
    %8266 = vmatpush1.bf16.msra.mxu0 %v8201
    %8267 = vmatprep.subr.bf16.mxu0 %v8204
    %8268 = vmatpush1.bf16.msra.mxu0 %v8203
    %8269 = vmatprep.subr.bf16.mxu0 %v8206
    %8270 = vmatpush1.bf16.msra.mxu0 %v8205
    %8271 = vmatprep.subr.bf16.mxu0 %v8208
    %8272 = vmatpush1.bf16.msra.mxu0 %v8207
    %8273 = vmatprep.subr.bf16.mxu0 %v8210
    %8274 = vmatpush1.bf16.msra.mxu0 %v8209
    %8275 = vmatprep.subr.bf16.mxu0 %v8212
    %8276 = vmatpush1.bf16.msra.mxu0 %v8211
    %8277 = vmatprep.subr.bf16.mxu0 %v8214
    %8278 = vmatpush1.bf16.msra.mxu0 %v8213
    %8279 = vmatprep.subr.bf16.mxu0 %v8216
    %8280 = vmatpush1.bf16.msra.mxu0 %v8215
    %8281 = vmatprep.subr.bf16.mxu0 %v8218
    %8282 = vmatpush1.bf16.msra.mxu0 %v8217
    %8283 = vmatprep.subr.bf16.mxu0 %v8220
    %8284 = vmatpush1.bf16.msra.mxu0 %v8219
    %8285 = vmatprep.subr.bf16.mxu0 %v8222
    %8286 = vmatpush1.bf16.msra.mxu0 %v8221
    %8287 = vmatprep.mubr.bf16.mxu0 %v7828
    %8288 = vmatmul.mubr.bf16.gmra.mrb[0].mxu0 %v7827
    %v8289 = vpop.f32.mrb[0].mxu0
    %v8290 = vadd.f32 %v8089, %v8289
    %v8291 = vpop.f32.mrb[0].mxu0
    %v8292 = vadd.f32 %v8091, %v8291
    %v8293 = vpop.f32.mrb[0].mxu0
    %v8294 = vpop.f32.mrb[0].mxu0
    %8295 = vdwg.mxu0
    %s8296 = scalar_lea.vmem [#allocation4], 464
    %v8297 = vld [vmem:[%s8296] sm:$0x3]
    %v8299 = vsel %vm7775, %v8297, 0
    %8301 = vmatprep.subr.bf16.mxu0 %v7784
    %8302 = vmatpush1.bf16.msra.mxu0 %v7781
    %8303 = vmatprep.subr.bf16.mxu0 0
    %8304 = vmatpush1.bf16.msra.mxu0 0
    %8305 = vmatprep.subr.bf16.mxu0 0
    %8306 = vmatpush1.bf16.msra.mxu0 0
    %8307 = vmatprep.subr.bf16.mxu0 0
    %8308 = vmatpush1.bf16.msra.mxu0 0
    %8309 = vmatprep.subr.bf16.mxu0 0
    %8310 = vmatpush1.bf16.msra.mxu0 0
    %8311 = vmatprep.subr.bf16.mxu0 0
    %8312 = vmatpush1.bf16.msra.mxu0 0
    %8313 = vmatprep.subr.bf16.mxu0 0
    %8314 = vmatpush1.bf16.msra.mxu0 0
    %8315 = vmatprep.subr.bf16.mxu0 0
    %8316 = vmatpush1.bf16.msra.mxu0 0
    %8317 = vmatprep.subr.bf16.mxu0 0
    %8318 = vmatpush1.bf16.msra.mxu0 0
    %8319 = vmatprep.subr.bf16.mxu0 0
    %8320 = vmatpush1.bf16.msra.mxu0 0
    %8321 = vmatprep.subr.bf16.mxu0 0
    %8322 = vmatpush1.bf16.msra.mxu0 0
    %8323 = vmatprep.subr.bf16.mxu0 0
    %8324 = vmatpush1.bf16.msra.mxu0 0
    %8325 = vmatprep.subr.bf16.mxu0 0
    %8326 = vmatpush1.bf16.msra.mxu0 0
    %8327 = vmatprep.subr.bf16.mxu0 0
    %8328 = vmatpush1.bf16.msra.mxu0 0
    %8329 = vmatprep.subr.bf16.mxu0 0
    %8330 = vmatpush1.bf16.msra.mxu0 0
    %8331 = vmatprep.subr.bf16.mxu0 0
    %8332 = vmatpush1.bf16.msra.mxu0 0
    %8333 = vmatprep.mubr.bf16.mxu0 0
    %8334 = vmatmul.mubr.bf16.gmra.mrb[0].mxu0 %v8299
    %v8335 = vpop.f32.mrb[0].mxu0
    %v8336 = vadd.f32 0.0, %v8335
    %v8337 = vpop.f32.mrb[0].mxu0
    %v8338 = vadd.f32 0.0, %v8337
    %v8339 = vpop.f32.mrb[0].mxu0
    %v8340 = vpop.f32.mrb[0].mxu0
    %8341 = vdwg.mxu0
    %v8342 = vpack.c.bf16 %v8336, %v8336
    %v8343 = vpack.c.bf16 %v8338, %v8338
    %s8344 = scalar_lea.vmem [#allocation21], 512
    %v8345 = vld [vmem:[%s8344] sm:$0xff]
    %v8346 = vld [vmem:[%s8344 + $0x8] sm:$0xff]
    %v8347 = vld [vmem:[%s8344 + $0x10] sm:$0xff]
    %v8348 = vld [vmem:[%s8344 + $0x18] sm:$0xff]
    %v8349 = vld [vmem:[%s8344 + $0x20] sm:$0xff]
    %v8350 = vld [vmem:[%s8344 + $0x28] sm:$0xff]
    %v8351 = vld [vmem:[%s8344 + $0x30] sm:$0xff]
    %v8352 = vld [vmem:[%s8344 + $0x38] sm:$0xff]
    %v8353 = vld [vmem:[%s8344 + $0x40] sm:$0xff]
    %v8354 = vld [vmem:[%s8344 + $0x48] sm:$0xff]
    %v8355 = vld [vmem:[%s8344 + $0x50] sm:$0xff]
    %v8356 = vld [vmem:[%s8344 + $0x58] sm:$0xff]
    %v8357 = vld [vmem:[%s8344 + $0x60] sm:$0xff]
    %v8358 = vld [vmem:[%s8344 + $0x68] sm:$0xff]
    %v8359 = vld [vmem:[%s8344 + $0x70] sm:$0xff]
    %v8360 = vld [vmem:[%s8344 + $0x78] sm:$0xff]
    %v8361 = vld [vmem:[%s8344 + $0x80] sm:$0xff]
    %v8362 = vld [vmem:[%s8344 + $0x88] sm:$0xff]
    %v8363 = vld [vmem:[%s8344 + $0x90] sm:$0xff]
    %v8364 = vld [vmem:[%s8344 + $0x98] sm:$0xff]
    %v8365 = vld [vmem:[%s8344 + $0xa0] sm:$0xff]
    %v8366 = vld [vmem:[%s8344 + $0xa8] sm:$0xff]
    %v8367 = vld [vmem:[%s8344 + $0xb0] sm:$0xff]
    %v8368 = vld [vmem:[%s8344 + $0xb8] sm:$0xff]
    %v8369 = vld [vmem:[%s8344 + $0xc0] sm:$0xff]
    %v8370 = vld [vmem:[%s8344 + $0xc8] sm:$0xff]
    %v8371 = vld [vmem:[%s8344 + $0xd0] sm:$0xff]
    %v8372 = vld [vmem:[%s8344 + $0xd8] sm:$0xff]
    %v8373 = vld [vmem:[%s8344 + $0xe0] sm:$0xff]
    %v8374 = vld [vmem:[%s8344 + $0xe8] sm:$0xff]
    %v8375 = vld [vmem:[%s8344 + $0xf0] sm:$0xff]
    %v8376 = vld [vmem:[%s8344 + $0xf8] sm:$0xff]
    %v8409 = vunpack.c.l.b16 %v8345
    %v8410 = vunpack.c.h.b16 %v8345
    %v8411 = vunpack.c.l.b16 %v8346
    %v8412 = vunpack.c.h.b16 %v8346
    %v8413 = vunpack.c.l.b16 %v8347
    %v8414 = vunpack.c.h.b16 %v8347
    %v8415 = vunpack.c.l.b16 %v8348
    %v8416 = vunpack.c.h.b16 %v8348
    %v8417 = vunpack.c.l.b16 %v8349
    %v8418 = vunpack.c.h.b16 %v8349
    %v8419 = vunpack.c.l.b16 %v8350
    %v8420 = vunpack.c.h.b16 %v8350
    %v8421 = vunpack.c.l.b16 %v8351
    %v8422 = vunpack.c.h.b16 %v8351
    %v8423 = vunpack.c.l.b16 %v8352
    %v8424 = vunpack.c.h.b16 %v8352
    %v8425 = vunpack.c.l.b16 %v8353
    %v8426 = vunpack.c.h.b16 %v8353
    %v8427 = vunpack.c.l.b16 %v8354
    %v8428 = vunpack.c.h.b16 %v8354
    %v8429 = vunpack.c.l.b16 %v8355
    %v8430 = vunpack.c.h.b16 %v8355
    %v8431 = vunpack.c.l.b16 %v8356
    %v8432 = vunpack.c.h.b16 %v8356
    %v8433 = vunpack.c.l.b16 %v8357
    %v8434 = vunpack.c.h.b16 %v8357
    %v8435 = vunpack.c.l.b16 %v8358
    %v8436 = vunpack.c.h.b16 %v8358
    %v8437 = vunpack.c.l.b16 %v8359
    %v8438 = vunpack.c.h.b16 %v8359
    %v8439 = vunpack.c.l.b16 %v8360
    %v8440 = vunpack.c.h.b16 %v8360
    %v8441 = vunpack.c.l.b16 %v8361
    %v8442 = vunpack.c.h.b16 %v8361
    %v8443 = vunpack.c.l.b16 %v8362
    %v8444 = vunpack.c.h.b16 %v8362
    %v8445 = vunpack.c.l.b16 %v8363
    %v8446 = vunpack.c.h.b16 %v8363
    %v8447 = vunpack.c.l.b16 %v8364
    %v8448 = vunpack.c.h.b16 %v8364
    %v8449 = vunpack.c.l.b16 %v8365
    %v8450 = vunpack.c.h.b16 %v8365
    %v8451 = vunpack.c.l.b16 %v8366
    %v8452 = vunpack.c.h.b16 %v8366
    %v8453 = vunpack.c.l.b16 %v8367
    %v8454 = vunpack.c.h.b16 %v8367
    %v8455 = vunpack.c.l.b16 %v8368
    %v8456 = vunpack.c.h.b16 %v8368
    %v8457 = vunpack.c.l.b16 %v8369
    %v8458 = vunpack.c.h.b16 %v8369
    %v8459 = vunpack.c.l.b16 %v8370
    %v8460 = vunpack.c.h.b16 %v8370
    %v8461 = vunpack.c.l.b16 %v8371
    %v8462 = vunpack.c.h.b16 %v8371
    %v8463 = vunpack.c.l.b16 %v8372
    %v8464 = vunpack.c.h.b16 %v8372
    %v8465 = vunpack.c.l.b16 %v8373
    %v8466 = vunpack.c.h.b16 %v8373
    %v8467 = vunpack.c.l.b16 %v8374
    %v8468 = vunpack.c.h.b16 %v8374
    %v8469 = vunpack.c.l.b16 %v8375
    %v8470 = vunpack.c.h.b16 %v8375
    %v8471 = vunpack.c.l.b16 %v8376
    %v8472 = vunpack.c.h.b16 %v8376
    %v8473 = vpack.c.b16 %v8411, %v8409
    %v8474 = vpack.c.b16 %v8412, %v8410
    %v8475 = vpack.c.b16 %v8415, %v8413
    %v8476 = vpack.c.b16 %v8416, %v8414
    %v8477 = vpack.c.b16 %v8419, %v8417
    %v8478 = vpack.c.b16 %v8420, %v8418
    %v8479 = vpack.c.b16 %v8423, %v8421
    %v8480 = vpack.c.b16 %v8424, %v8422
    %v8481 = vpack.c.b16 %v8427, %v8425
    %v8482 = vpack.c.b16 %v8428, %v8426
    %v8483 = vpack.c.b16 %v8431, %v8429
    %v8484 = vpack.c.b16 %v8432, %v8430
    %v8485 = vpack.c.b16 %v8435, %v8433
    %v8486 = vpack.c.b16 %v8436, %v8434
    %v8487 = vpack.c.b16 %v8439, %v8437
    %v8488 = vpack.c.b16 %v8440, %v8438
    %v8489 = vpack.c.b16 %v8443, %v8441
    %v8490 = vpack.c.b16 %v8444, %v8442
    %v8491 = vpack.c.b16 %v8447, %v8445
    %v8492 = vpack.c.b16 %v8448, %v8446
    %v8493 = vpack.c.b16 %v8451, %v8449
    %v8494 = vpack.c.b16 %v8452, %v8450
    %v8495 = vpack.c.b16 %v8455, %v8453
    %v8496 = vpack.c.b16 %v8456, %v8454
    %v8497 = vpack.c.b16 %v8459, %v8457
    %v8498 = vpack.c.b16 %v8460, %v8458
    %v8499 = vpack.c.b16 %v8463, %v8461
    %v8500 = vpack.c.b16 %v8464, %v8462
    %v8501 = vpack.c.b16 %v8467, %v8465
    %v8502 = vpack.c.b16 %v8468, %v8466
    %v8503 = vpack.c.b16 %v8471, %v8469
    %v8504 = vpack.c.b16 %v8472, %v8470
    %8537 = vmatprep.subr.bf16.mxu0 %v8474
    %8538 = vmatpush1.bf16.msra.mxu0 %v8473
    %8539 = vmatprep.subr.bf16.mxu0 %v8476
    %8540 = vmatpush1.bf16.msra.mxu0 %v8475
    %8541 = vmatprep.subr.bf16.mxu0 %v8478
    %8542 = vmatpush1.bf16.msra.mxu0 %v8477
    %8543 = vmatprep.subr.bf16.mxu0 %v8480
    %8544 = vmatpush1.bf16.msra.mxu0 %v8479
    %8545 = vmatprep.subr.bf16.mxu0 %v8482
    %8546 = vmatpush1.bf16.msra.mxu0 %v8481
    %8547 = vmatprep.subr.bf16.mxu0 %v8484
    %8548 = vmatpush1.bf16.msra.mxu0 %v8483
    %8549 = vmatprep.subr.bf16.mxu0 %v8486
    %8550 = vmatpush1.bf16.msra.mxu0 %v8485
    %8551 = vmatprep.subr.bf16.mxu0 %v8488
    %8552 = vmatpush1.bf16.msra.mxu0 %v8487
    %8553 = vmatprep.subr.bf16.mxu0 %v8490
    %8554 = vmatpush1.bf16.msra.mxu0 %v8489
    %8555 = vmatprep.subr.bf16.mxu0 %v8492
    %8556 = vmatpush1.bf16.msra.mxu0 %v8491
    %8557 = vmatprep.subr.bf16.mxu0 %v8494
    %8558 = vmatpush1.bf16.msra.mxu0 %v8493
    %8559 = vmatprep.subr.bf16.mxu0 %v8496
    %8560 = vmatpush1.bf16.msra.mxu0 %v8495
    %8561 = vmatprep.subr.bf16.mxu0 %v8498
    %8562 = vmatpush1.bf16.msra.mxu0 %v8497
    %8563 = vmatprep.subr.bf16.mxu0 %v8500
    %8564 = vmatpush1.bf16.msra.mxu0 %v8499
    %8565 = vmatprep.subr.bf16.mxu0 %v8502
    %8566 = vmatpush1.bf16.msra.mxu0 %v8501
    %8567 = vmatprep.subr.bf16.mxu0 %v8504
    %8568 = vmatpush1.bf16.msra.mxu0 %v8503
    %8569 = vmatprep.mubr.bf16.mxu0 %v8343
    %8570 = vmatmul.mubr.bf16.gmra.mrb[0].mxu0 %v8342
    %v8571 = vpop.f32.mrb[0].mxu0
    %v8572 = vadd.f32 0.0, %v8571
    %v8573 = vpop.f32.mrb[0].mxu0
    %v8574 = vadd.f32 0.0, %v8573
    %v8575 = vpop.f32.mrb[0].mxu0
    %v8576 = vpop.f32.mrb[0].mxu0
    %8577 = vdwg.mxu0
    %v8578 = vadd.f32 %v8290, %v8572
    %v8579 = vadd.f32 %v8292, %v8574
    %s8580 = scalar_lea.vmem [#allocation6], 33
    %v8581 = vld [vmem:[%s8580] ss:$8 sm:$0x3]
    %v8583 = vlaneseq
    %v8584 = vshrl.u32 %v8583, 7
    %v8585 = vsub.s32 0, %v8584
    %v8586 = vrot.slane %v8581, %v8585
    %v8587 = vlaneseq
    %v8588 = vshrl.u32 %v8587, 7
    %v8589 = vsub.s32 1, %v8588
    %v8590 = vrot.slane %v8581, %v8589
    %v8593 = vadd.f32 %v8578, %v8586
    %v8594 = vadd.f32 %v8579, %v8590
    %v8595 = vmax.f32 %v8593, 0.0
    %v8596 = vmax.f32 %v8594, 0.0
    %v8597 = vpack.c.bf16 %v8595, %v8595
    %v8598 = vpack.c.bf16 %v8596, %v8596
    %s8599 = scalar_lea.vmem [#allocation4], 480
    %v8600 = vld [vmem:[%s8599] sm:$0x3]
    %v8602 = vsel %vm7775, %v8600, 0
    %v8605 = vsel %vm7779, %v8597, 0
    %v8608 = vsel %vm7779, %v8598, 0
    %8610 = vmatprep.subr.bf16.mxu0 %v8608
    %8611 = vmatpush1.bf16.msra.mxu0 %v8605
    %8612 = vmatprep.subr.bf16.mxu0 0
    %8613 = vmatpush1.bf16.msra.mxu0 0
    %8614 = vmatprep.subr.bf16.mxu0 0
    %8615 = vmatpush1.bf16.msra.mxu0 0
    %8616 = vmatprep.subr.bf16.mxu0 0
    %8617 = vmatpush1.bf16.msra.mxu0 0
    %8618 = vmatprep.subr.bf16.mxu0 0
    %8619 = vmatpush1.bf16.msra.mxu0 0
    %8620 = vmatprep.subr.bf16.mxu0 0
    %8621 = vmatpush1.bf16.msra.mxu0 0
    %8622 = vmatprep.subr.bf16.mxu0 0
    %8623 = vmatpush1.bf16.msra.mxu0 0
    %8624 = vmatprep.subr.bf16.mxu0 0
    %8625 = vmatpush1.bf16.msra.mxu0 0
    %8626 = vmatprep.subr.bf16.mxu0 0
    %8627 = vmatpush1.bf16.msra.mxu0 0
    %8628 = vmatprep.subr.bf16.mxu0 0
    %8629 = vmatpush1.bf16.msra.mxu0 0
    %8630 = vmatprep.subr.bf16.mxu0 0
    %8631 = vmatpush1.bf16.msra.mxu0 0
    %8632 = vmatprep.subr.bf16.mxu0 0
    %8633 = vmatpush1.bf16.msra.mxu0 0
    %8634 = vmatprep.subr.bf16.mxu0 0
    %8635 = vmatpush1.bf16.msra.mxu0 0
    %8636 = vmatprep.subr.bf16.mxu0 0
    %8637 = vmatpush1.bf16.msra.mxu0 0
    %8638 = vmatprep.subr.bf16.mxu0 0
    %8639 = vmatpush1.bf16.msra.mxu0 0
    %8640 = vmatprep.subr.bf16.mxu0 0
    %8641 = vmatpush1.bf16.msra.mxu0 0
    %8642 = vmatprep.mubr.bf16.mxu0 0
    %8643 = vmatmul.mubr.bf16.gmra.mrb[0].mxu0 %v8602
    %v8644 = vpop.f32.mrb[0].mxu0
    %v8645 = vadd.f32 0.0, %v8644
    %v8646 = vpop.f32.mrb[0].mxu0
    %v8647 = vadd.f32 0.0, %v8646
    %v8648 = vpop.f32.mrb[0].mxu0
    %v8649 = vpop.f32.mrb[0].mxu0
    %8650 = vdwg.mxu0
    %v8651 = vpack.c.bf16 %v8645, %v8645
    %v8652 = vpack.c.bf16 %v8647, %v8647
    %v8653 = vld [vmem:[#allocation23] sm:$0xff]
    %v8654 = vld [vmem:[#allocation23 + $0x8] sm:$0xff]
    %v8655 = vld [vmem:[#allocation23 + $0x10] sm:$0xff]
    %v8656 = vld [vmem:[#allocation23 + $0x18] sm:$0xff]
    %v8657 = vld [vmem:[#allocation23 + $0x20] sm:$0xff]
    %v8658 = vld [vmem:[#allocation23 + $0x28] sm:$0xff]
    %v8659 = vld [vmem:[#allocation23 + $0x30] sm:$0xff]
    %v8660 = vld [vmem:[#allocation23 + $0x38] sm:$0xff]
    %v8661 = vld [vmem:[#allocation23 + $0x40] sm:$0xff]
    %v8662 = vld [vmem:[#allocation23 + $0x48] sm:$0xff]
    %v8663 = vld [vmem:[#allocation23 + $0x50] sm:$0xff]
    %v8664 = vld [vmem:[#allocation23 + $0x58] sm:$0xff]
    %v8665 = vld [vmem:[#allocation23 + $0x60] sm:$0xff]
    %v8666 = vld [vmem:[#allocation23 + $0x68] sm:$0xff]
    %v8667 = vld [vmem:[#allocation23 + $0x70] sm:$0xff]
    %v8668 = vld [vmem:[#allocation23 + $0x78] sm:$0xff]
    %v8669 = vld [vmem:[#allocation23 + $0x80] sm:$0xff]
    %v8670 = vld [vmem:[#allocation23 + $0x88] sm:$0xff]
    %v8671 = vld [vmem:[#allocation23 + $0x90] sm:$0xff]
    %v8672 = vld [vmem:[#allocation23 + $0x98] sm:$0xff]
    %v8673 = vld [vmem:[#allocation23 + $0xa0] sm:$0xff]
    %v8674 = vld [vmem:[#allocation23 + $0xa8] sm:$0xff]
    %v8675 = vld [vmem:[#allocation23 + $0xb0] sm:$0xff]
    %v8676 = vld [vmem:[#allocation23 + $0xb8] sm:$0xff]
    %v8677 = vld [vmem:[#allocation23 + $0xc0] sm:$0xff]
    %v8678 = vld [vmem:[#allocation23 + $0xc8] sm:$0xff]
    %v8679 = vld [vmem:[#allocation23 + $0xd0] sm:$0xff]
    %v8680 = vld [vmem:[#allocation23 + $0xd8] sm:$0xff]
    %v8681 = vld [vmem:[#allocation23 + $0xe0] sm:$0xff]
    %v8682 = vld [vmem:[#allocation23 + $0xe8] sm:$0xff]
    %v8683 = vld [vmem:[#allocation23 + $0xf0] sm:$0xff]
    %v8684 = vld [vmem:[#allocation23 + $0xf8] sm:$0xff]
    %s8685 = scalar_lea.vmem [#allocation23], 256
    %v8686 = vld [vmem:[%s8685] sm:$0xff]
    %v8687 = vld [vmem:[%s8685 + $0x8] sm:$0xff]
    %v8688 = vld [vmem:[%s8685 + $0x10] sm:$0xff]
    %v8689 = vld [vmem:[%s8685 + $0x18] sm:$0xff]
    %v8690 = vld [vmem:[%s8685 + $0x20] sm:$0xff]
    %v8691 = vld [vmem:[%s8685 + $0x28] sm:$0xff]
    %v8692 = vld [vmem:[%s8685 + $0x30] sm:$0xff]
    %v8693 = vld [vmem:[%s8685 + $0x38] sm:$0xff]
    %v8694 = vld [vmem:[%s8685 + $0x40] sm:$0xff]
    %v8695 = vld [vmem:[%s8685 + $0x48] sm:$0xff]
    %v8696 = vld [vmem:[%s8685 + $0x50] sm:$0xff]
    %v8697 = vld [vmem:[%s8685 + $0x58] sm:$0xff]
    %v8698 = vld [vmem:[%s8685 + $0x60] sm:$0xff]
    %v8699 = vld [vmem:[%s8685 + $0x68] sm:$0xff]
    %v8700 = vld [vmem:[%s8685 + $0x70] sm:$0xff]
    %v8701 = vld [vmem:[%s8685 + $0x78] sm:$0xff]
    %v8702 = vld [vmem:[%s8685 + $0x80] sm:$0xff]
    %v8703 = vld [vmem:[%s8685 + $0x88] sm:$0xff]
    %v8704 = vld [vmem:[%s8685 + $0x90] sm:$0xff]
    %v8705 = vld [vmem:[%s8685 + $0x98] sm:$0xff]
    %v8706 = vld [vmem:[%s8685 + $0xa0] sm:$0xff]
    %v8707 = vld [vmem:[%s8685 + $0xa8] sm:$0xff]
    %v8708 = vld [vmem:[%s8685 + $0xb0] sm:$0xff]
    %v8709 = vld [vmem:[%s8685 + $0xb8] sm:$0xff]
    %v8710 = vld [vmem:[%s8685 + $0xc0] sm:$0xff]
    %v8711 = vld [vmem:[%s8685 + $0xc8] sm:$0xff]
    %v8712 = vld [vmem:[%s8685 + $0xd0] sm:$0xff]
    %v8713 = vld [vmem:[%s8685 + $0xd8] sm:$0xff]
    %v8714 = vld [vmem:[%s8685 + $0xe0] sm:$0xff]
    %v8715 = vld [vmem:[%s8685 + $0xe8] sm:$0xff]
    %v8716 = vld [vmem:[%s8685 + $0xf0] sm:$0xff]
    %v8717 = vld [vmem:[%s8685 + $0xf8] sm:$0xff]
    %v8750 = vunpack.c.l.b16 %v8686
    %v8751 = vunpack.c.h.b16 %v8686
    %v8752 = vunpack.c.l.b16 %v8687
    %v8753 = vunpack.c.h.b16 %v8687
    %v8754 = vunpack.c.l.b16 %v8688
    %v8755 = vunpack.c.h.b16 %v8688
    %v8756 = vunpack.c.l.b16 %v8689
    %v8757 = vunpack.c.h.b16 %v8689
    %v8758 = vunpack.c.l.b16 %v8690
    %v8759 = vunpack.c.h.b16 %v8690
    %v8760 = vunpack.c.l.b16 %v8691
    %v8761 = vunpack.c.h.b16 %v8691
    %v8762 = vunpack.c.l.b16 %v8692
    %v8763 = vunpack.c.h.b16 %v8692
    %v8764 = vunpack.c.l.b16 %v8693
    %v8765 = vunpack.c.h.b16 %v8693
    %v8766 = vunpack.c.l.b16 %v8694
    %v8767 = vunpack.c.h.b16 %v8694
    %v8768 = vunpack.c.l.b16 %v8695
    %v8769 = vunpack.c.h.b16 %v8695
    %v8770 = vunpack.c.l.b16 %v8696
    %v8771 = vunpack.c.h.b16 %v8696
    %v8772 = vunpack.c.l.b16 %v8697
    %v8773 = vunpack.c.h.b16 %v8697
    %v8774 = vunpack.c.l.b16 %v8698
    %v8775 = vunpack.c.h.b16 %v8698
    %v8776 = vunpack.c.l.b16 %v8699
    %v8777 = vunpack.c.h.b16 %v8699
    %v8778 = vunpack.c.l.b16 %v8700
    %v8779 = vunpack.c.h.b16 %v8700
    %v8780 = vunpack.c.l.b16 %v8701
    %v8781 = vunpack.c.h.b16 %v8701
    %v8782 = vunpack.c.l.b16 %v8702
    %v8783 = vunpack.c.h.b16 %v8702
    %v8784 = vunpack.c.l.b16 %v8703
    %v8785 = vunpack.c.h.b16 %v8703
    %v8786 = vunpack.c.l.b16 %v8704
    %v8787 = vunpack.c.h.b16 %v8704
    %v8788 = vunpack.c.l.b16 %v8705
    %v8789 = vunpack.c.h.b16 %v8705
    %v8790 = vunpack.c.l.b16 %v8706
    %v8791 = vunpack.c.h.b16 %v8706
    %v8792 = vunpack.c.l.b16 %v8707
    %v8793 = vunpack.c.h.b16 %v8707
    %v8794 = vunpack.c.l.b16 %v8708
    %v8795 = vunpack.c.h.b16 %v8708
    %v8796 = vunpack.c.l.b16 %v8709
    %v8797 = vunpack.c.h.b16 %v8709
    %v8798 = vunpack.c.l.b16 %v8710
    %v8799 = vunpack.c.h.b16 %v8710
    %v8800 = vunpack.c.l.b16 %v8711
    %v8801 = vunpack.c.h.b16 %v8711
    %v8802 = vunpack.c.l.b16 %v8712
    %v8803 = vunpack.c.h.b16 %v8712
    %v8804 = vunpack.c.l.b16 %v8713
    %v8805 = vunpack.c.h.b16 %v8713
    %v8806 = vunpack.c.l.b16 %v8714
    %v8807 = vunpack.c.h.b16 %v8714
    %v8808 = vunpack.c.l.b16 %v8715
    %v8809 = vunpack.c.h.b16 %v8715
    %v8810 = vunpack.c.l.b16 %v8716
    %v8811 = vunpack.c.h.b16 %v8716
    %v8812 = vunpack.c.l.b16 %v8717
    %v8813 = vunpack.c.h.b16 %v8717
    %v8814 = vpack.c.b16 %v8752, %v8750
    %v8815 = vpack.c.b16 %v8753, %v8751
    %v8816 = vpack.c.b16 %v8756, %v8754
    %v8817 = vpack.c.b16 %v8757, %v8755
    %v8818 = vpack.c.b16 %v8760, %v8758
    %v8819 = vpack.c.b16 %v8761, %v8759
    %v8820 = vpack.c.b16 %v8764, %v8762
    %v8821 = vpack.c.b16 %v8765, %v8763
    %v8822 = vpack.c.b16 %v8768, %v8766
    %v8823 = vpack.c.b16 %v8769, %v8767
    %v8824 = vpack.c.b16 %v8772, %v8770
    %v8825 = vpack.c.b16 %v8773, %v8771
    %v8826 = vpack.c.b16 %v8776, %v8774
    %v8827 = vpack.c.b16 %v8777, %v8775
    %v8828 = vpack.c.b16 %v8780, %v8778
    %v8829 = vpack.c.b16 %v8781, %v8779
    %v8830 = vpack.c.b16 %v8784, %v8782
    %v8831 = vpack.c.b16 %v8785, %v8783
    %v8832 = vpack.c.b16 %v8788, %v8786
    %v8833 = vpack.c.b16 %v8789, %v8787
    %v8834 = vpack.c.b16 %v8792, %v8790
    %v8835 = vpack.c.b16 %v8793, %v8791
    %v8836 = vpack.c.b16 %v8796, %v8794
    %v8837 = vpack.c.b16 %v8797, %v8795
    %v8838 = vpack.c.b16 %v8800, %v8798
    %v8839 = vpack.c.b16 %v8801, %v8799
    %v8840 = vpack.c.b16 %v8804, %v8802
    %v8841 = vpack.c.b16 %v8805, %v8803
    %v8842 = vpack.c.b16 %v8808, %v8806
    %v8843 = vpack.c.b16 %v8809, %v8807
    %v8844 = vpack.c.b16 %v8812, %v8810
    %v8845 = vpack.c.b16 %v8813, %v8811
    %8878 = vmatprep.subr.bf16.mxu0 %v8815
    %8879 = vmatpush1.bf16.msra.mxu0 %v8814
    %8880 = vmatprep.subr.bf16.mxu0 %v8817
    %8881 = vmatpush1.bf16.msra.mxu0 %v8816
    %8882 = vmatprep.subr.bf16.mxu0 %v8819
    %8883 = vmatpush1.bf16.msra.mxu0 %v8818
    %8884 = vmatprep.subr.bf16.mxu0 %v8821
    %8885 = vmatpush1.bf16.msra.mxu0 %v8820
    %8886 = vmatprep.subr.bf16.mxu0 %v8823
    %8887 = vmatpush1.bf16.msra.mxu0 %v8822
    %8888 = vmatprep.subr.bf16.mxu0 %v8825
    %8889 = vmatpush1.bf16.msra.mxu0 %v8824
    %8890 = vmatprep.subr.bf16.mxu0 %v8827
    %8891 = vmatpush1.bf16.msra.mxu0 %v8826
    %8892 = vmatprep.subr.bf16.mxu0 %v8829
    %8893 = vmatpush1.bf16.msra.mxu0 %v8828
    %8894 = vmatprep.subr.bf16.mxu0 %v8831
    %8895 = vmatpush1.bf16.msra.mxu0 %v8830
    %8896 = vmatprep.subr.bf16.mxu0 %v8833
    %8897 = vmatpush1.bf16.msra.mxu0 %v8832
    %8898 = vmatprep.subr.bf16.mxu0 %v8835
    %8899 = vmatpush1.bf16.msra.mxu0 %v8834
    %8900 = vmatprep.subr.bf16.mxu0 %v8837
    %8901 = vmatpush1.bf16.msra.mxu0 %v8836
    %8902 = vmatprep.subr.bf16.mxu0 %v8839
    %8903 = vmatpush1.bf16.msra.mxu0 %v8838
    %8904 = vmatprep.subr.bf16.mxu0 %v8841
    %8905 = vmatpush1.bf16.msra.mxu0 %v8840
    %8906 = vmatprep.subr.bf16.mxu0 %v8843
    %8907 = vmatpush1.bf16.msra.mxu0 %v8842
    %8908 = vmatprep.subr.bf16.mxu0 %v8845
    %8909 = vmatpush1.bf16.msra.mxu0 %v8844
    %8910 = vmatprep.mubr.bf16.mxu0 %v8598
    %8911 = vmatmul.mubr.bf16.gmra.mrb[0].mxu0 %v8597
    %v8912 = vpop.f32.mrb[0].mxu0
    %v8913 = vadd.f32 0.0, %v8912
    %v8914 = vpop.f32.mrb[0].mxu0
    %v8915 = vadd.f32 0.0, %v8914
    %v8916 = vpop.f32.mrb[0].mxu0
    %v8917 = vpop.f32.mrb[0].mxu0
    %8918 = vdwg.mxu0
    %v8951 = vunpack.c.l.b16 %v8653
    %v8952 = vunpack.c.h.b16 %v8653
    %v8953 = vunpack.c.l.b16 %v8654
    %v8954 = vunpack.c.h.b16 %v8654
    %v8955 = vunpack.c.l.b16 %v8655
    %v8956 = vunpack.c.h.b16 %v8655
    %v8957 = vunpack.c.l.b16 %v8656
    %v8958 = vunpack.c.h.b16 %v8656
    %v8959 = vunpack.c.l.b16 %v8657
    %v8960 = vunpack.c.h.b16 %v8657
    %v8961 = vunpack.c.l.b16 %v8658
    %v8962 = vunpack.c.h.b16 %v8658
    %v8963 = vunpack.c.l.b16 %v8659
    %v8964 = vunpack.c.h.b16 %v8659
    %v8965 = vunpack.c.l.b16 %v8660
    %v8966 = vunpack.c.h.b16 %v8660
    %v8967 = vunpack.c.l.b16 %v8661
    %v8968 = vunpack.c.h.b16 %v8661
    %v8969 = vunpack.c.l.b16 %v8662
    %v8970 = vunpack.c.h.b16 %v8662
    %v8971 = vunpack.c.l.b16 %v8663
    %v8972 = vunpack.c.h.b16 %v8663
    %v8973 = vunpack.c.l.b16 %v8664
    %v8974 = vunpack.c.h.b16 %v8664
    %v8975 = vunpack.c.l.b16 %v8665
    %v8976 = vunpack.c.h.b16 %v8665
    %v8977 = vunpack.c.l.b16 %v8666
    %v8978 = vunpack.c.h.b16 %v8666
    %v8979 = vunpack.c.l.b16 %v8667
    %v8980 = vunpack.c.h.b16 %v8667
    %v8981 = vunpack.c.l.b16 %v8668
    %v8982 = vunpack.c.h.b16 %v8668
    %v8983 = vunpack.c.l.b16 %v8669
    %v8984 = vunpack.c.h.b16 %v8669
    %v8985 = vunpack.c.l.b16 %v8670
    %v8986 = vunpack.c.h.b16 %v8670
    %v8987 = vunpack.c.l.b16 %v8671
    %v8988 = vunpack.c.h.b16 %v8671
    %v8989 = vunpack.c.l.b16 %v8672
    %v8990 = vunpack.c.h.b16 %v8672
    %v8991 = vunpack.c.l.b16 %v8673
    %v8992 = vunpack.c.h.b16 %v8673
    %v8993 = vunpack.c.l.b16 %v8674
    %v8994 = vunpack.c.h.b16 %v8674
    %v8995 = vunpack.c.l.b16 %v8675
    %v8996 = vunpack.c.h.b16 %v8675
    %v8997 = vunpack.c.l.b16 %v8676
    %v8998 = vunpack.c.h.b16 %v8676
    %v8999 = vunpack.c.l.b16 %v8677
    %v9000 = vunpack.c.h.b16 %v8677
    %v9001 = vunpack.c.l.b16 %v8678
    %v9002 = vunpack.c.h.b16 %v8678
    %v9003 = vunpack.c.l.b16 %v8679
    %v9004 = vunpack.c.h.b16 %v8679
    %v9005 = vunpack.c.l.b16 %v8680
    %v9006 = vunpack.c.h.b16 %v8680
    %v9007 = vunpack.c.l.b16 %v8681
    %v9008 = vunpack.c.h.b16 %v8681
    %v9009 = vunpack.c.l.b16 %v8682
    %v9010 = vunpack.c.h.b16 %v8682
    %v9011 = vunpack.c.l.b16 %v8683
    %v9012 = vunpack.c.h.b16 %v8683
    %v9013 = vunpack.c.l.b16 %v8684
    %v9014 = vunpack.c.h.b16 %v8684
    %v9015 = vpack.c.b16 %v8953, %v8951
    %v9016 = vpack.c.b16 %v8954, %v8952
    %v9017 = vpack.c.b16 %v8957, %v8955
    %v9018 = vpack.c.b16 %v8958, %v8956
    %v9019 = vpack.c.b16 %v8961, %v8959
    %v9020 = vpack.c.b16 %v8962, %v8960
    %v9021 = vpack.c.b16 %v8965, %v8963
    %v9022 = vpack.c.b16 %v8966, %v8964
    %v9023 = vpack.c.b16 %v8969, %v8967
    %v9024 = vpack.c.b16 %v8970, %v8968
    %v9025 = vpack.c.b16 %v8973, %v8971
    %v9026 = vpack.c.b16 %v8974, %v8972
    %v9027 = vpack.c.b16 %v8977, %v8975
    %v9028 = vpack.c.b16 %v8978, %v8976
    %v9029 = vpack.c.b16 %v8981, %v8979
    %v9030 = vpack.c.b16 %v8982, %v8980
    %v9031 = vpack.c.b16 %v8985, %v8983
    %v9032 = vpack.c.b16 %v8986, %v8984
    %v9033 = vpack.c.b16 %v8989, %v8987
    %v9034 = vpack.c.b16 %v8990, %v8988
    %v9035 = vpack.c.b16 %v8993, %v8991
    %v9036 = vpack.c.b16 %v8994, %v8992
    %v9037 = vpack.c.b16 %v8997, %v8995
    %v9038 = vpack.c.b16 %v8998, %v8996
    %v9039 = vpack.c.b16 %v9001, %v8999
    %v9040 = vpack.c.b16 %v9002, %v9000
    %v9041 = vpack.c.b16 %v9005, %v9003
    %v9042 = vpack.c.b16 %v9006, %v9004
    %v9043 = vpack.c.b16 %v9009, %v9007
    %v9044 = vpack.c.b16 %v9010, %v9008
    %v9045 = vpack.c.b16 %v9013, %v9011
    %v9046 = vpack.c.b16 %v9014, %v9012
    %9079 = vmatprep.subr.bf16.mxu0 %v9016
    %9080 = vmatpush1.bf16.msra.mxu0 %v9015
    %9081 = vmatprep.subr.bf16.mxu0 %v9018
    %9082 = vmatpush1.bf16.msra.mxu0 %v9017
    %9083 = vmatprep.subr.bf16.mxu0 %v9020
    %9084 = vmatpush1.bf16.msra.mxu0 %v9019
    %9085 = vmatprep.subr.bf16.mxu0 %v9022
    %9086 = vmatpush1.bf16.msra.mxu0 %v9021
    %9087 = vmatprep.subr.bf16.mxu0 %v9024
    %9088 = vmatpush1.bf16.msra.mxu0 %v9023
    %9089 = vmatprep.subr.bf16.mxu0 %v9026
    %9090 = vmatpush1.bf16.msra.mxu0 %v9025
    %9091 = vmatprep.subr.bf16.mxu0 %v9028
    %9092 = vmatpush1.bf16.msra.mxu0 %v9027
    %9093 = vmatprep.subr.bf16.mxu0 %v9030
    %9094 = vmatpush1.bf16.msra.mxu0 %v9029
    %9095 = vmatprep.subr.bf16.mxu0 %v9032
    %9096 = vmatpush1.bf16.msra.mxu0 %v9031
    %9097 = vmatprep.subr.bf16.mxu0 %v9034
    %9098 = vmatpush1.bf16.msra.mxu0 %v9033
    %9099 = vmatprep.subr.bf16.mxu0 %v9036
    %9100 = vmatpush1.bf16.msra.mxu0 %v9035
    %9101 = vmatprep.subr.bf16.mxu0 %v9038
    %9102 = vmatpush1.bf16.msra.mxu0 %v9037
    %9103 = vmatprep.subr.bf16.mxu0 %v9040
    %9104 = vmatpush1.bf16.msra.mxu0 %v9039
    %9105 = vmatprep.subr.bf16.mxu0 %v9042
    %9106 = vmatpush1.bf16.msra.mxu0 %v9041
    %9107 = vmatprep.subr.bf16.mxu0 %v9044
    %9108 = vmatpush1.bf16.msra.mxu0 %v9043
    %9109 = vmatprep.subr.bf16.mxu0 %v9046
    %9110 = vmatpush1.bf16.msra.mxu0 %v9045
    %9111 = vmatprep.mubr.bf16.mxu0 %v8652
    %9112 = vmatmul.mubr.bf16.gmra.mrb[0].mxu0 %v8651
    %v9113 = vpop.f32.mrb[0].mxu0
    %v9114 = vadd.f32 %v8913, %v9113
    %v9115 = vpop.f32.mrb[0].mxu0
    %v9116 = vadd.f32 %v8915, %v9115
    %v9117 = vpop.f32.mrb[0].mxu0
    %v9118 = vpop.f32.mrb[0].mxu0
    %9119 = vdwg.mxu0
    %s9120 = scalar_lea.vmem [#allocation4], 512
    %v9121 = vld [vmem:[%s9120] sm:$0x3]
    %v9123 = vsel %vm7775, %v9121, 0
    %9125 = vmatprep.subr.bf16.mxu0 %v8608
    %9126 = vmatpush1.bf16.msra.mxu0 %v8605
    %9127 = vmatprep.subr.bf16.mxu0 0
    %9128 = vmatpush1.bf16.msra.mxu0 0
    %9129 = vmatprep.subr.bf16.mxu0 0
    %9130 = vmatpush1.bf16.msra.mxu0 0
    %9131 = vmatprep.subr.bf16.mxu0 0
    %9132 = vmatpush1.bf16.msra.mxu0 0
    %9133 = vmatprep.subr.bf16.mxu0 0
    %9134 = vmatpush1.bf16.msra.mxu0 0
    %9135 = vmatprep.subr.bf16.mxu0 0
    %9136 = vmatpush1.bf16.msra.mxu0 0
    %9137 = vmatprep.subr.bf16.mxu0 0
    %9138 = vmatpush1.bf16.msra.mxu0 0
    %9139 = vmatprep.subr.bf16.mxu0 0
    %9140 = vmatpush1.bf16.msra.mxu0 0
    %9141 = vmatprep.subr.bf16.mxu0 0
    %9142 = vmatpush1.bf16.msra.mxu0 0
    %9143 = vmatprep.subr.bf16.mxu0 0
    %9144 = vmatpush1.bf16.msra.mxu0 0
    %9145 = vmatprep.subr.bf16.mxu0 0
    %9146 = vmatpush1.bf16.msra.mxu0 0
    %9147 = vmatprep.subr.bf16.mxu0 0
    %9148 = vmatpush1.bf16.msra.mxu0 0
    %9149 = vmatprep.subr.bf16.mxu0 0
    %9150 = vmatpush1.bf16.msra.mxu0 0
    %9151 = vmatprep.subr.bf16.mxu0 0
    %9152 = vmatpush1.bf16.msra.mxu0 0
    %9153 = vmatprep.subr.bf16.mxu0 0
    %9154 = vmatpush1.bf16.msra.mxu0 0
    %9155 = vmatprep.subr.bf16.mxu0 0
    %9156 = vmatpush1.bf16.msra.mxu0 0
    %9157 = vmatprep.mubr.bf16.mxu0 0
    %9158 = vmatmul.mubr.bf16.gmra.mrb[0].mxu0 %v9123
    %v9159 = vpop.f32.mrb[0].mxu0
    %v9160 = vadd.f32 0.0, %v9159
    %v9161 = vpop.f32.mrb[0].mxu0
    %v9162 = vadd.f32 0.0, %v9161
    %v9163 = vpop.f32.mrb[0].mxu0
    %v9164 = vpop.f32.mrb[0].mxu0
    %9165 = vdwg.mxu0
    %v9166 = vpack.c.bf16 %v9160, %v9160
    %v9167 = vpack.c.bf16 %v9162, %v9162
    %s9168 = scalar_lea.vmem [#allocation23], 512
    %v9169 = vld [vmem:[%s9168] sm:$0xff]
    %v9170 = vld [vmem:[%s9168 + $0x8] sm:$0xff]
    %v9171 = vld [vmem:[%s9168 + $0x10] sm:$0xff]
    %v9172 = vld [vmem:[%s9168 + $0x18] sm:$0xff]
    %v9173 = vld [vmem:[%s9168 + $0x20] sm:$0xff]
    %v9174 = vld [vmem:[%s9168 + $0x28] sm:$0xff]
    %v9175 = vld [vmem:[%s9168 + $0x30] sm:$0xff]
    %v9176 = vld [vmem:[%s9168 + $0x38] sm:$0xff]
    %v9177 = vld [vmem:[%s9168 + $0x40] sm:$0xff]
    %v9178 = vld [vmem:[%s9168 + $0x48] sm:$0xff]
    %v9179 = vld [vmem:[%s9168 + $0x50] sm:$0xff]
    %v9180 = vld [vmem:[%s9168 + $0x58] sm:$0xff]
    %v9181 = vld [vmem:[%s9168 + $0x60] sm:$0xff]
    %v9182 = vld [vmem:[%s9168 + $0x68] sm:$0xff]
    %v9183 = vld [vmem:[%s9168 + $0x70] sm:$0xff]
    %v9184 = vld [vmem:[%s9168 + $0x78] sm:$0xff]
    %v9185 = vld [vmem:[%s9168 + $0x80] sm:$0xff]
    %v9186 = vld [vmem:[%s9168 + $0x88] sm:$0xff]
    %v9187 = vld [vmem:[%s9168 + $0x90] sm:$0xff]
    %v9188 = vld [vmem:[%s9168 + $0x98] sm:$0xff]
    %v9189 = vld [vmem:[%s9168 + $0xa0] sm:$0xff]
    %v9190 = vld [vmem:[%s9168 + $0xa8] sm:$0xff]
    %v9191 = vld [vmem:[%s9168 + $0xb0] sm:$0xff]
    %v9192 = vld [vmem:[%s9168 + $0xb8] sm:$0xff]
    %v9193 = vld [vmem:[%s9168 + $0xc0] sm:$0xff]
    %v9194 = vld [vmem:[%s9168 + $0xc8] sm:$0xff]
    %v9195 = vld [vmem:[%s9168 + $0xd0] sm:$0xff]
    %v9196 = vld [vmem:[%s9168 + $0xd8] sm:$0xff]
    %v9197 = vld [vmem:[%s9168 + $0xe0] sm:$0xff]
    %v9198 = vld [vmem:[%s9168 + $0xe8] sm:$0xff]
    %v9199 = vld [vmem:[%s9168 + $0xf0] sm:$0xff]
    %v9200 = vld [vmem:[%s9168 + $0xf8] sm:$0xff]
    %v9233 = vunpack.c.l.b16 %v9169
    %v9234 = vunpack.c.h.b16 %v9169
    %v9235 = vunpack.c.l.b16 %v9170
    %v9236 = vunpack.c.h.b16 %v9170
    %v9237 = vunpack.c.l.b16 %v9171
    %v9238 = vunpack.c.h.b16 %v9171
    %v9239 = vunpack.c.l.b16 %v9172
    %v9240 = vunpack.c.h.b16 %v9172
    %v9241 = vunpack.c.l.b16 %v9173
    %v9242 = vunpack.c.h.b16 %v9173
    %v9243 = vunpack.c.l.b16 %v9174
    %v9244 = vunpack.c.h.b16 %v9174
    %v9245 = vunpack.c.l.b16 %v9175
    %v9246 = vunpack.c.h.b16 %v9175
    %v9247 = vunpack.c.l.b16 %v9176
    %v9248 = vunpack.c.h.b16 %v9176
    %v9249 = vunpack.c.l.b16 %v9177
    %v9250 = vunpack.c.h.b16 %v9177
    %v9251 = vunpack.c.l.b16 %v9178
    %v9252 = vunpack.c.h.b16 %v9178
    %v9253 = vunpack.c.l.b16 %v9179
    %v9254 = vunpack.c.h.b16 %v9179
    %v9255 = vunpack.c.l.b16 %v9180
    %v9256 = vunpack.c.h.b16 %v9180
    %v9257 = vunpack.c.l.b16 %v9181
    %v9258 = vunpack.c.h.b16 %v9181
    %v9259 = vunpack.c.l.b16 %v9182
    %v9260 = vunpack.c.h.b16 %v9182
    %v9261 = vunpack.c.l.b16 %v9183
    %v9262 = vunpack.c.h.b16 %v9183
    %v9263 = vunpack.c.l.b16 %v9184
    %v9264 = vunpack.c.h.b16 %v9184
    %v9265 = vunpack.c.l.b16 %v9185
    %v9266 = vunpack.c.h.b16 %v9185
    %v9267 = vunpack.c.l.b16 %v9186
    %v9268 = vunpack.c.h.b16 %v9186
    %v9269 = vunpack.c.l.b16 %v9187
    %v9270 = vunpack.c.h.b16 %v9187
    %v9271 = vunpack.c.l.b16 %v9188
    %v9272 = vunpack.c.h.b16 %v9188
    %v9273 = vunpack.c.l.b16 %v9189
    %v9274 = vunpack.c.h.b16 %v9189
    %v9275 = vunpack.c.l.b16 %v9190
    %v9276 = vunpack.c.h.b16 %v9190
    %v9277 = vunpack.c.l.b16 %v9191
    %v9278 = vunpack.c.h.b16 %v9191
    %v9279 = vunpack.c.l.b16 %v9192
    %v9280 = vunpack.c.h.b16 %v9192
    %v9281 = vunpack.c.l.b16 %v9193
    %v9282 = vunpack.c.h.b16 %v9193
    %v9283 = vunpack.c.l.b16 %v9194
    %v9284 = vunpack.c.h.b16 %v9194
    %v9285 = vunpack.c.l.b16 %v9195
    %v9286 = vunpack.c.h.b16 %v9195
    %v9287 = vunpack.c.l.b16 %v9196
    %v9288 = vunpack.c.h.b16 %v9196
    %v9289 = vunpack.c.l.b16 %v9197
    %v9290 = vunpack.c.h.b16 %v9197
    %v9291 = vunpack.c.l.b16 %v9198
    %v9292 = vunpack.c.h.b16 %v9198
    %v9293 = vunpack.c.l.b16 %v9199
    %v9294 = vunpack.c.h.b16 %v9199
    %v9295 = vunpack.c.l.b16 %v9200
    %v9296 = vunpack.c.h.b16 %v9200
    %v9297 = vpack.c.b16 %v9235, %v9233
    %v9298 = vpack.c.b16 %v9236, %v9234
    %v9299 = vpack.c.b16 %v9239, %v9237
    %v9300 = vpack.c.b16 %v9240, %v9238
    %v9301 = vpack.c.b16 %v9243, %v9241
    %v9302 = vpack.c.b16 %v9244, %v9242
    %v9303 = vpack.c.b16 %v9247, %v9245
    %v9304 = vpack.c.b16 %v9248, %v9246
    %v9305 = vpack.c.b16 %v9251, %v9249
    %v9306 = vpack.c.b16 %v9252, %v9250
    %v9307 = vpack.c.b16 %v9255, %v9253
    %v9308 = vpack.c.b16 %v9256, %v9254
    %v9309 = vpack.c.b16 %v9259, %v9257
    %v9310 = vpack.c.b16 %v9260, %v9258
    %v9311 = vpack.c.b16 %v9263, %v9261
    %v9312 = vpack.c.b16 %v9264, %v9262
    %v9313 = vpack.c.b16 %v9267, %v9265
    %v9314 = vpack.c.b16 %v9268, %v9266
    %v9315 = vpack.c.b16 %v9271, %v9269
    %v9316 = vpack.c.b16 %v9272, %v9270
    %v9317 = vpack.c.b16 %v9275, %v9273
    %v9318 = vpack.c.b16 %v9276, %v9274
    %v9319 = vpack.c.b16 %v9279, %v9277
    %v9320 = vpack.c.b16 %v9280, %v9278
    %v9321 = vpack.c.b16 %v9283, %v9281
    %v9322 = vpack.c.b16 %v9284, %v9282
    %v9323 = vpack.c.b16 %v9287, %v9285
    %v9324 = vpack.c.b16 %v9288, %v9286
    %v9325 = vpack.c.b16 %v9291, %v9289
    %v9326 = vpack.c.b16 %v9292, %v9290
    %v9327 = vpack.c.b16 %v9295, %v9293
    %v9328 = vpack.c.b16 %v9296, %v9294
    %9361 = vmatprep.subr.bf16.mxu0 %v9298
    %9362 = vmatpush1.bf16.msra.mxu0 %v9297
    %9363 = vmatprep.subr.bf16.mxu0 %v9300
    %9364 = vmatpush1.bf16.msra.mxu0 %v9299
    %9365 = vmatprep.subr.bf16.mxu0 %v9302
    %9366 = vmatpush1.bf16.msra.mxu0 %v9301
    %9367 = vmatprep.subr.bf16.mxu0 %v9304
    %9368 = vmatpush1.bf16.msra.mxu0 %v9303
    %9369 = vmatprep.subr.bf16.mxu0 %v9306
    %9370 = vmatpush1.bf16.msra.mxu0 %v9305
    %9371 = vmatprep.subr.bf16.mxu0 %v9308
    %9372 = vmatpush1.bf16.msra.mxu0 %v9307
    %9373 = vmatprep.subr.bf16.mxu0 %v9310
    %9374 = vmatpush1.bf16.msra.mxu0 %v9309
    %9375 = vmatprep.subr.bf16.mxu0 %v9312
    %9376 = vmatpush1.bf16.msra.mxu0 %v9311
    %9377 = vmatprep.subr.bf16.mxu0 %v9314
    %9378 = vmatpush1.bf16.msra.mxu0 %v9313
    %9379 = vmatprep.subr.bf16.mxu0 %v9316
    %9380 = vmatpush1.bf16.msra.mxu0 %v9315
    %9381 = vmatprep.subr.bf16.mxu0 %v9318
    %9382 = vmatpush1.bf16.msra.mxu0 %v9317
    %9383 = vmatprep.subr.bf16.mxu0 %v9320
    %9384 = vmatpush1.bf16.msra.mxu0 %v9319
    %9385 = vmatprep.subr.bf16.mxu0 %v9322
    %9386 = vmatpush1.bf16.msra.mxu0 %v9321
    %9387 = vmatprep.subr.bf16.mxu0 %v9324
    %9388 = vmatpush1.bf16.msra.mxu0 %v9323
    %9389 = vmatprep.subr.bf16.mxu0 %v9326
    %9390 = vmatpush1.bf16.msra.mxu0 %v9325
    %9391 = vmatprep.subr.bf16.mxu0 %v9328
    %9392 = vmatpush1.bf16.msra.mxu0 %v9327
    %9393 = vmatprep.mubr.bf16.mxu0 %v9167
    %9394 = vmatmul.mubr.bf16.gmra.mrb[0].mxu0 %v9166
    %v9395 = vpop.f32.mrb[0].mxu0
    %v9396 = vadd.f32 0.0, %v9395
    %v9397 = vpop.f32.mrb[0].mxu0
    %v9398 = vadd.f32 0.0, %v9397
    %v9399 = vpop.f32.mrb[0].mxu0
    %v9400 = vpop.f32.mrb[0].mxu0
    %9401 = vdwg.mxu0
    %v9402 = vadd.f32 %v9114, %v9396
    %v9403 = vadd.f32 %v9116, %v9398
    %s9404 = scalar_lea.vmem [#allocation6], 34
    %v9405 = vld [vmem:[%s9404] ss:$8 sm:$0x3]
    %v9407 = vlaneseq
    %v9408 = vshrl.u32 %v9407, 7
    %v9409 = vsub.s32 0, %v9408
    %v9410 = vrot.slane %v9405, %v9409
    %v9411 = vlaneseq
    %v9412 = vshrl.u32 %v9411, 7
    %v9413 = vsub.s32 1, %v9412
    %v9414 = vrot.slane %v9405, %v9413
    %v9417 = vadd.f32 %v9402, %v9410
    %v9418 = vadd.f32 %v9403, %v9414
    %v9419 = vmax.f32 %v9417, 0.0
    %v9420 = vmax.f32 %v9418, 0.0
    %v9423 = vcombine.low %v9419, %v9420
    %9425 = vst [vmem:[%s20] sm:$0xff] %v9423
    %v9426 = vpack.c.bf16 %v9419, %v9419
    %v9427 = vpack.c.bf16 %v9420, %v9420
    %s9428 = scalar_lea.vmem [#allocation4], 544
    %v9429 = vld [vmem:[%s9428] sm:$0x1]
    %v9431 = vsel %vm7775, %v9429, 0
    %v9434 = vsel %vm7779, %v9426, 0
    %v9437 = vsel %vm7779, %v9427, 0
    %9439 = vmatprep.subr.bf16.mxu0 %v9437
    %9440 = vmatpush1.bf16.msra.mxu0 %v9434
    %9441 = vmatprep.subr.bf16.mxu0 0
    %9442 = vmatpush1.bf16.msra.mxu0 0
    %9443 = vmatprep.subr.bf16.mxu0 0
    %9444 = vmatpush1.bf16.msra.mxu0 0
    %9445 = vmatprep.subr.bf16.mxu0 0
    %9446 = vmatpush1.bf16.msra.mxu0 0
    %9447 = vmatprep.subr.bf16.mxu0 0
    %9448 = vmatpush1.bf16.msra.mxu0 0
    %9449 = vmatprep.subr.bf16.mxu0 0
    %9450 = vmatpush1.bf16.msra.mxu0 0
    %9451 = vmatprep.subr.bf16.mxu0 0
    %9452 = vmatpush1.bf16.msra.mxu0 0
    %9453 = vmatprep.subr.bf16.mxu0 0
    %9454 = vmatpush1.bf16.msra.mxu0 0
    %9455 = vmatprep.subr.bf16.mxu0 0
    %9456 = vmatpush1.bf16.msra.mxu0 0
    %9457 = vmatprep.subr.bf16.mxu0 0
    %9458 = vmatpush1.bf16.msra.mxu0 0
    %9459 = vmatprep.subr.bf16.mxu0 0
    %9460 = vmatpush1.bf16.msra.mxu0 0
    %9461 = vmatprep.subr.bf16.mxu0 0
    %9462 = vmatpush1.bf16.msra.mxu0 0
    %9463 = vmatprep.subr.bf16.mxu0 0
    %9464 = vmatpush1.bf16.msra.mxu0 0
    %9465 = vmatprep.subr.bf16.mxu0 0
    %9466 = vmatpush1.bf16.msra.mxu0 0
    %9467 = vmatprep.subr.bf16.mxu0 0
    %9468 = vmatpush1.bf16.msra.mxu0 0
    %9469 = vmatprep.subr.bf16.mxu0 0
    %9470 = vmatpush1.bf16.msra.mxu0 0
    %9471 = vmatprep.mubr.bf16.mxu0 0
    %9472 = vmatmul.mubr.bf16.gmra.mrb[0].mxu0 %v9431
    %v9473 = vpop.f32.mrb[0].mxu0
    %v9474 = vadd.f32 0.0, %v9473
    %v9475 = vpop.f32.mrb[0].mxu0
    %v9476 = vadd.f32 0.0, %v9475
    %v9477 = vpop.f32.mrb[0].mxu0
    %v9478 = vpop.f32.mrb[0].mxu0
    %9479 = vdwg.mxu0
    %v9480 = vpack.c.bf16 %v9474, %v9474
    %v9481 = vpack.c.bf16 %v9476, %v9476
    %v9482 = vld [vmem:[#allocation24] sm:$0xff]
    %v9483 = vld [vmem:[#allocation24 + $0x8] sm:$0xff]
    %v9484 = vld [vmem:[#allocation24 + $0x10] sm:$0xff]
    %v9485 = vld [vmem:[#allocation24 + $0x18] sm:$0xff]
    %v9486 = vld [vmem:[#allocation24 + $0x20] sm:$0xff]
    %v9487 = vld [vmem:[#allocation24 + $0x28] sm:$0xff]
    %v9488 = vld [vmem:[#allocation24 + $0x30] sm:$0xff]
    %v9489 = vld [vmem:[#allocation24 + $0x38] sm:$0xff]
    %v9490 = vld [vmem:[#allocation24 + $0x40] sm:$0xff]
    %v9491 = vld [vmem:[#allocation24 + $0x48] sm:$0xff]
    %v9492 = vld [vmem:[#allocation24 + $0x50] sm:$0xff]
    %v9493 = vld [vmem:[#allocation24 + $0x58] sm:$0xff]
    %v9494 = vld [vmem:[#allocation24 + $0x60] sm:$0xff]
    %v9495 = vld [vmem:[#allocation24 + $0x68] sm:$0xff]
    %v9496 = vld [vmem:[#allocation24 + $0x70] sm:$0xff]
    %v9497 = vld [vmem:[#allocation24 + $0x78] sm:$0xff]
    %v9498 = vld [vmem:[#allocation24 + $0x80] sm:$0xff]
    %v9499 = vld [vmem:[#allocation24 + $0x88] sm:$0xff]
    %v9500 = vld [vmem:[#allocation24 + $0x90] sm:$0xff]
    %v9501 = vld [vmem:[#allocation24 + $0x98] sm:$0xff]
    %v9502 = vld [vmem:[#allocation24 + $0xa0] sm:$0xff]
    %v9503 = vld [vmem:[#allocation24 + $0xa8] sm:$0xff]
    %v9504 = vld [vmem:[#allocation24 + $0xb0] sm:$0xff]
    %v9505 = vld [vmem:[#allocation24 + $0xb8] sm:$0xff]
    %v9506 = vld [vmem:[#allocation24 + $0xc0] sm:$0xff]
    %v9507 = vld [vmem:[#allocation24 + $0xc8] sm:$0xff]
    %v9508 = vld [vmem:[#allocation24 + $0xd0] sm:$0xff]
    %v9509 = vld [vmem:[#allocation24 + $0xd8] sm:$0xff]
    %v9510 = vld [vmem:[#allocation24 + $0xe0] sm:$0xff]
    %v9511 = vld [vmem:[#allocation24 + $0xe8] sm:$0xff]
    %v9512 = vld [vmem:[#allocation24 + $0xf0] sm:$0xff]
    %v9513 = vld [vmem:[#allocation24 + $0xf8] sm:$0xff]
    %s9514 = scalar_lea.vmem [#allocation4], 560
    %v9515 = vld [vmem:[%s9514] sm:$0x1]
    %v9517 = vsel %vm7775, %v9515, 0
    %9519 = vmatprep.subr.bf16.mxu0 %v9437
    %9520 = vmatpush1.bf16.msra.mxu0 %v9434
    %9521 = vmatprep.subr.bf16.mxu0 0
    %9522 = vmatpush1.bf16.msra.mxu0 0
    %9523 = vmatprep.subr.bf16.mxu0 0
    %9524 = vmatpush1.bf16.msra.mxu0 0
    %9525 = vmatprep.subr.bf16.mxu0 0
    %9526 = vmatpush1.bf16.msra.mxu0 0
    %9527 = vmatprep.subr.bf16.mxu0 0
    %9528 = vmatpush1.bf16.msra.mxu0 0
    %9529 = vmatprep.subr.bf16.mxu0 0
    %9530 = vmatpush1.bf16.msra.mxu0 0
    %9531 = vmatprep.subr.bf16.mxu0 0
    %9532 = vmatpush1.bf16.msra.mxu0 0
    %9533 = vmatprep.subr.bf16.mxu0 0
    %9534 = vmatpush1.bf16.msra.mxu0 0
    %9535 = vmatprep.subr.bf16.mxu0 0
    %9536 = vmatpush1.bf16.msra.mxu0 0
    %9537 = vmatprep.subr.bf16.mxu0 0
    %9538 = vmatpush1.bf16.msra.mxu0 0
    %9539 = vmatprep.subr.bf16.mxu0 0
    %9540 = vmatpush1.bf16.msra.mxu0 0
    %9541 = vmatprep.subr.bf16.mxu0 0
    %9542 = vmatpush1.bf16.msra.mxu0 0
    %9543 = vmatprep.subr.bf16.mxu0 0
    %9544 = vmatpush1.bf16.msra.mxu0 0
    %9545 = vmatprep.subr.bf16.mxu0 0
    %9546 = vmatpush1.bf16.msra.mxu0 0
    %9547 = vmatprep.subr.bf16.mxu0 0
    %9548 = vmatpush1.bf16.msra.mxu0 0
    %9549 = vmatprep.subr.bf16.mxu0 0
    %9550 = vmatpush1.bf16.msra.mxu0 0
    %9551 = vmatprep.mubr.bf16.mxu0 0
    %9552 = vmatmul.mubr.bf16.gmra.mrb[0].mxu0 %v9517
    %v9553 = vpop.f32.mrb[0].mxu0
    %v9554 = vadd.f32 0.0, %v9553
    %v9555 = vpop.f32.mrb[0].mxu0
    %v9556 = vadd.f32 0.0, %v9555
    %v9557 = vpop.f32.mrb[0].mxu0
    %v9558 = vpop.f32.mrb[0].mxu0
    %9559 = vdwg.mxu0
    %v9560 = vpack.c.bf16 %v9554, %v9554
    %v9561 = vpack.c.bf16 %v9556, %v9556
    %s9562 = scalar_lea.vmem [#allocation24], 256
    %v9563 = vld [vmem:[%s9562] sm:$0xff]
    %v9564 = vld [vmem:[%s9562 + $0x8] sm:$0xff]
    %v9565 = vld [vmem:[%s9562 + $0x10] sm:$0xff]
    %v9566 = vld [vmem:[%s9562 + $0x18] sm:$0xff]
    %v9567 = vld [vmem:[%s9562 + $0x20] sm:$0xff]
    %v9568 = vld [vmem:[%s9562 + $0x28] sm:$0xff]
    %v9569 = vld [vmem:[%s9562 + $0x30] sm:$0xff]
    %v9570 = vld [vmem:[%s9562 + $0x38] sm:$0xff]
    %v9571 = vld [vmem:[%s9562 + $0x40] sm:$0xff]
    %v9572 = vld [vmem:[%s9562 + $0x48] sm:$0xff]
    %v9573 = vld [vmem:[%s9562 + $0x50] sm:$0xff]
    %v9574 = vld [vmem:[%s9562 + $0x58] sm:$0xff]
    %v9575 = vld [vmem:[%s9562 + $0x60] sm:$0xff]
    %v9576 = vld [vmem:[%s9562 + $0x68] sm:$0xff]
    %v9577 = vld [vmem:[%s9562 + $0x70] sm:$0xff]
    %v9578 = vld [vmem:[%s9562 + $0x78] sm:$0xff]
    %v9579 = vld [vmem:[%s9562 + $0x80] sm:$0xff]
    %v9580 = vld [vmem:[%s9562 + $0x88] sm:$0xff]
    %v9581 = vld [vmem:[%s9562 + $0x90] sm:$0xff]
    %v9582 = vld [vmem:[%s9562 + $0x98] sm:$0xff]
    %v9583 = vld [vmem:[%s9562 + $0xa0] sm:$0xff]
    %v9584 = vld [vmem:[%s9562 + $0xa8] sm:$0xff]
    %v9585 = vld [vmem:[%s9562 + $0xb0] sm:$0xff]
    %v9586 = vld [vmem:[%s9562 + $0xb8] sm:$0xff]
    %v9587 = vld [vmem:[%s9562 + $0xc0] sm:$0xff]
    %v9588 = vld [vmem:[%s9562 + $0xc8] sm:$0xff]
    %v9589 = vld [vmem:[%s9562 + $0xd0] sm:$0xff]
    %v9590 = vld [vmem:[%s9562 + $0xd8] sm:$0xff]
    %v9591 = vld [vmem:[%s9562 + $0xe0] sm:$0xff]
    %v9592 = vld [vmem:[%s9562 + $0xe8] sm:$0xff]
    %v9593 = vld [vmem:[%s9562 + $0xf0] sm:$0xff]
    %v9594 = vld [vmem:[%s9562 + $0xf8] sm:$0xff]
    %v9627 = vunpack.c.l.b16 %v9563
    %v9628 = vunpack.c.h.b16 %v9563
    %v9629 = vunpack.c.l.b16 %v9564
    %v9630 = vunpack.c.h.b16 %v9564
    %v9631 = vunpack.c.l.b16 %v9565
    %v9632 = vunpack.c.h.b16 %v9565
    %v9633 = vunpack.c.l.b16 %v9566
    %v9634 = vunpack.c.h.b16 %v9566
    %v9635 = vunpack.c.l.b16 %v9567
    %v9636 = vunpack.c.h.b16 %v9567
    %v9637 = vunpack.c.l.b16 %v9568
    %v9638 = vunpack.c.h.b16 %v9568
    %v9639 = vunpack.c.l.b16 %v9569
    %v9640 = vunpack.c.h.b16 %v9569
    %v9641 = vunpack.c.l.b16 %v9570
    %v9642 = vunpack.c.h.b16 %v9570
    %v9643 = vunpack.c.l.b16 %v9571
    %v9644 = vunpack.c.h.b16 %v9571
    %v9645 = vunpack.c.l.b16 %v9572
    %v9646 = vunpack.c.h.b16 %v9572
    %v9647 = vunpack.c.l.b16 %v9573
    %v9648 = vunpack.c.h.b16 %v9573
    %v9649 = vunpack.c.l.b16 %v9574
    %v9650 = vunpack.c.h.b16 %v9574
    %v9651 = vunpack.c.l.b16 %v9575
    %v9652 = vunpack.c.h.b16 %v9575
    %v9653 = vunpack.c.l.b16 %v9576
    %v9654 = vunpack.c.h.b16 %v9576
    %v9655 = vunpack.c.l.b16 %v9577
    %v9656 = vunpack.c.h.b16 %v9577
    %v9657 = vunpack.c.l.b16 %v9578
    %v9658 = vunpack.c.h.b16 %v9578
    %v9659 = vunpack.c.l.b16 %v9579
    %v9660 = vunpack.c.h.b16 %v9579
    %v9661 = vunpack.c.l.b16 %v9580
    %v9662 = vunpack.c.h.b16 %v9580
    %v9663 = vunpack.c.l.b16 %v9581
    %v9664 = vunpack.c.h.b16 %v9581
    %v9665 = vunpack.c.l.b16 %v9582
    %v9666 = vunpack.c.h.b16 %v9582
    %v9667 = vunpack.c.l.b16 %v9583
    %v9668 = vunpack.c.h.b16 %v9583
    %v9669 = vunpack.c.l.b16 %v9584
    %v9670 = vunpack.c.h.b16 %v9584
    %v9671 = vunpack.c.l.b16 %v9585
    %v9672 = vunpack.c.h.b16 %v9585
    %v9673 = vunpack.c.l.b16 %v9586
    %v9674 = vunpack.c.h.b16 %v9586
    %v9675 = vunpack.c.l.b16 %v9587
    %v9676 = vunpack.c.h.b16 %v9587
    %v9677 = vunpack.c.l.b16 %v9588
    %v9678 = vunpack.c.h.b16 %v9588
    %v9679 = vunpack.c.l.b16 %v9589
    %v9680 = vunpack.c.h.b16 %v9589
    %v9681 = vunpack.c.l.b16 %v9590
    %v9682 = vunpack.c.h.b16 %v9590
    %v9683 = vunpack.c.l.b16 %v9591
    %v9684 = vunpack.c.h.b16 %v9591
    %v9685 = vunpack.c.l.b16 %v9592
    %v9686 = vunpack.c.h.b16 %v9592
    %v9687 = vunpack.c.l.b16 %v9593
    %v9688 = vunpack.c.h.b16 %v9593
    %v9689 = vunpack.c.l.b16 %v9594
    %v9690 = vunpack.c.h.b16 %v9594
    %v9691 = vpack.c.b16 %v9629, %v9627
    %v9692 = vpack.c.b16 %v9630, %v9628
    %v9693 = vpack.c.b16 %v9633, %v9631
    %v9694 = vpack.c.b16 %v9634, %v9632
    %v9695 = vpack.c.b16 %v9637, %v9635
    %v9696 = vpack.c.b16 %v9638, %v9636
    %v9697 = vpack.c.b16 %v9641, %v9639
    %v9698 = vpack.c.b16 %v9642, %v9640
    %v9699 = vpack.c.b16 %v9645, %v9643
    %v9700 = vpack.c.b16 %v9646, %v9644
    %v9701 = vpack.c.b16 %v9649, %v9647
    %v9702 = vpack.c.b16 %v9650, %v9648
    %v9703 = vpack.c.b16 %v9653, %v9651
    %v9704 = vpack.c.b16 %v9654, %v9652
    %v9705 = vpack.c.b16 %v9657, %v9655
    %v9706 = vpack.c.b16 %v9658, %v9656
    %v9707 = vpack.c.b16 %v9661, %v9659
    %v9708 = vpack.c.b16 %v9662, %v9660
    %v9709 = vpack.c.b16 %v9665, %v9663
    %v9710 = vpack.c.b16 %v9666, %v9664
    %v9711 = vpack.c.b16 %v9669, %v9667
    %v9712 = vpack.c.b16 %v9670, %v9668
    %v9713 = vpack.c.b16 %v9673, %v9671
    %v9714 = vpack.c.b16 %v9674, %v9672
    %v9715 = vpack.c.b16 %v9677, %v9675
    %v9716 = vpack.c.b16 %v9678, %v9676
    %v9717 = vpack.c.b16 %v9681, %v9679
    %v9718 = vpack.c.b16 %v9682, %v9680
    %v9719 = vpack.c.b16 %v9685, %v9683
    %v9720 = vpack.c.b16 %v9686, %v9684
    %v9721 = vpack.c.b16 %v9689, %v9687
    %v9722 = vpack.c.b16 %v9690, %v9688
    %9755 = vmatprep.subr.bf16.mxu0 %v9692
    %9756 = vmatpush1.bf16.msra.mxu0 %v9691
    %9757 = vmatprep.subr.bf16.mxu0 %v9694
    %9758 = vmatpush1.bf16.msra.mxu0 %v9693
    %9759 = vmatprep.subr.bf16.mxu0 %v9696
    %9760 = vmatpush1.bf16.msra.mxu0 %v9695
    %9761 = vmatprep.subr.bf16.mxu0 %v9698
    %9762 = vmatpush1.bf16.msra.mxu0 %v9697
    %9763 = vmatprep.subr.bf16.mxu0 %v9700
    %9764 = vmatpush1.bf16.msra.mxu0 %v9699
    %9765 = vmatprep.subr.bf16.mxu0 %v9702
    %9766 = vmatpush1.bf16.msra.mxu0 %v9701
    %9767 = vmatprep.subr.bf16.mxu0 %v9704
    %9768 = vmatpush1.bf16.msra.mxu0 %v9703
    %9769 = vmatprep.subr.bf16.mxu0 %v9706
    %9770 = vmatpush1.bf16.msra.mxu0 %v9705
    %9771 = vmatprep.subr.bf16.mxu0 %v9708
    %9772 = vmatpush1.bf16.msra.mxu0 %v9707
    %9773 = vmatprep.subr.bf16.mxu0 %v9710
    %9774 = vmatpush1.bf16.msra.mxu0 %v9709
    %9775 = vmatprep.subr.bf16.mxu0 %v9712
    %9776 = vmatpush1.bf16.msra.mxu0 %v9711
    %9777 = vmatprep.subr.bf16.mxu0 %v9714
    %9778 = vmatpush1.bf16.msra.mxu0 %v9713
    %9779 = vmatprep.subr.bf16.mxu0 %v9716
    %9780 = vmatpush1.bf16.msra.mxu0 %v9715
    %9781 = vmatprep.subr.bf16.mxu0 %v9718
    %9782 = vmatpush1.bf16.msra.mxu0 %v9717
    %9783 = vmatprep.subr.bf16.mxu0 %v9720
    %9784 = vmatpush1.bf16.msra.mxu0 %v9719
    %9785 = vmatprep.subr.bf16.mxu0 %v9722
    %9786 = vmatpush1.bf16.msra.mxu0 %v9721
    %9787 = vmatprep.mubr.bf16.mxu0 %v9561
    %9788 = vmatmul.mubr.bf16.gmra.mrb[0].mxu0 %v9560
    %v9789 = vpop.f32.mrb[0].mxu0
    %v9790 = vadd.f32 0.0, %v9789
    %v9791 = vpop.f32.mrb[0].mxu0
    %v9792 = vadd.f32 0.0, %v9791
    %v9793 = vpop.f32.mrb[0].mxu0
    %v9794 = vpop.f32.mrb[0].mxu0
    %9795 = vdwg.mxu0
    %v9828 = vunpack.c.l.b16 %v9482
    %v9829 = vunpack.c.h.b16 %v9482
    %v9830 = vunpack.c.l.b16 %v9483
    %v9831 = vunpack.c.h.b16 %v9483
    %v9832 = vunpack.c.l.b16 %v9484
    %v9833 = vunpack.c.h.b16 %v9484
    %v9834 = vunpack.c.l.b16 %v9485
    %v9835 = vunpack.c.h.b16 %v9485
    %v9836 = vunpack.c.l.b16 %v9486
    %v9837 = vunpack.c.h.b16 %v9486
    %v9838 = vunpack.c.l.b16 %v9487
    %v9839 = vunpack.c.h.b16 %v9487
    %v9840 = vunpack.c.l.b16 %v9488
    %v9841 = vunpack.c.h.b16 %v9488
    %v9842 = vunpack.c.l.b16 %v9489
    %v9843 = vunpack.c.h.b16 %v9489
    %v9844 = vunpack.c.l.b16 %v9490
    %v9845 = vunpack.c.h.b16 %v9490
    %v9846 = vunpack.c.l.b16 %v9491
    %v9847 = vunpack.c.h.b16 %v9491
    %v9848 = vunpack.c.l.b16 %v9492
    %v9849 = vunpack.c.h.b16 %v9492
    %v9850 = vunpack.c.l.b16 %v9493
    %v9851 = vunpack.c.h.b16 %v9493
    %v9852 = vunpack.c.l.b16 %v9494
    %v9853 = vunpack.c.h.b16 %v9494
    %v9854 = vunpack.c.l.b16 %v9495
    %v9855 = vunpack.c.h.b16 %v9495
    %v9856 = vunpack.c.l.b16 %v9496
    %v9857 = vunpack.c.h.b16 %v9496
    %v9858 = vunpack.c.l.b16 %v9497
    %v9859 = vunpack.c.h.b16 %v9497
    %v9860 = vunpack.c.l.b16 %v9498
    %v9861 = vunpack.c.h.b16 %v9498
    %v9862 = vunpack.c.l.b16 %v9499
    %v9863 = vunpack.c.h.b16 %v9499
    %v9864 = vunpack.c.l.b16 %v9500
    %v9865 = vunpack.c.h.b16 %v9500
    %v9866 = vunpack.c.l.b16 %v9501
    %v9867 = vunpack.c.h.b16 %v9501
    %v9868 = vunpack.c.l.b16 %v9502
    %v9869 = vunpack.c.h.b16 %v9502
    %v9870 = vunpack.c.l.b16 %v9503
    %v9871 = vunpack.c.h.b16 %v9503
    %v9872 = vunpack.c.l.b16 %v9504
    %v9873 = vunpack.c.h.b16 %v9504
    %v9874 = vunpack.c.l.b16 %v9505
    %v9875 = vunpack.c.h.b16 %v9505
    %v9876 = vunpack.c.l.b16 %v9506
    %v9877 = vunpack.c.h.b16 %v9506
    %v9878 = vunpack.c.l.b16 %v9507
    %v9879 = vunpack.c.h.b16 %v9507
    %v9880 = vunpack.c.l.b16 %v9508
    %v9881 = vunpack.c.h.b16 %v9508
    %v9882 = vunpack.c.l.b16 %v9509
    %v9883 = vunpack.c.h.b16 %v9509
    %v9884 = vunpack.c.l.b16 %v9510
    %v9885 = vunpack.c.h.b16 %v9510
    %v9886 = vunpack.c.l.b16 %v9511
    %v9887 = vunpack.c.h.b16 %v9511
    %v9888 = vunpack.c.l.b16 %v9512
    %v9889 = vunpack.c.h.b16 %v9512
    %v9890 = vunpack.c.l.b16 %v9513
    %v9891 = vunpack.c.h.b16 %v9513
    %v9892 = vpack.c.b16 %v9830, %v9828
    %v9893 = vpack.c.b16 %v9831, %v9829
    %v9894 = vpack.c.b16 %v9834, %v9832
    %v9895 = vpack.c.b16 %v9835, %v9833
    %v9896 = vpack.c.b16 %v9838, %v9836
    %v9897 = vpack.c.b16 %v9839, %v9837
    %v9898 = vpack.c.b16 %v9842, %v9840
    %v9899 = vpack.c.b16 %v9843, %v9841
    %v9900 = vpack.c.b16 %v9846, %v9844
    %v9901 = vpack.c.b16 %v9847, %v9845
    %v9902 = vpack.c.b16 %v9850, %v9848
    %v9903 = vpack.c.b16 %v9851, %v9849
    %v9904 = vpack.c.b16 %v9854, %v9852
    %v9905 = vpack.c.b16 %v9855, %v9853
    %v9906 = vpack.c.b16 %v9858, %v9856
    %v9907 = vpack.c.b16 %v9859, %v9857
    %v9908 = vpack.c.b16 %v9862, %v9860
    %v9909 = vpack.c.b16 %v9863, %v9861
    %v9910 = vpack.c.b16 %v9866, %v9864
    %v9911 = vpack.c.b16 %v9867, %v9865
    %v9912 = vpack.c.b16 %v9870, %v9868
    %v9913 = vpack.c.b16 %v9871, %v9869
    %v9914 = vpack.c.b16 %v9874, %v9872
    %v9915 = vpack.c.b16 %v9875, %v9873
    %v9916 = vpack.c.b16 %v9878, %v9876
    %v9917 = vpack.c.b16 %v9879, %v9877
    %v9918 = vpack.c.b16 %v9882, %v9880
    %v9919 = vpack.c.b16 %v9883, %v9881
    %v9920 = vpack.c.b16 %v9886, %v9884
    %v9921 = vpack.c.b16 %v9887, %v9885
    %v9922 = vpack.c.b16 %v9890, %v9888
    %v9923 = vpack.c.b16 %v9891, %v9889
    %9956 = vmatprep.subr.bf16.mxu0 %v9893
    %9957 = vmatpush1.bf16.msra.mxu0 %v9892
    %9958 = vmatprep.subr.bf16.mxu0 %v9895
    %9959 = vmatpush1.bf16.msra.mxu0 %v9894
    %9960 = vmatprep.subr.bf16.mxu0 %v9897
    %9961 = vmatpush1.bf16.msra.mxu0 %v9896
    %9962 = vmatprep.subr.bf16.mxu0 %v9899
    %9963 = vmatpush1.bf16.msra.mxu0 %v9898
    %9964 = vmatprep.subr.bf16.mxu0 %v9901
    %9965 = vmatpush1.bf16.msra.mxu0 %v9900
    %9966 = vmatprep.subr.bf16.mxu0 %v9903
    %9967 = vmatpush1.bf16.msra.mxu0 %v9902
    %9968 = vmatprep.subr.bf16.mxu0 %v9905
    %9969 = vmatpush1.bf16.msra.mxu0 %v9904
    %9970 = vmatprep.subr.bf16.mxu0 %v9907
    %9971 = vmatpush1.bf16.msra.mxu0 %v9906
    %9972 = vmatprep.subr.bf16.mxu0 %v9909
    %9973 = vmatpush1.bf16.msra.mxu0 %v9908
    %9974 = vmatprep.subr.bf16.mxu0 %v9911
    %9975 = vmatpush1.bf16.msra.mxu0 %v9910
    %9976 = vmatprep.subr.bf16.mxu0 %v9913
    %9977 = vmatpush1.bf16.msra.mxu0 %v9912
    %9978 = vmatprep.subr.bf16.mxu0 %v9915
    %9979 = vmatpush1.bf16.msra.mxu0 %v9914
    %9980 = vmatprep.subr.bf16.mxu0 %v9917
    %9981 = vmatpush1.bf16.msra.mxu0 %v9916
    %9982 = vmatprep.subr.bf16.mxu0 %v9919
    %9983 = vmatpush1.bf16.msra.mxu0 %v9918
    %9984 = vmatprep.subr.bf16.mxu0 %v9921
    %9985 = vmatpush1.bf16.msra.mxu0 %v9920
    %9986 = vmatprep.subr.bf16.mxu0 %v9923
    %9987 = vmatpush1.bf16.msra.mxu0 %v9922
    %9988 = vmatprep.mubr.bf16.mxu0 %v9481
    %9989 = vmatmul.mubr.bf16.gmra.mrb[0].mxu0 %v9480
    %v9990 = vpop.f32.mrb[0].mxu0
    %v9991 = vadd.f32 %v9790, %v9990
    %v9992 = vpop.f32.mrb[0].mxu0
    %v9993 = vadd.f32 %v9792, %v9992
    %v9994 = vpop.f32.mrb[0].mxu0
    %v9995 = vpop.f32.mrb[0].mxu0
    %9996 = vdwg.mxu0
    %s9997 = scalar_lea.vmem [#allocation6], 35
    %v9998 = vld [vmem:[%s9997] ss:$8 sm:$0x3]
    %v10000 = vlaneseq
    %v10001 = vshrl.u32 %v10000, 7
    %v10002 = vsub.s32 0, %v10001
    %v10003 = vrot.slane %v9998, %v10002
    %v10004 = vlaneseq
    %v10005 = vshrl.u32 %v10004, 7
    %v10006 = vsub.s32 1, %v10005
    %v10007 = vrot.slane %v9998, %v10006
    %v10010 = vadd.f32 %v9991, %v10003
    %v10011 = vadd.f32 %v9993, %v10007
    %v10012 = vmax.f32 %v10010, 0.0
    %v10013 = vmax.f32 %v10011, 0.0
    %v10014 = vpack.c.bf16 %v10012, %v10012
    %v10015 = vpack.c.bf16 %v10013, %v10013
    %v10016 = vld [vmem:[#allocation26] sm:$0xff]
    %v10017 = vld [vmem:[#allocation26 + $0x8] sm:$0xff]
    %v10018 = vld [vmem:[#allocation26 + $0x10] sm:$0xff]
    %v10019 = vld [vmem:[#allocation26 + $0x18] sm:$0xff]
    %v10020 = vld [vmem:[#allocation26 + $0x20] sm:$0xff]
    %v10021 = vld [vmem:[#allocation26 + $0x28] sm:$0xff]
    %v10022 = vld [vmem:[#allocation26 + $0x30] sm:$0xff]
    %v10023 = vld [vmem:[#allocation26 + $0x38] sm:$0xff]
    %v10024 = vld [vmem:[#allocation26 + $0x40] sm:$0xff]
    %v10025 = vld [vmem:[#allocation26 + $0x48] sm:$0xff]
    %v10026 = vld [vmem:[#allocation26 + $0x50] sm:$0xff]
    %v10027 = vld [vmem:[#allocation26 + $0x58] sm:$0xff]
    %v10028 = vld [vmem:[#allocation26 + $0x60] sm:$0xff]
    %v10029 = vld [vmem:[#allocation26 + $0x68] sm:$0xff]
    %v10030 = vld [vmem:[#allocation26 + $0x70] sm:$0xff]
    %v10031 = vld [vmem:[#allocation26 + $0x78] sm:$0xff]
    %v10032 = vld [vmem:[#allocation26 + $0x80] sm:$0xff]
    %v10033 = vld [vmem:[#allocation26 + $0x88] sm:$0xff]
    %v10034 = vld [vmem:[#allocation26 + $0x90] sm:$0xff]
    %v10035 = vld [vmem:[#allocation26 + $0x98] sm:$0xff]
    %v10036 = vld [vmem:[#allocation26 + $0xa0] sm:$0xff]
    %v10037 = vld [vmem:[#allocation26 + $0xa8] sm:$0xff]
    %v10038 = vld [vmem:[#allocation26 + $0xb0] sm:$0xff]
    %v10039 = vld [vmem:[#allocation26 + $0xb8] sm:$0xff]
    %v10040 = vld [vmem:[#allocation26 + $0xc0] sm:$0xff]
    %v10041 = vld [vmem:[#allocation26 + $0xc8] sm:$0xff]
    %v10042 = vld [vmem:[#allocation26 + $0xd0] sm:$0xff]
    %v10043 = vld [vmem:[#allocation26 + $0xd8] sm:$0xff]
    %v10044 = vld [vmem:[#allocation26 + $0xe0] sm:$0xff]
    %v10045 = vld [vmem:[#allocation26 + $0xe8] sm:$0xff]
    %v10046 = vld [vmem:[#allocation26 + $0xf0] sm:$0xff]
    %v10047 = vld [vmem:[#allocation26 + $0xf8] sm:$0xff]
    %s10048 = scalar_lea.vmem [#allocation6], 36
    %v10049 = vld [vmem:[%s10048] ss:$8 sm:$0x3]
    %v10051 = vlaneseq
    %v10052 = vshrl.u32 %v10051, 7
    %v10053 = vsub.s32 0, %v10052
    %v10054 = vrot.slane %v10049, %v10053
    %v10055 = vlaneseq
    %v10056 = vshrl.u32 %v10055, 7
    %v10057 = vsub.s32 1, %v10056
    %v10058 = vrot.slane %v10049, %v10057
    %v10093 = vunpack.c.l.b16 %v10016
    %v10094 = vunpack.c.h.b16 %v10016
    %v10095 = vunpack.c.l.b16 %v10017
    %v10096 = vunpack.c.h.b16 %v10017
    %v10097 = vunpack.c.l.b16 %v10018
    %v10098 = vunpack.c.h.b16 %v10018
    %v10099 = vunpack.c.l.b16 %v10019
    %v10100 = vunpack.c.h.b16 %v10019
    %v10101 = vunpack.c.l.b16 %v10020
    %v10102 = vunpack.c.h.b16 %v10020
    %v10103 = vunpack.c.l.b16 %v10021
    %v10104 = vunpack.c.h.b16 %v10021
    %v10105 = vunpack.c.l.b16 %v10022
    %v10106 = vunpack.c.h.b16 %v10022
    %v10107 = vunpack.c.l.b16 %v10023
    %v10108 = vunpack.c.h.b16 %v10023
    %v10109 = vunpack.c.l.b16 %v10024
    %v10110 = vunpack.c.h.b16 %v10024
    %v10111 = vunpack.c.l.b16 %v10025
    %v10112 = vunpack.c.h.b16 %v10025
    %v10113 = vunpack.c.l.b16 %v10026
    %v10114 = vunpack.c.h.b16 %v10026
    %v10115 = vunpack.c.l.b16 %v10027
    %v10116 = vunpack.c.h.b16 %v10027
    %v10117 = vunpack.c.l.b16 %v10028
    %v10118 = vunpack.c.h.b16 %v10028
    %v10119 = vunpack.c.l.b16 %v10029
    %v10120 = vunpack.c.h.b16 %v10029
    %v10121 = vunpack.c.l.b16 %v10030
    %v10122 = vunpack.c.h.b16 %v10030
    %v10123 = vunpack.c.l.b16 %v10031
    %v10124 = vunpack.c.h.b16 %v10031
    %v10125 = vunpack.c.l.b16 %v10032
    %v10126 = vunpack.c.h.b16 %v10032
    %v10127 = vunpack.c.l.b16 %v10033
    %v10128 = vunpack.c.h.b16 %v10033
    %v10129 = vunpack.c.l.b16 %v10034
    %v10130 = vunpack.c.h.b16 %v10034
    %v10131 = vunpack.c.l.b16 %v10035
    %v10132 = vunpack.c.h.b16 %v10035
    %v10133 = vunpack.c.l.b16 %v10036
    %v10134 = vunpack.c.h.b16 %v10036
    %v10135 = vunpack.c.l.b16 %v10037
    %v10136 = vunpack.c.h.b16 %v10037
    %v10137 = vunpack.c.l.b16 %v10038
    %v10138 = vunpack.c.h.b16 %v10038
    %v10139 = vunpack.c.l.b16 %v10039
    %v10140 = vunpack.c.h.b16 %v10039
    %v10141 = vunpack.c.l.b16 %v10040
    %v10142 = vunpack.c.h.b16 %v10040
    %v10143 = vunpack.c.l.b16 %v10041
    %v10144 = vunpack.c.h.b16 %v10041
    %v10145 = vunpack.c.l.b16 %v10042
    %v10146 = vunpack.c.h.b16 %v10042
    %v10147 = vunpack.c.l.b16 %v10043
    %v10148 = vunpack.c.h.b16 %v10043
    %v10149 = vunpack.c.l.b16 %v10044
    %v10150 = vunpack.c.h.b16 %v10044
    %v10151 = vunpack.c.l.b16 %v10045
    %v10152 = vunpack.c.h.b16 %v10045
    %v10153 = vunpack.c.l.b16 %v10046
    %v10154 = vunpack.c.h.b16 %v10046
    %v10155 = vunpack.c.l.b16 %v10047
    %v10156 = vunpack.c.h.b16 %v10047
    %v10157 = vpack.c.b16 %v10095, %v10093
    %v10158 = vpack.c.b16 %v10096, %v10094
    %v10159 = vpack.c.b16 %v10099, %v10097
    %v10160 = vpack.c.b16 %v10100, %v10098
    %v10161 = vpack.c.b16 %v10103, %v10101
    %v10162 = vpack.c.b16 %v10104, %v10102
    %v10163 = vpack.c.b16 %v10107, %v10105
    %v10164 = vpack.c.b16 %v10108, %v10106
    %v10165 = vpack.c.b16 %v10111, %v10109
    %v10166 = vpack.c.b16 %v10112, %v10110
    %v10167 = vpack.c.b16 %v10115, %v10113
    %v10168 = vpack.c.b16 %v10116, %v10114
    %v10169 = vpack.c.b16 %v10119, %v10117
    %v10170 = vpack.c.b16 %v10120, %v10118
    %v10171 = vpack.c.b16 %v10123, %v10121
    %v10172 = vpack.c.b16 %v10124, %v10122
    %v10173 = vpack.c.b16 %v10127, %v10125
    %v10174 = vpack.c.b16 %v10128, %v10126
    %v10175 = vpack.c.b16 %v10131, %v10129
    %v10176 = vpack.c.b16 %v10132, %v10130
    %v10177 = vpack.c.b16 %v10135, %v10133
    %v10178 = vpack.c.b16 %v10136, %v10134
    %v10179 = vpack.c.b16 %v10139, %v10137
    %v10180 = vpack.c.b16 %v10140, %v10138
    %v10181 = vpack.c.b16 %v10143, %v10141
    %v10182 = vpack.c.b16 %v10144, %v10142
    %v10183 = vpack.c.b16 %v10147, %v10145
    %v10184 = vpack.c.b16 %v10148, %v10146
    %v10185 = vpack.c.b16 %v10151, %v10149
    %v10186 = vpack.c.b16 %v10152, %v10150
    %v10187 = vpack.c.b16 %v10155, %v10153
    %v10188 = vpack.c.b16 %v10156, %v10154
    %10221 = vmatprep.subr.bf16.mxu0 %v10158
    %10222 = vmatpush1.bf16.msra.mxu0 %v10157
    %10223 = vmatprep.subr.bf16.mxu0 %v10160
    %10224 = vmatpush1.bf16.msra.mxu0 %v10159
    %10225 = vmatprep.subr.bf16.mxu0 %v10162
    %10226 = vmatpush1.bf16.msra.mxu0 %v10161
    %10227 = vmatprep.subr.bf16.mxu0 %v10164
    %10228 = vmatpush1.bf16.msra.mxu0 %v10163
    %10229 = vmatprep.subr.bf16.mxu0 %v10166
    %10230 = vmatpush1.bf16.msra.mxu0 %v10165
    %10231 = vmatprep.subr.bf16.mxu0 %v10168
    %10232 = vmatpush1.bf16.msra.mxu0 %v10167
    %10233 = vmatprep.subr.bf16.mxu0 %v10170
    %10234 = vmatpush1.bf16.msra.mxu0 %v10169
    %10235 = vmatprep.subr.bf16.mxu0 %v10172
    %10236 = vmatpush1.bf16.msra.mxu0 %v10171
    %10237 = vmatprep.subr.bf16.mxu0 %v10174
    %10238 = vmatpush1.bf16.msra.mxu0 %v10173
    %10239 = vmatprep.subr.bf16.mxu0 %v10176
    %10240 = vmatpush1.bf16.msra.mxu0 %v10175
    %10241 = vmatprep.subr.bf16.mxu0 %v10178
    %10242 = vmatpush1.bf16.msra.mxu0 %v10177
    %10243 = vmatprep.subr.bf16.mxu0 %v10180
    %10244 = vmatpush1.bf16.msra.mxu0 %v10179
    %10245 = vmatprep.subr.bf16.mxu0 %v10182
    %10246 = vmatpush1.bf16.msra.mxu0 %v10181
    %10247 = vmatprep.subr.bf16.mxu0 %v10184
    %10248 = vmatpush1.bf16.msra.mxu0 %v10183
    %10249 = vmatprep.subr.bf16.mxu0 %v10186
    %10250 = vmatpush1.bf16.msra.mxu0 %v10185
    %10251 = vmatprep.subr.bf16.mxu0 %v10188
    %10252 = vmatpush1.bf16.msra.mxu0 %v10187
    %10253 = vmatprep.mubr.bf16.mxu0 %v10015
    %10254 = vmatmul.mubr.bf16.gmra.mrb[0].mxu0 %v10014
    %v10255 = vpop.f32.mrb[0].mxu0
    %v10256 = vadd.f32 %v10054, %v10255
    %v10257 = vpop.f32.mrb[0].mxu0
    %v10258 = vadd.f32 %v10058, %v10257
    %v10259 = vpop.f32.mrb[0].mxu0
    %v10260 = vpop.f32.mrb[0].mxu0
    %10261 = vdwg.mxu0
    %v10262 = vmax.f32 %v10256, 0.0
    %v10263 = vmax.f32 %v10258, 0.0
    %v10264 = vpack.c.bf16 %v10262, %v10262
    %v10265 = vpack.c.bf16 %v10263, %v10263
    %v10266 = vld [vmem:[#allocation27] sm:$0xff]
    %v10267 = vld [vmem:[#allocation27 + $0x8] sm:$0xff]
    %v10268 = vld [vmem:[#allocation27 + $0x10] sm:$0xff]
    %v10269 = vld [vmem:[#allocation27 + $0x18] sm:$0xff]
    %v10270 = vld [vmem:[#allocation27 + $0x20] sm:$0xff]
    %v10271 = vld [vmem:[#allocation27 + $0x28] sm:$0xff]
    %v10272 = vld [vmem:[#allocation27 + $0x30] sm:$0xff]
    %v10273 = vld [vmem:[#allocation27 + $0x38] sm:$0xff]
    %v10274 = vld [vmem:[#allocation27 + $0x40] sm:$0xff]
    %v10275 = vld [vmem:[#allocation27 + $0x48] sm:$0xff]
    %v10276 = vld [vmem:[#allocation27 + $0x50] sm:$0xff]
    %v10277 = vld [vmem:[#allocation27 + $0x58] sm:$0xff]
    %v10278 = vld [vmem:[#allocation27 + $0x60] sm:$0xff]
    %v10279 = vld [vmem:[#allocation27 + $0x68] sm:$0xff]
    %v10280 = vld [vmem:[#allocation27 + $0x70] sm:$0xff]
    %v10281 = vld [vmem:[#allocation27 + $0x78] sm:$0xff]
    %v10282 = vld [vmem:[#allocation27 + $0x80] sm:$0xff]
    %v10283 = vld [vmem:[#allocation27 + $0x88] sm:$0xff]
    %v10284 = vld [vmem:[#allocation27 + $0x90] sm:$0xff]
    %v10285 = vld [vmem:[#allocation27 + $0x98] sm:$0xff]
    %v10286 = vld [vmem:[#allocation27 + $0xa0] sm:$0xff]
    %v10287 = vld [vmem:[#allocation27 + $0xa8] sm:$0xff]
    %v10288 = vld [vmem:[#allocation27 + $0xb0] sm:$0xff]
    %v10289 = vld [vmem:[#allocation27 + $0xb8] sm:$0xff]
    %v10290 = vld [vmem:[#allocation27 + $0xc0] sm:$0xff]
    %v10291 = vld [vmem:[#allocation27 + $0xc8] sm:$0xff]
    %v10292 = vld [vmem:[#allocation27 + $0xd0] sm:$0xff]
    %v10293 = vld [vmem:[#allocation27 + $0xd8] sm:$0xff]
    %v10294 = vld [vmem:[#allocation27 + $0xe0] sm:$0xff]
    %v10295 = vld [vmem:[#allocation27 + $0xe8] sm:$0xff]
    %v10296 = vld [vmem:[#allocation27 + $0xf0] sm:$0xff]
    %v10297 = vld [vmem:[#allocation27 + $0xf8] sm:$0xff]
    %s10298 = scalar_lea.vmem [#allocation6], 37
    %v10299 = vld [vmem:[%s10298] ss:$8 sm:$0x3]
    %v10301 = vlaneseq
    %v10302 = vshrl.u32 %v10301, 7
    %v10303 = vsub.s32 0, %v10302
    %v10304 = vrot.slane %v10299, %v10303
    %v10305 = vlaneseq
    %v10306 = vshrl.u32 %v10305, 7
    %v10307 = vsub.s32 1, %v10306
    %v10308 = vrot.slane %v10299, %v10307
    %v10343 = vunpack.c.l.b16 %v10266
    %v10344 = vunpack.c.h.b16 %v10266
    %v10345 = vunpack.c.l.b16 %v10267
    %v10346 = vunpack.c.h.b16 %v10267
    %v10347 = vunpack.c.l.b16 %v10268
    %v10348 = vunpack.c.h.b16 %v10268
    %v10349 = vunpack.c.l.b16 %v10269
    %v10350 = vunpack.c.h.b16 %v10269
    %v10351 = vunpack.c.l.b16 %v10270
    %v10352 = vunpack.c.h.b16 %v10270
    %v10353 = vunpack.c.l.b16 %v10271
    %v10354 = vunpack.c.h.b16 %v10271
    %v10355 = vunpack.c.l.b16 %v10272
    %v10356 = vunpack.c.h.b16 %v10272
    %v10357 = vunpack.c.l.b16 %v10273
    %v10358 = vunpack.c.h.b16 %v10273
    %v10359 = vunpack.c.l.b16 %v10274
    %v10360 = vunpack.c.h.b16 %v10274
    %v10361 = vunpack.c.l.b16 %v10275
    %v10362 = vunpack.c.h.b16 %v10275
    %v10363 = vunpack.c.l.b16 %v10276
    %v10364 = vunpack.c.h.b16 %v10276
    %v10365 = vunpack.c.l.b16 %v10277
    %v10366 = vunpack.c.h.b16 %v10277
    %v10367 = vunpack.c.l.b16 %v10278
    %v10368 = vunpack.c.h.b16 %v10278
    %v10369 = vunpack.c.l.b16 %v10279
    %v10370 = vunpack.c.h.b16 %v10279
    %v10371 = vunpack.c.l.b16 %v10280
    %v10372 = vunpack.c.h.b16 %v10280
    %v10373 = vunpack.c.l.b16 %v10281
    %v10374 = vunpack.c.h.b16 %v10281
    %v10375 = vunpack.c.l.b16 %v10282
    %v10376 = vunpack.c.h.b16 %v10282
    %v10377 = vunpack.c.l.b16 %v10283
    %v10378 = vunpack.c.h.b16 %v10283
    %v10379 = vunpack.c.l.b16 %v10284
    %v10380 = vunpack.c.h.b16 %v10284
    %v10381 = vunpack.c.l.b16 %v10285
    %v10382 = vunpack.c.h.b16 %v10285
    %v10383 = vunpack.c.l.b16 %v10286
    %v10384 = vunpack.c.h.b16 %v10286
    %v10385 = vunpack.c.l.b16 %v10287
    %v10386 = vunpack.c.h.b16 %v10287
    %v10387 = vunpack.c.l.b16 %v10288
    %v10388 = vunpack.c.h.b16 %v10288
    %v10389 = vunpack.c.l.b16 %v10289
    %v10390 = vunpack.c.h.b16 %v10289
    %v10391 = vunpack.c.l.b16 %v10290
    %v10392 = vunpack.c.h.b16 %v10290
    %v10393 = vunpack.c.l.b16 %v10291
    %v10394 = vunpack.c.h.b16 %v10291
    %v10395 = vunpack.c.l.b16 %v10292
    %v10396 = vunpack.c.h.b16 %v10292
    %v10397 = vunpack.c.l.b16 %v10293
    %v10398 = vunpack.c.h.b16 %v10293
    %v10399 = vunpack.c.l.b16 %v10294
    %v10400 = vunpack.c.h.b16 %v10294
    %v10401 = vunpack.c.l.b16 %v10295
    %v10402 = vunpack.c.h.b16 %v10295
    %v10403 = vunpack.c.l.b16 %v10296
    %v10404 = vunpack.c.h.b16 %v10296
    %v10405 = vunpack.c.l.b16 %v10297
    %v10406 = vunpack.c.h.b16 %v10297
    %v10407 = vpack.c.b16 %v10345, %v10343
    %v10408 = vpack.c.b16 %v10346, %v10344
    %v10409 = vpack.c.b16 %v10349, %v10347
    %v10410 = vpack.c.b16 %v10350, %v10348
    %v10411 = vpack.c.b16 %v10353, %v10351
    %v10412 = vpack.c.b16 %v10354, %v10352
    %v10413 = vpack.c.b16 %v10357, %v10355
    %v10414 = vpack.c.b16 %v10358, %v10356
    %v10415 = vpack.c.b16 %v10361, %v10359
    %v10416 = vpack.c.b16 %v10362, %v10360
    %v10417 = vpack.c.b16 %v10365, %v10363
    %v10418 = vpack.c.b16 %v10366, %v10364
    %v10419 = vpack.c.b16 %v10369, %v10367
    %v10420 = vpack.c.b16 %v10370, %v10368
    %v10421 = vpack.c.b16 %v10373, %v10371
    %v10422 = vpack.c.b16 %v10374, %v10372
    %v10423 = vpack.c.b16 %v10377, %v10375
    %v10424 = vpack.c.b16 %v10378, %v10376
    %v10425 = vpack.c.b16 %v10381, %v10379
    %v10426 = vpack.c.b16 %v10382, %v10380
    %v10427 = vpack.c.b16 %v10385, %v10383
    %v10428 = vpack.c.b16 %v10386, %v10384
    %v10429 = vpack.c.b16 %v10389, %v10387
    %v10430 = vpack.c.b16 %v10390, %v10388
    %v10431 = vpack.c.b16 %v10393, %v10391
    %v10432 = vpack.c.b16 %v10394, %v10392
    %v10433 = vpack.c.b16 %v10397, %v10395
    %v10434 = vpack.c.b16 %v10398, %v10396
    %v10435 = vpack.c.b16 %v10401, %v10399
    %v10436 = vpack.c.b16 %v10402, %v10400
    %v10437 = vpack.c.b16 %v10405, %v10403
    %v10438 = vpack.c.b16 %v10406, %v10404
    %10471 = vmatprep.subr.bf16.mxu0 %v10408
    %10472 = vmatpush1.bf16.msra.mxu0 %v10407
    %10473 = vmatprep.subr.bf16.mxu0 %v10410
    %10474 = vmatpush1.bf16.msra.mxu0 %v10409
    %10475 = vmatprep.subr.bf16.mxu0 %v10412
    %10476 = vmatpush1.bf16.msra.mxu0 %v10411
    %10477 = vmatprep.subr.bf16.mxu0 %v10414
    %10478 = vmatpush1.bf16.msra.mxu0 %v10413
    %10479 = vmatprep.subr.bf16.mxu0 %v10416
    %10480 = vmatpush1.bf16.msra.mxu0 %v10415
    %10481 = vmatprep.subr.bf16.mxu0 %v10418
    %10482 = vmatpush1.bf16.msra.mxu0 %v10417
    %10483 = vmatprep.subr.bf16.mxu0 %v10420
    %10484 = vmatpush1.bf16.msra.mxu0 %v10419
    %10485 = vmatprep.subr.bf16.mxu0 %v10422
    %10486 = vmatpush1.bf16.msra.mxu0 %v10421
    %10487 = vmatprep.subr.bf16.mxu0 %v10424
    %10488 = vmatpush1.bf16.msra.mxu0 %v10423
    %10489 = vmatprep.subr.bf16.mxu0 %v10426
    %10490 = vmatpush1.bf16.msra.mxu0 %v10425
    %10491 = vmatprep.subr.bf16.mxu0 %v10428
    %10492 = vmatpush1.bf16.msra.mxu0 %v10427
    %10493 = vmatprep.subr.bf16.mxu0 %v10430
    %10494 = vmatpush1.bf16.msra.mxu0 %v10429
    %10495 = vmatprep.subr.bf16.mxu0 %v10432
    %10496 = vmatpush1.bf16.msra.mxu0 %v10431
    %10497 = vmatprep.subr.bf16.mxu0 %v10434
    %10498 = vmatpush1.bf16.msra.mxu0 %v10433
    %10499 = vmatprep.subr.bf16.mxu0 %v10436
    %10500 = vmatpush1.bf16.msra.mxu0 %v10435
    %10501 = vmatprep.subr.bf16.mxu0 %v10438
    %10502 = vmatpush1.bf16.msra.mxu0 %v10437
    %10503 = vmatprep.mubr.bf16.mxu0 %v10265
    %10504 = vmatmul.mubr.bf16.gmra.mrb[0].mxu0 %v10264
    %v10505 = vpop.f32.mrb[0].mxu0
    %v10506 = vadd.f32 %v10304, %v10505
    %v10507 = vpop.f32.mrb[0].mxu0
    %v10508 = vadd.f32 %v10308, %v10507
    %v10509 = vpop.f32.mrb[0].mxu0
    %v10510 = vpop.f32.mrb[0].mxu0
    %10511 = vdwg.mxu0
    %v10512 = vmax.f32 %v10506, 0.0
    %v10513 = vmax.f32 %v10508, 0.0
    %v10516 = vcombine.low %v10512, %v10513
    %v10518 = vunpack.c.l.s4 1983009808
    %v10519 = vunpack.c.0.s8 %v10518
    %v10520 = vlaneseq
    %v10521 = vshrl.u32 %v10520, 7
    %v10522 = vsub.s32 %v10519, %v10521
    %v10523 = vrot.slane %v10516, %v10522
    %10525 = vst [vmem:[%s21] sm:$0xf] %v10523
    %v10526 = vpack.c.bf16 %v10512, %v10512
    %v10527 = vpack.c.bf16 %v10513, %v10513
    %v10528 = vld [vmem:[#allocation29] sm:$0xff]
    %v10529 = vld [vmem:[#allocation29 + $0x8] sm:$0xff]
    %v10530 = vld [vmem:[#allocation29 + $0x10] sm:$0xff]
    %v10531 = vld [vmem:[#allocation29 + $0x18] sm:$0xff]
    %v10532 = vld [vmem:[#allocation29 + $0x20] sm:$0xff]
    %v10533 = vld [vmem:[#allocation29 + $0x28] sm:$0xff]
    %v10534 = vld [vmem:[#allocation29 + $0x30] sm:$0xff]
    %v10535 = vld [vmem:[#allocation29 + $0x38] sm:$0xff]
    %v10536 = vld [vmem:[#allocation29 + $0x40] sm:$0xff]
    %v10537 = vld [vmem:[#allocation29 + $0x48] sm:$0xff]
    %v10538 = vld [vmem:[#allocation29 + $0x50] sm:$0xff]
    %v10539 = vld [vmem:[#allocation29 + $0x58] sm:$0xff]
    %v10540 = vld [vmem:[#allocation29 + $0x60] sm:$0xff]
    %v10541 = vld [vmem:[#allocation29 + $0x68] sm:$0xff]
    %v10542 = vld [vmem:[#allocation29 + $0x70] sm:$0xff]
    %v10543 = vld [vmem:[#allocation29 + $0x78] sm:$0xff]
    %v10544 = vld [vmem:[#allocation29 + $0x80] sm:$0xff]
    %v10545 = vld [vmem:[#allocation29 + $0x88] sm:$0xff]
    %v10546 = vld [vmem:[#allocation29 + $0x90] sm:$0xff]
    %v10547 = vld [vmem:[#allocation29 + $0x98] sm:$0xff]
    %v10548 = vld [vmem:[#allocation29 + $0xa0] sm:$0xff]
    %v10549 = vld [vmem:[#allocation29 + $0xa8] sm:$0xff]
    %v10550 = vld [vmem:[#allocation29 + $0xb0] sm:$0xff]
    %v10551 = vld [vmem:[#allocation29 + $0xb8] sm:$0xff]
    %v10552 = vld [vmem:[#allocation29 + $0xc0] sm:$0xff]
    %v10553 = vld [vmem:[#allocation29 + $0xc8] sm:$0xff]
    %v10554 = vld [vmem:[#allocation29 + $0xd0] sm:$0xff]
    %v10555 = vld [vmem:[#allocation29 + $0xd8] sm:$0xff]
    %v10556 = vld [vmem:[#allocation29 + $0xe0] sm:$0xff]
    %v10557 = vld [vmem:[#allocation29 + $0xe8] sm:$0xff]
    %v10558 = vld [vmem:[#allocation29 + $0xf0] sm:$0xff]
    %v10559 = vld [vmem:[#allocation29 + $0xf8] sm:$0xff]
    %v10560 = vld [vmem:[#allocation29 + $0x100] sm:$0xff]
    %v10561 = vld [vmem:[#allocation29 + $0x108] sm:$0xff]
    %v10562 = vld [vmem:[#allocation29 + $0x110] sm:$0xff]
    %v10563 = vld [vmem:[#allocation29 + $0x118] sm:$0xff]
    %v10564 = vld [vmem:[#allocation29 + $0x120] sm:$0xff]
    %v10565 = vld [vmem:[#allocation29 + $0x128] sm:$0xff]
    %v10566 = vld [vmem:[#allocation29 + $0x130] sm:$0xff]
    %v10567 = vld [vmem:[#allocation29 + $0x138] sm:$0xff]
    %v10568 = vld [vmem:[#allocation29 + $0x140] sm:$0xff]
    %v10569 = vld [vmem:[#allocation29 + $0x148] sm:$0xff]
    %v10570 = vld [vmem:[#allocation29 + $0x150] sm:$0xff]
    %v10571 = vld [vmem:[#allocation29 + $0x158] sm:$0xff]
    %v10572 = vld [vmem:[#allocation29 + $0x160] sm:$0xff]
    %v10573 = vld [vmem:[#allocation29 + $0x168] sm:$0xff]
    %v10574 = vld [vmem:[#allocation29 + $0x170] sm:$0xff]
    %v10575 = vld [vmem:[#allocation29 + $0x178] sm:$0xff]
    %v10576 = vld [vmem:[#allocation29 + $0x180] sm:$0xff]
    %v10577 = vld [vmem:[#allocation29 + $0x188] sm:$0xff]
    %v10578 = vld [vmem:[#allocation29 + $0x190] sm:$0xff]
    %v10579 = vld [vmem:[#allocation29 + $0x198] sm:$0xff]
    %v10580 = vld [vmem:[#allocation29 + $0x1a0] sm:$0xff]
    %v10581 = vld [vmem:[#allocation29 + $0x1a8] sm:$0xff]
    %v10582 = vld [vmem:[#allocation29 + $0x1b0] sm:$0xff]
    %v10583 = vld [vmem:[#allocation29 + $0x1b8] sm:$0xff]
    %v10584 = vld [vmem:[#allocation29 + $0x1c0] sm:$0xff]
    %v10585 = vld [vmem:[#allocation29 + $0x1c8] sm:$0xff]
    %v10586 = vld [vmem:[#allocation29 + $0x1d0] sm:$0xff]
    %v10587 = vld [vmem:[#allocation29 + $0x1d8] sm:$0xff]
    %v10588 = vld [vmem:[#allocation29 + $0x1e0] sm:$0xff]
    %v10589 = vld [vmem:[#allocation29 + $0x1e8] sm:$0xff]
    %v10590 = vld [vmem:[#allocation29 + $0x1f0] sm:$0xff]
    %v10591 = vld [vmem:[#allocation29 + $0x1f8] sm:$0xff]
    %s10592 = scalar_lea.vmem [#allocation6], 38
    %v10593 = vld [vmem:[%s10592] ss:$8 sm:$0xf]
    %v10595 = vlaneseq
    %v10596 = vshrl.u32 %v10595, 7
    %v10597 = vsub.s32 0, %v10596
    %v10598 = vrot.slane %v10593, %v10597
    %v10599 = vlaneseq
    %v10600 = vshrl.u32 %v10599, 7
    %v10601 = vsub.s32 1, %v10600
    %v10602 = vrot.slane %v10593, %v10601
    %v10603 = vlaneseq
    %v10604 = vshrl.u32 %v10603, 7
    %v10605 = vsub.s32 2, %v10604
    %v10606 = vrot.slane %v10593, %v10605
    %v10607 = vlaneseq
    %v10608 = vshrl.u32 %v10607, 7
    %v10609 = vsub.s32 3, %v10608
    %v10610 = vrot.slane %v10593, %v10609
    %v10679 = vunpack.c.l.b16 %v10528
    %v10680 = vunpack.c.h.b16 %v10528
    %v10681 = vunpack.c.l.b16 %v10529
    %v10682 = vunpack.c.h.b16 %v10529
    %v10683 = vunpack.c.l.b16 %v10530
    %v10684 = vunpack.c.h.b16 %v10530
    %v10685 = vunpack.c.l.b16 %v10531
    %v10686 = vunpack.c.h.b16 %v10531
    %v10687 = vunpack.c.l.b16 %v10532
    %v10688 = vunpack.c.h.b16 %v10532
    %v10689 = vunpack.c.l.b16 %v10533
    %v10690 = vunpack.c.h.b16 %v10533
    %v10691 = vunpack.c.l.b16 %v10534
    %v10692 = vunpack.c.h.b16 %v10534
    %v10693 = vunpack.c.l.b16 %v10535
    %v10694 = vunpack.c.h.b16 %v10535
    %v10695 = vunpack.c.l.b16 %v10536
    %v10696 = vunpack.c.h.b16 %v10536
    %v10697 = vunpack.c.l.b16 %v10537
    %v10698 = vunpack.c.h.b16 %v10537
    %v10699 = vunpack.c.l.b16 %v10538
    %v10700 = vunpack.c.h.b16 %v10538
    %v10701 = vunpack.c.l.b16 %v10539
    %v10702 = vunpack.c.h.b16 %v10539
    %v10703 = vunpack.c.l.b16 %v10540
    %v10704 = vunpack.c.h.b16 %v10540
    %v10705 = vunpack.c.l.b16 %v10541
    %v10706 = vunpack.c.h.b16 %v10541
    %v10707 = vunpack.c.l.b16 %v10542
    %v10708 = vunpack.c.h.b16 %v10542
    %v10709 = vunpack.c.l.b16 %v10543
    %v10710 = vunpack.c.h.b16 %v10543
    %v10711 = vunpack.c.l.b16 %v10544
    %v10712 = vunpack.c.h.b16 %v10544
    %v10713 = vunpack.c.l.b16 %v10545
    %v10714 = vunpack.c.h.b16 %v10545
    %v10715 = vunpack.c.l.b16 %v10546
    %v10716 = vunpack.c.h.b16 %v10546
    %v10717 = vunpack.c.l.b16 %v10547
    %v10718 = vunpack.c.h.b16 %v10547
    %v10719 = vunpack.c.l.b16 %v10548
    %v10720 = vunpack.c.h.b16 %v10548
    %v10721 = vunpack.c.l.b16 %v10549
    %v10722 = vunpack.c.h.b16 %v10549
    %v10723 = vunpack.c.l.b16 %v10550
    %v10724 = vunpack.c.h.b16 %v10550
    %v10725 = vunpack.c.l.b16 %v10551
    %v10726 = vunpack.c.h.b16 %v10551
    %v10727 = vunpack.c.l.b16 %v10552
    %v10728 = vunpack.c.h.b16 %v10552
    %v10729 = vunpack.c.l.b16 %v10553
    %v10730 = vunpack.c.h.b16 %v10553
    %v10731 = vunpack.c.l.b16 %v10554
    %v10732 = vunpack.c.h.b16 %v10554
    %v10733 = vunpack.c.l.b16 %v10555
    %v10734 = vunpack.c.h.b16 %v10555
    %v10735 = vunpack.c.l.b16 %v10556
    %v10736 = vunpack.c.h.b16 %v10556
    %v10737 = vunpack.c.l.b16 %v10557
    %v10738 = vunpack.c.h.b16 %v10557
    %v10739 = vunpack.c.l.b16 %v10558
    %v10740 = vunpack.c.h.b16 %v10558
    %v10741 = vunpack.c.l.b16 %v10559
    %v10742 = vunpack.c.h.b16 %v10559
    %v10743 = vunpack.c.l.b16 %v10560
    %v10744 = vunpack.c.h.b16 %v10560
    %v10745 = vunpack.c.l.b16 %v10561
    %v10746 = vunpack.c.h.b16 %v10561
    %v10747 = vunpack.c.l.b16 %v10562
    %v10748 = vunpack.c.h.b16 %v10562
    %v10749 = vunpack.c.l.b16 %v10563
    %v10750 = vunpack.c.h.b16 %v10563
    %v10751 = vunpack.c.l.b16 %v10564
    %v10752 = vunpack.c.h.b16 %v10564
    %v10753 = vunpack.c.l.b16 %v10565
    %v10754 = vunpack.c.h.b16 %v10565
    %v10755 = vunpack.c.l.b16 %v10566
    %v10756 = vunpack.c.h.b16 %v10566
    %v10757 = vunpack.c.l.b16 %v10567
    %v10758 = vunpack.c.h.b16 %v10567
    %v10759 = vunpack.c.l.b16 %v10568
    %v10760 = vunpack.c.h.b16 %v10568
    %v10761 = vunpack.c.l.b16 %v10569
    %v10762 = vunpack.c.h.b16 %v10569
    %v10763 = vunpack.c.l.b16 %v10570
    %v10764 = vunpack.c.h.b16 %v10570
    %v10765 = vunpack.c.l.b16 %v10571
    %v10766 = vunpack.c.h.b16 %v10571
    %v10767 = vunpack.c.l.b16 %v10572
    %v10768 = vunpack.c.h.b16 %v10572
    %v10769 = vunpack.c.l.b16 %v10573
    %v10770 = vunpack.c.h.b16 %v10573
    %v10771 = vunpack.c.l.b16 %v10574
    %v10772 = vunpack.c.h.b16 %v10574
    %v10773 = vunpack.c.l.b16 %v10575
    %v10774 = vunpack.c.h.b16 %v10575
    %v10775 = vunpack.c.l.b16 %v10576
    %v10776 = vunpack.c.h.b16 %v10576
    %v10777 = vunpack.c.l.b16 %v10577
    %v10778 = vunpack.c.h.b16 %v10577
    %v10779 = vunpack.c.l.b16 %v10578
    %v10780 = vunpack.c.h.b16 %v10578
    %v10781 = vunpack.c.l.b16 %v10579
    %v10782 = vunpack.c.h.b16 %v10579
    %v10783 = vunpack.c.l.b16 %v10580
    %v10784 = vunpack.c.h.b16 %v10580
    %v10785 = vunpack.c.l.b16 %v10581
    %v10786 = vunpack.c.h.b16 %v10581
    %v10787 = vunpack.c.l.b16 %v10582
    %v10788 = vunpack.c.h.b16 %v10582
    %v10789 = vunpack.c.l.b16 %v10583
    %v10790 = vunpack.c.h.b16 %v10583
    %v10791 = vunpack.c.l.b16 %v10584
    %v10792 = vunpack.c.h.b16 %v10584
    %v10793 = vunpack.c.l.b16 %v10585
    %v10794 = vunpack.c.h.b16 %v10585
    %v10795 = vunpack.c.l.b16 %v10586
    %v10796 = vunpack.c.h.b16 %v10586
    %v10797 = vunpack.c.l.b16 %v10587
    %v10798 = vunpack.c.h.b16 %v10587
    %v10799 = vunpack.c.l.b16 %v10588
    %v10800 = vunpack.c.h.b16 %v10588
    %v10801 = vunpack.c.l.b16 %v10589
    %v10802 = vunpack.c.h.b16 %v10589
    %v10803 = vunpack.c.l.b16 %v10590
    %v10804 = vunpack.c.h.b16 %v10590
    %v10805 = vunpack.c.l.b16 %v10591
    %v10806 = vunpack.c.h.b16 %v10591
    %v10807 = vpack.c.b16 %v10683, %v10679
    %v10808 = vpack.c.b16 %v10684, %v10680
    %v10809 = vpack.c.b16 %v10685, %v10681
    %v10810 = vpack.c.b16 %v10686, %v10682
    %v10811 = vpack.c.b16 %v10691, %v10687
    %v10812 = vpack.c.b16 %v10692, %v10688
    %v10813 = vpack.c.b16 %v10693, %v10689
    %v10814 = vpack.c.b16 %v10694, %v10690
    %v10815 = vpack.c.b16 %v10699, %v10695
    %v10816 = vpack.c.b16 %v10700, %v10696
    %v10817 = vpack.c.b16 %v10701, %v10697
    %v10818 = vpack.c.b16 %v10702, %v10698
    %v10819 = vpack.c.b16 %v10707, %v10703
    %v10820 = vpack.c.b16 %v10708, %v10704
    %v10821 = vpack.c.b16 %v10709, %v10705
    %v10822 = vpack.c.b16 %v10710, %v10706
    %v10823 = vpack.c.b16 %v10715, %v10711
    %v10824 = vpack.c.b16 %v10716, %v10712
    %v10825 = vpack.c.b16 %v10717, %v10713
    %v10826 = vpack.c.b16 %v10718, %v10714
    %v10827 = vpack.c.b16 %v10723, %v10719
    %v10828 = vpack.c.b16 %v10724, %v10720
    %v10829 = vpack.c.b16 %v10725, %v10721
    %v10830 = vpack.c.b16 %v10726, %v10722
    %v10831 = vpack.c.b16 %v10731, %v10727
    %v10832 = vpack.c.b16 %v10732, %v10728
    %v10833 = vpack.c.b16 %v10733, %v10729
    %v10834 = vpack.c.b16 %v10734, %v10730
    %v10835 = vpack.c.b16 %v10739, %v10735
    %v10836 = vpack.c.b16 %v10740, %v10736
    %v10837 = vpack.c.b16 %v10741, %v10737
    %v10838 = vpack.c.b16 %v10742, %v10738
    %v10839 = vpack.c.b16 %v10747, %v10743
    %v10840 = vpack.c.b16 %v10748, %v10744
    %v10841 = vpack.c.b16 %v10749, %v10745
    %v10842 = vpack.c.b16 %v10750, %v10746
    %v10843 = vpack.c.b16 %v10755, %v10751
    %v10844 = vpack.c.b16 %v10756, %v10752
    %v10845 = vpack.c.b16 %v10757, %v10753
    %v10846 = vpack.c.b16 %v10758, %v10754
    %v10847 = vpack.c.b16 %v10763, %v10759
    %v10848 = vpack.c.b16 %v10764, %v10760
    %v10849 = vpack.c.b16 %v10765, %v10761
    %v10850 = vpack.c.b16 %v10766, %v10762
    %v10851 = vpack.c.b16 %v10771, %v10767
    %v10852 = vpack.c.b16 %v10772, %v10768
    %v10853 = vpack.c.b16 %v10773, %v10769
    %v10854 = vpack.c.b16 %v10774, %v10770
    %v10855 = vpack.c.b16 %v10779, %v10775
    %v10856 = vpack.c.b16 %v10780, %v10776
    %v10857 = vpack.c.b16 %v10781, %v10777
    %v10858 = vpack.c.b16 %v10782, %v10778
    %v10859 = vpack.c.b16 %v10787, %v10783
    %v10860 = vpack.c.b16 %v10788, %v10784
    %v10861 = vpack.c.b16 %v10789, %v10785
    %v10862 = vpack.c.b16 %v10790, %v10786
    %v10863 = vpack.c.b16 %v10795, %v10791
    %v10864 = vpack.c.b16 %v10796, %v10792
    %v10865 = vpack.c.b16 %v10797, %v10793
    %v10866 = vpack.c.b16 %v10798, %v10794
    %v10867 = vpack.c.b16 %v10803, %v10799
    %v10868 = vpack.c.b16 %v10804, %v10800
    %v10869 = vpack.c.b16 %v10805, %v10801
    %v10870 = vpack.c.b16 %v10806, %v10802
    %10935 = vmatprep.subr.bf16.mxu0 %v10808
    %10936 = vmatpush1.bf16.msra.mxu0 %v10807
    %10937 = vmatprep.subr.bf16.mxu0 %v10812
    %10938 = vmatpush1.bf16.msra.mxu0 %v10811
    %10939 = vmatprep.subr.bf16.mxu0 %v10816
    %10940 = vmatpush1.bf16.msra.mxu0 %v10815
    %10941 = vmatprep.subr.bf16.mxu0 %v10820
    %10942 = vmatpush1.bf16.msra.mxu0 %v10819
    %10943 = vmatprep.subr.bf16.mxu0 %v10824
    %10944 = vmatpush1.bf16.msra.mxu0 %v10823
    %10945 = vmatprep.subr.bf16.mxu0 %v10828
    %10946 = vmatpush1.bf16.msra.mxu0 %v10827
    %10947 = vmatprep.subr.bf16.mxu0 %v10832
    %10948 = vmatpush1.bf16.msra.mxu0 %v10831
    %10949 = vmatprep.subr.bf16.mxu0 %v10836
    %10950 = vmatpush1.bf16.msra.mxu0 %v10835
    %10951 = vmatprep.subr.bf16.mxu0 %v10840
    %10952 = vmatpush1.bf16.msra.mxu0 %v10839
    %10953 = vmatprep.subr.bf16.mxu0 %v10844
    %10954 = vmatpush1.bf16.msra.mxu0 %v10843
    %10955 = vmatprep.subr.bf16.mxu0 %v10848
    %10956 = vmatpush1.bf16.msra.mxu0 %v10847
    %10957 = vmatprep.subr.bf16.mxu0 %v10852
    %10958 = vmatpush1.bf16.msra.mxu0 %v10851
    %10959 = vmatprep.subr.bf16.mxu0 %v10856
    %10960 = vmatpush1.bf16.msra.mxu0 %v10855
    %10961 = vmatprep.subr.bf16.mxu0 %v10860
    %10962 = vmatpush1.bf16.msra.mxu0 %v10859
    %10963 = vmatprep.subr.bf16.mxu0 %v10864
    %10964 = vmatpush1.bf16.msra.mxu0 %v10863
    %10965 = vmatprep.subr.bf16.mxu0 %v10868
    %10966 = vmatpush1.bf16.msra.mxu0 %v10867
    %10967 = vmatprep.mubr.bf16.mxu0 %v10527
    %10968 = vmatmul.mubr.bf16.gmra.mrb[0].mxu0 %v10526
    %v10969 = vpop.f32.mrb[0].mxu0
    %v10970 = vadd.f32 %v10598, %v10969
    %v10971 = vpop.f32.mrb[0].mxu0
    %v10972 = vadd.f32 %v10602, %v10971
    %v10973 = vpop.f32.mrb[0].mxu0
    %v10974 = vpop.f32.mrb[0].mxu0
    %10975 = vdwg.mxu0
    %10976 = vmatprep.subr.bf16.mxu0 %v10810
    %10977 = vmatpush1.bf16.msra.mxu0 %v10809
    %10978 = vmatprep.subr.bf16.mxu0 %v10814
    %10979 = vmatpush1.bf16.msra.mxu0 %v10813
    %10980 = vmatprep.subr.bf16.mxu0 %v10818
    %10981 = vmatpush1.bf16.msra.mxu0 %v10817
    %10982 = vmatprep.subr.bf16.mxu0 %v10822
    %10983 = vmatpush1.bf16.msra.mxu0 %v10821
    %10984 = vmatprep.subr.bf16.mxu0 %v10826
    %10985 = vmatpush1.bf16.msra.mxu0 %v10825
    %10986 = vmatprep.subr.bf16.mxu0 %v10830
    %10987 = vmatpush1.bf16.msra.mxu0 %v10829
    %10988 = vmatprep.subr.bf16.mxu0 %v10834
    %10989 = vmatpush1.bf16.msra.mxu0 %v10833
    %10990 = vmatprep.subr.bf16.mxu0 %v10838
    %10991 = vmatpush1.bf16.msra.mxu0 %v10837
    %10992 = vmatprep.subr.bf16.mxu0 %v10842
    %10993 = vmatpush1.bf16.msra.mxu0 %v10841
    %10994 = vmatprep.subr.bf16.mxu0 %v10846
    %10995 = vmatpush1.bf16.msra.mxu0 %v10845
    %10996 = vmatprep.subr.bf16.mxu0 %v10850
    %10997 = vmatpush1.bf16.msra.mxu0 %v10849
    %10998 = vmatprep.subr.bf16.mxu0 %v10854
    %10999 = vmatpush1.bf16.msra.mxu0 %v10853
    %11000 = vmatprep.subr.bf16.mxu0 %v10858
    %11001 = vmatpush1.bf16.msra.mxu0 %v10857
    %11002 = vmatprep.subr.bf16.mxu0 %v10862
    %11003 = vmatpush1.bf16.msra.mxu0 %v10861
    %11004 = vmatprep.subr.bf16.mxu0 %v10866
    %11005 = vmatpush1.bf16.msra.mxu0 %v10865
    %11006 = vmatprep.subr.bf16.mxu0 %v10870
    %11007 = vmatpush1.bf16.msra.mxu0 %v10869
    %11008 = vmatprep.mubr.bf16.mxu0 %v10527
    %11009 = vmatmul.mubr.bf16.gmra.mrb[0].mxu0 %v10526
    %v11010 = vpop.f32.mrb[0].mxu0
    %v11011 = vadd.f32 %v10606, %v11010
    %v11012 = vpop.f32.mrb[0].mxu0
    %v11013 = vadd.f32 %v10610, %v11012
    %v11014 = vpop.f32.mrb[0].mxu0
    %v11015 = vpop.f32.mrb[0].mxu0
    %11016 = vdwg.mxu0
    %v11017 = vmax.f32 %v10970, 0.0
    %v11018 = vmax.f32 %v10972, 0.0
    %v11019 = vmax.f32 %v11011, 0.0
    %v11020 = vmax.f32 %v11013, 0.0
    %v11021 = vpack.c.bf16 %v11017, %v11017
    %v11022 = vpack.c.bf16 %v11018, %v11018
    %v11023 = vpack.c.bf16 %v11019, %v11019
    %v11024 = vpack.c.bf16 %v11020, %v11020
    %s11025 = smul.u32 4, 3
    %s11026 = smul.u32 %s11025, 64
    %s11027 = smul.u32 %s11026, 4
    %s11028 = sshll.u32 %s11027, 4
    %11029 = dma.done [#allocation3], %s11028
    %v11030 = vld [vmem:[#allocation2] sm:$0xff]
    %v11031 = vld [vmem:[#allocation2 + $0x8] sm:$0xff]
    %v11032 = vld [vmem:[#allocation2 + $0x10] sm:$0xff]
    %v11033 = vld [vmem:[#allocation2 + $0x18] sm:$0xff]
    %v11034 = vld [vmem:[#allocation2 + $0x20] sm:$0xff]
    %v11035 = vld [vmem:[#allocation2 + $0x28] sm:$0xff]
    %v11036 = vld [vmem:[#allocation2 + $0x30] sm:$0xff]
    %v11037 = vld [vmem:[#allocation2 + $0x38] sm:$0xff]
    %v11038 = vld [vmem:[#allocation2 + $0x40] sm:$0xff]
    %v11039 = vld [vmem:[#allocation2 + $0x48] sm:$0xff]
    %v11040 = vld [vmem:[#allocation2 + $0x50] sm:$0xff]
    %v11041 = vld [vmem:[#allocation2 + $0x58] sm:$0xff]
    %v11042 = vld [vmem:[#allocation2 + $0x60] sm:$0xff]
    %v11043 = vld [vmem:[#allocation2 + $0x68] sm:$0xff]
    %v11044 = vld [vmem:[#allocation2 + $0x70] sm:$0xff]
    %v11045 = vld [vmem:[#allocation2 + $0x78] sm:$0xff]
    %v11046 = vld [vmem:[#allocation2 + $0x80] sm:$0xff]
    %v11047 = vld [vmem:[#allocation2 + $0x88] sm:$0xff]
    %v11048 = vld [vmem:[#allocation2 + $0x90] sm:$0xff]
    %v11049 = vld [vmem:[#allocation2 + $0x98] sm:$0xff]
    %v11050 = vld [vmem:[#allocation2 + $0xa0] sm:$0xff]
    %v11051 = vld [vmem:[#allocation2 + $0xa8] sm:$0xff]
    %v11052 = vld [vmem:[#allocation2 + $0xb0] sm:$0xff]
    %v11053 = vld [vmem:[#allocation2 + $0xb8] sm:$0xff]
    %v11054 = vld [vmem:[#allocation2 + $0xc0] sm:$0xff]
    %v11055 = vld [vmem:[#allocation2 + $0xc8] sm:$0xff]
    %v11056 = vld [vmem:[#allocation2 + $0xd0] sm:$0xff]
    %v11057 = vld [vmem:[#allocation2 + $0xd8] sm:$0xff]
    %v11058 = vld [vmem:[#allocation2 + $0xe0] sm:$0xff]
    %v11059 = vld [vmem:[#allocation2 + $0xe8] sm:$0xff]
    %v11060 = vld [vmem:[#allocation2 + $0xf0] sm:$0xff]
    %v11061 = vld [vmem:[#allocation2 + $0xf8] sm:$0xff]
    %v11062 = vld [vmem:[#allocation2 + $0x100] sm:$0xff]
    %v11063 = vld [vmem:[#allocation2 + $0x108] sm:$0xff]
    %v11064 = vld [vmem:[#allocation2 + $0x110] sm:$0xff]
    %v11065 = vld [vmem:[#allocation2 + $0x118] sm:$0xff]
    %v11066 = vld [vmem:[#allocation2 + $0x120] sm:$0xff]
    %v11067 = vld [vmem:[#allocation2 + $0x128] sm:$0xff]
    %v11068 = vld [vmem:[#allocation2 + $0x130] sm:$0xff]
    %v11069 = vld [vmem:[#allocation2 + $0x138] sm:$0xff]
    %v11070 = vld [vmem:[#allocation2 + $0x140] sm:$0xff]
    %v11071 = vld [vmem:[#allocation2 + $0x148] sm:$0xff]
    %v11072 = vld [vmem:[#allocation2 + $0x150] sm:$0xff]
    %v11073 = vld [vmem:[#allocation2 + $0x158] sm:$0xff]
    %v11074 = vld [vmem:[#allocation2 + $0x160] sm:$0xff]
    %v11075 = vld [vmem:[#allocation2 + $0x168] sm:$0xff]
    %v11076 = vld [vmem:[#allocation2 + $0x170] sm:$0xff]
    %v11077 = vld [vmem:[#allocation2 + $0x178] sm:$0xff]
    %v11078 = vld [vmem:[#allocation2 + $0x180] sm:$0xff]
    %v11079 = vld [vmem:[#allocation2 + $0x188] sm:$0xff]
    %v11080 = vld [vmem:[#allocation2 + $0x190] sm:$0xff]
    %v11081 = vld [vmem:[#allocation2 + $0x198] sm:$0xff]
    %v11082 = vld [vmem:[#allocation2 + $0x1a0] sm:$0xff]
    %v11083 = vld [vmem:[#allocation2 + $0x1a8] sm:$0xff]
    %v11084 = vld [vmem:[#allocation2 + $0x1b0] sm:$0xff]
    %v11085 = vld [vmem:[#allocation2 + $0x1b8] sm:$0xff]
    %v11086 = vld [vmem:[#allocation2 + $0x1c0] sm:$0xff]
    %v11087 = vld [vmem:[#allocation2 + $0x1c8] sm:$0xff]
    %v11088 = vld [vmem:[#allocation2 + $0x1d0] sm:$0xff]
    %v11089 = vld [vmem:[#allocation2 + $0x1d8] sm:$0xff]
    %v11090 = vld [vmem:[#allocation2 + $0x1e0] sm:$0xff]
    %v11091 = vld [vmem:[#allocation2 + $0x1e8] sm:$0xff]
    %v11092 = vld [vmem:[#allocation2 + $0x1f0] sm:$0xff]
    %v11093 = vld [vmem:[#allocation2 + $0x1f8] sm:$0xff]
    %v11094 = vld [vmem:[#allocation2 + $0x200] sm:$0xff]
    %v11095 = vld [vmem:[#allocation2 + $0x208] sm:$0xff]
    %v11096 = vld [vmem:[#allocation2 + $0x210] sm:$0xff]
    %v11097 = vld [vmem:[#allocation2 + $0x218] sm:$0xff]
    %v11098 = vld [vmem:[#allocation2 + $0x220] sm:$0xff]
    %v11099 = vld [vmem:[#allocation2 + $0x228] sm:$0xff]
    %v11100 = vld [vmem:[#allocation2 + $0x230] sm:$0xff]
    %v11101 = vld [vmem:[#allocation2 + $0x238] sm:$0xff]
    %v11102 = vld [vmem:[#allocation2 + $0x240] sm:$0xff]
    %v11103 = vld [vmem:[#allocation2 + $0x248] sm:$0xff]
    %v11104 = vld [vmem:[#allocation2 + $0x250] sm:$0xff]
    %v11105 = vld [vmem:[#allocation2 + $0x258] sm:$0xff]
    %v11106 = vld [vmem:[#allocation2 + $0x260] sm:$0xff]
    %v11107 = vld [vmem:[#allocation2 + $0x268] sm:$0xff]
    %v11108 = vld [vmem:[#allocation2 + $0x270] sm:$0xff]
    %v11109 = vld [vmem:[#allocation2 + $0x278] sm:$0xff]
    %v11110 = vld [vmem:[#allocation2 + $0x280] sm:$0xff]
    %v11111 = vld [vmem:[#allocation2 + $0x288] sm:$0xff]
    %v11112 = vld [vmem:[#allocation2 + $0x290] sm:$0xff]
    %v11113 = vld [vmem:[#allocation2 + $0x298] sm:$0xff]
    %v11114 = vld [vmem:[#allocation2 + $0x2a0] sm:$0xff]
    %v11115 = vld [vmem:[#allocation2 + $0x2a8] sm:$0xff]
    %v11116 = vld [vmem:[#allocation2 + $0x2b0] sm:$0xff]
    %v11117 = vld [vmem:[#allocation2 + $0x2b8] sm:$0xff]
    %v11118 = vld [vmem:[#allocation2 + $0x2c0] sm:$0xff]
    %v11119 = vld [vmem:[#allocation2 + $0x2c8] sm:$0xff]
    %v11120 = vld [vmem:[#allocation2 + $0x2d0] sm:$0xff]
    %v11121 = vld [vmem:[#allocation2 + $0x2d8] sm:$0xff]
    %v11122 = vld [vmem:[#allocation2 + $0x2e0] sm:$0xff]
    %v11123 = vld [vmem:[#allocation2 + $0x2e8] sm:$0xff]
    %v11124 = vld [vmem:[#allocation2 + $0x2f0] sm:$0xff]
    %v11125 = vld [vmem:[#allocation2 + $0x2f8] sm:$0xff]
    %v11126 = vld [vmem:[#allocation2 + $0x300] sm:$0xff]
    %v11127 = vld [vmem:[#allocation2 + $0x308] sm:$0xff]
    %v11128 = vld [vmem:[#allocation2 + $0x310] sm:$0xff]
    %v11129 = vld [vmem:[#allocation2 + $0x318] sm:$0xff]
    %v11130 = vld [vmem:[#allocation2 + $0x320] sm:$0xff]
    %v11131 = vld [vmem:[#allocation2 + $0x328] sm:$0xff]
    %v11132 = vld [vmem:[#allocation2 + $0x330] sm:$0xff]
    %v11133 = vld [vmem:[#allocation2 + $0x338] sm:$0xff]
    %v11134 = vld [vmem:[#allocation2 + $0x340] sm:$0xff]
    %v11135 = vld [vmem:[#allocation2 + $0x348] sm:$0xff]
    %v11136 = vld [vmem:[#allocation2 + $0x350] sm:$0xff]
    %v11137 = vld [vmem:[#allocation2 + $0x358] sm:$0xff]
    %v11138 = vld [vmem:[#allocation2 + $0x360] sm:$0xff]
    %v11139 = vld [vmem:[#allocation2 + $0x368] sm:$0xff]
    %v11140 = vld [vmem:[#allocation2 + $0x370] sm:$0xff]
    %v11141 = vld [vmem:[#allocation2 + $0x378] sm:$0xff]
    %v11142 = vld [vmem:[#allocation2 + $0x380] sm:$0xff]
    %v11143 = vld [vmem:[#allocation2 + $0x388] sm:$0xff]
    %v11144 = vld [vmem:[#allocation2 + $0x390] sm:$0xff]
    %v11145 = vld [vmem:[#allocation2 + $0x398] sm:$0xff]
    %v11146 = vld [vmem:[#allocation2 + $0x3a0] sm:$0xff]
    %v11147 = vld [vmem:[#allocation2 + $0x3a8] sm:$0xff]
    %v11148 = vld [vmem:[#allocation2 + $0x3b0] sm:$0xff]
    %v11149 = vld [vmem:[#allocation2 + $0x3b8] sm:$0xff]
    %v11150 = vld [vmem:[#allocation2 + $0x3c0] sm:$0xff]
    %v11151 = vld [vmem:[#allocation2 + $0x3c8] sm:$0xff]
    %v11152 = vld [vmem:[#allocation2 + $0x3d0] sm:$0xff]
    %v11153 = vld [vmem:[#allocation2 + $0x3d8] sm:$0xff]
    %v11154 = vld [vmem:[#allocation2 + $0x3e0] sm:$0xff]
    %v11155 = vld [vmem:[#allocation2 + $0x3e8] sm:$0xff]
    %v11156 = vld [vmem:[#allocation2 + $0x3f0] sm:$0xff]
    %v11157 = vld [vmem:[#allocation2 + $0x3f8] sm:$0xff]
    %s11158 = scalar_lea.vmem [#allocation6], 39
    %v11159 = vld [vmem:[%s11158] ss:$8 sm:$0xf]
    %v11161 = vlaneseq
    %v11162 = vshrl.u32 %v11161, 7
    %v11163 = vsub.s32 0, %v11162
    %v11164 = vrot.slane %v11159, %v11163
    %v11165 = vlaneseq
    %v11166 = vshrl.u32 %v11165, 7
    %v11167 = vsub.s32 1, %v11166
    %v11168 = vrot.slane %v11159, %v11167
    %v11169 = vlaneseq
    %v11170 = vshrl.u32 %v11169, 7
    %v11171 = vsub.s32 2, %v11170
    %v11172 = vrot.slane %v11159, %v11171
    %v11173 = vlaneseq
    %v11174 = vshrl.u32 %v11173, 7
    %v11175 = vsub.s32 3, %v11174
    %v11176 = vrot.slane %v11159, %v11175
    %11181 = vmatprep.subr.bf16.mxu0 %v11031
    %11182 = vmatpush1.bf16.msra.mxu0 %v11030
    %11183 = vmatprep.subr.bf16.mxu0 %v11035
    %11184 = vmatpush1.bf16.msra.mxu0 %v11034
    %11185 = vmatprep.subr.bf16.mxu0 %v11039
    %11186 = vmatpush1.bf16.msra.mxu0 %v11038
    %11187 = vmatprep.subr.bf16.mxu0 %v11043
    %11188 = vmatpush1.bf16.msra.mxu0 %v11042
    %11189 = vmatprep.subr.bf16.mxu0 %v11047
    %11190 = vmatpush1.bf16.msra.mxu0 %v11046
    %11191 = vmatprep.subr.bf16.mxu0 %v11051
    %11192 = vmatpush1.bf16.msra.mxu0 %v11050
    %11193 = vmatprep.subr.bf16.mxu0 %v11055
    %11194 = vmatpush1.bf16.msra.mxu0 %v11054
    %11195 = vmatprep.subr.bf16.mxu0 %v11059
    %11196 = vmatpush1.bf16.msra.mxu0 %v11058
    %11197 = vmatprep.subr.bf16.mxu0 %v11063
    %11198 = vmatpush1.bf16.msra.mxu0 %v11062
    %11199 = vmatprep.subr.bf16.mxu0 %v11067
    %11200 = vmatpush1.bf16.msra.mxu0 %v11066
    %11201 = vmatprep.subr.bf16.mxu0 %v11071
    %11202 = vmatpush1.bf16.msra.mxu0 %v11070
    %11203 = vmatprep.subr.bf16.mxu0 %v11075
    %11204 = vmatpush1.bf16.msra.mxu0 %v11074
    %11205 = vmatprep.subr.bf16.mxu0 %v11079
    %11206 = vmatpush1.bf16.msra.mxu0 %v11078
    %11207 = vmatprep.subr.bf16.mxu0 %v11083
    %11208 = vmatpush1.bf16.msra.mxu0 %v11082
    %11209 = vmatprep.subr.bf16.mxu0 %v11087
    %11210 = vmatpush1.bf16.msra.mxu0 %v11086
    %11211 = vmatprep.subr.bf16.mxu0 %v11091
    %11212 = vmatpush1.bf16.msra.mxu0 %v11090
    %11213 = vmatprep.mubr.bf16.mxu0 %v11022
    %11214 = vmatmul.mubr.bf16.gmra.mrb[0].mxu0 %v11021
    %v11215 = vpop.f32.mrb[0].mxu0
    %v11216 = vadd.f32 %v11164, %v11215
    %v11217 = vpop.f32.mrb[0].mxu0
    %v11218 = vadd.f32 %v11168, %v11217
    %v11219 = vpop.f32.mrb[0].mxu0
    %v11220 = vpop.f32.mrb[0].mxu0
    %11221 = vdwg.mxu0
    %11222 = vmatprep.subr.bf16.mxu0 %v11095
    %11223 = vmatpush1.bf16.msra.mxu0 %v11094
    %11224 = vmatprep.subr.bf16.mxu0 %v11099
    %11225 = vmatpush1.bf16.msra.mxu0 %v11098
    %11226 = vmatprep.subr.bf16.mxu0 %v11103
    %11227 = vmatpush1.bf16.msra.mxu0 %v11102
    %11228 = vmatprep.subr.bf16.mxu0 %v11107
    %11229 = vmatpush1.bf16.msra.mxu0 %v11106
    %11230 = vmatprep.subr.bf16.mxu0 %v11111
    %11231 = vmatpush1.bf16.msra.mxu0 %v11110
    %11232 = vmatprep.subr.bf16.mxu0 %v11115
    %11233 = vmatpush1.bf16.msra.mxu0 %v11114
    %11234 = vmatprep.subr.bf16.mxu0 %v11119
    %11235 = vmatpush1.bf16.msra.mxu0 %v11118
    %11236 = vmatprep.subr.bf16.mxu0 %v11123
    %11237 = vmatpush1.bf16.msra.mxu0 %v11122
    %11238 = vmatprep.subr.bf16.mxu0 %v11127
    %11239 = vmatpush1.bf16.msra.mxu0 %v11126
    %11240 = vmatprep.subr.bf16.mxu0 %v11131
    %11241 = vmatpush1.bf16.msra.mxu0 %v11130
    %11242 = vmatprep.subr.bf16.mxu0 %v11135
    %11243 = vmatpush1.bf16.msra.mxu0 %v11134
    %11244 = vmatprep.subr.bf16.mxu0 %v11139
    %11245 = vmatpush1.bf16.msra.mxu0 %v11138
    %11246 = vmatprep.subr.bf16.mxu0 %v11143
    %11247 = vmatpush1.bf16.msra.mxu0 %v11142
    %11248 = vmatprep.subr.bf16.mxu0 %v11147
    %11249 = vmatpush1.bf16.msra.mxu0 %v11146
    %11250 = vmatprep.subr.bf16.mxu0 %v11151
    %11251 = vmatpush1.bf16.msra.mxu0 %v11150
    %11252 = vmatprep.subr.bf16.mxu0 %v11155
    %11253 = vmatpush1.bf16.msra.mxu0 %v11154
    %11254 = vmatprep.mubr.bf16.mxu0 %v11024
    %11255 = vmatmul.mubr.bf16.gmra.mrb[0].mxu0 %v11023
    %v11256 = vpop.f32.mrb[0].mxu0
    %v11257 = vadd.f32 %v11216, %v11256
    %v11258 = vpop.f32.mrb[0].mxu0
    %v11259 = vadd.f32 %v11218, %v11258
    %v11260 = vpop.f32.mrb[0].mxu0
    %v11261 = vpop.f32.mrb[0].mxu0
    %11262 = vdwg.mxu0
    %11263 = vmatprep.subr.bf16.mxu0 %v11033
    %11264 = vmatpush1.bf16.msra.mxu0 %v11032
    %11265 = vmatprep.subr.bf16.mxu0 %v11037
    %11266 = vmatpush1.bf16.msra.mxu0 %v11036
    %11267 = vmatprep.subr.bf16.mxu0 %v11041
    %11268 = vmatpush1.bf16.msra.mxu0 %v11040
    %11269 = vmatprep.subr.bf16.mxu0 %v11045
    %11270 = vmatpush1.bf16.msra.mxu0 %v11044
    %11271 = vmatprep.subr.bf16.mxu0 %v11049
    %11272 = vmatpush1.bf16.msra.mxu0 %v11048
    %11273 = vmatprep.subr.bf16.mxu0 %v11053
    %11274 = vmatpush1.bf16.msra.mxu0 %v11052
    %11275 = vmatprep.subr.bf16.mxu0 %v11057
    %11276 = vmatpush1.bf16.msra.mxu0 %v11056
    %11277 = vmatprep.subr.bf16.mxu0 %v11061
    %11278 = vmatpush1.bf16.msra.mxu0 %v11060
    %11279 = vmatprep.subr.bf16.mxu0 %v11065
    %11280 = vmatpush1.bf16.msra.mxu0 %v11064
    %11281 = vmatprep.subr.bf16.mxu0 %v11069
    %11282 = vmatpush1.bf16.msra.mxu0 %v11068
    %11283 = vmatprep.subr.bf16.mxu0 %v11073
    %11284 = vmatpush1.bf16.msra.mxu0 %v11072
    %11285 = vmatprep.subr.bf16.mxu0 %v11077
    %11286 = vmatpush1.bf16.msra.mxu0 %v11076
    %11287 = vmatprep.subr.bf16.mxu0 %v11081
    %11288 = vmatpush1.bf16.msra.mxu0 %v11080
    %11289 = vmatprep.subr.bf16.mxu0 %v11085
    %11290 = vmatpush1.bf16.msra.mxu0 %v11084
    %11291 = vmatprep.subr.bf16.mxu0 %v11089
    %11292 = vmatpush1.bf16.msra.mxu0 %v11088
    %11293 = vmatprep.subr.bf16.mxu0 %v11093
    %11294 = vmatpush1.bf16.msra.mxu0 %v11092
    %11295 = vmatprep.mubr.bf16.mxu0 %v11022
    %11296 = vmatmul.mubr.bf16.gmra.mrb[0].mxu0 %v11021
    %v11297 = vpop.f32.mrb[0].mxu0
    %v11298 = vadd.f32 %v11172, %v11297
    %v11299 = vpop.f32.mrb[0].mxu0
    %v11300 = vadd.f32 %v11176, %v11299
    %v11301 = vpop.f32.mrb[0].mxu0
    %v11302 = vpop.f32.mrb[0].mxu0
    %11303 = vdwg.mxu0
    %11304 = vmatprep.subr.bf16.mxu0 %v11097
    %11305 = vmatpush1.bf16.msra.mxu0 %v11096
    %11306 = vmatprep.subr.bf16.mxu0 %v11101
    %11307 = vmatpush1.bf16.msra.mxu0 %v11100
    %11308 = vmatprep.subr.bf16.mxu0 %v11105
    %11309 = vmatpush1.bf16.msra.mxu0 %v11104
    %11310 = vmatprep.subr.bf16.mxu0 %v11109
    %11311 = vmatpush1.bf16.msra.mxu0 %v11108
    %11312 = vmatprep.subr.bf16.mxu0 %v11113
    %11313 = vmatpush1.bf16.msra.mxu0 %v11112
    %11314 = vmatprep.subr.bf16.mxu0 %v11117
    %11315 = vmatpush1.bf16.msra.mxu0 %v11116
    %11316 = vmatprep.subr.bf16.mxu0 %v11121
    %11317 = vmatpush1.bf16.msra.mxu0 %v11120
    %11318 = vmatprep.subr.bf16.mxu0 %v11125
    %11319 = vmatpush1.bf16.msra.mxu0 %v11124
    %11320 = vmatprep.subr.bf16.mxu0 %v11129
    %11321 = vmatpush1.bf16.msra.mxu0 %v11128
    %11322 = vmatprep.subr.bf16.mxu0 %v11133
    %11323 = vmatpush1.bf16.msra.mxu0 %v11132
    %11324 = vmatprep.subr.bf16.mxu0 %v11137
    %11325 = vmatpush1.bf16.msra.mxu0 %v11136
    %11326 = vmatprep.subr.bf16.mxu0 %v11141
    %11327 = vmatpush1.bf16.msra.mxu0 %v11140
    %11328 = vmatprep.subr.bf16.mxu0 %v11145
    %11329 = vmatpush1.bf16.msra.mxu0 %v11144
    %11330 = vmatprep.subr.bf16.mxu0 %v11149
    %11331 = vmatpush1.bf16.msra.mxu0 %v11148
    %11332 = vmatprep.subr.bf16.mxu0 %v11153
    %11333 = vmatpush1.bf16.msra.mxu0 %v11152
    %11334 = vmatprep.subr.bf16.mxu0 %v11157
    %11335 = vmatpush1.bf16.msra.mxu0 %v11156
    %11336 = vmatprep.mubr.bf16.mxu0 %v11024
    %11337 = vmatmul.mubr.bf16.gmra.mrb[0].mxu0 %v11023
    %v11338 = vpop.f32.mrb[0].mxu0
    %v11339 = vadd.f32 %v11298, %v11338
    %v11340 = vpop.f32.mrb[0].mxu0
    %v11341 = vadd.f32 %v11300, %v11340
    %v11342 = vpop.f32.mrb[0].mxu0
    %v11343 = vpop.f32.mrb[0].mxu0
    %11344 = vdwg.mxu0
    %v11345 = vmax.f32 %v11257, 0.0
    %v11346 = vmax.f32 %v11259, 0.0
    %v11347 = vmax.f32 %v11339, 0.0
    %v11348 = vmax.f32 %v11341, 0.0
    %v11349 = vpack.c.bf16 %v11345, %v11345
    %v11350 = vpack.c.bf16 %v11346, %v11346
    %v11351 = vpack.c.bf16 %v11347, %v11347
    %v11352 = vpack.c.bf16 %v11348, %v11348
    %s11353 = scalar_lea.vmem [#allocation2], 1024
    %v11354 = vld [vmem:[%s11353] sm:$0xff]
    %v11355 = vld [vmem:[%s11353 + $0x8] sm:$0xff]
    %v11356 = vld [vmem:[%s11353 + $0x10] sm:$0xff]
    %v11357 = vld [vmem:[%s11353 + $0x18] sm:$0xff]
    %v11358 = vld [vmem:[%s11353 + $0x20] sm:$0xff]
    %v11359 = vld [vmem:[%s11353 + $0x28] sm:$0xff]
    %v11360 = vld [vmem:[%s11353 + $0x30] sm:$0xff]
    %v11361 = vld [vmem:[%s11353 + $0x38] sm:$0xff]
    %v11362 = vld [vmem:[%s11353 + $0x40] sm:$0xff]
    %v11363 = vld [vmem:[%s11353 + $0x48] sm:$0xff]
    %v11364 = vld [vmem:[%s11353 + $0x50] sm:$0xff]
    %v11365 = vld [vmem:[%s11353 + $0x58] sm:$0xff]
    %v11366 = vld [vmem:[%s11353 + $0x60] sm:$0xff]
    %v11367 = vld [vmem:[%s11353 + $0x68] sm:$0xff]
    %v11368 = vld [vmem:[%s11353 + $0x70] sm:$0xff]
    %v11369 = vld [vmem:[%s11353 + $0x78] sm:$0xff]
    %v11370 = vld [vmem:[%s11353 + $0x80] sm:$0xff]
    %v11371 = vld [vmem:[%s11353 + $0x88] sm:$0xff]
    %v11372 = vld [vmem:[%s11353 + $0x90] sm:$0xff]
    %v11373 = vld [vmem:[%s11353 + $0x98] sm:$0xff]
    %v11374 = vld [vmem:[%s11353 + $0xa0] sm:$0xff]
    %v11375 = vld [vmem:[%s11353 + $0xa8] sm:$0xff]
    %v11376 = vld [vmem:[%s11353 + $0xb0] sm:$0xff]
    %v11377 = vld [vmem:[%s11353 + $0xb8] sm:$0xff]
    %v11378 = vld [vmem:[%s11353 + $0xc0] sm:$0xff]
    %v11379 = vld [vmem:[%s11353 + $0xc8] sm:$0xff]
    %v11380 = vld [vmem:[%s11353 + $0xd0] sm:$0xff]
    %v11381 = vld [vmem:[%s11353 + $0xd8] sm:$0xff]
    %v11382 = vld [vmem:[%s11353 + $0xe0] sm:$0xff]
    %v11383 = vld [vmem:[%s11353 + $0xe8] sm:$0xff]
    %v11384 = vld [vmem:[%s11353 + $0xf0] sm:$0xff]
    %v11385 = vld [vmem:[%s11353 + $0xf8] sm:$0xff]
    %v11386 = vld [vmem:[%s11353 + $0x100] sm:$0xff]
    %v11387 = vld [vmem:[%s11353 + $0x108] sm:$0xff]
    %v11388 = vld [vmem:[%s11353 + $0x110] sm:$0xff]
    %v11389 = vld [vmem:[%s11353 + $0x118] sm:$0xff]
    %v11390 = vld [vmem:[%s11353 + $0x120] sm:$0xff]
    %v11391 = vld [vmem:[%s11353 + $0x128] sm:$0xff]
    %v11392 = vld [vmem:[%s11353 + $0x130] sm:$0xff]
    %v11393 = vld [vmem:[%s11353 + $0x138] sm:$0xff]
    %v11394 = vld [vmem:[%s11353 + $0x140] sm:$0xff]
    %v11395 = vld [vmem:[%s11353 + $0x148] sm:$0xff]
    %v11396 = vld [vmem:[%s11353 + $0x150] sm:$0xff]
    %v11397 = vld [vmem:[%s11353 + $0x158] sm:$0xff]
    %v11398 = vld [vmem:[%s11353 + $0x160] sm:$0xff]
    %v11399 = vld [vmem:[%s11353 + $0x168] sm:$0xff]
    %v11400 = vld [vmem:[%s11353 + $0x170] sm:$0xff]
    %v11401 = vld [vmem:[%s11353 + $0x178] sm:$0xff]
    %v11402 = vld [vmem:[%s11353 + $0x180] sm:$0xff]
    %v11403 = vld [vmem:[%s11353 + $0x188] sm:$0xff]
    %v11404 = vld [vmem:[%s11353 + $0x190] sm:$0xff]
    %v11405 = vld [vmem:[%s11353 + $0x198] sm:$0xff]
    %v11406 = vld [vmem:[%s11353 + $0x1a0] sm:$0xff]
    %v11407 = vld [vmem:[%s11353 + $0x1a8] sm:$0xff]
    %v11408 = vld [vmem:[%s11353 + $0x1b0] sm:$0xff]
    %v11409 = vld [vmem:[%s11353 + $0x1b8] sm:$0xff]
    %v11410 = vld [vmem:[%s11353 + $0x1c0] sm:$0xff]
    %v11411 = vld [vmem:[%s11353 + $0x1c8] sm:$0xff]
    %v11412 = vld [vmem:[%s11353 + $0x1d0] sm:$0xff]
    %v11413 = vld [vmem:[%s11353 + $0x1d8] sm:$0xff]
    %v11414 = vld [vmem:[%s11353 + $0x1e0] sm:$0xff]
    %v11415 = vld [vmem:[%s11353 + $0x1e8] sm:$0xff]
    %v11416 = vld [vmem:[%s11353 + $0x1f0] sm:$0xff]
    %v11417 = vld [vmem:[%s11353 + $0x1f8] sm:$0xff]
    %v11418 = vld [vmem:[%s11353 + $0x200] sm:$0xff]
    %v11419 = vld [vmem:[%s11353 + $0x208] sm:$0xff]
    %v11420 = vld [vmem:[%s11353 + $0x210] sm:$0xff]
    %v11421 = vld [vmem:[%s11353 + $0x218] sm:$0xff]
    %v11422 = vld [vmem:[%s11353 + $0x220] sm:$0xff]
    %v11423 = vld [vmem:[%s11353 + $0x228] sm:$0xff]
    %v11424 = vld [vmem:[%s11353 + $0x230] sm:$0xff]
    %v11425 = vld [vmem:[%s11353 + $0x238] sm:$0xff]
    %v11426 = vld [vmem:[%s11353 + $0x240] sm:$0xff]
    %v11427 = vld [vmem:[%s11353 + $0x248] sm:$0xff]
    %v11428 = vld [vmem:[%s11353 + $0x250] sm:$0xff]
    %v11429 = vld [vmem:[%s11353 + $0x258] sm:$0xff]
    %v11430 = vld [vmem:[%s11353 + $0x260] sm:$0xff]
    %v11431 = vld [vmem:[%s11353 + $0x268] sm:$0xff]
    %v11432 = vld [vmem:[%s11353 + $0x270] sm:$0xff]
    %v11433 = vld [vmem:[%s11353 + $0x278] sm:$0xff]
    %v11434 = vld [vmem:[%s11353 + $0x280] sm:$0xff]
    %v11435 = vld [vmem:[%s11353 + $0x288] sm:$0xff]
    %v11436 = vld [vmem:[%s11353 + $0x290] sm:$0xff]
    %v11437 = vld [vmem:[%s11353 + $0x298] sm:$0xff]
    %v11438 = vld [vmem:[%s11353 + $0x2a0] sm:$0xff]
    %v11439 = vld [vmem:[%s11353 + $0x2a8] sm:$0xff]
    %v11440 = vld [vmem:[%s11353 + $0x2b0] sm:$0xff]
    %v11441 = vld [vmem:[%s11353 + $0x2b8] sm:$0xff]
    %v11442 = vld [vmem:[%s11353 + $0x2c0] sm:$0xff]
    %v11443 = vld [vmem:[%s11353 + $0x2c8] sm:$0xff]
    %v11444 = vld [vmem:[%s11353 + $0x2d0] sm:$0xff]
    %v11445 = vld [vmem:[%s11353 + $0x2d8] sm:$0xff]
    %v11446 = vld [vmem:[%s11353 + $0x2e0] sm:$0xff]
    %v11447 = vld [vmem:[%s11353 + $0x2e8] sm:$0xff]
    %v11448 = vld [vmem:[%s11353 + $0x2f0] sm:$0xff]
    %v11449 = vld [vmem:[%s11353 + $0x2f8] sm:$0xff]
    %v11450 = vld [vmem:[%s11353 + $0x300] sm:$0xff]
    %v11451 = vld [vmem:[%s11353 + $0x308] sm:$0xff]
    %v11452 = vld [vmem:[%s11353 + $0x310] sm:$0xff]
    %v11453 = vld [vmem:[%s11353 + $0x318] sm:$0xff]
    %v11454 = vld [vmem:[%s11353 + $0x320] sm:$0xff]
    %v11455 = vld [vmem:[%s11353 + $0x328] sm:$0xff]
    %v11456 = vld [vmem:[%s11353 + $0x330] sm:$0xff]
    %v11457 = vld [vmem:[%s11353 + $0x338] sm:$0xff]
    %v11458 = vld [vmem:[%s11353 + $0x340] sm:$0xff]
    %v11459 = vld [vmem:[%s11353 + $0x348] sm:$0xff]
    %v11460 = vld [vmem:[%s11353 + $0x350] sm:$0xff]
    %v11461 = vld [vmem:[%s11353 + $0x358] sm:$0xff]
    %v11462 = vld [vmem:[%s11353 + $0x360] sm:$0xff]
    %v11463 = vld [vmem:[%s11353 + $0x368] sm:$0xff]
    %v11464 = vld [vmem:[%s11353 + $0x370] sm:$0xff]
    %v11465 = vld [vmem:[%s11353 + $0x378] sm:$0xff]
    %v11466 = vld [vmem:[%s11353 + $0x380] sm:$0xff]
    %v11467 = vld [vmem:[%s11353 + $0x388] sm:$0xff]
    %v11468 = vld [vmem:[%s11353 + $0x390] sm:$0xff]
    %v11469 = vld [vmem:[%s11353 + $0x398] sm:$0xff]
    %v11470 = vld [vmem:[%s11353 + $0x3a0] sm:$0xff]
    %v11471 = vld [vmem:[%s11353 + $0x3a8] sm:$0xff]
    %v11472 = vld [vmem:[%s11353 + $0x3b0] sm:$0xff]
    %v11473 = vld [vmem:[%s11353 + $0x3b8] sm:$0xff]
    %v11474 = vld [vmem:[%s11353 + $0x3c0] sm:$0xff]
    %v11475 = vld [vmem:[%s11353 + $0x3c8] sm:$0xff]
    %v11476 = vld [vmem:[%s11353 + $0x3d0] sm:$0xff]
    %v11477 = vld [vmem:[%s11353 + $0x3d8] sm:$0xff]
    %v11478 = vld [vmem:[%s11353 + $0x3e0] sm:$0xff]
    %v11479 = vld [vmem:[%s11353 + $0x3e8] sm:$0xff]
    %v11480 = vld [vmem:[%s11353 + $0x3f0] sm:$0xff]
    %v11481 = vld [vmem:[%s11353 + $0x3f8] sm:$0xff]
    %s11482 = scalar_lea.vmem [#allocation6], 64
    %v11483 = vld [vmem:[%s11482] ss:$8 sm:$0xf]
    %v11485 = vlaneseq
    %v11486 = vshrl.u32 %v11485, 7
    %v11487 = vsub.s32 0, %v11486
    %v11488 = vrot.slane %v11483, %v11487
    %v11489 = vlaneseq
    %v11490 = vshrl.u32 %v11489, 7
    %v11491 = vsub.s32 1, %v11490
    %v11492 = vrot.slane %v11483, %v11491
    %v11493 = vlaneseq
    %v11494 = vshrl.u32 %v11493, 7
    %v11495 = vsub.s32 2, %v11494
    %v11496 = vrot.slane %v11483, %v11495
    %v11497 = vlaneseq
    %v11498 = vshrl.u32 %v11497, 7
    %v11499 = vsub.s32 3, %v11498
    %v11500 = vrot.slane %v11483, %v11499
    %11505 = vmatprep.subr.bf16.mxu0 %v11355
    %11506 = vmatpush1.bf16.msra.mxu0 %v11354
    %11507 = vmatprep.subr.bf16.mxu0 %v11359
    %11508 = vmatpush1.bf16.msra.mxu0 %v11358
    %11509 = vmatprep.subr.bf16.mxu0 %v11363
    %11510 = vmatpush1.bf16.msra.mxu0 %v11362
    %11511 = vmatprep.subr.bf16.mxu0 %v11367
    %11512 = vmatpush1.bf16.msra.mxu0 %v11366
    %11513 = vmatprep.subr.bf16.mxu0 %v11371
    %11514 = vmatpush1.bf16.msra.mxu0 %v11370
    %11515 = vmatprep.subr.bf16.mxu0 %v11375
    %11516 = vmatpush1.bf16.msra.mxu0 %v11374
    %11517 = vmatprep.subr.bf16.mxu0 %v11379
    %11518 = vmatpush1.bf16.msra.mxu0 %v11378
    %11519 = vmatprep.subr.bf16.mxu0 %v11383
    %11520 = vmatpush1.bf16.msra.mxu0 %v11382
    %11521 = vmatprep.subr.bf16.mxu0 %v11387
    %11522 = vmatpush1.bf16.msra.mxu0 %v11386
    %11523 = vmatprep.subr.bf16.mxu0 %v11391
    %11524 = vmatpush1.bf16.msra.mxu0 %v11390
    %11525 = vmatprep.subr.bf16.mxu0 %v11395
    %11526 = vmatpush1.bf16.msra.mxu0 %v11394
    %11527 = vmatprep.subr.bf16.mxu0 %v11399
    %11528 = vmatpush1.bf16.msra.mxu0 %v11398
    %11529 = vmatprep.subr.bf16.mxu0 %v11403
    %11530 = vmatpush1.bf16.msra.mxu0 %v11402
    %11531 = vmatprep.subr.bf16.mxu0 %v11407
    %11532 = vmatpush1.bf16.msra.mxu0 %v11406
    %11533 = vmatprep.subr.bf16.mxu0 %v11411
    %11534 = vmatpush1.bf16.msra.mxu0 %v11410
    %11535 = vmatprep.subr.bf16.mxu0 %v11415
    %11536 = vmatpush1.bf16.msra.mxu0 %v11414
    %11537 = vmatprep.mubr.bf16.mxu0 %v11350
    %11538 = vmatmul.mubr.bf16.gmra.mrb[0].mxu0 %v11349
    %v11539 = vpop.f32.mrb[0].mxu0
    %v11540 = vadd.f32 %v11488, %v11539
    %v11541 = vpop.f32.mrb[0].mxu0
    %v11542 = vadd.f32 %v11492, %v11541
    %v11543 = vpop.f32.mrb[0].mxu0
    %v11544 = vpop.f32.mrb[0].mxu0
    %11545 = vdwg.mxu0
    %11546 = vmatprep.subr.bf16.mxu0 %v11419
    %11547 = vmatpush1.bf16.msra.mxu0 %v11418
    %11548 = vmatprep.subr.bf16.mxu0 %v11423
    %11549 = vmatpush1.bf16.msra.mxu0 %v11422
    %11550 = vmatprep.subr.bf16.mxu0 %v11427
    %11551 = vmatpush1.bf16.msra.mxu0 %v11426
    %11552 = vmatprep.subr.bf16.mxu0 %v11431
    %11553 = vmatpush1.bf16.msra.mxu0 %v11430
    %11554 = vmatprep.subr.bf16.mxu0 %v11435
    %11555 = vmatpush1.bf16.msra.mxu0 %v11434
    %11556 = vmatprep.subr.bf16.mxu0 %v11439
    %11557 = vmatpush1.bf16.msra.mxu0 %v11438
    %11558 = vmatprep.subr.bf16.mxu0 %v11443
    %11559 = vmatpush1.bf16.msra.mxu0 %v11442
    %11560 = vmatprep.subr.bf16.mxu0 %v11447
    %11561 = vmatpush1.bf16.msra.mxu0 %v11446
    %11562 = vmatprep.subr.bf16.mxu0 %v11451
    %11563 = vmatpush1.bf16.msra.mxu0 %v11450
    %11564 = vmatprep.subr.bf16.mxu0 %v11455
    %11565 = vmatpush1.bf16.msra.mxu0 %v11454
    %11566 = vmatprep.subr.bf16.mxu0 %v11459
    %11567 = vmatpush1.bf16.msra.mxu0 %v11458
    %11568 = vmatprep.subr.bf16.mxu0 %v11463
    %11569 = vmatpush1.bf16.msra.mxu0 %v11462
    %11570 = vmatprep.subr.bf16.mxu0 %v11467
    %11571 = vmatpush1.bf16.msra.mxu0 %v11466
    %11572 = vmatprep.subr.bf16.mxu0 %v11471
    %11573 = vmatpush1.bf16.msra.mxu0 %v11470
    %11574 = vmatprep.subr.bf16.mxu0 %v11475
    %11575 = vmatpush1.bf16.msra.mxu0 %v11474
    %11576 = vmatprep.subr.bf16.mxu0 %v11479
    %11577 = vmatpush1.bf16.msra.mxu0 %v11478
    %11578 = vmatprep.mubr.bf16.mxu0 %v11352
    %11579 = vmatmul.mubr.bf16.gmra.mrb[0].mxu0 %v11351
    %v11580 = vpop.f32.mrb[0].mxu0
    %v11581 = vadd.f32 %v11540, %v11580
    %v11582 = vpop.f32.mrb[0].mxu0
    %v11583 = vadd.f32 %v11542, %v11582
    %v11584 = vpop.f32.mrb[0].mxu0
    %v11585 = vpop.f32.mrb[0].mxu0
    %11586 = vdwg.mxu0
    %11587 = vmatprep.subr.bf16.mxu0 %v11357
    %11588 = vmatpush1.bf16.msra.mxu0 %v11356
    %11589 = vmatprep.subr.bf16.mxu0 %v11361
    %11590 = vmatpush1.bf16.msra.mxu0 %v11360
    %11591 = vmatprep.subr.bf16.mxu0 %v11365
    %11592 = vmatpush1.bf16.msra.mxu0 %v11364
    %11593 = vmatprep.subr.bf16.mxu0 %v11369
    %11594 = vmatpush1.bf16.msra.mxu0 %v11368
    %11595 = vmatprep.subr.bf16.mxu0 %v11373
    %11596 = vmatpush1.bf16.msra.mxu0 %v11372
    %11597 = vmatprep.subr.bf16.mxu0 %v11377
    %11598 = vmatpush1.bf16.msra.mxu0 %v11376
    %11599 = vmatprep.subr.bf16.mxu0 %v11381
    %11600 = vmatpush1.bf16.msra.mxu0 %v11380
    %11601 = vmatprep.subr.bf16.mxu0 %v11385
    %11602 = vmatpush1.bf16.msra.mxu0 %v11384
    %11603 = vmatprep.subr.bf16.mxu0 %v11389
    %11604 = vmatpush1.bf16.msra.mxu0 %v11388
    %11605 = vmatprep.subr.bf16.mxu0 %v11393
    %11606 = vmatpush1.bf16.msra.mxu0 %v11392
    %11607 = vmatprep.subr.bf16.mxu0 %v11397
    %11608 = vmatpush1.bf16.msra.mxu0 %v11396
    %11609 = vmatprep.subr.bf16.mxu0 %v11401
    %11610 = vmatpush1.bf16.msra.mxu0 %v11400
    %11611 = vmatprep.subr.bf16.mxu0 %v11405
    %11612 = vmatpush1.bf16.msra.mxu0 %v11404
    %11613 = vmatprep.subr.bf16.mxu0 %v11409
    %11614 = vmatpush1.bf16.msra.mxu0 %v11408
    %11615 = vmatprep.subr.bf16.mxu0 %v11413
    %11616 = vmatpush1.bf16.msra.mxu0 %v11412
    %11617 = vmatprep.subr.bf16.mxu0 %v11417
    %11618 = vmatpush1.bf16.msra.mxu0 %v11416
    %11619 = vmatprep.mubr.bf16.mxu0 %v11350
    %11620 = vmatmul.mubr.bf16.gmra.mrb[0].mxu0 %v11349
    %v11621 = vpop.f32.mrb[0].mxu0
    %v11622 = vadd.f32 %v11496, %v11621
    %v11623 = vpop.f32.mrb[0].mxu0
    %v11624 = vadd.f32 %v11500, %v11623
    %v11625 = vpop.f32.mrb[0].mxu0
    %v11626 = vpop.f32.mrb[0].mxu0
    %11627 = vdwg.mxu0
    %11628 = vmatprep.subr.bf16.mxu0 %v11421
    %11629 = vmatpush1.bf16.msra.mxu0 %v11420
    %11630 = vmatprep.subr.bf16.mxu0 %v11425
    %11631 = vmatpush1.bf16.msra.mxu0 %v11424
    %11632 = vmatprep.subr.bf16.mxu0 %v11429
    %11633 = vmatpush1.bf16.msra.mxu0 %v11428
    %11634 = vmatprep.subr.bf16.mxu0 %v11433
    %11635 = vmatpush1.bf16.msra.mxu0 %v11432
    %11636 = vmatprep.subr.bf16.mxu0 %v11437
    %11637 = vmatpush1.bf16.msra.mxu0 %v11436
    %11638 = vmatprep.subr.bf16.mxu0 %v11441
    %11639 = vmatpush1.bf16.msra.mxu0 %v11440
    %11640 = vmatprep.subr.bf16.mxu0 %v11445
    %11641 = vmatpush1.bf16.msra.mxu0 %v11444
    %11642 = vmatprep.subr.bf16.mxu0 %v11449
    %11643 = vmatpush1.bf16.msra.mxu0 %v11448
    %11644 = vmatprep.subr.bf16.mxu0 %v11453
    %11645 = vmatpush1.bf16.msra.mxu0 %v11452
    %11646 = vmatprep.subr.bf16.mxu0 %v11457
    %11647 = vmatpush1.bf16.msra.mxu0 %v11456
    %11648 = vmatprep.subr.bf16.mxu0 %v11461
    %11649 = vmatpush1.bf16.msra.mxu0 %v11460
    %11650 = vmatprep.subr.bf16.mxu0 %v11465
    %11651 = vmatpush1.bf16.msra.mxu0 %v11464
    %11652 = vmatprep.subr.bf16.mxu0 %v11469
    %11653 = vmatpush1.bf16.msra.mxu0 %v11468
    %11654 = vmatprep.subr.bf16.mxu0 %v11473
    %11655 = vmatpush1.bf16.msra.mxu0 %v11472
    %11656 = vmatprep.subr.bf16.mxu0 %v11477
    %11657 = vmatpush1.bf16.msra.mxu0 %v11476
    %11658 = vmatprep.subr.bf16.mxu0 %v11481
    %11659 = vmatpush1.bf16.msra.mxu0 %v11480
    %11660 = vmatprep.mubr.bf16.mxu0 %v11352
    %11661 = vmatmul.mubr.bf16.gmra.mrb[0].mxu0 %v11351
    %v11662 = vpop.f32.mrb[0].mxu0
    %v11663 = vadd.f32 %v11622, %v11662
    %v11664 = vpop.f32.mrb[0].mxu0
    %v11665 = vadd.f32 %v11624, %v11664
    %v11666 = vpop.f32.mrb[0].mxu0
    %v11667 = vpop.f32.mrb[0].mxu0
    %11668 = vdwg.mxu0
    %v11669 = vmax.f32 %v11581, 0.0
    %v11670 = vmax.f32 %v11583, 0.0
    %v11671 = vmax.f32 %v11663, 0.0
    %v11672 = vmax.f32 %v11665, 0.0
    %v11673 = vpack.c.bf16 %v11669, %v11669
    %v11674 = vpack.c.bf16 %v11670, %v11670
    %v11675 = vpack.c.bf16 %v11671, %v11671
    %v11676 = vpack.c.bf16 %v11672, %v11672
    %s11677 = scalar_lea.vmem [#allocation2], 2048
    %v11678 = vld [vmem:[%s11677] sm:$0xff]
    %v11679 = vld [vmem:[%s11677 + $0x8] sm:$0xff]
    %v11680 = vld [vmem:[%s11677 + $0x10] sm:$0xff]
    %v11681 = vld [vmem:[%s11677 + $0x18] sm:$0xff]
    %v11682 = vld [vmem:[%s11677 + $0x20] sm:$0xff]
    %v11683 = vld [vmem:[%s11677 + $0x28] sm:$0xff]
    %v11684 = vld [vmem:[%s11677 + $0x30] sm:$0xff]
    %v11685 = vld [vmem:[%s11677 + $0x38] sm:$0xff]
    %v11686 = vld [vmem:[%s11677 + $0x40] sm:$0xff]
    %v11687 = vld [vmem:[%s11677 + $0x48] sm:$0xff]
    %v11688 = vld [vmem:[%s11677 + $0x50] sm:$0xff]
    %v11689 = vld [vmem:[%s11677 + $0x58] sm:$0xff]
    %v11690 = vld [vmem:[%s11677 + $0x60] sm:$0xff]
    %v11691 = vld [vmem:[%s11677 + $0x68] sm:$0xff]
    %v11692 = vld [vmem:[%s11677 + $0x70] sm:$0xff]
    %v11693 = vld [vmem:[%s11677 + $0x78] sm:$0xff]
    %v11694 = vld [vmem:[%s11677 + $0x80] sm:$0xff]
    %v11695 = vld [vmem:[%s11677 + $0x88] sm:$0xff]
    %v11696 = vld [vmem:[%s11677 + $0x90] sm:$0xff]
    %v11697 = vld [vmem:[%s11677 + $0x98] sm:$0xff]
    %v11698 = vld [vmem:[%s11677 + $0xa0] sm:$0xff]
    %v11699 = vld [vmem:[%s11677 + $0xa8] sm:$0xff]
    %v11700 = vld [vmem:[%s11677 + $0xb0] sm:$0xff]
    %v11701 = vld [vmem:[%s11677 + $0xb8] sm:$0xff]
    %v11702 = vld [vmem:[%s11677 + $0xc0] sm:$0xff]
    %v11703 = vld [vmem:[%s11677 + $0xc8] sm:$0xff]
    %v11704 = vld [vmem:[%s11677 + $0xd0] sm:$0xff]
    %v11705 = vld [vmem:[%s11677 + $0xd8] sm:$0xff]
    %v11706 = vld [vmem:[%s11677 + $0xe0] sm:$0xff]
    %v11707 = vld [vmem:[%s11677 + $0xe8] sm:$0xff]
    %v11708 = vld [vmem:[%s11677 + $0xf0] sm:$0xff]
    %v11709 = vld [vmem:[%s11677 + $0xf8] sm:$0xff]
    %v11710 = vld [vmem:[%s11677 + $0x100] sm:$0xff]
    %v11711 = vld [vmem:[%s11677 + $0x108] sm:$0xff]
    %v11712 = vld [vmem:[%s11677 + $0x110] sm:$0xff]
    %v11713 = vld [vmem:[%s11677 + $0x118] sm:$0xff]
    %v11714 = vld [vmem:[%s11677 + $0x120] sm:$0xff]
    %v11715 = vld [vmem:[%s11677 + $0x128] sm:$0xff]
    %v11716 = vld [vmem:[%s11677 + $0x130] sm:$0xff]
    %v11717 = vld [vmem:[%s11677 + $0x138] sm:$0xff]
    %v11718 = vld [vmem:[%s11677 + $0x140] sm:$0xff]
    %v11719 = vld [vmem:[%s11677 + $0x148] sm:$0xff]
    %v11720 = vld [vmem:[%s11677 + $0x150] sm:$0xff]
    %v11721 = vld [vmem:[%s11677 + $0x158] sm:$0xff]
    %v11722 = vld [vmem:[%s11677 + $0x160] sm:$0xff]
    %v11723 = vld [vmem:[%s11677 + $0x168] sm:$0xff]
    %v11724 = vld [vmem:[%s11677 + $0x170] sm:$0xff]
    %v11725 = vld [vmem:[%s11677 + $0x178] sm:$0xff]
    %v11726 = vld [vmem:[%s11677 + $0x180] sm:$0xff]
    %v11727 = vld [vmem:[%s11677 + $0x188] sm:$0xff]
    %v11728 = vld [vmem:[%s11677 + $0x190] sm:$0xff]
    %v11729 = vld [vmem:[%s11677 + $0x198] sm:$0xff]
    %v11730 = vld [vmem:[%s11677 + $0x1a0] sm:$0xff]
    %v11731 = vld [vmem:[%s11677 + $0x1a8] sm:$0xff]
    %v11732 = vld [vmem:[%s11677 + $0x1b0] sm:$0xff]
    %v11733 = vld [vmem:[%s11677 + $0x1b8] sm:$0xff]
    %v11734 = vld [vmem:[%s11677 + $0x1c0] sm:$0xff]
    %v11735 = vld [vmem:[%s11677 + $0x1c8] sm:$0xff]
    %v11736 = vld [vmem:[%s11677 + $0x1d0] sm:$0xff]
    %v11737 = vld [vmem:[%s11677 + $0x1d8] sm:$0xff]
    %v11738 = vld [vmem:[%s11677 + $0x1e0] sm:$0xff]
    %v11739 = vld [vmem:[%s11677 + $0x1e8] sm:$0xff]
    %v11740 = vld [vmem:[%s11677 + $0x1f0] sm:$0xff]
    %v11741 = vld [vmem:[%s11677 + $0x1f8] sm:$0xff]
    %v11742 = vld [vmem:[%s11677 + $0x200] sm:$0xff]
    %v11743 = vld [vmem:[%s11677 + $0x208] sm:$0xff]
    %v11744 = vld [vmem:[%s11677 + $0x210] sm:$0xff]
    %v11745 = vld [vmem:[%s11677 + $0x218] sm:$0xff]
    %v11746 = vld [vmem:[%s11677 + $0x220] sm:$0xff]
    %v11747 = vld [vmem:[%s11677 + $0x228] sm:$0xff]
    %v11748 = vld [vmem:[%s11677 + $0x230] sm:$0xff]
    %v11749 = vld [vmem:[%s11677 + $0x238] sm:$0xff]
    %v11750 = vld [vmem:[%s11677 + $0x240] sm:$0xff]
    %v11751 = vld [vmem:[%s11677 + $0x248] sm:$0xff]
    %v11752 = vld [vmem:[%s11677 + $0x250] sm:$0xff]
    %v11753 = vld [vmem:[%s11677 + $0x258] sm:$0xff]
    %v11754 = vld [vmem:[%s11677 + $0x260] sm:$0xff]
    %v11755 = vld [vmem:[%s11677 + $0x268] sm:$0xff]
    %v11756 = vld [vmem:[%s11677 + $0x270] sm:$0xff]
    %v11757 = vld [vmem:[%s11677 + $0x278] sm:$0xff]
    %v11758 = vld [vmem:[%s11677 + $0x280] sm:$0xff]
    %v11759 = vld [vmem:[%s11677 + $0x288] sm:$0xff]
    %v11760 = vld [vmem:[%s11677 + $0x290] sm:$0xff]
    %v11761 = vld [vmem:[%s11677 + $0x298] sm:$0xff]
    %v11762 = vld [vmem:[%s11677 + $0x2a0] sm:$0xff]
    %v11763 = vld [vmem:[%s11677 + $0x2a8] sm:$0xff]
    %v11764 = vld [vmem:[%s11677 + $0x2b0] sm:$0xff]
    %v11765 = vld [vmem:[%s11677 + $0x2b8] sm:$0xff]
    %v11766 = vld [vmem:[%s11677 + $0x2c0] sm:$0xff]
    %v11767 = vld [vmem:[%s11677 + $0x2c8] sm:$0xff]
    %v11768 = vld [vmem:[%s11677 + $0x2d0] sm:$0xff]
    %v11769 = vld [vmem:[%s11677 + $0x2d8] sm:$0xff]
    %v11770 = vld [vmem:[%s11677 + $0x2e0] sm:$0xff]
    %v11771 = vld [vmem:[%s11677 + $0x2e8] sm:$0xff]
    %v11772 = vld [vmem:[%s11677 + $0x2f0] sm:$0xff]
    %v11773 = vld [vmem:[%s11677 + $0x2f8] sm:$0xff]
    %v11774 = vld [vmem:[%s11677 + $0x300] sm:$0xff]
    %v11775 = vld [vmem:[%s11677 + $0x308] sm:$0xff]
    %v11776 = vld [vmem:[%s11677 + $0x310] sm:$0xff]
    %v11777 = vld [vmem:[%s11677 + $0x318] sm:$0xff]
    %v11778 = vld [vmem:[%s11677 + $0x320] sm:$0xff]
    %v11779 = vld [vmem:[%s11677 + $0x328] sm:$0xff]
    %v11780 = vld [vmem:[%s11677 + $0x330] sm:$0xff]
    %v11781 = vld [vmem:[%s11677 + $0x338] sm:$0xff]
    %v11782 = vld [vmem:[%s11677 + $0x340] sm:$0xff]
    %v11783 = vld [vmem:[%s11677 + $0x348] sm:$0xff]
    %v11784 = vld [vmem:[%s11677 + $0x350] sm:$0xff]
    %v11785 = vld [vmem:[%s11677 + $0x358] sm:$0xff]
    %v11786 = vld [vmem:[%s11677 + $0x360] sm:$0xff]
    %v11787 = vld [vmem:[%s11677 + $0x368] sm:$0xff]
    %v11788 = vld [vmem:[%s11677 + $0x370] sm:$0xff]
    %v11789 = vld [vmem:[%s11677 + $0x378] sm:$0xff]
    %v11790 = vld [vmem:[%s11677 + $0x380] sm:$0xff]
    %v11791 = vld [vmem:[%s11677 + $0x388] sm:$0xff]
    %v11792 = vld [vmem:[%s11677 + $0x390] sm:$0xff]
    %v11793 = vld [vmem:[%s11677 + $0x398] sm:$0xff]
    %v11794 = vld [vmem:[%s11677 + $0x3a0] sm:$0xff]
    %v11795 = vld [vmem:[%s11677 + $0x3a8] sm:$0xff]
    %v11796 = vld [vmem:[%s11677 + $0x3b0] sm:$0xff]
    %v11797 = vld [vmem:[%s11677 + $0x3b8] sm:$0xff]
    %v11798 = vld [vmem:[%s11677 + $0x3c0] sm:$0xff]
    %v11799 = vld [vmem:[%s11677 + $0x3c8] sm:$0xff]
    %v11800 = vld [vmem:[%s11677 + $0x3d0] sm:$0xff]
    %v11801 = vld [vmem:[%s11677 + $0x3d8] sm:$0xff]
    %v11802 = vld [vmem:[%s11677 + $0x3e0] sm:$0xff]
    %v11803 = vld [vmem:[%s11677 + $0x3e8] sm:$0xff]
    %v11804 = vld [vmem:[%s11677 + $0x3f0] sm:$0xff]
    %v11805 = vld [vmem:[%s11677 + $0x3f8] sm:$0xff]
    %s11806 = scalar_lea.vmem [#allocation6], 65
    %v11807 = vld [vmem:[%s11806] ss:$8 sm:$0xf]
    %v11809 = vlaneseq
    %v11810 = vshrl.u32 %v11809, 7
    %v11811 = vsub.s32 0, %v11810
    %v11812 = vrot.slane %v11807, %v11811
    %v11813 = vlaneseq
    %v11814 = vshrl.u32 %v11813, 7
    %v11815 = vsub.s32 1, %v11814
    %v11816 = vrot.slane %v11807, %v11815
    %v11817 = vlaneseq
    %v11818 = vshrl.u32 %v11817, 7
    %v11819 = vsub.s32 2, %v11818
    %v11820 = vrot.slane %v11807, %v11819
    %v11821 = vlaneseq
    %v11822 = vshrl.u32 %v11821, 7
    %v11823 = vsub.s32 3, %v11822
    %v11824 = vrot.slane %v11807, %v11823
    %11829 = vmatprep.subr.bf16.mxu0 %v11679
    %11830 = vmatpush1.bf16.msra.mxu0 %v11678
    %11831 = vmatprep.subr.bf16.mxu0 %v11683
    %11832 = vmatpush1.bf16.msra.mxu0 %v11682
    %11833 = vmatprep.subr.bf16.mxu0 %v11687
    %11834 = vmatpush1.bf16.msra.mxu0 %v11686
    %11835 = vmatprep.subr.bf16.mxu0 %v11691
    %11836 = vmatpush1.bf16.msra.mxu0 %v11690
    %11837 = vmatprep.subr.bf16.mxu0 %v11695
    %11838 = vmatpush1.bf16.msra.mxu0 %v11694
    %11839 = vmatprep.subr.bf16.mxu0 %v11699
    %11840 = vmatpush1.bf16.msra.mxu0 %v11698
    %11841 = vmatprep.subr.bf16.mxu0 %v11703
    %11842 = vmatpush1.bf16.msra.mxu0 %v11702
    %11843 = vmatprep.subr.bf16.mxu0 %v11707
    %11844 = vmatpush1.bf16.msra.mxu0 %v11706
    %11845 = vmatprep.subr.bf16.mxu0 %v11711
    %11846 = vmatpush1.bf16.msra.mxu0 %v11710
    %11847 = vmatprep.subr.bf16.mxu0 %v11715
    %11848 = vmatpush1.bf16.msra.mxu0 %v11714
    %11849 = vmatprep.subr.bf16.mxu0 %v11719
    %11850 = vmatpush1.bf16.msra.mxu0 %v11718
    %11851 = vmatprep.subr.bf16.mxu0 %v11723
    %11852 = vmatpush1.bf16.msra.mxu0 %v11722
    %11853 = vmatprep.subr.bf16.mxu0 %v11727
    %11854 = vmatpush1.bf16.msra.mxu0 %v11726
    %11855 = vmatprep.subr.bf16.mxu0 %v11731
    %11856 = vmatpush1.bf16.msra.mxu0 %v11730
    %11857 = vmatprep.subr.bf16.mxu0 %v11735
    %11858 = vmatpush1.bf16.msra.mxu0 %v11734
    %11859 = vmatprep.subr.bf16.mxu0 %v11739
    %11860 = vmatpush1.bf16.msra.mxu0 %v11738
    %11861 = vmatprep.mubr.bf16.mxu0 %v11674
    %11862 = vmatmul.mubr.bf16.gmra.mrb[0].mxu0 %v11673
    %v11863 = vpop.f32.mrb[0].mxu0
    %v11864 = vadd.f32 %v11812, %v11863
    %v11865 = vpop.f32.mrb[0].mxu0
    %v11866 = vadd.f32 %v11816, %v11865
    %v11867 = vpop.f32.mrb[0].mxu0
    %v11868 = vpop.f32.mrb[0].mxu0
    %11869 = vdwg.mxu0
    %11870 = vmatprep.subr.bf16.mxu0 %v11743
    %11871 = vmatpush1.bf16.msra.mxu0 %v11742
    %11872 = vmatprep.subr.bf16.mxu0 %v11747
    %11873 = vmatpush1.bf16.msra.mxu0 %v11746
    %11874 = vmatprep.subr.bf16.mxu0 %v11751
    %11875 = vmatpush1.bf16.msra.mxu0 %v11750
    %11876 = vmatprep.subr.bf16.mxu0 %v11755
    %11877 = vmatpush1.bf16.msra.mxu0 %v11754
    %11878 = vmatprep.subr.bf16.mxu0 %v11759
    %11879 = vmatpush1.bf16.msra.mxu0 %v11758
    %11880 = vmatprep.subr.bf16.mxu0 %v11763
    %11881 = vmatpush1.bf16.msra.mxu0 %v11762
    %11882 = vmatprep.subr.bf16.mxu0 %v11767
    %11883 = vmatpush1.bf16.msra.mxu0 %v11766
    %11884 = vmatprep.subr.bf16.mxu0 %v11771
    %11885 = vmatpush1.bf16.msra.mxu0 %v11770
    %11886 = vmatprep.subr.bf16.mxu0 %v11775
    %11887 = vmatpush1.bf16.msra.mxu0 %v11774
    %11888 = vmatprep.subr.bf16.mxu0 %v11779
    %11889 = vmatpush1.bf16.msra.mxu0 %v11778
    %11890 = vmatprep.subr.bf16.mxu0 %v11783
    %11891 = vmatpush1.bf16.msra.mxu0 %v11782
    %11892 = vmatprep.subr.bf16.mxu0 %v11787
    %11893 = vmatpush1.bf16.msra.mxu0 %v11786
    %11894 = vmatprep.subr.bf16.mxu0 %v11791
    %11895 = vmatpush1.bf16.msra.mxu0 %v11790
    %11896 = vmatprep.subr.bf16.mxu0 %v11795
    %11897 = vmatpush1.bf16.msra.mxu0 %v11794
    %11898 = vmatprep.subr.bf16.mxu0 %v11799
    %11899 = vmatpush1.bf16.msra.mxu0 %v11798
    %11900 = vmatprep.subr.bf16.mxu0 %v11803
    %11901 = vmatpush1.bf16.msra.mxu0 %v11802
    %11902 = vmatprep.mubr.bf16.mxu0 %v11676
    %11903 = vmatmul.mubr.bf16.gmra.mrb[0].mxu0 %v11675
    %v11904 = vpop.f32.mrb[0].mxu0
    %v11905 = vadd.f32 %v11864, %v11904
    %v11906 = vpop.f32.mrb[0].mxu0
    %v11907 = vadd.f32 %v11866, %v11906
    %v11908 = vpop.f32.mrb[0].mxu0
    %v11909 = vpop.f32.mrb[0].mxu0
    %11910 = vdwg.mxu0
    %11911 = vmatprep.subr.bf16.mxu0 %v11681
    %11912 = vmatpush1.bf16.msra.mxu0 %v11680
    %11913 = vmatprep.subr.bf16.mxu0 %v11685
    %11914 = vmatpush1.bf16.msra.mxu0 %v11684
    %11915 = vmatprep.subr.bf16.mxu0 %v11689
    %11916 = vmatpush1.bf16.msra.mxu0 %v11688
    %11917 = vmatprep.subr.bf16.mxu0 %v11693
    %11918 = vmatpush1.bf16.msra.mxu0 %v11692
    %11919 = vmatprep.subr.bf16.mxu0 %v11697
    %11920 = vmatpush1.bf16.msra.mxu0 %v11696
    %11921 = vmatprep.subr.bf16.mxu0 %v11701
    %11922 = vmatpush1.bf16.msra.mxu0 %v11700
    %11923 = vmatprep.subr.bf16.mxu0 %v11705
    %11924 = vmatpush1.bf16.msra.mxu0 %v11704
    %11925 = vmatprep.subr.bf16.mxu0 %v11709
    %11926 = vmatpush1.bf16.msra.mxu0 %v11708
    %11927 = vmatprep.subr.bf16.mxu0 %v11713
    %11928 = vmatpush1.bf16.msra.mxu0 %v11712
    %11929 = vmatprep.subr.bf16.mxu0 %v11717
    %11930 = vmatpush1.bf16.msra.mxu0 %v11716
    %11931 = vmatprep.subr.bf16.mxu0 %v11721
    %11932 = vmatpush1.bf16.msra.mxu0 %v11720
    %11933 = vmatprep.subr.bf16.mxu0 %v11725
    %11934 = vmatpush1.bf16.msra.mxu0 %v11724
    %11935 = vmatprep.subr.bf16.mxu0 %v11729
    %11936 = vmatpush1.bf16.msra.mxu0 %v11728
    %11937 = vmatprep.subr.bf16.mxu0 %v11733
    %11938 = vmatpush1.bf16.msra.mxu0 %v11732
    %11939 = vmatprep.subr.bf16.mxu0 %v11737
    %11940 = vmatpush1.bf16.msra.mxu0 %v11736
    %11941 = vmatprep.subr.bf16.mxu0 %v11741
    %11942 = vmatpush1.bf16.msra.mxu0 %v11740
    %11943 = vmatprep.mubr.bf16.mxu0 %v11674
    %11944 = vmatmul.mubr.bf16.gmra.mrb[0].mxu0 %v11673
    %v11945 = vpop.f32.mrb[0].mxu0
    %v11946 = vadd.f32 %v11820, %v11945
    %v11947 = vpop.f32.mrb[0].mxu0
    %v11948 = vadd.f32 %v11824, %v11947
    %v11949 = vpop.f32.mrb[0].mxu0
    %v11950 = vpop.f32.mrb[0].mxu0
    %11951 = vdwg.mxu0
    %11952 = vmatprep.subr.bf16.mxu0 %v11745
    %11953 = vmatpush1.bf16.msra.mxu0 %v11744
    %11954 = vmatprep.subr.bf16.mxu0 %v11749
    %11955 = vmatpush1.bf16.msra.mxu0 %v11748
    %11956 = vmatprep.subr.bf16.mxu0 %v11753
    %11957 = vmatpush1.bf16.msra.mxu0 %v11752
    %11958 = vmatprep.subr.bf16.mxu0 %v11757
    %11959 = vmatpush1.bf16.msra.mxu0 %v11756
    %11960 = vmatprep.subr.bf16.mxu0 %v11761
    %11961 = vmatpush1.bf16.msra.mxu0 %v11760
    %11962 = vmatprep.subr.bf16.mxu0 %v11765
    %11963 = vmatpush1.bf16.msra.mxu0 %v11764
    %11964 = vmatprep.subr.bf16.mxu0 %v11769
    %11965 = vmatpush1.bf16.msra.mxu0 %v11768
    %11966 = vmatprep.subr.bf16.mxu0 %v11773
    %11967 = vmatpush1.bf16.msra.mxu0 %v11772
    %11968 = vmatprep.subr.bf16.mxu0 %v11777
    %11969 = vmatpush1.bf16.msra.mxu0 %v11776
    %11970 = vmatprep.subr.bf16.mxu0 %v11781
    %11971 = vmatpush1.bf16.msra.mxu0 %v11780
    %11972 = vmatprep.subr.bf16.mxu0 %v11785
    %11973 = vmatpush1.bf16.msra.mxu0 %v11784
    %11974 = vmatprep.subr.bf16.mxu0 %v11789
    %11975 = vmatpush1.bf16.msra.mxu0 %v11788
    %11976 = vmatprep.subr.bf16.mxu0 %v11793
    %11977 = vmatpush1.bf16.msra.mxu0 %v11792
    %11978 = vmatprep.subr.bf16.mxu0 %v11797
    %11979 = vmatpush1.bf16.msra.mxu0 %v11796
    %11980 = vmatprep.subr.bf16.mxu0 %v11801
    %11981 = vmatpush1.bf16.msra.mxu0 %v11800
    %11982 = vmatprep.subr.bf16.mxu0 %v11805
    %11983 = vmatpush1.bf16.msra.mxu0 %v11804
    %11984 = vmatprep.mubr.bf16.mxu0 %v11676
    %11985 = vmatmul.mubr.bf16.gmra.mrb[0].mxu0 %v11675
    %v11986 = vpop.f32.mrb[0].mxu0
    %v11987 = vadd.f32 %v11946, %v11986
    %v11988 = vpop.f32.mrb[0].mxu0
    %v11989 = vadd.f32 %v11948, %v11988
    %v11990 = vpop.f32.mrb[0].mxu0
    %v11991 = vpop.f32.mrb[0].mxu0
    %11992 = vdwg.mxu0
    %v11993 = vmax.f32 %v11905, 0.0
    %v11994 = vmax.f32 %v11907, 0.0
    %v11995 = vmax.f32 %v11987, 0.0
    %v11996 = vmax.f32 %v11989, 0.0
    %v12001 = vcombine.low %v11993, %v11994
    %v12002 = vcombine.low %v11995, %v11996
    %v12004 = vunpack.c.l.s4 1983009808
    %v12005 = vunpack.c.0.s8 %v12004
    %v12006 = vlaneseq
    %v12007 = vshrl.u32 %v12006, 7
    %v12008 = vsub.s32 %v12005, %v12007
    %v12009 = vrot.slane %v12001, %v12008
    %v12011 = vunpack.c.l.s4 1983009808
    %v12012 = vunpack.c.0.s8 %v12011
    %v12013 = vlaneseq
    %v12014 = vshrl.u32 %v12013, 7
    %v12015 = vsub.s32 %v12012, %v12014
    %v12016 = vrot.slane %v12002, %v12015
    %v12017 = vcombine.low %v12009, %v12016
    %12019 = vst [vmem:[%s22] sm:$0xff] %v12017
    // Predicated region
    $region142: #{vgg_forward.1} parent=1 // pred_check
      _
    $region143: #{vgg_forward.1} parent=1 // pred_check_branch
      %12021 = sbr.rel (0) target = $region145
    $region144: #{vgg_forward.1} parent=1 // pred_region
      _
    $region145: #{vgg_forward.1} parent=1 // pred_fallthru
      _
    // Predicated region
    $region146: #{vgg_forward.1} parent=1 // pred_check
      _
    $region147: #{vgg_forward.1} parent=1 // pred_check_branch
      %12023 = sbr.rel (0) target = $region149
    $region148: #{vgg_forward.1} parent=1 // pred_region
      _
    $region149: #{vgg_forward.1} parent=1 // pred_fallthru
      _
    // Predicated region
    $region150: #{vgg_forward.1} parent=1 // pred_check
      _
    $region151: #{vgg_forward.1} parent=1 // pred_check_branch
      %12025 = sbr.rel (0) target = $region153
    $region152: #{vgg_forward.1} parent=1 // pred_region
      _
    $region153: #{vgg_forward.1} parent=1 // pred_fallthru
      _
    // Predicated region
    $region154: #{vgg_forward.1} parent=1 // pred_check
      _
    $region155: #{vgg_forward.1} parent=1 // pred_check_branch
      %12027 = sbr.rel (0) target = $region157
    $region156: #{vgg_forward.1} parent=1 // pred_region
      _
    $region157: #{vgg_forward.1} parent=1 // pred_fallthru
      _
    // Predicated region
    $region158: #{vgg_forward.1} parent=1 // pred_check
      _
    $region159: #{vgg_forward.1} parent=1 // pred_check_branch
      %12029 = sbr.rel (0) target = $region161
    $region160: #{vgg_forward.1} parent=1 // pred_region
      _
    $region161: #{vgg_forward.1} parent=1 // pred_fallthru
      _
    // Predicated region
    $region162: #{vgg_forward.1} parent=1 // pred_check
      _
    $region163: #{vgg_forward.1} parent=1 // pred_check_branch
      %12031 = sbr.rel (0) target = $region165
    $region164: #{vgg_forward.1} parent=1 // pred_region
      _
    $region165: #{vgg_forward.1} parent=1 // pred_fallthru
      _
    // Predicated region
    $region166: #{vgg_forward.1} parent=1 // pred_check
      _
    $region167: #{vgg_forward.1} parent=1 // pred_check_branch
      %12033 = sbr.rel (0) target = $region169
    $region168: #{vgg_forward.1} parent=1 // pred_region
      _
    $region169: #{vgg_forward.1} parent=1 // pred_fallthru
      _
    // Predicated region
    $region170: #{vgg_forward.1} parent=1 // pred_check
      _
    $region171: #{vgg_forward.1} parent=1 // pred_check_branch
      %12035 = sbr.rel (0) target = $region173
    $region172: #{vgg_forward.1} parent=1 // pred_region
      _
    $region173: #{vgg_forward.1} parent=1 // pred_fallthru
      _
    %12036 = vsyncpa [#allocation5], 1
    %12037 = vsyncpa [#allocation7], 1
    %12038 = vsyncpa [#allocation10], 1
    %12039 = vsyncpa [#allocation13], 1
    %12040 = vsyncpa [#allocation16], 1
    %12041 = vsyncpa [#allocation19], 1
    %12042 = vsyncpa [#allocation22], 1
    %12043 = vsyncpa [#allocation25], 1
    %12044 = vsyncpa [#allocation28], 1
  %12045 = vsyncmov [#allocation3]
  %s12046 = vpop.sfrf %12045
  %p12047 = scmp.eq.s32.totalorder %s12046, 0
  %p12048 = pneg %p12047
  %12050 = shalt.err (%p12048)

</llo_original>
